<compile_context>
chip_gen: v6e
topology: v6e:2x2x1
jax: 0.10.0
libtpu: 0.0.40
codegen_flags: <defaults>
</compile_context>

<pallas_src>
import functools

import jax
import jax.numpy as jnp
from jax.experimental import pallas as pl
from jax.experimental.pallas import tpu as pltpu


# ----------------------------- small helpers ------------------------------- #

def _round_up(n, m):
    return ((n + m - 1) // m) * m


def _pick_tile_m(m_pad, min_steps=2, max_tile=512):
    """Largest multiple-of-8 row tile <= max_tile that still yields >= min_steps
    grid steps (keeps both v7x TensorCores busy) without dropping below 8 rows.
    For large M this gives big tiles (v5e/v6e roofline) AND many steps."""
    tile = max(8, (min(max_tile, m_pad) // 8) * 8)
    while tile > 8 and (m_pad + tile - 1) // tile < min_steps:
        tile = max(8, ((tile // 2) // 8) * 8)
    return tile


def _pick_row_split(n_batch, oh, target_steps=4):
    """Split conv output rows so batch * row_split >= target_steps grid steps."""
    rs = 1
    while n_batch * rs < target_steps and oh % (rs * 2) == 0:
        rs *= 2
    return rs


# -------------------- stride-2 4x4 conv (in-kernel taps) ------------------- #

def _conv4x4s2_kernel(x_ref, w_ref, shift_ref, o_ref, *, rows_per_block, ow,
                      apply_silu):
    """Stride-2 4x4 conv over a space-to-depth input.

    x_ref:     (1, OH+1, OW+1, 4*C) bf16   whole image (index map ignores the
                                           row-block grid axis)
    w_ref:     (4, 4*C, O)          bf16   tap-major, BN scale pre-folded
    shift_ref: (1, O)               f32    folded BN shift (zeros when no BN)
    o_ref:     (1, rows_per_block, OW, O)
    """
    o_ch = o_ref.shape[-1]
    row0 = pl.program_id(1) * rows_per_block
    shift = shift_ref[...]                                  # (1, O) f32
    for local in range(rows_per_block):                     # unrolled: OH <= 16
        acc = jnp.zeros((ow, o_ch), jnp.float32)
        for qi in range(2):
            row = x_ref[0, row0 + local + qi]               # (OW+1, 4*C)
            for qj in range(2):
                acc = acc + jnp.dot(row[qj:qj + ow, :], w_ref[2 * qi + qj],
                                    preferred_element_type=jnp.float32)
        y = acc + shift
        if apply_silu:
            y = y * jax.nn.sigmoid(y)                       # SiLU in f32
        o_ref[0, local] = y.astype(o_ref.dtype)


def conv4x4_s2_p1(x_nhwc, w_tap, shift, *, apply_silu=True):
    """4x4 / stride-2 / pad-1 conv (+ folded BN shift + SiLU), NHWC.

    Wrapper does pad + space-to-depth only (1x activation traffic); the four
    kernel taps are accumulated inside the Pallas kernel on the MXU."""
    n, h, w, c = x_nhwc.shape
    assert h % 2 == 0 and w % 2 == 0
    oh, ow = h // 2, w // 2
    o_ch = w_tap.shape[-1]

    xp = jnp.pad(x_nhwc, ((0, 0), (1, 1), (1, 1), (0, 0)))
    s_h, s_w = oh + 1, ow + 1
    xs = xp.reshape(n, s_h, 2, s_w, 2, c)
    xs = jnp.transpose(xs, (0, 1, 3, 2, 4, 5)).reshape(n, s_h, s_w, 4 * c)
    xs = xs.astype(jnp.bfloat16)

    row_split = _pick_row_split(n, oh)
    rows_per_block = oh // row_split

    cost = pl.CostEstimate(
        flops=2 * n * oh * ow * (16 * c) * o_ch,
        transcendentals=n * oh * ow * o_ch if apply_silu else 0,
        bytes_accessed=xs.size * 2 + w_tap.size * 2 + shift.size * 4
        + n * oh * ow * o_ch * 2,
    )
    kern = functools.partial(_conv4x4s2_kernel, rows_per_block=rows_per_block,
                             ow=ow, apply_silu=apply_silu)
    return pl.pallas_call(
        kern,
        out_shape=jax.ShapeDtypeStruct((n, oh, ow, o_ch), jnp.bfloat16),
        grid=(n, row_split),
        in_specs=[
            pl.BlockSpec((1, s_h, s_w, 4 * c), lambda b, r: (b, 0, 0, 0)),
            pl.BlockSpec((4, 4 * c, o_ch), lambda b, r: (0, 0, 0)),
            pl.BlockSpec((1, o_ch), lambda b, r: (0, 0)),
        ],
        out_specs=pl.BlockSpec((1, rows_per_block, ow, o_ch),
                               lambda b, r: (b, r, 0, 0)),
        compiler_params=pltpu.CompilerParams(
            dimension_semantics=("parallel", "parallel")),
        cost_estimate=cost,
    )(xs, w_tap, shift)


# ----------------------- generic fused matmul (MXU) ------------------------ #

def _fused_matmul_kernel(x_ref, w_ref, shift_ref, o_ref, *, apply_silu):
    y = jnp.dot(x_ref[...], w_ref[...], preferred_element_type=jnp.float32)
    y = y + shift_ref[...]
    if apply_silu:
        y = y * jax.nn.sigmoid(y)
    o_ref[...] = y.astype(o_ref.dtype)


def fused_matmul(x, w_bf16, shift, apply_silu, out_dtype=jnp.float32):
    """out = silu?(x @ w + shift); bf16 MXU inputs, f32 accumulate/epilogue.
    M is zero-padded to a whole number of row tiles (no TM=M fallback), the
    grid is 'parallel' over M, tiles are chosen largest-first while keeping
    >= 2 steps, and vmem_limit_bytes is set explicitly (v7x-safe)."""
    m, k = x.shape
    kw_, n = w_bf16.shape
    assert kw_ == k and n % 128 == 0
    x = x.astype(jnp.bfloat16)
    shift = shift.reshape(1, n).astype(jnp.float32)

    tm = _pick_tile_m(_round_up(m, 8), min_steps=2, max_tile=512)
    m_pad = _round_up(m, tm)
    if m_pad > m:
        x = jnp.pad(x, ((0, m_pad - m), (0, 0)))
    grid = (m_pad // tm,)

    out_isize = jnp.dtype(out_dtype).itemsize
    cost = pl.CostEstimate(
        flops=2 * m_pad * k * n,
        transcendentals=m_pad * n if apply_silu else 0,
        bytes_accessed=x.size * 2 + w_bf16.size * 2 + shift.size * 4
        + m_pad * n * out_isize,
    )
    vmem_est = 2 * (tm * k * 2 + tm * n * out_isize) + k * n * 2 + n * 4 + (4 << 20)
    kern = functools.partial(_fused_matmul_kernel, apply_silu=apply_silu)
    out = pl.pallas_call(
        kern,
        out_shape=jax.ShapeDtypeStruct((m_pad, n), out_dtype),
        grid=grid,
        in_specs=[
            pl.BlockSpec((tm, k), lambda i: (i, 0)),
            pl.BlockSpec((k, n), lambda i: (0, 0)),
            pl.BlockSpec((1, n), lambda i: (0, 0)),
        ],
        out_specs=pl.BlockSpec((tm, n), lambda i: (i, 0)),
        compiler_params=pltpu.CompilerParams(
            dimension_semantics=("parallel",),
            vmem_limit_bytes=int(min(64 << 20, max(16 << 20, vmem_est)))),
        cost_estimate=cost,
    )(x, w_bf16, shift)
    return out[:m] if m_pad > m else out


# --------------------- fused tail: conv4 + fc1 + fc2 ----------------------- #

def _tail_kernel(x_ref, w4_ref, s4_ref, w5_ref, b5_ref, w6_ref, b6_ref, o_ref):
    # conv4 (1x1 output spatial -> plain matmul over the flattened map) + SiLU
    h = jnp.dot(x_ref[...], w4_ref[...], preferred_element_type=jnp.float32)
    h = h + s4_ref[...]
    h = h * jax.nn.sigmoid(h)
    # Linear(flat, 512) + SiLU   (Dropout(0.1) is identity in inference)
    h = jnp.dot(h.astype(jnp.bfloat16), w5_ref[...],
                preferred_element_type=jnp.float32) + b5_ref[...]
    h = h * jax.nn.sigmoid(h)
    # Linear(512, 2L) (columns padded to 128 for a lane-dense store)
    o_ref[...] = jnp.dot(h.astype(jnp.bfloat16), w6_ref[...],
                         preferred_element_type=jnp.float32) + b6_ref[...]


def fused_tail(x4, w4, s4, w5, b5, w6, b6):
    """conv4(1x1 spatial) + flatten + fc1 + SiLU + fc2 in one launch, tiled
    ('parallel') over padded M; the three weights stay VMEM-resident."""
    m, k4 = x4.shape
    n4 = w4.shape[1]
    n5 = w5.shape[1]
    n6 = w6.shape[1]
    assert w5.shape[0] == n4 and w6.shape[0] == n5
    x4 = x4.astype(jnp.bfloat16)

    tm = _pick_tile_m(_round_up(m, 8), min_steps=2, max_tile=256)
    m_pad = _round_up(m, tm)
    if m_pad > m:
        x4 = jnp.pad(x4, ((0, m_pad - m), (0, 0)))
    grid = (m_pad // tm,)

    cost = pl.CostEstimate(
        flops=2 * m_pad * (k4 * n4 + n4 * n5 + n5 * n6),
        transcendentals=m_pad * (n4 + n5),
        bytes_accessed=(x4.size + w4.size + w5.size + w6.size) * 2
        + (s4.size + b5.size + b6.size) * 4 + m_pad * n6 * 4,
    )
    out = pl.pallas_call(
        _tail_kernel,
        out_shape=jax.ShapeDtypeStruct((m_pad, n6), jnp.float32),
        grid=grid,
        in_specs=[
            pl.BlockSpec((tm, k4), lambda i: (i, 0)),
            pl.BlockSpec((k4, n4), lambda i: (0, 0)),
            pl.BlockSpec((1, n4), lambda i: (0, 0)),
            pl.BlockSpec((n4, n5), lambda i: (0, 0)),
            pl.BlockSpec((1, n5), lambda i: (0, 0)),
            pl.BlockSpec((n5, n6), lambda i: (0, 0)),
            pl.BlockSpec((1, n6), lambda i: (0, 0)),
        ],
        out_specs=pl.BlockSpec((tm, n6), lambda i: (i, 0)),
        compiler_params=pltpu.CompilerParams(
            dimension_semantics=("parallel",),
            vmem_limit_bytes=32 << 20),
        cost_estimate=cost,
    )(x4, w4, s4, w5, b5, w6, b6)
    return out[:m]


# -------------------- im2col (general conv4 path only) --------------------- #

def _im2col(x_nhwc, kh, kw, stride, pad):
    # XLA-side patch extraction; only used for the general oh4*ow4 > 1 path.
    # TODO(synk): replace with an in-kernel stride-1 tap accumulation too.
    if pad:
        x_nhwc = jnp.pad(x_nhwc, ((0, 0), (pad, pad), (pad, pad), (0, 0)))
    n, h, w, c = x_nhwc.shape
    oh = (h - kh) // stride + 1
    ow = (w - kw) // stride + 1
    cols = []
    for i in range(kh):
        for j in range(kw):
            cols.append(x_nhwc[:, i:i + stride * oh:stride,
                               j:j + stride * ow:stride, :])
    p = jnp.stack(cols, axis=3)
    return p.reshape(n * oh * ow, kh * kw * c), oh, ow


# ------------------------------ model params ------------------------------- #

def calculate_output_shape(input_shape, kernel_size, stride, padding):
    return tuple(
        (input_shape[d] + (2 * padding - kernel_size)) // stride + 1 for d in range(2)
    )


def fold_bn(gamma, beta, mean, var, eps=1e-5):
    scale = gamma / jnp.sqrt(var + eps)
    shift = beta - mean * scale
    return scale, shift


def _prep_conv_s2d(w_oihw, scale, shift):
    """PyTorch (O,C,4,4) stride-2 conv weight -> (4, 4*C, O) bf16 tap matrices
    matching the space-to-depth channel order, BN scale folded in."""
    o, c, kh, kw = w_oihw.shape
    assert kh == 4 and kw == 4
    w = jnp.transpose(w_oihw, (2, 3, 1, 0)) * scale[None, None, None, :]  # (i,j,c,o)
    w = w.reshape(2, 2, 2, 2, c, o)                 # (qi, di, qj, dj, c, o)
    w = jnp.transpose(w, (0, 2, 1, 3, 4, 5))        # (qi, qj, di, dj, c, o)
    w = w.reshape(4, 4 * c, o)
    return w.astype(jnp.bfloat16), shift.reshape(1, o).astype(jnp.float32)


def _prep_conv_flat(w_oihw, scale, shift):
    """PyTorch (O,C,kh,kw) weight -> (kh*kw*C, O) bf16 matrix, BN scale folded."""
    o, c, kh, kw = w_oihw.shape
    w = jnp.transpose(w_oihw, (2, 3, 1, 0)).reshape(kh * kw * c, o) * scale[None, :]
    return w.astype(jnp.bfloat16), shift.reshape(1, o).astype(jnp.float32)


def init_params(key, input_shape, num_latent_units):
    out_shape = calculate_output_shape(input_shape, 4, 2, 1)
    out_shape = calculate_output_shape(out_shape, 4, 2, 1)
    out_shape = calculate_output_shape(out_shape, 4, 2, 1)
    out_shape = calculate_output_shape(out_shape, 4, 1, 0)
    flat = 256 * out_shape[0] * out_shape[1]

    ks = jax.random.split(key, 16)
    p = {}
    p["w1"] = 0.05 * jax.random.normal(ks[0], (32, 3, 4, 4), jnp.float32)
    p["w2"] = 0.05 * jax.random.normal(ks[1], (64, 32, 4, 4), jnp.float32)
    p["w3"] = 0.05 * jax.random.normal(ks[2], (128, 64, 4, 4), jnp.float32)
    p["w4"] = 0.05 * jax.random.normal(ks[3], (256, 128, 4, 4), jnp.float32)
    for name, ch, k in (("bn2", 64, 4), ("bn3", 128, 7), ("bn4", 256, 10)):
        p[name + "_gamma"] = 1.0 + 0.1 * jax.random.normal(ks[k], (ch,), jnp.float32)
        p[name + "_beta"] = 0.1 * jax.random.normal(ks[k + 1], (ch,), jnp.float32)
        p[name + "_mean"] = 0.05 * jax.random.normal(ks[k + 2], (ch,), jnp.float32)
        p[name + "_var"] = jnp.ones((ch,), jnp.float32)
    p["fc1_w"] = 0.05 * jax.random.normal(ks[13], (flat, 512), jnp.float32)
    p["fc1_b"] = 0.01 * jax.random.normal(ks[14], (512,), jnp.float32)
    p["fc2_w"] = 0.05 * jax.random.normal(
        ks[15], (512, 2 * num_latent_units), jnp.float32)
    p["fc2_b"] = jnp.zeros((2 * num_latent_units,), jnp.float32)
    return p, flat


def prepare_kernel_params(p, input_shape, num_latent_units):
    """One-time parameter prep: fold BN into conv weights, rearrange conv1..3
    into space-to-depth tap matrices, pre-permute fc1 rows to NHWC flatten
    order, pad fc2 columns to 128 lanes, cast all weights to bf16."""
    s1 = calculate_output_shape(input_shape, 4, 2, 1)
    s2 = calculate_output_shape(s1, 4, 2, 1)
    s3 = calculate_output_shape(s2, 4, 2, 1)
    oh4, ow4 = calculate_output_shape(s3, 4, 1, 0)

    kp = {}
    # All Conv2d layers are bias=False (spec); conv1 has no BatchNorm.
    kp["conv1_w"], kp["conv1_b"] = _prep_conv_s2d(
        p["w1"], jnp.ones((32,), jnp.float32), jnp.zeros((32,), jnp.float32))
    for i, bn in ((2, "bn2"), (3, "bn3")):
        s, b = fold_bn(p[bn + "_gamma"], p[bn + "_beta"],
                       p[bn + "_mean"], p[bn + "_var"])
        kp[f"conv{i}_w"], kp[f"conv{i}_b"] = _prep_conv_s2d(p[f"w{i}"], s, b)
    s, b = fold_bn(p["bn4_gamma"], p["bn4_beta"], p["bn4_mean"], p["bn4_var"])
    kp["conv4_w"], kp["conv4_b"] = _prep_conv_flat(p["w4"], s, b)

    # fc1 rows permuted from NCHW-flatten order to NHWC-flatten order (identity
    # when the conv4 output is 1x1 spatial) -> no runtime transpose.
    flat = p["fc1_w"].shape[0]
    hw = oh4 * ow4
    ch = flat // hw
    r = jnp.arange(flat)
    old_rows = (r % ch) * hw + r // ch
    kp["fc1_w"] = p["fc1_w"][old_rows, :].astype(jnp.bfloat16)
    kp["fc1_b"] = p["fc1_b"].reshape(1, -1).astype(jnp.float32)

    n2 = 2 * num_latent_units
    n2p = _round_up(n2, 128)
    kp["fc2_w"] = jnp.pad(p["fc2_w"], ((0, 0), (0, n2p - n2))).astype(jnp.bfloat16)
    kp["fc2_b"] = jnp.pad(p["fc2_b"], ((0, n2p - n2),)).reshape(1, -1).astype(
        jnp.float32)
    return kp


# ------------------------------ forward ------------------------------------ #

def image_encoder_forward(kp, x_nchw, num_latent_units):
    # x_nchw follows the PyTorch layout; the conv pipeline runs in NHWC.
    n = x_nchw.shape[0]
    x = jnp.transpose(x_nchw, (0, 2, 3, 1)).astype(jnp.bfloat16)

    # Conv1..Conv3: stride-2 4x4 convs with in-kernel tap accumulation + SiLU
    # (BN scale folded into the tap weights, shift added in the epilogue).
    x = conv4x4_s2_p1(x, kp["conv1_w"], kp["conv1_b"])   # (N, H/2, W/2, 32)
    x = conv4x4_s2_p1(x, kp["conv2_w"], kp["conv2_b"])   # (N, H/4, W/4, 64)
    x = conv4x4_s2_p1(x, kp["conv3_w"], kp["conv3_b"])   # (N, H/8, W/8, 128)

    n_out = 2 * num_latent_units
    _, h3, w3, c3 = x.shape
    oh4, ow4 = calculate_output_shape((h3, w3), 4, 1, 0)

    if oh4 * ow4 == 1:
        # conv4's 4x4 patch covers the whole map: im2col == NHWC flatten.
        # Fused tail: conv4 + BN + SiLU + flatten + fc1 + SiLU + fc2.
        y = fused_tail(x.reshape(n, h3 * w3 * c3),
                       kp["conv4_w"], kp["conv4_b"],
                       kp["fc1_w"], kp["fc1_b"], kp["fc2_w"], kp["fc2_b"])
        y = y[:, :n_out]
    else:
        # General spatial size: conv4 as an im2col matmul; fc1_w rows were
        # pre-permuted so the NHWC flatten feeds it without a transpose.
        cols4, oh4, ow4 = _im2col(x, 4, 4, 1, 0)
        y = fused_matmul(cols4, kp["conv4_w"], kp["conv4_b"],
                         apply_silu=True, out_dtype=jnp.bfloat16)
        y = y.reshape(n, oh4 * ow4 * 256)
        y = fused_matmul(y, kp["fc1_w"], kp["fc1_b"],
                         apply_silu=True, out_dtype=jnp.bfloat16)
        y = fused_matmul(y, kp["fc2_w"], kp["fc2_b"],
                         apply_silu=False, out_dtype=jnp.float32)[:, :n_out]

    loc = y[:, :num_latent_units]
    log_var = y[:, num_latent_units:]
    return loc, log_var


# ------------------------------ main ---------------------------------------- #

if __name__ == "__main__":
    key = jax.random.PRNGKey(0)
    k_param, k_data = jax.random.split(key)

    input_shape = (32, 32)       # smallest spatial size compatible with the net
    num_latent_units = 16
    batch = 2

    params, _ = init_params(k_param, input_shape, num_latent_units)
    kp = prepare_kernel_params(params, input_shape, num_latent_units)
    x = jax.random.normal(k_data, (batch, 3, *input_shape), jnp.float32)

    fwd = jax.jit(
        functools.partial(image_encoder_forward, num_latent_units=num_latent_units)
    )
    loc, log_var = fwd(kp, x)
    jax.block_until_ready((loc, log_var))

    assert loc.shape == (batch, num_latent_units)
    assert log_var.shape == (batch, num_latent_units)
    print("KERNEL_OK")
</pallas_src>

<mosaic_0001>
module attributes {stable_mosaic.version = 11 : i64} {
  func.func @_conv4x4s2_kernel(%arg0: i32, %arg1: i32, %arg2: memref<1x17x17x12xbf16, #tpu.memory_space<vmem>>, %arg3: memref<4x12x32xbf16, #tpu.memory_space<vmem>>, %arg4: memref<1x32xf32, #tpu.memory_space<vmem>>, %arg5: memref<1x8x16x32xbf16, #tpu.memory_space<vmem>>) attributes {dimension_semantics = [#tpu.dimension_semantics<parallel>, #tpu.dimension_semantics<parallel>], iteration_bounds = array<i64: 2, 2>, scalar_prefetch = 0 : i64, scratch_operands = 0 : i64, tpu.core_type = #tpu.core_type<tc>, window_params = [{transform_indices = @transform_0, window_bounds = array<i64: 1, 17, 17, 12>}, {pipeline_mode = #tpu.pipeline_mode<synchronous>, transform_indices = @transform_1, window_bounds = array<i64: 4, 12, 32>}, {pipeline_mode = #tpu.pipeline_mode<synchronous>, transform_indices = @transform_2, window_bounds = array<i64: 1, 32>}, {transform_indices = @transform_3, window_bounds = array<i64: 1, 8, 16, 32>}]} {
    %c8_i32 = arith.constant 8 : i32
    %0 = arith.muli %arg1, %c8_i32 : i32
    %c0 = arith.constant 0 : index
    %c0_0 = arith.constant 0 : index
    %1 = vector.load %arg4[%c0, %c0_0] : memref<1x32xf32, #tpu.memory_space<vmem>>, vector<1x32xf32>
    %cst = arith.constant 0.000000e+00 : f32
    %2 = vector.broadcast %cst : f32 to vector<16x32xf32>
    %c0_i32 = arith.constant 0 : i32
    %3 = arith.addi %0, %c0_i32 : i32
    %c0_i32_1 = arith.constant 0 : i32
    %4 = arith.addi %3, %c0_i32_1 : i32
    %c0_2 = arith.constant 0 : index
    %5 = arith.index_cast %4 : i32 to index
    %c0_3 = arith.constant 0 : index
    %c0_4 = arith.constant 0 : index
    %6 = vector.load %arg2[%c0_2, %5, %c0_3, %c0_4] : memref<1x17x17x12xbf16, #tpu.memory_space<vmem>>, vector<1x1x17x12xbf16>
    %7 = vector.shape_cast %6 : vector<1x1x17x12xbf16> to vector<17x12xbf16>
    %8 = vector.extract_strided_slice %7 {offsets = [0, 0], sizes = [16, 12], strides = [1, 1]} : vector<17x12xbf16> to vector<16x12xbf16>
    %c0_5 = arith.constant 0 : index
    %c0_6 = arith.constant 0 : index
    %c0_7 = arith.constant 0 : index
    %9 = vector.load %arg3[%c0_5, %c0_6, %c0_7] : memref<4x12x32xbf16, #tpu.memory_space<vmem>>, vector<1x12x32xbf16>
    %10 = vector.shape_cast %9 : vector<1x12x32xbf16> to vector<12x32xbf16>
    %cst_8 = arith.constant dense<0.000000e+00> : vector<16x32xf32>
    %11 = tpu.matmul %8, %10, %cst_8 {dimension_numbers = #tpu.dot_dimension_numbers<[1], [0], [0], [1], [0, 0, 1, 1], [], []>} : vector<16x12xbf16>, vector<12x32xbf16>, vector<16x32xf32> -> vector<16x32xf32>
    %12 = arith.addf %2, %11 : vector<16x32xf32>
    %13 = vector.extract_strided_slice %7 {offsets = [1, 0], sizes = [16, 12], strides = [1, 1]} : vector<17x12xbf16> to vector<16x12xbf16>
    %c1 = arith.constant 1 : index
    %c0_9 = arith.constant 0 : index
    %c0_10 = arith.constant 0 : index
    %14 = vector.load %arg3[%c1, %c0_9, %c0_10] : memref<4x12x32xbf16, #tpu.memory_space<vmem>>, vector<1x12x32xbf16>
    %15 = vector.shape_cast %14 : vector<1x12x32xbf16> to vector<12x32xbf16>
    %cst_11 = arith.constant dense<0.000000e+00> : vector<16x32xf32>
    %16 = tpu.matmul %13, %15, %cst_11 {dimension_numbers = #tpu.dot_dimension_numbers<[1], [0], [0], [1], [0, 0, 1, 1], [], []>} : vector<16x12xbf16>, vector<12x32xbf16>, vector<16x32xf32> -> vector<16x32xf32>
    %17 = arith.addf %12, %16 : vector<16x32xf32>
    %c0_i32_12 = arith.constant 0 : i32
    %18 = arith.addi %0, %c0_i32_12 : i32
    %c1_i32 = arith.constant 1 : i32
    %19 = arith.addi %18, %c1_i32 : i32
    %c0_13 = arith.constant 0 : index
    %20 = arith.index_cast %19 : i32 to index
    %c0_14 = arith.constant 0 : index
    %c0_15 = arith.constant 0 : index
    %21 = vector.load %arg2[%c0_13, %20, %c0_14, %c0_15] : memref<1x17x17x12xbf16, #tpu.memory_space<vmem>>, vector<1x1x17x12xbf16>
    %22 = vector.shape_cast %21 : vector<1x1x17x12xbf16> to vector<17x12xbf16>
    %23 = vector.extract_strided_slice %22 {offsets = [0, 0], sizes = [16, 12], strides = [1, 1]} : vector<17x12xbf16> to vector<16x12xbf16>
    %c2 = arith.constant 2 : index
    %c0_16 = arith.constant 0 : index
    %c0_17 = arith.constant 0 : index
    %24 = vector.load %arg3[%c2, %c0_16, %c0_17] : memref<4x12x32xbf16, #tpu.memory_space<vmem>>, vector<1x12x32xbf16>
    %25 = vector.shape_cast %24 : vector<1x12x32xbf16> to vector<12x32xbf16>
    %cst_18 = arith.constant dense<0.000000e+00> : vector<16x32xf32>
    %26 = tpu.matmul %23, %25, %cst_18 {dimension_numbers = #tpu.dot_dimension_numbers<[1], [0], [0], [1], [0, 0, 1, 1], [], []>} : vector<16x12xbf16>, vector<12x32xbf16>, vector<16x32xf32> -> vector<16x32xf32>
    %27 = arith.addf %17, %26 : vector<16x32xf32>
    %28 = vector.extract_strided_slice %22 {offsets = [1, 0], sizes = [16, 12], strides = [1, 1]} : vector<17x12xbf16> to vector<16x12xbf16>
    %c3 = arith.constant 3 : index
    %c0_19 = arith.constant 0 : index
    %c0_20 = arith.constant 0 : index
    %29 = vector.load %arg3[%c3, %c0_19, %c0_20] : memref<4x12x32xbf16, #tpu.memory_space<vmem>>, vector<1x12x32xbf16>
    %30 = vector.shape_cast %29 : vector<1x12x32xbf16> to vector<12x32xbf16>
    %cst_21 = arith.constant dense<0.000000e+00> : vector<16x32xf32>
    %31 = tpu.matmul %28, %30, %cst_21 {dimension_numbers = #tpu.dot_dimension_numbers<[1], [0], [0], [1], [0, 0, 1, 1], [], []>} : vector<16x12xbf16>, vector<12x32xbf16>, vector<16x32xf32> -> vector<16x32xf32>
    %32 = arith.addf %27, %31 : vector<16x32xf32>
    %33 = vector.broadcast %1 : vector<1x32xf32> to vector<16x32xf32>
    %34 = arith.addf %32, %33 : vector<16x32xf32>
    %35 = arith.negf %34 : vector<16x32xf32>
    %36 = math.exp %35 : vector<16x32xf32>
    %cst_22 = arith.constant 1.000000e+00 : f32
    %37 = vector.broadcast %cst_22 : f32 to vector<16x32xf32>
    %38 = arith.addf %37, %36 : vector<16x32xf32>
    %39 = arith.divf %37, %38 : vector<16x32xf32>
    %40 = arith.mulf %34, %39 : vector<16x32xf32>
    %41 = arith.truncf %40 : vector<16x32xf32> to vector<16x32xbf16>
    %c0_23 = arith.constant 0 : index
    %c0_24 = arith.constant 0 : index
    %c0_25 = arith.constant 0 : index
    %c0_26 = arith.constant 0 : index
    %42 = vector.load %arg5[%c0_23, %c0_24, %c0_25, %c0_26] : memref<1x8x16x32xbf16, #tpu.memory_space<vmem>>, vector<1x1x16x32xbf16>
    %43 = vector.shape_cast %42 : vector<1x1x16x32xbf16> to vector<16x32xbf16>
    %44 = vector.shape_cast %41 : vector<16x32xbf16> to vector<1x1x16x32xbf16>
    tpu.vector_store %arg5[%c0_23, %c0_24, %c0_25, %c0_26], %44 {strides = array<i32>} : memref<1x8x16x32xbf16, #tpu.memory_space<vmem>>, vector<1x1x16x32xbf16>,
    %cst_27 = arith.constant 0.000000e+00 : f32
    %45 = vector.broadcast %cst_27 : f32 to vector<16x32xf32>
    %c1_i32_28 = arith.constant 1 : i32
    %46 = arith.addi %0, %c1_i32_28 : i32
    %c0_i32_29 = arith.constant 0 : i32
    %47 = arith.addi %46, %c0_i32_29 : i32
    %c0_30 = arith.constant 0 : index
    %48 = arith.index_cast %47 : i32 to index
    %c0_31 = arith.constant 0 : index
    %c0_32 = arith.constant 0 : index
    %49 = vector.load %arg2[%c0_30, %48, %c0_31, %c0_32] : memref<1x17x17x12xbf16, #tpu.memory_space<vmem>>, vector<1x1x17x12xbf16>
    %50 = vector.shape_cast %49 : vector<1x1x17x12xbf16> to vector<17x12xbf16>
    %51 = vector.extract_strided_slice %50 {offsets = [0, 0], sizes = [16, 12], strides = [1, 1]} : vector<17x12xbf16> to vector<16x12xbf16>
    %c0_33 = arith.constant 0 : index
    %c0_34 = arith.constant 0 : index
    %c0_35 = arith.constant 0 : index
    %52 = vector.load %arg3[%c0_33, %c0_34, %c0_35] : memref<4x12x32xbf16, #tpu.memory_space<vmem>>, vector<1x12x32xbf16>
    %53 = vector.shape_cast %52 : vector<1x12x32xbf16> to vector<12x32xbf16>
    %cst_36 = arith.constant dense<0.000000e+00> : vector<16x32xf32>
    %54 = tpu.matmul %51, %53, %cst_36 {dimension_numbers = #tpu.dot_dimension_numbers<[1], [0], [0], [1], [0, 0, 1, 1], [], []>} : vector<16x12xbf16>, vector<12x32xbf16>, vector<16x32xf32> -> vector<16x32xf32>
    %55 = arith.addf %45, %54 : vector<16x32xf32>
    %56 = vector.extract_strided_slice %50 {offsets = [1, 0], sizes = [16, 12], strides = [1, 1]} : vector<17x12xbf16> to vector<16x12xbf16>
    %c1_37 = arith.constant 1 : index
    %c0_38 = arith.constant 0 : index
    %c0_39 = arith.constant 0 : index
    %57 = vector.load %arg3[%c1_37, %c0_38, %c0_39] : memref<4x12x32xbf16, #tpu.memory_space<vmem>>, vector<1x12x32xbf16>
    %58 = vector.shape_cast %57 : vector<1x12x32xbf16> to vector<12x32xbf16>
    %cst_40 = arith.constant dense<0.000000e+00> : vector<16x32xf32>
    %59 = tpu.matmul %56, %58, %cst_40 {dimension_numbers = #tpu.dot_dimension_numbers<[1], [0], [0], [1], [0, 0, 1, 1], [], []>} : vector<16x12xbf16>, vector<12x32xbf16>, vector<16x32xf32> -> vector<16x32xf32>
    %60 = arith.addf %55, %59 : vector<16x32xf32>
    %c1_i32_41 = arith.constant 1 : i32
    %61 = arith.addi %0, %c1_i32_41 : i32
    %c1_i32_42 = arith.constant 1 : i32
    %62 = arith.addi %61, %c1_i32_42 : i32
    %c0_43 = arith.constant 0 : index
    %63 = arith.index_cast %62 : i32 to index
    %c0_44 = arith.constant 0 : index
    %c0_45 = arith.constant 0 : index
    %64 = vector.load %arg2[%c0_43, %63, %c0_44, %c0_45] : memref<1x17x17x12xbf16, #tpu.memory_space<vmem>>, vector<1x1x17x12xbf16>
    %65 = vector.shape_cast %64 : vector<1x1x17x12xbf16> to vector<17x12xbf16>
    %66 = vector.extract_strided_slice %65 {offsets = [0, 0], sizes = [16, 12], strides = [1, 1]} : vector<17x12xbf16> to vector<16x12xbf16>
    %c2_46 = arith.constant 2 : index
    %c0_47 = arith.constant 0 : index
    %c0_48 = arith.constant 0 : index
    %67 = vector.load %arg3[%c2_46, %c0_47, %c0_48] : memref<4x12x32xbf16, #tpu.memory_space<vmem>>, vector<1x12x32xbf16>
    %68 = vector.shape_cast %67 : vector<1x12x32xbf16> to vector<12x32xbf16>
    %cst_49 = arith.constant dense<0.000000e+00> : vector<16x32xf32>
    %69 = tpu.matmul %66, %68, %cst_49 {dimension_numbers = #tpu.dot_dimension_numbers<[1], [0], [0], [1], [0, 0, 1, 1], [], []>} : vector<16x12xbf16>, vector<12x32xbf16>, vector<16x32xf32> -> vector<16x32xf32>
    %70 = arith.addf %60, %69 : vector<16x32xf32>
    %71 = vector.extract_strided_slice %65 {offsets = [1, 0], sizes = [16, 12], strides = [1, 1]} : vector<17x12xbf16> to vector<16x12xbf16>
    %c3_50 = arith.constant 3 : index
    %c0_51 = arith.constant 0 : index
    %c0_52 = arith.constant 0 : index
    %72 = vector.load %arg3[%c3_50, %c0_51, %c0_52] : memref<4x12x32xbf16, #tpu.memory_space<vmem>>, vector<1x12x32xbf16>
    %73 = vector.shape_cast %72 : vector<1x12x32xbf16> to vector<12x32xbf16>
    %cst_53 = arith.constant dense<0.000000e+00> : vector<16x32xf32>
    %74 = tpu.matmul %71, %73, %cst_53 {dimension_numbers = #tpu.dot_dimension_numbers<[1], [0], [0], [1], [0, 0, 1, 1], [], []>} : vector<16x12xbf16>, vector<12x32xbf16>, vector<16x32xf32> -> vector<16x32xf32>
    %75 = arith.addf %70, %74 : vector<16x32xf32>
    %76 = vector.broadcast %1 : vector<1x32xf32> to vector<16x32xf32>
    %77 = arith.addf %75, %76 : vector<16x32xf32>
    %78 = arith.negf %77 : vector<16x32xf32>
    %79 = math.exp %78 : vector<16x32xf32>
    %cst_54 = arith.constant 1.000000e+00 : f32
    %80 = vector.broadcast %cst_54 : f32 to vector<16x32xf32>
    %81 = arith.addf %80, %79 : vector<16x32xf32>
    %82 = arith.divf %80, %81 : vector<16x32xf32>
    %83 = arith.mulf %77, %82 : vector<16x32xf32>
    %84 = arith.truncf %83 : vector<16x32xf32> to vector<16x32xbf16>
    %c0_55 = arith.constant 0 : index
    %c1_56 = arith.constant 1 : index
    %c0_57 = arith.constant 0 : index
    %c0_58 = arith.constant 0 : index
    %85 = vector.load %arg5[%c0_55, %c1_56, %c0_57, %c0_58] : memref<1x8x16x32xbf16, #tpu.memory_space<vmem>>, vector<1x1x16x32xbf16>
    %86 = vector.shape_cast %85 : vector<1x1x16x32xbf16> to vector<16x32xbf16>
    %87 = vector.shape_cast %84 : vector<16x32xbf16> to vector<1x1x16x32xbf16>
    tpu.vector_store %arg5[%c0_55, %c1_56, %c0_57, %c0_58], %87 {strides = array<i32>} : memref<1x8x16x32xbf16, #tpu.memory_space<vmem>>, vector<1x1x16x32xbf16>,
    %cst_59 = arith.constant 0.000000e+00 : f32
    %88 = vector.broadcast %cst_59 : f32 to vector<16x32xf32>
    %c2_i32 = arith.constant 2 : i32
    %89 = arith.addi %0, %c2_i32 : i32
    %c0_i32_60 = arith.constant 0 : i32
    %90 = arith.addi %89, %c0_i32_60 : i32
    %c0_61 = arith.constant 0 : index
    %91 = arith.index_cast %90 : i32 to index
    %c0_62 = arith.constant 0 : index
    %c0_63 = arith.constant 0 : index
    %92 = vector.load %arg2[%c0_61, %91, %c0_62, %c0_63] : memref<1x17x17x12xbf16, #tpu.memory_space<vmem>>, vector<1x1x17x12xbf16>
    %93 = vector.shape_cast %92 : vector<1x1x17x12xbf16> to vector<17x12xbf16>
    %94 = vector.extract_strided_slice %93 {offsets = [0, 0], sizes = [16, 12], strides = [1, 1]} : vector<17x12xbf16> to vector<16x12xbf16>
    %c0_64 = arith.constant 0 : index
    %c0_65 = arith.constant 0 : index
    %c0_66 = arith.constant 0 : index
    %95 = vector.load %arg3[%c0_64, %c0_65, %c0_66] : memref<4x12x32xbf16, #tpu.memory_space<vmem>>, vector<1x12x32xbf16>
    %96 = vector.shape_cast %95 : vector<1x12x32xbf16> to vector<12x32xbf16>
    %cst_67 = arith.constant dense<0.000000e+00> : vector<16x32xf32>
    %97 = tpu.matmul %94, %96, %cst_67 {dimension_numbers = #tpu.dot_dimension_numbers<[1], [0], [0], [1], [0, 0, 1, 1], [], []>} : vector<16x12xbf16>, vector<12x32xbf16>, vector<16x32xf32> -> vector<16x32xf32>
    %98 = arith.addf %88, %97 : vector<16x32xf32>
    %99 = vector.extract_strided_slice %93 {offsets = [1, 0], sizes = [16, 12], strides = [1, 1]} : vector<17x12xbf16> to vector<16x12xbf16>
    %c1_68 = arith.constant 1 : index
    %c0_69 = arith.constant 0 : index
    %c0_70 = arith.constant 0 : index
    %100 = vector.load %arg3[%c1_68, %c0_69, %c0_70] : memref<4x12x32xbf16, #tpu.memory_space<vmem>>, vector<1x12x32xbf16>
    %101 = vector.shape_cast %100 : vector<1x12x32xbf16> to vector<12x32xbf16>
    %cst_71 = arith.constant dense<0.000000e+00> : vector<16x32xf32>
    %102 = tpu.matmul %99, %101, %cst_71 {dimension_numbers = #tpu.dot_dimension_numbers<[1], [0], [0], [1], [0, 0, 1, 1], [], []>} : vector<16x12xbf16>, vector<12x32xbf16>, vector<16x32xf32> -> vector<16x32xf32>
    %103 = arith.addf %98, %102 : vector<16x32xf32>
    %c2_i32_72 = arith.constant 2 : i32
    %104 = arith.addi %0, %c2_i32_72 : i32
    %c1_i32_73 = arith.constant 1 : i32
    %105 = arith.addi %104, %c1_i32_73 : i32
    %c0_74 = arith.constant 0 : index
    %106 = arith.index_cast %105 : i32 to index
    %c0_75 = arith.constant 0 : index
    %c0_76 = arith.constant 0 : index
    %107 = vector.load %arg2[%c0_74, %106, %c0_75, %c0_76] : memref<1x17x17x12xbf16, #tpu.memory_space<vmem>>, vector<1x1x17x12xbf16>
    %108 = vector.shape_cast %107 : vector<1x1x17x12xbf16> to vector<17x12xbf16>
    %109 = vector.extract_strided_slice %108 {offsets = [0, 0], sizes = [16, 12], strides = [1, 1]} : vector<17x12xbf16> to vector<16x12xbf16>
    %c2_77 = arith.constant 2 : index
    %c0_78 = arith.constant 0 : index
    %c0_79 = arith.constant 0 : index
    %110 = vector.load %arg3[%c2_77, %c0_78, %c0_79] : memref<4x12x32xbf16, #tpu.memory_space<vmem>>, vector<1x12x32xbf16>
    %111 = vector.shape_cast %110 : vector<1x12x32xbf16> to vector<12x32xbf16>
    %cst_80 = arith.constant dense<0.000000e+00> : vector<16x32xf32>
    %112 = tpu.matmul %109, %111, %cst_80 {dimension_numbers = #tpu.dot_dimension_numbers<[1], [0], [0], [1], [0, 0, 1, 1], [], []>} : vector<16x12xbf16>, vector<12x32xbf16>, vector<16x32xf32> -> vector<16x32xf32>
    %113 = arith.addf %103, %112 : vector<16x32xf32>
    %114 = vector.extract_strided_slice %108 {offsets = [1, 0], sizes = [16, 12], strides = [1, 1]} : vector<17x12xbf16> to vector<16x12xbf16>
    %c3_81 = arith.constant 3 : index
    %c0_82 = arith.constant 0 : index
    %c0_83 = arith.constant 0 : index
    %115 = vector.load %arg3[%c3_81, %c0_82, %c0_83] : memref<4x12x32xbf16, #tpu.memory_space<vmem>>, vector<1x12x32xbf16>
    %116 = vector.shape_cast %115 : vector<1x12x32xbf16> to vector<12x32xbf16>
    %cst_84 = arith.constant dense<0.000000e+00> : vector<16x32xf32>
    %117 = tpu.matmul %114, %116, %cst_84 {dimension_numbers = #tpu.dot_dimension_numbers<[1], [0], [0], [1], [0, 0, 1, 1], [], []>} : vector<16x12xbf16>, vector<12x32xbf16>, vector<16x32xf32> -> vector<16x32xf32>
    %118 = arith.addf %113, %117 : vector<16x32xf32>
    %119 = vector.broadcast %1 : vector<1x32xf32> to vector<16x32xf32>
    %120 = arith.addf %118, %119 : vector<16x32xf32>
    %121 = arith.negf %120 : vector<16x32xf32>
    %122 = math.exp %121 : vector<16x32xf32>
    %cst_85 = arith.constant 1.000000e+00 : f32
    %123 = vector.broadcast %cst_85 : f32 to vector<16x32xf32>
    %124 = arith.addf %123, %122 : vector<16x32xf32>
    %125 = arith.divf %123, %124 : vector<16x32xf32>
    %126 = arith.mulf %120, %125 : vector<16x32xf32>
    %127 = arith.truncf %126 : vector<16x32xf32> to vector<16x32xbf16>
    %c0_86 = arith.constant 0 : index
    %c2_87 = arith.constant 2 : index
    %c0_88 = arith.constant 0 : index
    %c0_89 = arith.constant 0 : index
    %128 = vector.load %arg5[%c0_86, %c2_87, %c0_88, %c0_89] : memref<1x8x16x32xbf16, #tpu.memory_space<vmem>>, vector<1x1x16x32xbf16>
    %129 = vector.shape_cast %128 : vector<1x1x16x32xbf16> to vector<16x32xbf16>
    %130 = vector.shape_cast %127 : vector<16x32xbf16> to vector<1x1x16x32xbf16>
    tpu.vector_store %arg5[%c0_86, %c2_87, %c0_88, %c0_89], %130 {strides = array<i32>} : memref<1x8x16x32xbf16, #tpu.memory_space<vmem>>, vector<1x1x16x32xbf16>,
    %cst_90 = arith.constant 0.000000e+00 : f32
    %131 = vector.broadcast %cst_90 : f32 to vector<16x32xf32>
    %c3_i32 = arith.constant 3 : i32
    %132 = arith.addi %0, %c3_i32 : i32
    %c0_i32_91 = arith.constant 0 : i32
    %133 = arith.addi %132, %c0_i32_91 : i32
    %c0_92 = arith.constant 0 : index
    %134 = arith.index_cast %133 : i32 to index
    %c0_93 = arith.constant 0 : index
    %c0_94 = arith.constant 0 : index
    %135 = vector.load %arg2[%c0_92, %134, %c0_93, %c0_94] : memref<1x17x17x12xbf16, #tpu.memory_space<vmem>>, vector<1x1x17x12xbf16>
    %136 = vector.shape_cast %135 : vector<1x1x17x12xbf16> to vector<17x12xbf16>
    %137 = vector.extract_strided_slice %136 {offsets = [0, 0], sizes = [16, 12], strides = [1, 1]} : vector<17x12xbf16> to vector<16x12xbf16>
    %c0_95 = arith.constant 0 : index
    %c0_96 = arith.constant 0 : index
    %c0_97 = arith.constant 0 : index
    %138 = vector.load %arg3[%c0_95, %c0_96, %c0_97] : memref<4x12x32xbf16, #tpu.memory_space<vmem>>, vector<1x12x32xbf16>
    %139 = vector.shape_cast %138 : vector<1x12x32xbf16> to vector<12x32xbf16>
    %cst_98 = arith.constant dense<0.000000e+00> : vector<16x32xf32>
    %140 = tpu.matmul %137, %139, %cst_98 {dimension_numbers = #tpu.dot_dimension_numbers<[1], [0], [0], [1], [0, 0, 1, 1], [], []>} : vector<16x12xbf16>, vector<12x32xbf16>, vector<16x32xf32> -> vector<16x32xf32>
    %141 = arith.addf %131, %140 : vector<16x32xf32>
    %142 = vector.extract_strided_slice %136 {offsets = [1, 0], sizes = [16, 12], strides = [1, 1]} : vector<17x12xbf16> to vector<16x12xbf16>
    %c1_99 = arith.constant 1 : index
    %c0_100 = arith.constant 0 : index
    %c0_101 = arith.constant 0 : index
    %143 = vector.load %arg3[%c1_99, %c0_100, %c0_101] : memref<4x12x32xbf16, #tpu.memory_space<vmem>>, vector<1x12x32xbf16>
    %144 = vector.shape_cast %143 : vector<1x12x32xbf16> to vector<12x32xbf16>
    %cst_102 = arith.constant dense<0.000000e+00> : vector<16x32xf32>
    %145 = tpu.matmul %142, %144, %cst_102 {dimension_numbers = #tpu.dot_dimension_numbers<[1], [0], [0], [1], [0, 0, 1, 1], [], []>} : vector<16x12xbf16>, vector<12x32xbf16>, vector<16x32xf32> -> vector<16x32xf32>
    %146 = arith.addf %141, %145 : vector<16x32xf32>
    %c3_i32_103 = arith.constant 3 : i32
    %147 = arith.addi %0, %c3_i32_103 : i32
    %c1_i32_104 = arith.constant 1 : i32
    %148 = arith.addi %147, %c1_i32_104 : i32
    %c0_105 = arith.constant 0 : index
    %149 = arith.index_cast %148 : i32 to index
    %c0_106 = arith.constant 0 : index
    %c0_107 = arith.constant 0 : index
    %150 = vector.load %arg2[%c0_105, %149, %c0_106, %c0_107] : memref<1x17x17x12xbf16, #tpu.memory_space<vmem>>, vector<1x1x17x12xbf16>
    %151 = vector.shape_cast %150 : vector<1x1x17x12xbf16> to vector<17x12xbf16>
    %152 = vector.extract_strided_slice %151 {offsets = [0, 0], sizes = [16, 12], strides = [1, 1]} : vector<17x12xbf16> to vector<16x12xbf16>
    %c2_108 = arith.constant 2 : index
    %c0_109 = arith.constant 0 : index
    %c0_110 = arith.constant 0 : index
    %153 = vector.load %arg3[%c2_108, %c0_109, %c0_110] : memref<4x12x32xbf16, #tpu.memory_space<vmem>>, vector<1x12x32xbf16>
    %154 = vector.shape_cast %153 : vector<1x12x32xbf16> to vector<12x32xbf16>
    %cst_111 = arith.constant dense<0.000000e+00> : vector<16x32xf32>
    %155 = tpu.matmul %152, %154, %cst_111 {dimension_numbers = #tpu.dot_dimension_numbers<[1], [0], [0], [1], [0, 0, 1, 1], [], []>} : vector<16x12xbf16>, vector<12x32xbf16>, vector<16x32xf32> -> vector<16x32xf32>
    %156 = arith.addf %146, %155 : vector<16x32xf32>
    %157 = vector.extract_strided_slice %151 {offsets = [1, 0], sizes = [16, 12], strides = [1, 1]} : vector<17x12xbf16> to vector<16x12xbf16>
    %c3_112 = arith.constant 3 : index
    %c0_113 = arith.constant 0 : index
    %c0_114 = arith.constant 0 : index
    %158 = vector.load %arg3[%c3_112, %c0_113, %c0_114] : memref<4x12x32xbf16, #tpu.memory_space<vmem>>, vector<1x12x32xbf16>
    %159 = vector.shape_cast %158 : vector<1x12x32xbf16> to vector<12x32xbf16>
    %cst_115 = arith.constant dense<0.000000e+00> : vector<16x32xf32>
    %160 = tpu.matmul %157, %159, %cst_115 {dimension_numbers = #tpu.dot_dimension_numbers<[1], [0], [0], [1], [0, 0, 1, 1], [], []>} : vector<16x12xbf16>, vector<12x32xbf16>, vector<16x32xf32> -> vector<16x32xf32>
    %161 = arith.addf %156, %160 : vector<16x32xf32>
    %162 = vector.broadcast %1 : vector<1x32xf32> to vector<16x32xf32>
    %163 = arith.addf %161, %162 : vector<16x32xf32>
    %164 = arith.negf %163 : vector<16x32xf32>
    %165 = math.exp %164 : vector<16x32xf32>
    %cst_116 = arith.constant 1.000000e+00 : f32
    %166 = vector.broadcast %cst_116 : f32 to vector<16x32xf32>
    %167 = arith.addf %166, %165 : vector<16x32xf32>
    %168 = arith.divf %166, %167 : vector<16x32xf32>
    %169 = arith.mulf %163, %168 : vector<16x32xf32>
    %170 = arith.truncf %169 : vector<16x32xf32> to vector<16x32xbf16>
    %c0_117 = arith.constant 0 : index
    %c3_118 = arith.constant 3 : index
    %c0_119 = arith.constant 0 : index
    %c0_120 = arith.constant 0 : index
    %171 = vector.load %arg5[%c0_117, %c3_118, %c0_119, %c0_120] : memref<1x8x16x32xbf16, #tpu.memory_space<vmem>>, vector<1x1x16x32xbf16>
    %172 = vector.shape_cast %171 : vector<1x1x16x32xbf16> to vector<16x32xbf16>
    %173 = vector.shape_cast %170 : vector<16x32xbf16> to vector<1x1x16x32xbf16>
    tpu.vector_store %arg5[%c0_117, %c3_118, %c0_119, %c0_120], %173 {strides = array<i32>} : memref<1x8x16x32xbf16, #tpu.memory_space<vmem>>, vector<1x1x16x32xbf16>,
    %cst_121 = arith.constant 0.000000e+00 : f32
    %174 = vector.broadcast %cst_121 : f32 to vector<16x32xf32>
    %c4_i32 = arith.constant 4 : i32
    %175 = arith.addi %0, %c4_i32 : i32
    %c0_i32_122 = arith.constant 0 : i32
    %176 = arith.addi %175, %c0_i32_122 : i32
    %c0_123 = arith.constant 0 : index
    %177 = arith.index_cast %176 : i32 to index
    %c0_124 = arith.constant 0 : index
    %c0_125 = arith.constant 0 : index
    %178 = vector.load %arg2[%c0_123, %177, %c0_124, %c0_125] : memref<1x17x17x12xbf16, #tpu.memory_space<vmem>>, vector<1x1x17x12xbf16>
    %179 = vector.shape_cast %178 : vector<1x1x17x12xbf16> to vector<17x12xbf16>
    %180 = vector.extract_strided_slice %179 {offsets = [0, 0], sizes = [16, 12], strides = [1, 1]} : vector<17x12xbf16> to vector<16x12xbf16>
    %c0_126 = arith.constant 0 : index
    %c0_127 = arith.constant 0 : index
    %c0_128 = arith.constant 0 : index
    %181 = vector.load %arg3[%c0_126, %c0_127, %c0_128] : memref<4x12x32xbf16, #tpu.memory_space<vmem>>, vector<1x12x32xbf16>
    %182 = vector.shape_cast %181 : vector<1x12x32xbf16> to vector<12x32xbf16>
    %cst_129 = arith.constant dense<0.000000e+00> : vector<16x32xf32>
    %183 = tpu.matmul %180, %182, %cst_129 {dimension_numbers = #tpu.dot_dimension_numbers<[1], [0], [0], [1], [0, 0, 1, 1], [], []>} : vector<16x12xbf16>, vector<12x32xbf16>, vector<16x32xf32> -> vector<16x32xf32>
    %184 = arith.addf %174, %183 : vector<16x32xf32>
    %185 = vector.extract_strided_slice %179 {offsets = [1, 0], sizes = [16, 12], strides = [1, 1]} : vector<17x12xbf16> to vector<16x12xbf16>
    %c1_130 = arith.constant 1 : index
    %c0_131 = arith.constant 0 : index
    %c0_132 = arith.constant 0 : index
    %186 = vector.load %arg3[%c1_130, %c0_131, %c0_132] : memref<4x12x32xbf16, #tpu.memory_space<vmem>>, vector<1x12x32xbf16>
    %187 = vector.shape_cast %186 : vector<1x12x32xbf16> to vector<12x32xbf16>
    %cst_133 = arith.constant dense<0.000000e+00> : vector<16x32xf32>
    %188 = tpu.matmul %185, %187, %cst_133 {dimension_numbers = #tpu.dot_dimension_numbers<[1], [0], [0], [1], [0, 0, 1, 1], [], []>} : vector<16x12xbf16>, vector<12x32xbf16>, vector<16x32xf32> -> vector<16x32xf32>
    %189 = arith.addf %184, %188 : vector<16x32xf32>
    %c4_i32_134 = arith.constant 4 : i32
    %190 = arith.addi %0, %c4_i32_134 : i32
    %c1_i32_135 = arith.constant 1 : i32
    %191 = arith.addi %190, %c1_i32_135 : i32
    %c0_136 = arith.constant 0 : index
    %192 = arith.index_cast %191 : i32 to index
    %c0_137 = arith.constant 0 : index
    %c0_138 = arith.constant 0 : index
    %193 = vector.load %arg2[%c0_136, %192, %c0_137, %c0_138] : memref<1x17x17x12xbf16, #tpu.memory_space<vmem>>, vector<1x1x17x12xbf16>
    %194 = vector.shape_cast %193 : vector<1x1x17x12xbf16> to vector<17x12xbf16>
    %195 = vector.extract_strided_slice %194 {offsets = [0, 0], sizes = [16, 12], strides = [1, 1]} : vector<17x12xbf16> to vector<16x12xbf16>
    %c2_139 = arith.constant 2 : index
    %c0_140 = arith.constant 0 : index
    %c0_141 = arith.constant 0 : index
    %196 = vector.load %arg3[%c2_139, %c0_140, %c0_141] : memref<4x12x32xbf16, #tpu.memory_space<vmem>>, vector<1x12x32xbf16>
    %197 = vector.shape_cast %196 : vector<1x12x32xbf16> to vector<12x32xbf16>
    %cst_142 = arith.constant dense<0.000000e+00> : vector<16x32xf32>
    %198 = tpu.matmul %195, %197, %cst_142 {dimension_numbers = #tpu.dot_dimension_numbers<[1], [0], [0], [1], [0, 0, 1, 1], [], []>} : vector<16x12xbf16>, vector<12x32xbf16>, vector<16x32xf32> -> vector<16x32xf32>
    %199 = arith.addf %189, %198 : vector<16x32xf32>
    %200 = vector.extract_strided_slice %194 {offsets = [1, 0], sizes = [16, 12], strides = [1, 1]} : vector<17x12xbf16> to vector<16x12xbf16>
    %c3_143 = arith.constant 3 : index
    %c0_144 = arith.constant 0 : index
    %c0_145 = arith.constant 0 : index
    %201 = vector.load %arg3[%c3_143, %c0_144, %c0_145] : memref<4x12x32xbf16, #tpu.memory_space<vmem>>, vector<1x12x32xbf16>
    %202 = vector.shape_cast %201 : vector<1x12x32xbf16> to vector<12x32xbf16>
    %cst_146 = arith.constant dense<0.000000e+00> : vector<16x32xf32>
    %203 = tpu.matmul %200, %202, %cst_146 {dimension_numbers = #tpu.dot_dimension_numbers<[1], [0], [0], [1], [0, 0, 1, 1], [], []>} : vector<16x12xbf16>, vector<12x32xbf16>, vector<16x32xf32> -> vector<16x32xf32>
    %204 = arith.addf %199, %203 : vector<16x32xf32>
    %205 = vector.broadcast %1 : vector<1x32xf32> to vector<16x32xf32>
    %206 = arith.addf %204, %205 : vector<16x32xf32>
    %207 = arith.negf %206 : vector<16x32xf32>
    %208 = math.exp %207 : vector<16x32xf32>
    %cst_147 = arith.constant 1.000000e+00 : f32
    %209 = vector.broadcast %cst_147 : f32 to vector<16x32xf32>
    %210 = arith.addf %209, %208 : vector<16x32xf32>
    %211 = arith.divf %209, %210 : vector<16x32xf32>
    %212 = arith.mulf %206, %211 : vector<16x32xf32>
    %213 = arith.truncf %212 : vector<16x32xf32> to vector<16x32xbf16>
    %c0_148 = arith.constant 0 : index
    %c4 = arith.constant 4 : index
    %c0_149 = arith.constant 0 : index
    %c0_150 = arith.constant 0 : index
    %214 = vector.load %arg5[%c0_148, %c4, %c0_149, %c0_150] : memref<1x8x16x32xbf16, #tpu.memory_space<vmem>>, vector<1x1x16x32xbf16>
    %215 = vector.shape_cast %214 : vector<1x1x16x32xbf16> to vector<16x32xbf16>
    %216 = vector.shape_cast %213 : vector<16x32xbf16> to vector<1x1x16x32xbf16>
    tpu.vector_store %arg5[%c0_148, %c4, %c0_149, %c0_150], %216 {strides = array<i32>} : memref<1x8x16x32xbf16, #tpu.memory_space<vmem>>, vector<1x1x16x32xbf16>,
    %cst_151 = arith.constant 0.000000e+00 : f32
    %217 = vector.broadcast %cst_151 : f32 to vector<16x32xf32>
    %c5_i32 = arith.constant 5 : i32
    %218 = arith.addi %0, %c5_i32 : i32
    %c0_i32_152 = arith.constant 0 : i32
    %219 = arith.addi %218, %c0_i32_152 : i32
    %c0_153 = arith.constant 0 : index
    %220 = arith.index_cast %219 : i32 to index
    %c0_154 = arith.constant 0 : index
    %c0_155 = arith.constant 0 : index
    %221 = vector.load %arg2[%c0_153, %220, %c0_154, %c0_155] : memref<1x17x17x12xbf16, #tpu.memory_space<vmem>>, vector<1x1x17x12xbf16>
    %222 = vector.shape_cast %221 : vector<1x1x17x12xbf16> to vector<17x12xbf16>
    %223 = vector.extract_strided_slice %222 {offsets = [0, 0], sizes = [16, 12], strides = [1, 1]} : vector<17x12xbf16> to vector<16x12xbf16>
    %c0_156 = arith.constant 0 : index
    %c0_157 = arith.constant 0 : index
    %c0_158 = arith.constant 0 : index
    %224 = vector.load %arg3[%c0_156, %c0_157, %c0_158] : memref<4x12x32xbf16, #tpu.memory_space<vmem>>, vector<1x12x32xbf16>
    %225 = vector.shape_cast %224 : vector<1x12x32xbf16> to vector<12x32xbf16>
    %cst_159 = arith.constant dense<0.000000e+00> : vector<16x32xf32>
    %226 = tpu.matmul %223, %225, %cst_159 {dimension_numbers = #tpu.dot_dimension_numbers<[1], [0], [0], [1], [0, 0, 1, 1], [], []>} : vector<16x12xbf16>, vector<12x32xbf16>, vector<16x32xf32> -> vector<16x32xf32>
    %227 = arith.addf %217, %226 : vector<16x32xf32>
    %228 = vector.extract_strided_slice %222 {offsets = [1, 0], sizes = [16, 12], strides = [1, 1]} : vector<17x12xbf16> to vector<16x12xbf16>
    %c1_160 = arith.constant 1 : index
    %c0_161 = arith.constant 0 : index
    %c0_162 = arith.constant 0 : index
    %229 = vector.load %arg3[%c1_160, %c0_161, %c0_162] : memref<4x12x32xbf16, #tpu.memory_space<vmem>>, vector<1x12x32xbf16>
    %230 = vector.shape_cast %229 : vector<1x12x32xbf16> to vector<12x32xbf16>
    %cst_163 = arith.constant dense<0.000000e+00> : vector<16x32xf32>
    %231 = tpu.matmul %228, %230, %cst_163 {dimension_numbers = #tpu.dot_dimension_numbers<[1], [0], [0], [1], [0, 0, 1, 1], [], []>} : vector<16x12xbf16>, vector<12x32xbf16>, vector<16x32xf32> -> vector<16x32xf32>
    %232 = arith.addf %227, %231 : vector<16x32xf32>
    %c5_i32_164 = arith.constant 5 : i32
    %233 = arith.addi %0, %c5_i32_164 : i32
    %c1_i32_165 = arith.constant 1 : i32
    %234 = arith.addi %233, %c1_i32_165 : i32
    %c0_166 = arith.constant 0 : index
    %235 = arith.index_cast %234 : i32 to index
    %c0_167 = arith.constant 0 : index
    %c0_168 = arith.constant 0 : index
    %236 = vector.load %arg2[%c0_166, %235, %c0_167, %c0_168] : memref<1x17x17x12xbf16, #tpu.memory_space<vmem>>, vector<1x1x17x12xbf16>
    %237 = vector.shape_cast %236 : vector<1x1x17x12xbf16> to vector<17x12xbf16>
    %238 = vector.extract_strided_slice %237 {offsets = [0, 0], sizes = [16, 12], strides = [1, 1]} : vector<17x12xbf16> to vector<16x12xbf16>
    %c2_169 = arith.constant 2 : index
    %c0_170 = arith.constant 0 : index
    %c0_171 = arith.constant 0 : index
    %239 = vector.load %arg3[%c2_169, %c0_170, %c0_171] : memref<4x12x32xbf16, #tpu.memory_space<vmem>>, vector<1x12x32xbf16>
    %240 = vector.shape_cast %239 : vector<1x12x32xbf16> to vector<12x32xbf16>
    %cst_172 = arith.constant dense<0.000000e+00> : vector<16x32xf32>
    %241 = tpu.matmul %238, %240, %cst_172 {dimension_numbers = #tpu.dot_dimension_numbers<[1], [0], [0], [1], [0, 0, 1, 1], [], []>} : vector<16x12xbf16>, vector<12x32xbf16>, vector<16x32xf32> -> vector<16x32xf32>
    %242 = arith.addf %232, %241 : vector<16x32xf32>
    %243 = vector.extract_strided_slice %237 {offsets = [1, 0], sizes = [16, 12], strides = [1, 1]} : vector<17x12xbf16> to vector<16x12xbf16>
    %c3_173 = arith.constant 3 : index
    %c0_174 = arith.constant 0 : index
    %c0_175 = arith.constant 0 : index
    %244 = vector.load %arg3[%c3_173, %c0_174, %c0_175] : memref<4x12x32xbf16, #tpu.memory_space<vmem>>, vector<1x12x32xbf16>
    %245 = vector.shape_cast %244 : vector<1x12x32xbf16> to vector<12x32xbf16>
    %cst_176 = arith.constant dense<0.000000e+00> : vector<16x32xf32>
    %246 = tpu.matmul %243, %245, %cst_176 {dimension_numbers = #tpu.dot_dimension_numbers<[1], [0], [0], [1], [0, 0, 1, 1], [], []>} : vector<16x12xbf16>, vector<12x32xbf16>, vector<16x32xf32> -> vector<16x32xf32>
    %247 = arith.addf %242, %246 : vector<16x32xf32>
    %248 = vector.broadcast %1 : vector<1x32xf32> to vector<16x32xf32>
    %249 = arith.addf %247, %248 : vector<16x32xf32>
    %250 = arith.negf %249 : vector<16x32xf32>
    %251 = math.exp %250 : vector<16x32xf32>
    %cst_177 = arith.constant 1.000000e+00 : f32
    %252 = vector.broadcast %cst_177 : f32 to vector<16x32xf32>
    %253 = arith.addf %252, %251 : vector<16x32xf32>
    %254 = arith.divf %252, %253 : vector<16x32xf32>
    %255 = arith.mulf %249, %254 : vector<16x32xf32>
    %256 = arith.truncf %255 : vector<16x32xf32> to vector<16x32xbf16>
    %c0_178 = arith.constant 0 : index
    %c5 = arith.constant 5 : index
    %c0_179 = arith.constant 0 : index
    %c0_180 = arith.constant 0 : index
    %257 = vector.load %arg5[%c0_178, %c5, %c0_179, %c0_180] : memref<1x8x16x32xbf16, #tpu.memory_space<vmem>>, vector<1x1x16x32xbf16>
    %258 = vector.shape_cast %257 : vector<1x1x16x32xbf16> to vector<16x32xbf16>
    %259 = vector.shape_cast %256 : vector<16x32xbf16> to vector<1x1x16x32xbf16>
    tpu.vector_store %arg5[%c0_178, %c5, %c0_179, %c0_180], %259 {strides = array<i32>} : memref<1x8x16x32xbf16, #tpu.memory_space<vmem>>, vector<1x1x16x32xbf16>,
    %cst_181 = arith.constant 0.000000e+00 : f32
    %260 = vector.broadcast %cst_181 : f32 to vector<16x32xf32>
    %c6_i32 = arith.constant 6 : i32
    %261 = arith.addi %0, %c6_i32 : i32
    %c0_i32_182 = arith.constant 0 : i32
    %262 = arith.addi %261, %c0_i32_182 : i32
    %c0_183 = arith.constant 0 : index
    %263 = arith.index_cast %262 : i32 to index
    %c0_184 = arith.constant 0 : index
    %c0_185 = arith.constant 0 : index
    %264 = vector.load %arg2[%c0_183, %263, %c0_184, %c0_185] : memref<1x17x17x12xbf16, #tpu.memory_space<vmem>>, vector<1x1x17x12xbf16>
    %265 = vector.shape_cast %264 : vector<1x1x17x12xbf16> to vector<17x12xbf16>
    %266 = vector.extract_strided_slice %265 {offsets = [0, 0], sizes = [16, 12], strides = [1, 1]} : vector<17x12xbf16> to vector<16x12xbf16>
    %c0_186 = arith.constant 0 : index
    %c0_187 = arith.constant 0 : index
    %c0_188 = arith.constant 0 : index
    %267 = vector.load %arg3[%c0_186, %c0_187, %c0_188] : memref<4x12x32xbf16, #tpu.memory_space<vmem>>, vector<1x12x32xbf16>
    %268 = vector.shape_cast %267 : vector<1x12x32xbf16> to vector<12x32xbf16>
    %cst_189 = arith.constant dense<0.000000e+00> : vector<16x32xf32>
    %269 = tpu.matmul %266, %268, %cst_189 {dimension_numbers = #tpu.dot_dimension_numbers<[1], [0], [0], [1], [0, 0, 1, 1], [], []>} : vector<16x12xbf16>, vector<12x32xbf16>, vector<16x32xf32> -> vector<16x32xf32>
    %270 = arith.addf %260, %269 : vector<16x32xf32>
    %271 = vector.extract_strided_slice %265 {offsets = [1, 0], sizes = [16, 12], strides = [1, 1]} : vector<17x12xbf16> to vector<16x12xbf16>
    %c1_190 = arith.constant 1 : index
    %c0_191 = arith.constant 0 : index
    %c0_192 = arith.constant 0 : index
    %272 = vector.load %arg3[%c1_190, %c0_191, %c0_192] : memref<4x12x32xbf16, #tpu.memory_space<vmem>>, vector<1x12x32xbf16>
    %273 = vector.shape_cast %272 : vector<1x12x32xbf16> to vector<12x32xbf16>
    %cst_193 = arith.constant dense<0.000000e+00> : vector<16x32xf32>
    %274 = tpu.matmul %271, %273, %cst_193 {dimension_numbers = #tpu.dot_dimension_numbers<[1], [0], [0], [1], [0, 0, 1, 1], [], []>} : vector<16x12xbf16>, vector<12x32xbf16>, vector<16x32xf32> -> vector<16x32xf32>
    %275 = arith.addf %270, %274 : vector<16x32xf32>
    %c6_i32_194 = arith.constant 6 : i32
    %276 = arith.addi %0, %c6_i32_194 : i32
    %c1_i32_195 = arith.constant 1 : i32
    %277 = arith.addi %276, %c1_i32_195 : i32
    %c0_196 = arith.constant 0 : index
    %278 = arith.index_cast %277 : i32 to index
    %c0_197 = arith.constant 0 : index
    %c0_198 = arith.constant 0 : index
    %279 = vector.load %arg2[%c0_196, %278, %c0_197, %c0_198] : memref<1x17x17x12xbf16, #tpu.memory_space<vmem>>, vector<1x1x17x12xbf16>
    %280 = vector.shape_cast %279 : vector<1x1x17x12xbf16> to vector<17x12xbf16>
    %281 = vector.extract_strided_slice %280 {offsets = [0, 0], sizes = [16, 12], strides = [1, 1]} : vector<17x12xbf16> to vector<16x12xbf16>
    %c2_199 = arith.constant 2 : index
    %c0_200 = arith.constant 0 : index
    %c0_201 = arith.constant 0 : index
    %282 = vector.load %arg3[%c2_199, %c0_200, %c0_201] : memref<4x12x32xbf16, #tpu.memory_space<vmem>>, vector<1x12x32xbf16>
    %283 = vector.shape_cast %282 : vector<1x12x32xbf16> to vector<12x32xbf16>
    %cst_202 = arith.constant dense<0.000000e+00> : vector<16x32xf32>
    %284 = tpu.matmul %281, %283, %cst_202 {dimension_numbers = #tpu.dot_dimension_numbers<[1], [0], [0], [1], [0, 0, 1, 1], [], []>} : vector<16x12xbf16>, vector<12x32xbf16>, vector<16x32xf32> -> vector<16x32xf32>
    %285 = arith.addf %275, %284 : vector<16x32xf32>
    %286 = vector.extract_strided_slice %280 {offsets = [1, 0], sizes = [16, 12], strides = [1, 1]} : vector<17x12xbf16> to vector<16x12xbf16>
    %c3_203 = arith.constant 3 : index
    %c0_204 = arith.constant 0 : index
    %c0_205 = arith.constant 0 : index
    %287 = vector.load %arg3[%c3_203, %c0_204, %c0_205] : memref<4x12x32xbf16, #tpu.memory_space<vmem>>, vector<1x12x32xbf16>
    %288 = vector.shape_cast %287 : vector<1x12x32xbf16> to vector<12x32xbf16>
    %cst_206 = arith.constant dense<0.000000e+00> : vector<16x32xf32>
    %289 = tpu.matmul %286, %288, %cst_206 {dimension_numbers = #tpu.dot_dimension_numbers<[1], [0], [0], [1], [0, 0, 1, 1], [], []>} : vector<16x12xbf16>, vector<12x32xbf16>, vector<16x32xf32> -> vector<16x32xf32>
    %290 = arith.addf %285, %289 : vector<16x32xf32>
    %291 = vector.broadcast %1 : vector<1x32xf32> to vector<16x32xf32>
    %292 = arith.addf %290, %291 : vector<16x32xf32>
    %293 = arith.negf %292 : vector<16x32xf32>
    %294 = math.exp %293 : vector<16x32xf32>
    %cst_207 = arith.constant 1.000000e+00 : f32
    %295 = vector.broadcast %cst_207 : f32 to vector<16x32xf32>
    %296 = arith.addf %295, %294 : vector<16x32xf32>
    %297 = arith.divf %295, %296 : vector<16x32xf32>
    %298 = arith.mulf %292, %297 : vector<16x32xf32>
    %299 = arith.truncf %298 : vector<16x32xf32> to vector<16x32xbf16>
    %c0_208 = arith.constant 0 : index
    %c6 = arith.constant 6 : index
    %c0_209 = arith.constant 0 : index
    %c0_210 = arith.constant 0 : index
    %300 = vector.load %arg5[%c0_208, %c6, %c0_209, %c0_210] : memref<1x8x16x32xbf16, #tpu.memory_space<vmem>>, vector<1x1x16x32xbf16>
    %301 = vector.shape_cast %300 : vector<1x1x16x32xbf16> to vector<16x32xbf16>
    %302 = vector.shape_cast %299 : vector<16x32xbf16> to vector<1x1x16x32xbf16>
    tpu.vector_store %arg5[%c0_208, %c6, %c0_209, %c0_210], %302 {strides = array<i32>} : memref<1x8x16x32xbf16, #tpu.memory_space<vmem>>, vector<1x1x16x32xbf16>,
    %cst_211 = arith.constant 0.000000e+00 : f32
    %303 = vector.broadcast %cst_211 : f32 to vector<16x32xf32>
    %c7_i32 = arith.constant 7 : i32
    %304 = arith.addi %0, %c7_i32 : i32
    %c0_i32_212 = arith.constant 0 : i32
    %305 = arith.addi %304, %c0_i32_212 : i32
    %c0_213 = arith.constant 0 : index
    %306 = arith.index_cast %305 : i32 to index
    %c0_214 = arith.constant 0 : index
    %c0_215 = arith.constant 0 : index
    %307 = vector.load %arg2[%c0_213, %306, %c0_214, %c0_215] : memref<1x17x17x12xbf16, #tpu.memory_space<vmem>>, vector<1x1x17x12xbf16>
    %308 = vector.shape_cast %307 : vector<1x1x17x12xbf16> to vector<17x12xbf16>
    %309 = vector.extract_strided_slice %308 {offsets = [0, 0], sizes = [16, 12], strides = [1, 1]} : vector<17x12xbf16> to vector<16x12xbf16>
    %c0_216 = arith.constant 0 : index
    %c0_217 = arith.constant 0 : index
    %c0_218 = arith.constant 0 : index
    %310 = vector.load %arg3[%c0_216, %c0_217, %c0_218] : memref<4x12x32xbf16, #tpu.memory_space<vmem>>, vector<1x12x32xbf16>
    %311 = vector.shape_cast %310 : vector<1x12x32xbf16> to vector<12x32xbf16>
    %cst_219 = arith.constant dense<0.000000e+00> : vector<16x32xf32>
    %312 = tpu.matmul %309, %311, %cst_219 {dimension_numbers = #tpu.dot_dimension_numbers<[1], [0], [0], [1], [0, 0, 1, 1], [], []>} : vector<16x12xbf16>, vector<12x32xbf16>, vector<16x32xf32> -> vector<16x32xf32>
    %313 = arith.addf %303, %312 : vector<16x32xf32>
    %314 = vector.extract_strided_slice %308 {offsets = [1, 0], sizes = [16, 12], strides = [1, 1]} : vector<17x12xbf16> to vector<16x12xbf16>
    %c1_220 = arith.constant 1 : index
    %c0_221 = arith.constant 0 : index
    %c0_222 = arith.constant 0 : index
    %315 = vector.load %arg3[%c1_220, %c0_221, %c0_222] : memref<4x12x32xbf16, #tpu.memory_space<vmem>>, vector<1x12x32xbf16>
    %316 = vector.shape_cast %315 : vector<1x12x32xbf16> to vector<12x32xbf16>
    %cst_223 = arith.constant dense<0.000000e+00> : vector<16x32xf32>
    %317 = tpu.matmul %314, %316, %cst_223 {dimension_numbers = #tpu.dot_dimension_numbers<[1], [0], [0], [1], [0, 0, 1, 1], [], []>} : vector<16x12xbf16>, vector<12x32xbf16>, vector<16x32xf32> -> vector<16x32xf32>
    %318 = arith.addf %313, %317 : vector<16x32xf32>
    %c7_i32_224 = arith.constant 7 : i32
    %319 = arith.addi %0, %c7_i32_224 : i32
    %c1_i32_225 = arith.constant 1 : i32
    %320 = arith.addi %319, %c1_i32_225 : i32
    %c0_226 = arith.constant 0 : index
    %321 = arith.index_cast %320 : i32 to index
    %c0_227 = arith.constant 0 : index
    %c0_228 = arith.constant 0 : index
    %322 = vector.load %arg2[%c0_226, %321, %c0_227, %c0_228] : memref<1x17x17x12xbf16, #tpu.memory_space<vmem>>, vector<1x1x17x12xbf16>
    %323 = vector.shape_cast %322 : vector<1x1x17x12xbf16> to vector<17x12xbf16>
    %324 = vector.extract_strided_slice %323 {offsets = [0, 0], sizes = [16, 12], strides = [1, 1]} : vector<17x12xbf16> to vector<16x12xbf16>
    %c2_229 = arith.constant 2 : index
    %c0_230 = arith.constant 0 : index
    %c0_231 = arith.constant 0 : index
    %325 = vector.load %arg3[%c2_229, %c0_230, %c0_231] : memref<4x12x32xbf16, #tpu.memory_space<vmem>>, vector<1x12x32xbf16>
    %326 = vector.shape_cast %325 : vector<1x12x32xbf16> to vector<12x32xbf16>
    %cst_232 = arith.constant dense<0.000000e+00> : vector<16x32xf32>
    %327 = tpu.matmul %324, %326, %cst_232 {dimension_numbers = #tpu.dot_dimension_numbers<[1], [0], [0], [1], [0, 0, 1, 1], [], []>} : vector<16x12xbf16>, vector<12x32xbf16>, vector<16x32xf32> -> vector<16x32xf32>
    %328 = arith.addf %318, %327 : vector<16x32xf32>
    %329 = vector.extract_strided_slice %323 {offsets = [1, 0], sizes = [16, 12], strides = [1, 1]} : vector<17x12xbf16> to vector<16x12xbf16>
    %c3_233 = arith.constant 3 : index
    %c0_234 = arith.constant 0 : index
    %c0_235 = arith.constant 0 : index
    %330 = vector.load %arg3[%c3_233, %c0_234, %c0_235] : memref<4x12x32xbf16, #tpu.memory_space<vmem>>, vector<1x12x32xbf16>
    %331 = vector.shape_cast %330 : vector<1x12x32xbf16> to vector<12x32xbf16>
    %cst_236 = arith.constant dense<0.000000e+00> : vector<16x32xf32>
    %332 = tpu.matmul %329, %331, %cst_236 {dimension_numbers = #tpu.dot_dimension_numbers<[1], [0], [0], [1], [0, 0, 1, 1], [], []>} : vector<16x12xbf16>, vector<12x32xbf16>, vector<16x32xf32> -> vector<16x32xf32>
    %333 = arith.addf %328, %332 : vector<16x32xf32>
    %334 = vector.broadcast %1 : vector<1x32xf32> to vector<16x32xf32>
    %335 = arith.addf %333, %334 : vector<16x32xf32>
    %336 = arith.negf %335 : vector<16x32xf32>
    %337 = math.exp %336 : vector<16x32xf32>
    %cst_237 = arith.constant 1.000000e+00 : f32
    %338 = vector.broadcast %cst_237 : f32 to vector<16x32xf32>
    %339 = arith.addf %338, %337 : vector<16x32xf32>
    %340 = arith.divf %338, %339 : vector<16x32xf32>
    %341 = arith.mulf %335, %340 : vector<16x32xf32>
    %342 = arith.truncf %341 : vector<16x32xf32> to vector<16x32xbf16>
    %c0_238 = arith.constant 0 : index
    %c7 = arith.constant 7 : index
    %c0_239 = arith.constant 0 : index
    %c0_240 = arith.constant 0 : index
    %343 = vector.load %arg5[%c0_238, %c7, %c0_239, %c0_240] : memref<1x8x16x32xbf16, #tpu.memory_space<vmem>>, vector<1x1x16x32xbf16>
    %344 = vector.shape_cast %343 : vector<1x1x16x32xbf16> to vector<16x32xbf16>
    %345 = vector.shape_cast %342 : vector<16x32xbf16> to vector<1x1x16x32xbf16>
    tpu.vector_store %arg5[%c0_238, %c7, %c0_239, %c0_240], %345 {strides = array<i32>} : memref<1x8x16x32xbf16, #tpu.memory_space<vmem>>, vector<1x1x16x32xbf16>,
    return
  }
  func.func @transform_0(%arg0: i32, %arg1: i32) -> (i32, i32, i32, i32) {
    %c0_i32 = arith.constant 0 : i32
    %c0_i32_0 = arith.constant 0 : i32
    %c0_i32_1 = arith.constant 0 : i32
    %c0_i32_2 = arith.constant 0 : i32
    return %arg0, %c0_i32, %c0_i32_0, %c0_i32_1 : i32, i32, i32, i32
  }
  func.func @transform_1(%arg0: i32, %arg1: i32) -> (i32, i32, i32) {
    %c0_i32 = arith.constant 0 : i32
    %c0_i32_0 = arith.constant 0 : i32
    %c0_i32_1 = arith.constant 0 : i32
    %c0_i32_2 = arith.constant 0 : i32
    return %c0_i32, %c0_i32_0, %c0_i32_1 : i32, i32, i32
  }
  func.func @transform_2(%arg0: i32, %arg1: i32) -> (i32, i32) {
    %c0_i32 = arith.constant 0 : i32
    %c0_i32_0 = arith.constant 0 : i32
    %c0_i32_1 = arith.constant 0 : i32
    return %c0_i32, %c0_i32_0 : i32, i32
  }
  func.func @transform_3(%arg0: i32, %arg1: i32) -> (i32, i32, i32, i32) {
    %c0_i32 = arith.constant 0 : i32
    %c0_i32_0 = arith.constant 0 : i32
    %c0_i32_1 = arith.constant 0 : i32
    return %arg0, %arg1, %c0_i32, %c0_i32_0 : i32, i32, i32, i32
  }
}

module attributes {stable_mosaic.version = 11 : i64} {
  func.func @_conv4x4s2_kernel(%arg0: i32, %arg1: i32, %arg2: memref<1x9x9x128xbf16, #tpu.memory_space<vmem>>, %arg3: memref<4x128x64xbf16, #tpu.memory_space<vmem>>, %arg4: memref<1x64xf32, #tpu.memory_space<vmem>>, %arg5: memref<1x4x8x64xbf16, #tpu.memory_space<vmem>>) attributes {dimension_semantics = [#tpu.dimension_semantics<parallel>, #tpu.dimension_semantics<parallel>], iteration_bounds = array<i64: 2, 2>, scalar_prefetch = 0 : i64, scratch_operands = 0 : i64, tpu.core_type = #tpu.core_type<tc>, window_params = [{transform_indices = @transform_0, window_bounds = array<i64: 1, 9, 9, 128>}, {pipeline_mode = #tpu.pipeline_mode<synchronous>, transform_indices = @transform_1, window_bounds = array<i64: 4, 128, 64>}, {pipeline_mode = #tpu.pipeline_mode<synchronous>, transform_indices = @transform_2, window_bounds = array<i64: 1, 64>}, {transform_indices = @transform_3, window_bounds = array<i64: 1, 4, 8, 64>}]} {
    %c4_i32 = arith.constant 4 : i32
    %0 = arith.muli %arg1, %c4_i32 : i32
    %c0 = arith.constant 0 : index
    %c0_0 = arith.constant 0 : index
    %1 = vector.load %arg4[%c0, %c0_0] : memref<1x64xf32, #tpu.memory_space<vmem>>, vector<1x64xf32>
    %cst = arith.constant 0.000000e+00 : f32
    %2 = vector.broadcast %cst : f32 to vector<8x64xf32>
    %c0_i32 = arith.constant 0 : i32
    %3 = arith.addi %0, %c0_i32 : i32
    %c0_i32_1 = arith.constant 0 : i32
    %4 = arith.addi %3, %c0_i32_1 : i32
    %c0_2 = arith.constant 0 : index
    %5 = arith.index_cast %4 : i32 to index
    %c0_3 = arith.constant 0 : index
    %c0_4 = arith.constant 0 : index
    %6 = vector.load %arg2[%c0_2, %5, %c0_3, %c0_4] : memref<1x9x9x128xbf16, #tpu.memory_space<vmem>>, vector<1x1x9x128xbf16>
    %7 = vector.shape_cast %6 : vector<1x1x9x128xbf16> to vector<9x128xbf16>
    %8 = vector.extract_strided_slice %7 {offsets = [0, 0], sizes = [8, 128], strides = [1, 1]} : vector<9x128xbf16> to vector<8x128xbf16>
    %c0_5 = arith.constant 0 : index
    %c0_6 = arith.constant 0 : index
    %c0_7 = arith.constant 0 : index
    %9 = vector.load %arg3[%c0_5, %c0_6, %c0_7] : memref<4x128x64xbf16, #tpu.memory_space<vmem>>, vector<1x128x64xbf16>
    %10 = vector.shape_cast %9 : vector<1x128x64xbf16> to vector<128x64xbf16>
    %cst_8 = arith.constant dense<0.000000e+00> : vector<8x64xf32>
    %11 = tpu.matmul %8, %10, %cst_8 {dimension_numbers = #tpu.dot_dimension_numbers<[1], [0], [0], [1], [0, 0, 1, 1], [], []>} : vector<8x128xbf16>, vector<128x64xbf16>, vector<8x64xf32> -> vector<8x64xf32>
    %12 = arith.addf %2, %11 : vector<8x64xf32>
    %13 = vector.extract_strided_slice %7 {offsets = [1, 0], sizes = [8, 128], strides = [1, 1]} : vector<9x128xbf16> to vector<8x128xbf16>
    %c1 = arith.constant 1 : index
    %c0_9 = arith.constant 0 : index
    %c0_10 = arith.constant 0 : index
    %14 = vector.load %arg3[%c1, %c0_9, %c0_10] : memref<4x128x64xbf16, #tpu.memory_space<vmem>>, vector<1x128x64xbf16>
    %15 = vector.shape_cast %14 : vector<1x128x64xbf16> to vector<128x64xbf16>
    %cst_11 = arith.constant dense<0.000000e+00> : vector<8x64xf32>
    %16 = tpu.matmul %13, %15, %cst_11 {dimension_numbers = #tpu.dot_dimension_numbers<[1], [0], [0], [1], [0, 0, 1, 1], [], []>} : vector<8x128xbf16>, vector<128x64xbf16>, vector<8x64xf32> -> vector<8x64xf32>
    %17 = arith.addf %12, %16 : vector<8x64xf32>
    %c0_i32_12 = arith.constant 0 : i32
    %18 = arith.addi %0, %c0_i32_12 : i32
    %c1_i32 = arith.constant 1 : i32
    %19 = arith.addi %18, %c1_i32 : i32
    %c0_13 = arith.constant 0 : index
    %20 = arith.index_cast %19 : i32 to index
    %c0_14 = arith.constant 0 : index
    %c0_15 = arith.constant 0 : index
    %21 = vector.load %arg2[%c0_13, %20, %c0_14, %c0_15] : memref<1x9x9x128xbf16, #tpu.memory_space<vmem>>, vector<1x1x9x128xbf16>
    %22 = vector.shape_cast %21 : vector<1x1x9x128xbf16> to vector<9x128xbf16>
    %23 = vector.extract_strided_slice %22 {offsets = [0, 0], sizes = [8, 128], strides = [1, 1]} : vector<9x128xbf16> to vector<8x128xbf16>
    %c2 = arith.constant 2 : index
    %c0_16 = arith.constant 0 : index
    %c0_17 = arith.constant 0 : index
    %24 = vector.load %arg3[%c2, %c0_16, %c0_17] : memref<4x128x64xbf16, #tpu.memory_space<vmem>>, vector<1x128x64xbf16>
    %25 = vector.shape_cast %24 : vector<1x128x64xbf16> to vector<128x64xbf16>
    %cst_18 = arith.constant dense<0.000000e+00> : vector<8x64xf32>
    %26 = tpu.matmul %23, %25, %cst_18 {dimension_numbers = #tpu.dot_dimension_numbers<[1], [0], [0], [1], [0, 0, 1, 1], [], []>} : vector<8x128xbf16>, vector<128x64xbf16>, vector<8x64xf32> -> vector<8x64xf32>
    %27 = arith.addf %17, %26 : vector<8x64xf32>
    %28 = vector.extract_strided_slice %22 {offsets = [1, 0], sizes = [8, 128], strides = [1, 1]} : vector<9x128xbf16> to vector<8x128xbf16>
    %c3 = arith.constant 3 : index
    %c0_19 = arith.constant 0 : index
    %c0_20 = arith.constant 0 : index
    %29 = vector.load %arg3[%c3, %c0_19, %c0_20] : memref<4x128x64xbf16, #tpu.memory_space<vmem>>, vector<1x128x64xbf16>
    %30 = vector.shape_cast %29 : vector<1x128x64xbf16> to vector<128x64xbf16>
    %cst_21 = arith.constant dense<0.000000e+00> : vector<8x64xf32>
    %31 = tpu.matmul %28, %30, %cst_21 {dimension_numbers = #tpu.dot_dimension_numbers<[1], [0], [0], [1], [0, 0, 1, 1], [], []>} : vector<8x128xbf16>, vector<128x64xbf16>, vector<8x64xf32> -> vector<8x64xf32>
    %32 = arith.addf %27, %31 : vector<8x64xf32>
    %33 = vector.broadcast %1 : vector<1x64xf32> to vector<8x64xf32>
    %34 = arith.addf %32, %33 : vector<8x64xf32>
    %35 = arith.negf %34 : vector<8x64xf32>
    %36 = math.exp %35 : vector<8x64xf32>
    %cst_22 = arith.constant 1.000000e+00 : f32
    %37 = vector.broadcast %cst_22 : f32 to vector<8x64xf32>
    %38 = arith.addf %37, %36 : vector<8x64xf32>
    %39 = arith.divf %37, %38 : vector<8x64xf32>
    %40 = arith.mulf %34, %39 : vector<8x64xf32>
    %41 = arith.truncf %40 : vector<8x64xf32> to vector<8x64xbf16>
    %c0_23 = arith.constant 0 : index
    %c0_24 = arith.constant 0 : index
    %c0_25 = arith.constant 0 : index
    %c0_26 = arith.constant 0 : index
    %42 = vector.load %arg5[%c0_23, %c0_24, %c0_25, %c0_26] : memref<1x4x8x64xbf16, #tpu.memory_space<vmem>>, vector<1x1x8x64xbf16>
    %43 = vector.shape_cast %42 : vector<1x1x8x64xbf16> to vector<8x64xbf16>
    %44 = vector.shape_cast %41 : vector<8x64xbf16> to vector<1x1x8x64xbf16>
    tpu.vector_store %arg5[%c0_23, %c0_24, %c0_25, %c0_26], %44 {strides = array<i32>} : memref<1x4x8x64xbf16, #tpu.memory_space<vmem>>, vector<1x1x8x64xbf16>,
    %cst_27 = arith.constant 0.000000e+00 : f32
    %45 = vector.broadcast %cst_27 : f32 to vector<8x64xf32>
    %c1_i32_28 = arith.constant 1 : i32
    %46 = arith.addi %0, %c1_i32_28 : i32
    %c0_i32_29 = arith.constant 0 : i32
    %47 = arith.addi %46, %c0_i32_29 : i32
    %c0_30 = arith.constant 0 : index
    %48 = arith.index_cast %47 : i32 to index
    %c0_31 = arith.constant 0 : index
    %c0_32 = arith.constant 0 : index
    %49 = vector.load %arg2[%c0_30, %48, %c0_31, %c0_32] : memref<1x9x9x128xbf16, #tpu.memory_space<vmem>>, vector<1x1x9x128xbf16>
    %50 = vector.shape_cast %49 : vector<1x1x9x128xbf16> to vector<9x128xbf16>
    %51 = vector.extract_strided_slice %50 {offsets = [0, 0], sizes = [8, 128], strides = [1, 1]} : vector<9x128xbf16> to vector<8x128xbf16>
    %c0_33 = arith.constant 0 : index
    %c0_34 = arith.constant 0 : index
    %c0_35 = arith.constant 0 : index
    %52 = vector.load %arg3[%c0_33, %c0_34, %c0_35] : memref<4x128x64xbf16, #tpu.memory_space<vmem>>, vector<1x128x64xbf16>
    %53 = vector.shape_cast %52 : vector<1x128x64xbf16> to vector<128x64xbf16>
    %cst_36 = arith.constant dense<0.000000e+00> : vector<8x64xf32>
    %54 = tpu.matmul %51, %53, %cst_36 {dimension_numbers = #tpu.dot_dimension_numbers<[1], [0], [0], [1], [0, 0, 1, 1], [], []>} : vector<8x128xbf16>, vector<128x64xbf16>, vector<8x64xf32> -> vector<8x64xf32>
    %55 = arith.addf %45, %54 : vector<8x64xf32>
    %56 = vector.extract_strided_slice %50 {offsets = [1, 0], sizes = [8, 128], strides = [1, 1]} : vector<9x128xbf16> to vector<8x128xbf16>
    %c1_37 = arith.constant 1 : index
    %c0_38 = arith.constant 0 : index
    %c0_39 = arith.constant 0 : index
    %57 = vector.load %arg3[%c1_37, %c0_38, %c0_39] : memref<4x128x64xbf16, #tpu.memory_space<vmem>>, vector<1x128x64xbf16>
    %58 = vector.shape_cast %57 : vector<1x128x64xbf16> to vector<128x64xbf16>
    %cst_40 = arith.constant dense<0.000000e+00> : vector<8x64xf32>
    %59 = tpu.matmul %56, %58, %cst_40 {dimension_numbers = #tpu.dot_dimension_numbers<[1], [0], [0], [1], [0, 0, 1, 1], [], []>} : vector<8x128xbf16>, vector<128x64xbf16>, vector<8x64xf32> -> vector<8x64xf32>
    %60 = arith.addf %55, %59 : vector<8x64xf32>
    %c1_i32_41 = arith.constant 1 : i32
    %61 = arith.addi %0, %c1_i32_41 : i32
    %c1_i32_42 = arith.constant 1 : i32
    %62 = arith.addi %61, %c1_i32_42 : i32
    %c0_43 = arith.constant 0 : index
    %63 = arith.index_cast %62 : i32 to index
    %c0_44 = arith.constant 0 : index
    %c0_45 = arith.constant 0 : index
    %64 = vector.load %arg2[%c0_43, %63, %c0_44, %c0_45] : memref<1x9x9x128xbf16, #tpu.memory_space<vmem>>, vector<1x1x9x128xbf16>
    %65 = vector.shape_cast %64 : vector<1x1x9x128xbf16> to vector<9x128xbf16>
    %66 = vector.extract_strided_slice %65 {offsets = [0, 0], sizes = [8, 128], strides = [1, 1]} : vector<9x128xbf16> to vector<8x128xbf16>
    %c2_46 = arith.constant 2 : index
    %c0_47 = arith.constant 0 : index
    %c0_48 = arith.constant 0 : index
    %67 = vector.load %arg3[%c2_46, %c0_47, %c0_48] : memref<4x128x64xbf16, #tpu.memory_space<vmem>>, vector<1x128x64xbf16>
    %68 = vector.shape_cast %67 : vector<1x128x64xbf16> to vector<128x64xbf16>
    %cst_49 = arith.constant dense<0.000000e+00> : vector<8x64xf32>
    %69 = tpu.matmul %66, %68, %cst_49 {dimension_numbers = #tpu.dot_dimension_numbers<[1], [0], [0], [1], [0, 0, 1, 1], [], []>} : vector<8x128xbf16>, vector<128x64xbf16>, vector<8x64xf32> -> vector<8x64xf32>
    %70 = arith.addf %60, %69 : vector<8x64xf32>
    %71 = vector.extract_strided_slice %65 {offsets = [1, 0], sizes = [8, 128], strides = [1, 1]} : vector<9x128xbf16> to vector<8x128xbf16>
    %c3_50 = arith.constant 3 : index
    %c0_51 = arith.constant 0 : index
    %c0_52 = arith.constant 0 : index
    %72 = vector.load %arg3[%c3_50, %c0_51, %c0_52] : memref<4x128x64xbf16, #tpu.memory_space<vmem>>, vector<1x128x64xbf16>
    %73 = vector.shape_cast %72 : vector<1x128x64xbf16> to vector<128x64xbf16>
    %cst_53 = arith.constant dense<0.000000e+00> : vector<8x64xf32>
    %74 = tpu.matmul %71, %73, %cst_53 {dimension_numbers = #tpu.dot_dimension_numbers<[1], [0], [0], [1], [0, 0, 1, 1], [], []>} : vector<8x128xbf16>, vector<128x64xbf16>, vector<8x64xf32> -> vector<8x64xf32>
    %75 = arith.addf %70, %74 : vector<8x64xf32>
    %76 = vector.broadcast %1 : vector<1x64xf32> to vector<8x64xf32>
    %77 = arith.addf %75, %76 : vector<8x64xf32>
    %78 = arith.negf %77 : vector<8x64xf32>
    %79 = math.exp %78 : vector<8x64xf32>
    %cst_54 = arith.constant 1.000000e+00 : f32
    %80 = vector.broadcast %cst_54 : f32 to vector<8x64xf32>
    %81 = arith.addf %80, %79 : vector<8x64xf32>
    %82 = arith.divf %80, %81 : vector<8x64xf32>
    %83 = arith.mulf %77, %82 : vector<8x64xf32>
    %84 = arith.truncf %83 : vector<8x64xf32> to vector<8x64xbf16>
    %c0_55 = arith.constant 0 : index
    %c1_56 = arith.constant 1 : index
    %c0_57 = arith.constant 0 : index
    %c0_58 = arith.constant 0 : index
    %85 = vector.load %arg5[%c0_55, %c1_56, %c0_57, %c0_58] : memref<1x4x8x64xbf16, #tpu.memory_space<vmem>>, vector<1x1x8x64xbf16>
    %86 = vector.shape_cast %85 : vector<1x1x8x64xbf16> to vector<8x64xbf16>
    %87 = vector.shape_cast %84 : vector<8x64xbf16> to vector<1x1x8x64xbf16>
    tpu.vector_store %arg5[%c0_55, %c1_56, %c0_57, %c0_58], %87 {strides = array<i32>} : memref<1x4x8x64xbf16, #tpu.memory_space<vmem>>, vector<1x1x8x64xbf16>,
    %cst_59 = arith.constant 0.000000e+00 : f32
    %88 = vector.broadcast %cst_59 : f32 to vector<8x64xf32>
    %c2_i32 = arith.constant 2 : i32
    %89 = arith.addi %0, %c2_i32 : i32
    %c0_i32_60 = arith.constant 0 : i32
    %90 = arith.addi %89, %c0_i32_60 : i32
    %c0_61 = arith.constant 0 : index
    %91 = arith.index_cast %90 : i32 to index
    %c0_62 = arith.constant 0 : index
    %c0_63 = arith.constant 0 : index
    %92 = vector.load %arg2[%c0_61, %91, %c0_62, %c0_63] : memref<1x9x9x128xbf16, #tpu.memory_space<vmem>>, vector<1x1x9x128xbf16>
    %93 = vector.shape_cast %92 : vector<1x1x9x128xbf16> to vector<9x128xbf16>
    %94 = vector.extract_strided_slice %93 {offsets = [0, 0], sizes = [8, 128], strides = [1, 1]} : vector<9x128xbf16> to vector<8x128xbf16>
    %c0_64 = arith.constant 0 : index
    %c0_65 = arith.constant 0 : index
    %c0_66 = arith.constant 0 : index
    %95 = vector.load %arg3[%c0_64, %c0_65, %c0_66] : memref<4x128x64xbf16, #tpu.memory_space<vmem>>, vector<1x128x64xbf16>
    %96 = vector.shape_cast %95 : vector<1x128x64xbf16> to vector<128x64xbf16>
    %cst_67 = arith.constant dense<0.000000e+00> : vector<8x64xf32>
    %97 = tpu.matmul %94, %96, %cst_67 {dimension_numbers = #tpu.dot_dimension_numbers<[1], [0], [0], [1], [0, 0, 1, 1], [], []>} : vector<8x128xbf16>, vector<128x64xbf16>, vector<8x64xf32> -> vector<8x64xf32>
    %98 = arith.addf %88, %97 : vector<8x64xf32>
    %99 = vector.extract_strided_slice %93 {offsets = [1, 0], sizes = [8, 128], strides = [1, 1]} : vector<9x128xbf16> to vector<8x128xbf16>
    %c1_68 = arith.constant 1 : index
    %c0_69 = arith.constant 0 : index
    %c0_70 = arith.constant 0 : index
    %100 = vector.load %arg3[%c1_68, %c0_69, %c0_70] : memref<4x128x64xbf16, #tpu.memory_space<vmem>>, vector<1x128x64xbf16>
    %101 = vector.shape_cast %100 : vector<1x128x64xbf16> to vector<128x64xbf16>
    %cst_71 = arith.constant dense<0.000000e+00> : vector<8x64xf32>
    %102 = tpu.matmul %99, %101, %cst_71 {dimension_numbers = #tpu.dot_dimension_numbers<[1], [0], [0], [1], [0, 0, 1, 1], [], []>} : vector<8x128xbf16>, vector<128x64xbf16>, vector<8x64xf32> -> vector<8x64xf32>
    %103 = arith.addf %98, %102 : vector<8x64xf32>
    %c2_i32_72 = arith.constant 2 : i32
    %104 = arith.addi %0, %c2_i32_72 : i32
    %c1_i32_73 = arith.constant 1 : i32
    %105 = arith.addi %104, %c1_i32_73 : i32
    %c0_74 = arith.constant 0 : index
    %106 = arith.index_cast %105 : i32 to index
    %c0_75 = arith.constant 0 : index
    %c0_76 = arith.constant 0 : index
    %107 = vector.load %arg2[%c0_74, %106, %c0_75, %c0_76] : memref<1x9x9x128xbf16, #tpu.memory_space<vmem>>, vector<1x1x9x128xbf16>
    %108 = vector.shape_cast %107 : vector<1x1x9x128xbf16> to vector<9x128xbf16>
    %109 = vector.extract_strided_slice %108 {offsets = [0, 0], sizes = [8, 128], strides = [1, 1]} : vector<9x128xbf16> to vector<8x128xbf16>
    %c2_77 = arith.constant 2 : index
    %c0_78 = arith.constant 0 : index
    %c0_79 = arith.constant 0 : index
    %110 = vector.load %arg3[%c2_77, %c0_78, %c0_79] : memref<4x128x64xbf16, #tpu.memory_space<vmem>>, vector<1x128x64xbf16>
    %111 = vector.shape_cast %110 : vector<1x128x64xbf16> to vector<128x64xbf16>
    %cst_80 = arith.constant dense<0.000000e+00> : vector<8x64xf32>
    %112 = tpu.matmul %109, %111, %cst_80 {dimension_numbers = #tpu.dot_dimension_numbers<[1], [0], [0], [1], [0, 0, 1, 1], [], []>} : vector<8x128xbf16>, vector<128x64xbf16>, vector<8x64xf32> -> vector<8x64xf32>
    %113 = arith.addf %103, %112 : vector<8x64xf32>
    %114 = vector.extract_strided_slice %108 {offsets = [1, 0], sizes = [8, 128], strides = [1, 1]} : vector<9x128xbf16> to vector<8x128xbf16>
    %c3_81 = arith.constant 3 : index
    %c0_82 = arith.constant 0 : index
    %c0_83 = arith.constant 0 : index
    %115 = vector.load %arg3[%c3_81, %c0_82, %c0_83] : memref<4x128x64xbf16, #tpu.memory_space<vmem>>, vector<1x128x64xbf16>
    %116 = vector.shape_cast %115 : vector<1x128x64xbf16> to vector<128x64xbf16>
    %cst_84 = arith.constant dense<0.000000e+00> : vector<8x64xf32>
    %117 = tpu.matmul %114, %116, %cst_84 {dimension_numbers = #tpu.dot_dimension_numbers<[1], [0], [0], [1], [0, 0, 1, 1], [], []>} : vector<8x128xbf16>, vector<128x64xbf16>, vector<8x64xf32> -> vector<8x64xf32>
    %118 = arith.addf %113, %117 : vector<8x64xf32>
    %119 = vector.broadcast %1 : vector<1x64xf32> to vector<8x64xf32>
    %120 = arith.addf %118, %119 : vector<8x64xf32>
    %121 = arith.negf %120 : vector<8x64xf32>
    %122 = math.exp %121 : vector<8x64xf32>
    %cst_85 = arith.constant 1.000000e+00 : f32
    %123 = vector.broadcast %cst_85 : f32 to vector<8x64xf32>
    %124 = arith.addf %123, %122 : vector<8x64xf32>
    %125 = arith.divf %123, %124 : vector<8x64xf32>
    %126 = arith.mulf %120, %125 : vector<8x64xf32>
    %127 = arith.truncf %126 : vector<8x64xf32> to vector<8x64xbf16>
    %c0_86 = arith.constant 0 : index
    %c2_87 = arith.constant 2 : index
    %c0_88 = arith.constant 0 : index
    %c0_89 = arith.constant 0 : index
    %128 = vector.load %arg5[%c0_86, %c2_87, %c0_88, %c0_89] : memref<1x4x8x64xbf16, #tpu.memory_space<vmem>>, vector<1x1x8x64xbf16>
    %129 = vector.shape_cast %128 : vector<1x1x8x64xbf16> to vector<8x64xbf16>
    %130 = vector.shape_cast %127 : vector<8x64xbf16> to vector<1x1x8x64xbf16>
    tpu.vector_store %arg5[%c0_86, %c2_87, %c0_88, %c0_89], %130 {strides = array<i32>} : memref<1x4x8x64xbf16, #tpu.memory_space<vmem>>, vector<1x1x8x64xbf16>,
    %cst_90 = arith.constant 0.000000e+00 : f32
    %131 = vector.broadcast %cst_90 : f32 to vector<8x64xf32>
    %c3_i32 = arith.constant 3 : i32
    %132 = arith.addi %0, %c3_i32 : i32
    %c0_i32_91 = arith.constant 0 : i32
    %133 = arith.addi %132, %c0_i32_91 : i32
    %c0_92 = arith.constant 0 : index
    %134 = arith.index_cast %133 : i32 to index
    %c0_93 = arith.constant 0 : index
    %c0_94 = arith.constant 0 : index
    %135 = vector.load %arg2[%c0_92, %134, %c0_93, %c0_94] : memref<1x9x9x128xbf16, #tpu.memory_space<vmem>>, vector<1x1x9x128xbf16>
    %136 = vector.shape_cast %135 : vector<1x1x9x128xbf16> to vector<9x128xbf16>
    %137 = vector.extract_strided_slice %136 {offsets = [0, 0], sizes = [8, 128], strides = [1, 1]} : vector<9x128xbf16> to vector<8x128xbf16>
    %c0_95 = arith.constant 0 : index
    %c0_96 = arith.constant 0 : index
    %c0_97 = arith.constant 0 : index
    %138 = vector.load %arg3[%c0_95, %c0_96, %c0_97] : memref<4x128x64xbf16, #tpu.memory_space<vmem>>, vector<1x128x64xbf16>
    %139 = vector.shape_cast %138 : vector<1x128x64xbf16> to vector<128x64xbf16>
    %cst_98 = arith.constant dense<0.000000e+00> : vector<8x64xf32>
    %140 = tpu.matmul %137, %139, %cst_98 {dimension_numbers = #tpu.dot_dimension_numbers<[1], [0], [0], [1], [0, 0, 1, 1], [], []>} : vector<8x128xbf16>, vector<128x64xbf16>, vector<8x64xf32> -> vector<8x64xf32>
    %141 = arith.addf %131, %140 : vector<8x64xf32>
    %142 = vector.extract_strided_slice %136 {offsets = [1, 0], sizes = [8, 128], strides = [1, 1]} : vector<9x128xbf16> to vector<8x128xbf16>
    %c1_99 = arith.constant 1 : index
    %c0_100 = arith.constant 0 : index
    %c0_101 = arith.constant 0 : index
    %143 = vector.load %arg3[%c1_99, %c0_100, %c0_101] : memref<4x128x64xbf16, #tpu.memory_space<vmem>>, vector<1x128x64xbf16>
    %144 = vector.shape_cast %143 : vector<1x128x64xbf16> to vector<128x64xbf16>
    %cst_102 = arith.constant dense<0.000000e+00> : vector<8x64xf32>
    %145 = tpu.matmul %142, %144, %cst_102 {dimension_numbers = #tpu.dot_dimension_numbers<[1], [0], [0], [1], [0, 0, 1, 1], [], []>} : vector<8x128xbf16>, vector<128x64xbf16>, vector<8x64xf32> -> vector<8x64xf32>
    %146 = arith.addf %141, %145 : vector<8x64xf32>
    %c3_i32_103 = arith.constant 3 : i32
    %147 = arith.addi %0, %c3_i32_103 : i32
    %c1_i32_104 = arith.constant 1 : i32
    %148 = arith.addi %147, %c1_i32_104 : i32
    %c0_105 = arith.constant 0 : index
    %149 = arith.index_cast %148 : i32 to index
    %c0_106 = arith.constant 0 : index
    %c0_107 = arith.constant 0 : index
    %150 = vector.load %arg2[%c0_105, %149, %c0_106, %c0_107] : memref<1x9x9x128xbf16, #tpu.memory_space<vmem>>, vector<1x1x9x128xbf16>
    %151 = vector.shape_cast %150 : vector<1x1x9x128xbf16> to vector<9x128xbf16>
    %152 = vector.extract_strided_slice %151 {offsets = [0, 0], sizes = [8, 128], strides = [1, 1]} : vector<9x128xbf16> to vector<8x128xbf16>
    %c2_108 = arith.constant 2 : index
    %c0_109 = arith.constant 0 : index
    %c0_110 = arith.constant 0 : index
    %153 = vector.load %arg3[%c2_108, %c0_109, %c0_110] : memref<4x128x64xbf16, #tpu.memory_space<vmem>>, vector<1x128x64xbf16>
    %154 = vector.shape_cast %153 : vector<1x128x64xbf16> to vector<128x64xbf16>
    %cst_111 = arith.constant dense<0.000000e+00> : vector<8x64xf32>
    %155 = tpu.matmul %152, %154, %cst_111 {dimension_numbers = #tpu.dot_dimension_numbers<[1], [0], [0], [1], [0, 0, 1, 1], [], []>} : vector<8x128xbf16>, vector<128x64xbf16>, vector<8x64xf32> -> vector<8x64xf32>
    %156 = arith.addf %146, %155 : vector<8x64xf32>
    %157 = vector.extract_strided_slice %151 {offsets = [1, 0], sizes = [8, 128], strides = [1, 1]} : vector<9x128xbf16> to vector<8x128xbf16>
    %c3_112 = arith.constant 3 : index
    %c0_113 = arith.constant 0 : index
    %c0_114 = arith.constant 0 : index
    %158 = vector.load %arg3[%c3_112, %c0_113, %c0_114] : memref<4x128x64xbf16, #tpu.memory_space<vmem>>, vector<1x128x64xbf16>
    %159 = vector.shape_cast %158 : vector<1x128x64xbf16> to vector<128x64xbf16>
    %cst_115 = arith.constant dense<0.000000e+00> : vector<8x64xf32>
    %160 = tpu.matmul %157, %159, %cst_115 {dimension_numbers = #tpu.dot_dimension_numbers<[1], [0], [0], [1], [0, 0, 1, 1], [], []>} : vector<8x128xbf16>, vector<128x64xbf16>, vector<8x64xf32> -> vector<8x64xf32>
    %161 = arith.addf %156, %160 : vector<8x64xf32>
    %162 = vector.broadcast %1 : vector<1x64xf32> to vector<8x64xf32>
    %163 = arith.addf %161, %162 : vector<8x64xf32>
    %164 = arith.negf %163 : vector<8x64xf32>
    %165 = math.exp %164 : vector<8x64xf32>
    %cst_116 = arith.constant 1.000000e+00 : f32
    %166 = vector.broadcast %cst_116 : f32 to vector<8x64xf32>
    %167 = arith.addf %166, %165 : vector<8x64xf32>
    %168 = arith.divf %166, %167 : vector<8x64xf32>
    %169 = arith.mulf %163, %168 : vector<8x64xf32>
    %170 = arith.truncf %169 : vector<8x64xf32> to vector<8x64xbf16>
    %c0_117 = arith.constant 0 : index
    %c3_118 = arith.constant 3 : index
    %c0_119 = arith.constant 0 : index
    %c0_120 = arith.constant 0 : index
    %171 = vector.load %arg5[%c0_117, %c3_118, %c0_119, %c0_120] : memref<1x4x8x64xbf16, #tpu.memory_space<vmem>>, vector<1x1x8x64xbf16>
    %172 = vector.shape_cast %171 : vector<1x1x8x64xbf16> to vector<8x64xbf16>
    %173 = vector.shape_cast %170 : vector<8x64xbf16> to vector<1x1x8x64xbf16>
    tpu.vector_store %arg5[%c0_117, %c3_118, %c0_119, %c0_120], %173 {strides = array<i32>} : memref<1x4x8x64xbf16, #tpu.memory_space<vmem>>, vector<1x1x8x64xbf16>,
    return
  }
  func.func @transform_0(%arg0: i32, %arg1: i32) -> (i32, i32, i32, i32) {
    %c0_i32 = arith.constant 0 : i32
    %c0_i32_0 = arith.constant 0 : i32
    %c0_i32_1 = arith.constant 0 : i32
    %c0_i32_2 = arith.constant 0 : i32
    return %arg0, %c0_i32, %c0_i32_0, %c0_i32_1 : i32, i32, i32, i32
  }
  func.func @transform_1(%arg0: i32, %arg1: i32) -> (i32, i32, i32) {
    %c0_i32 = arith.constant 0 : i32
    %c0_i32_0 = arith.constant 0 : i32
    %c0_i32_1 = arith.constant 0 : i32
    %c0_i32_2 = arith.constant 0 : i32
    return %c0_i32, %c0_i32_0, %c0_i32_1 : i32, i32, i32
  }
  func.func @transform_2(%arg0: i32, %arg1: i32) -> (i32, i32) {
    %c0_i32 = arith.constant 0 : i32
    %c0_i32_0 = arith.constant 0 : i32
    %c0_i32_1 = arith.constant 0 : i32
    return %c0_i32, %c0_i32_0 : i32, i32
  }
  func.func @transform_3(%arg0: i32, %arg1: i32) -> (i32, i32, i32, i32) {
    %c0_i32 = arith.constant 0 : i32
    %c0_i32_0 = arith.constant 0 : i32
    %c0_i32_1 = arith.constant 0 : i32
    return %arg0, %arg1, %c0_i32, %c0_i32_0 : i32, i32, i32, i32
  }
}

module attributes {stable_mosaic.version = 11 : i64} {
  func.func @_conv4x4s2_kernel(%arg0: i32, %arg1: i32, %arg2: memref<1x5x5x256xbf16, #tpu.memory_space<vmem>>, %arg3: memref<4x256x128xbf16, #tpu.memory_space<vmem>>, %arg4: memref<1x128xf32, #tpu.memory_space<vmem>>, %arg5: memref<1x2x4x128xbf16, #tpu.memory_space<vmem>>) attributes {dimension_semantics = [#tpu.dimension_semantics<parallel>, #tpu.dimension_semantics<parallel>], iteration_bounds = array<i64: 2, 2>, scalar_prefetch = 0 : i64, scratch_operands = 0 : i64, tpu.core_type = #tpu.core_type<tc>, window_params = [{transform_indices = @transform_0, window_bounds = array<i64: 1, 5, 5, 256>}, {pipeline_mode = #tpu.pipeline_mode<synchronous>, transform_indices = @transform_1, window_bounds = array<i64: 4, 256, 128>}, {pipeline_mode = #tpu.pipeline_mode<synchronous>, transform_indices = @transform_2, window_bounds = array<i64: 1, 128>}, {transform_indices = @transform_3, window_bounds = array<i64: 1, 2, 4, 128>}]} {
    %c2_i32 = arith.constant 2 : i32
    %0 = arith.muli %arg1, %c2_i32 : i32
    %c0 = arith.constant 0 : index
    %c0_0 = arith.constant 0 : index
    %1 = vector.load %arg4[%c0, %c0_0] : memref<1x128xf32, #tpu.memory_space<vmem>>, vector<1x128xf32>
    %cst = arith.constant 0.000000e+00 : f32
    %2 = vector.broadcast %cst : f32 to vector<4x128xf32>
    %c0_i32 = arith.constant 0 : i32
    %3 = arith.addi %0, %c0_i32 : i32
    %c0_i32_1 = arith.constant 0 : i32
    %4 = arith.addi %3, %c0_i32_1 : i32
    %c0_2 = arith.constant 0 : index
    %5 = arith.index_cast %4 : i32 to index
    %c0_3 = arith.constant 0 : index
    %c0_4 = arith.constant 0 : index
    %6 = vector.load %arg2[%c0_2, %5, %c0_3, %c0_4] : memref<1x5x5x256xbf16, #tpu.memory_space<vmem>>, vector<1x1x5x256xbf16>
    %7 = vector.shape_cast %6 : vector<1x1x5x256xbf16> to vector<5x256xbf16>
    %8 = vector.extract_strided_slice %7 {offsets = [0, 0], sizes = [4, 256], strides = [1, 1]} : vector<5x256xbf16> to vector<4x256xbf16>
    %c0_5 = arith.constant 0 : index
    %c0_6 = arith.constant 0 : index
    %c0_7 = arith.constant 0 : index
    %9 = vector.load %arg3[%c0_5, %c0_6, %c0_7] : memref<4x256x128xbf16, #tpu.memory_space<vmem>>, vector<1x256x128xbf16>
    %10 = vector.shape_cast %9 : vector<1x256x128xbf16> to vector<256x128xbf16>
    %cst_8 = arith.constant dense<0.000000e+00> : vector<4x128xf32>
    %11 = tpu.matmul %8, %10, %cst_8 {dimension_numbers = #tpu.dot_dimension_numbers<[1], [0], [0], [1], [0, 0, 1, 1], [], []>} : vector<4x256xbf16>, vector<256x128xbf16>, vector<4x128xf32> -> vector<4x128xf32>
    %12 = arith.addf %2, %11 : vector<4x128xf32>
    %13 = vector.extract_strided_slice %7 {offsets = [1, 0], sizes = [4, 256], strides = [1, 1]} : vector<5x256xbf16> to vector<4x256xbf16>
    %c1 = arith.constant 1 : index
    %c0_9 = arith.constant 0 : index
    %c0_10 = arith.constant 0 : index
    %14 = vector.load %arg3[%c1, %c0_9, %c0_10] : memref<4x256x128xbf16, #tpu.memory_space<vmem>>, vector<1x256x128xbf16>
    %15 = vector.shape_cast %14 : vector<1x256x128xbf16> to vector<256x128xbf16>
    %cst_11 = arith.constant dense<0.000000e+00> : vector<4x128xf32>
    %16 = tpu.matmul %13, %15, %cst_11 {dimension_numbers = #tpu.dot_dimension_numbers<[1], [0], [0], [1], [0, 0, 1, 1], [], []>} : vector<4x256xbf16>, vector<256x128xbf16>, vector<4x128xf32> -> vector<4x128xf32>
    %17 = arith.addf %12, %16 : vector<4x128xf32>
    %c0_i32_12 = arith.constant 0 : i32
    %18 = arith.addi %0, %c0_i32_12 : i32
    %c1_i32 = arith.constant 1 : i32
    %19 = arith.addi %18, %c1_i32 : i32
    %c0_13 = arith.constant 0 : index
    %20 = arith.index_cast %19 : i32 to index
    %c0_14 = arith.constant 0 : index
    %c0_15 = arith.constant 0 : index
    %21 = vector.load %arg2[%c0_13, %20, %c0_14, %c0_15] : memref<1x5x5x256xbf16, #tpu.memory_space<vmem>>, vector<1x1x5x256xbf16>
    %22 = vector.shape_cast %21 : vector<1x1x5x256xbf16> to vector<5x256xbf16>
    %23 = vector.extract_strided_slice %22 {offsets = [0, 0], sizes = [4, 256], strides = [1, 1]} : vector<5x256xbf16> to vector<4x256xbf16>
    %c2 = arith.constant 2 : index
    %c0_16 = arith.constant 0 : index
    %c0_17 = arith.constant 0 : index
    %24 = vector.load %arg3[%c2, %c0_16, %c0_17] : memref<4x256x128xbf16, #tpu.memory_space<vmem>>, vector<1x256x128xbf16>
    %25 = vector.shape_cast %24 : vector<1x256x128xbf16> to vector<256x128xbf16>
    %cst_18 = arith.constant dense<0.000000e+00> : vector<4x128xf32>
    %26 = tpu.matmul %23, %25, %cst_18 {dimension_numbers = #tpu.dot_dimension_numbers<[1], [0], [0], [1], [0, 0, 1, 1], [], []>} : vector<4x256xbf16>, vector<256x128xbf16>, vector<4x128xf32> -> vector<4x128xf32>
    %27 = arith.addf %17, %26 : vector<4x128xf32>
    %28 = vector.extract_strided_slice %22 {offsets = [1, 0], sizes = [4, 256], strides = [1, 1]} : vector<5x256xbf16> to vector<4x256xbf16>
    %c3 = arith.constant 3 : index
    %c0_19 = arith.constant 0 : index
    %c0_20 = arith.constant 0 : index
    %29 = vector.load %arg3[%c3, %c0_19, %c0_20] : memref<4x256x128xbf16, #tpu.memory_space<vmem>>, vector<1x256x128xbf16>
    %30 = vector.shape_cast %29 : vector<1x256x128xbf16> to vector<256x128xbf16>
    %cst_21 = arith.constant dense<0.000000e+00> : vector<4x128xf32>
    %31 = tpu.matmul %28, %30, %cst_21 {dimension_numbers = #tpu.dot_dimension_numbers<[1], [0], [0], [1], [0, 0, 1, 1], [], []>} : vector<4x256xbf16>, vector<256x128xbf16>, vector<4x128xf32> -> vector<4x128xf32>
    %32 = arith.addf %27, %31 : vector<4x128xf32>
    %33 = vector.broadcast %1 : vector<1x128xf32> to vector<4x128xf32>
    %34 = arith.addf %32, %33 : vector<4x128xf32>
    %35 = arith.negf %34 : vector<4x128xf32>
    %36 = math.exp %35 : vector<4x128xf32>
    %cst_22 = arith.constant 1.000000e+00 : f32
    %37 = vector.broadcast %cst_22 : f32 to vector<4x128xf32>
    %38 = arith.addf %37, %36 : vector<4x128xf32>
    %39 = arith.divf %37, %38 : vector<4x128xf32>
    %40 = arith.mulf %34, %39 : vector<4x128xf32>
    %41 = arith.truncf %40 : vector<4x128xf32> to vector<4x128xbf16>
    %c0_23 = arith.constant 0 : index
    %c0_24 = arith.constant 0 : index
    %c0_25 = arith.constant 0 : index
    %c0_26 = arith.constant 0 : index
    %42 = vector.load %arg5[%c0_23, %c0_24, %c0_25, %c0_26] : memref<1x2x4x128xbf16, #tpu.memory_space<vmem>>, vector<1x1x4x128xbf16>
    %43 = vector.shape_cast %42 : vector<1x1x4x128xbf16> to vector<4x128xbf16>
    %44 = vector.shape_cast %41 : vector<4x128xbf16> to vector<1x1x4x128xbf16>
    tpu.vector_store %arg5[%c0_23, %c0_24, %c0_25, %c0_26], %44 {strides = array<i32>} : memref<1x2x4x128xbf16, #tpu.memory_space<vmem>>, vector<1x1x4x128xbf16>,
    %cst_27 = arith.constant 0.000000e+00 : f32
    %45 = vector.broadcast %cst_27 : f32 to vector<4x128xf32>
    %c1_i32_28 = arith.constant 1 : i32
    %46 = arith.addi %0, %c1_i32_28 : i32
    %c0_i32_29 = arith.constant 0 : i32
    %47 = arith.addi %46, %c0_i32_29 : i32
    %c0_30 = arith.constant 0 : index
    %48 = arith.index_cast %47 : i32 to index
    %c0_31 = arith.constant 0 : index
    %c0_32 = arith.constant 0 : index
    %49 = vector.load %arg2[%c0_30, %48, %c0_31, %c0_32] : memref<1x5x5x256xbf16, #tpu.memory_space<vmem>>, vector<1x1x5x256xbf16>
    %50 = vector.shape_cast %49 : vector<1x1x5x256xbf16> to vector<5x256xbf16>
    %51 = vector.extract_strided_slice %50 {offsets = [0, 0], sizes = [4, 256], strides = [1, 1]} : vector<5x256xbf16> to vector<4x256xbf16>
    %c0_33 = arith.constant 0 : index
    %c0_34 = arith.constant 0 : index
    %c0_35 = arith.constant 0 : index
    %52 = vector.load %arg3[%c0_33, %c0_34, %c0_35] : memref<4x256x128xbf16, #tpu.memory_space<vmem>>, vector<1x256x128xbf16>
    %53 = vector.shape_cast %52 : vector<1x256x128xbf16> to vector<256x128xbf16>
    %cst_36 = arith.constant dense<0.000000e+00> : vector<4x128xf32>
    %54 = tpu.matmul %51, %53, %cst_36 {dimension_numbers = #tpu.dot_dimension_numbers<[1], [0], [0], [1], [0, 0, 1, 1], [], []>} : vector<4x256xbf16>, vector<256x128xbf16>, vector<4x128xf32> -> vector<4x128xf32>
    %55 = arith.addf %45, %54 : vector<4x128xf32>
    %56 = vector.extract_strided_slice %50 {offsets = [1, 0], sizes = [4, 256], strides = [1, 1]} : vector<5x256xbf16> to vector<4x256xbf16>
    %c1_37 = arith.constant 1 : index
    %c0_38 = arith.constant 0 : index
    %c0_39 = arith.constant 0 : index
    %57 = vector.load %arg3[%c1_37, %c0_38, %c0_39] : memref<4x256x128xbf16, #tpu.memory_space<vmem>>, vector<1x256x128xbf16>
    %58 = vector.shape_cast %57 : vector<1x256x128xbf16> to vector<256x128xbf16>
    %cst_40 = arith.constant dense<0.000000e+00> : vector<4x128xf32>
    %59 = tpu.matmul %56, %58, %cst_40 {dimension_numbers = #tpu.dot_dimension_numbers<[1], [0], [0], [1], [0, 0, 1, 1], [], []>} : vector<4x256xbf16>, vector<256x128xbf16>, vector<4x128xf32> -> vector<4x128xf32>
    %60 = arith.addf %55, %59 : vector<4x128xf32>
    %c1_i32_41 = arith.constant 1 : i32
    %61 = arith.addi %0, %c1_i32_41 : i32
    %c1_i32_42 = arith.constant 1 : i32
    %62 = arith.addi %61, %c1_i32_42 : i32
    %c0_43 = arith.constant 0 : index
    %63 = arith.index_cast %62 : i32 to index
    %c0_44 = arith.constant 0 : index
    %c0_45 = arith.constant 0 : index
    %64 = vector.load %arg2[%c0_43, %63, %c0_44, %c0_45] : memref<1x5x5x256xbf16, #tpu.memory_space<vmem>>, vector<1x1x5x256xbf16>
    %65 = vector.shape_cast %64 : vector<1x1x5x256xbf16> to vector<5x256xbf16>
    %66 = vector.extract_strided_slice %65 {offsets = [0, 0], sizes = [4, 256], strides = [1, 1]} : vector<5x256xbf16> to vector<4x256xbf16>
    %c2_46 = arith.constant 2 : index
    %c0_47 = arith.constant 0 : index
    %c0_48 = arith.constant 0 : index
    %67 = vector.load %arg3[%c2_46, %c0_47, %c0_48] : memref<4x256x128xbf16, #tpu.memory_space<vmem>>, vector<1x256x128xbf16>
    %68 = vector.shape_cast %67 : vector<1x256x128xbf16> to vector<256x128xbf16>
    %cst_49 = arith.constant dense<0.000000e+00> : vector<4x128xf32>
    %69 = tpu.matmul %66, %68, %cst_49 {dimension_numbers = #tpu.dot_dimension_numbers<[1], [0], [0], [1], [0, 0, 1, 1], [], []>} : vector<4x256xbf16>, vector<256x128xbf16>, vector<4x128xf32> -> vector<4x128xf32>
    %70 = arith.addf %60, %69 : vector<4x128xf32>
    %71 = vector.extract_strided_slice %65 {offsets = [1, 0], sizes = [4, 256], strides = [1, 1]} : vector<5x256xbf16> to vector<4x256xbf16>
    %c3_50 = arith.constant 3 : index
    %c0_51 = arith.constant 0 : index
    %c0_52 = arith.constant 0 : index
    %72 = vector.load %arg3[%c3_50, %c0_51, %c0_52] : memref<4x256x128xbf16, #tpu.memory_space<vmem>>, vector<1x256x128xbf16>
    %73 = vector.shape_cast %72 : vector<1x256x128xbf16> to vector<256x128xbf16>
    %cst_53 = arith.constant dense<0.000000e+00> : vector<4x128xf32>
    %74 = tpu.matmul %71, %73, %cst_53 {dimension_numbers = #tpu.dot_dimension_numbers<[1], [0], [0], [1], [0, 0, 1, 1], [], []>} : vector<4x256xbf16>, vector<256x128xbf16>, vector<4x128xf32> -> vector<4x128xf32>
    %75 = arith.addf %70, %74 : vector<4x128xf32>
    %76 = vector.broadcast %1 : vector<1x128xf32> to vector<4x128xf32>
    %77 = arith.addf %75, %76 : vector<4x128xf32>
    %78 = arith.negf %77 : vector<4x128xf32>
    %79 = math.exp %78 : vector<4x128xf32>
    %cst_54 = arith.constant 1.000000e+00 : f32
    %80 = vector.broadcast %cst_54 : f32 to vector<4x128xf32>
    %81 = arith.addf %80, %79 : vector<4x128xf32>
    %82 = arith.divf %80, %81 : vector<4x128xf32>
    %83 = arith.mulf %77, %82 : vector<4x128xf32>
    %84 = arith.truncf %83 : vector<4x128xf32> to vector<4x128xbf16>
    %c0_55 = arith.constant 0 : index
    %c1_56 = arith.constant 1 : index
    %c0_57 = arith.constant 0 : index
    %c0_58 = arith.constant 0 : index
    %85 = vector.load %arg5[%c0_55, %c1_56, %c0_57, %c0_58] : memref<1x2x4x128xbf16, #tpu.memory_space<vmem>>, vector<1x1x4x128xbf16>
    %86 = vector.shape_cast %85 : vector<1x1x4x128xbf16> to vector<4x128xbf16>
    %87 = vector.shape_cast %84 : vector<4x128xbf16> to vector<1x1x4x128xbf16>
    tpu.vector_store %arg5[%c0_55, %c1_56, %c0_57, %c0_58], %87 {strides = array<i32>} : memref<1x2x4x128xbf16, #tpu.memory_space<vmem>>, vector<1x1x4x128xbf16>,
    return
  }
  func.func @transform_0(%arg0: i32, %arg1: i32) -> (i32, i32, i32, i32) {
    %c0_i32 = arith.constant 0 : i32
    %c0_i32_0 = arith.constant 0 : i32
    %c0_i32_1 = arith.constant 0 : i32
    %c0_i32_2 = arith.constant 0 : i32
    return %arg0, %c0_i32, %c0_i32_0, %c0_i32_1 : i32, i32, i32, i32
  }
  func.func @transform_1(%arg0: i32, %arg1: i32) -> (i32, i32, i32) {
    %c0_i32 = arith.constant 0 : i32
    %c0_i32_0 = arith.constant 0 : i32
    %c0_i32_1 = arith.constant 0 : i32
    %c0_i32_2 = arith.constant 0 : i32
    return %c0_i32, %c0_i32_0, %c0_i32_1 : i32, i32, i32
  }
  func.func @transform_2(%arg0: i32, %arg1: i32) -> (i32, i32) {
    %c0_i32 = arith.constant 0 : i32
    %c0_i32_0 = arith.constant 0 : i32
    %c0_i32_1 = arith.constant 0 : i32
    return %c0_i32, %c0_i32_0 : i32, i32
  }
  func.func @transform_3(%arg0: i32, %arg1: i32) -> (i32, i32, i32, i32) {
    %c0_i32 = arith.constant 0 : i32
    %c0_i32_0 = arith.constant 0 : i32
    %c0_i32_1 = arith.constant 0 : i32
    return %arg0, %arg1, %c0_i32, %c0_i32_0 : i32, i32, i32, i32
  }
}

module attributes {stable_mosaic.version = 11 : i64} {
  func.func @_tail_kernel(%arg0: i32, %arg1: memref<8x2048xbf16, #tpu.memory_space<vmem>>, %arg2: memref<2048x256xbf16, #tpu.memory_space<vmem>>, %arg3: memref<1x256xf32, #tpu.memory_space<vmem>>, %arg4: memref<256x512xbf16, #tpu.memory_space<vmem>>, %arg5: memref<1x512xf32, #tpu.memory_space<vmem>>, %arg6: memref<512x128xbf16, #tpu.memory_space<vmem>>, %arg7: memref<1x128xf32, #tpu.memory_space<vmem>>, %arg8: memref<8x128xf32, #tpu.memory_space<vmem>>) attributes {dimension_semantics = [#tpu.dimension_semantics<parallel>], iteration_bounds = array<i64: 1>, scalar_prefetch = 0 : i64, scratch_operands = 0 : i64, tpu.core_type = #tpu.core_type<tc>, window_params = [{transform_indices = @transform_0, window_bounds = array<i64: 8, 2048>}, {pipeline_mode = #tpu.pipeline_mode<synchronous>, transform_indices = @transform_1, window_bounds = array<i64: 2048, 256>}, {pipeline_mode = #tpu.pipeline_mode<synchronous>, transform_indices = @transform_2, window_bounds = array<i64: 1, 256>}, {pipeline_mode = #tpu.pipeline_mode<synchronous>, transform_indices = @transform_3, window_bounds = array<i64: 256, 512>}, {pipeline_mode = #tpu.pipeline_mode<synchronous>, transform_indices = @transform_4, window_bounds = array<i64: 1, 512>}, {pipeline_mode = #tpu.pipeline_mode<synchronous>, transform_indices = @transform_5, window_bounds = array<i64: 512, 128>}, {pipeline_mode = #tpu.pipeline_mode<synchronous>, transform_indices = @transform_6, window_bounds = array<i64: 1, 128>}, {transform_indices = @transform_7, window_bounds = array<i64: 8, 128>}]} {
    %c0 = arith.constant 0 : index
    %c0_0 = arith.constant 0 : index
    %0 = vector.load %arg1[%c0, %c0_0] : memref<8x2048xbf16, #tpu.memory_space<vmem>>, vector<8x2048xbf16>
    %c0_1 = arith.constant 0 : index
    %c0_2 = arith.constant 0 : index
    %1 = vector.load %arg2[%c0_1, %c0_2] : memref<2048x256xbf16, #tpu.memory_space<vmem>>, vector<2048x256xbf16>
    %cst = arith.constant dense<0.000000e+00> : vector<8x256xf32>
    %2 = tpu.matmul %0, %1, %cst {dimension_numbers = #tpu.dot_dimension_numbers<[1], [0], [0], [1], [0, 0, 1, 1], [], []>} : vector<8x2048xbf16>, vector<2048x256xbf16>, vector<8x256xf32> -> vector<8x256xf32>
    %c0_3 = arith.constant 0 : index
    %c0_4 = arith.constant 0 : index
    %3 = vector.load %arg3[%c0_3, %c0_4] : memref<1x256xf32, #tpu.memory_space<vmem>>, vector<1x256xf32>
    %4 = vector.broadcast %3 : vector<1x256xf32> to vector<8x256xf32>
    %5 = arith.addf %2, %4 : vector<8x256xf32>
    %6 = arith.negf %5 : vector<8x256xf32>
    %7 = math.exp %6 : vector<8x256xf32>
    %cst_5 = arith.constant 1.000000e+00 : f32
    %8 = vector.broadcast %cst_5 : f32 to vector<8x256xf32>
    %9 = arith.addf %8, %7 : vector<8x256xf32>
    %10 = arith.divf %8, %9 : vector<8x256xf32>
    %11 = arith.mulf %5, %10 : vector<8x256xf32>
    %12 = arith.truncf %11 : vector<8x256xf32> to vector<8x256xbf16>
    %c0_6 = arith.constant 0 : index
    %c0_7 = arith.constant 0 : index
    %13 = vector.load %arg4[%c0_6, %c0_7] : memref<256x512xbf16, #tpu.memory_space<vmem>>, vector<256x512xbf16>
    %cst_8 = arith.constant dense<0.000000e+00> : vector<8x512xf32>
    %14 = tpu.matmul %12, %13, %cst_8 {dimension_numbers = #tpu.dot_dimension_numbers<[1], [0], [0], [1], [0, 0, 1, 1], [], []>} : vector<8x256xbf16>, vector<256x512xbf16>, vector<8x512xf32> -> vector<8x512xf32>
    %c0_9 = arith.constant 0 : index
    %c0_10 = arith.constant 0 : index
    %15 = vector.load %arg5[%c0_9, %c0_10] : memref<1x512xf32, #tpu.memory_space<vmem>>, vector<1x512xf32>
    %16 = vector.broadcast %15 : vector<1x512xf32> to vector<8x512xf32>
    %17 = arith.addf %14, %16 : vector<8x512xf32>
    %18 = arith.negf %17 : vector<8x512xf32>
    %19 = math.exp %18 : vector<8x512xf32>
    %cst_11 = arith.constant 1.000000e+00 : f32
    %20 = vector.broadcast %cst_11 : f32 to vector<8x512xf32>
    %21 = arith.addf %20, %19 : vector<8x512xf32>
    %22 = arith.divf %20, %21 : vector<8x512xf32>
    %23 = arith.mulf %17, %22 : vector<8x512xf32>
    %24 = arith.truncf %23 : vector<8x512xf32> to vector<8x512xbf16>
    %c0_12 = arith.constant 0 : index
    %c0_13 = arith.constant 0 : index
    %25 = vector.load %arg6[%c0_12, %c0_13] : memref<512x128xbf16, #tpu.memory_space<vmem>>, vector<512x128xbf16>
    %cst_14 = arith.constant dense<0.000000e+00> : vector<8x128xf32>
    %26 = tpu.matmul %24, %25, %cst_14 {dimension_numbers = #tpu.dot_dimension_numbers<[1], [0], [0], [1], [0, 0, 1, 1], [], []>} : vector<8x512xbf16>, vector<512x128xbf16>, vector<8x128xf32> -> vector<8x128xf32>
    %c0_15 = arith.constant 0 : index
    %c0_16 = arith.constant 0 : index
    %27 = vector.load %arg7[%c0_15, %c0_16] : memref<1x128xf32, #tpu.memory_space<vmem>>, vector<1x128xf32>
    %28 = vector.broadcast %27 : vector<1x128xf32> to vector<8x128xf32>
    %29 = arith.addf %26, %28 : vector<8x128xf32>
    %c0_17 = arith.constant 0 : index
    %c0_18 = arith.constant 0 : index
    %30 = vector.load %arg8[%c0_17, %c0_18] : memref<8x128xf32, #tpu.memory_space<vmem>>, vector<8x128xf32>
    tpu.vector_store %arg8[%c0_17, %c0_18], %29 {strides = array<i32>} : memref<8x128xf32, #tpu.memory_space<vmem>>, vector<8x128xf32>,
    return
  }
  func.func @transform_0(%arg0: i32) -> (i32, i32) {
    %c0_i32 = arith.constant 0 : i32
    %c0_i32_0 = arith.constant 0 : i32
    return %arg0, %c0_i32 : i32, i32
  }
  func.func @transform_1(%arg0: i32) -> (i32, i32) {
    %c0_i32 = arith.constant 0 : i32
    %c0_i32_0 = arith.constant 0 : i32
    %c0_i32_1 = arith.constant 0 : i32
    return %c0_i32, %c0_i32_0 : i32, i32
  }
  func.func @transform_2(%arg0: i32) -> (i32, i32) {
    %c0_i32 = arith.constant 0 : i32
    %c0_i32_0 = arith.constant 0 : i32
    %c0_i32_1 = arith.constant 0 : i32
    return %c0_i32, %c0_i32_0 : i32, i32
  }
  func.func @transform_3(%arg0: i32) -> (i32, i32) {
    %c0_i32 = arith.constant 0 : i32
    %c0_i32_0 = arith.constant 0 : i32
    %c0_i32_1 = arith.constant 0 : i32
    return %c0_i32, %c0_i32_0 : i32, i32
  }
  func.func @transform_4(%arg0: i32) -> (i32, i32) {
    %c0_i32 = arith.constant 0 : i32
    %c0_i32_0 = arith.constant 0 : i32
    %c0_i32_1 = arith.constant 0 : i32
    return %c0_i32, %c0_i32_0 : i32, i32
  }
  func.func @transform_5(%arg0: i32) -> (i32, i32) {
    %c0_i32 = arith.constant 0 : i32
    %c0_i32_0 = arith.constant 0 : i32
    %c0_i32_1 = arith.constant 0 : i32
    return %c0_i32, %c0_i32_0 : i32, i32
  }
  func.func @transform_6(%arg0: i32) -> (i32, i32) {
    %c0_i32 = arith.constant 0 : i32
    %c0_i32_0 = arith.constant 0 : i32
    %c0_i32_1 = arith.constant 0 : i32
    return %c0_i32, %c0_i32_0 : i32, i32
  }
  func.func @transform_7(%arg0: i32) -> (i32, i32) {
    %c0_i32 = arith.constant 0 : i32
    %c0_i32_0 = arith.constant 0 : i32
    return %arg0, %c0_i32 : i32, i32
  }
}

</mosaic_0001>

<llo_original>
// kernel: image_encoder_forward.4
$region0: #{image_encoder_forward.4}
  #allocation0 [shape = 'u32[]', space=smem, size = 0x4, offset = 0x4, fixed_abs, tag = 'smem constant byte address 0x4 - core index']
  #allocation1 [shape = 'u32[144,128]{1,0:T(1,128)}', space=vmem, size = 0x12000, scoped, tag = 'internal scratch']
  %s0 = inlined_call_operand.vmem [shape: bf16[2,17,17,12], index: 0, kind: input, shape index: {}]
  %s1 = inlined_call_operand.vmem [shape: bf16[4,12,32], index: 1, kind: input, shape index: {}]
  %s2 = inlined_call_operand.vmem [shape: f32[1,32], index: 2, kind: input, shape index: {}]
  %s3 = inlined_call_operand.vmem [shape: bf16[2,16,16,32], index: 3, kind: output, shape index: {}]
  %s4 = sld [smem:[#allocation0]]
  $region45: #{image_encoder_forward.4} parent=0
    _
  %s6 = ssub.s32 1, %s4
  %s7 = scalar_select 0, %s6, %s4
  loop: start=0, step=1, limit=6
  $region2: #{image_encoder_forward.4} parent=0 // loop_pre_header
    _
  $region3: #{image_encoder_forward.4} parent=0 // loop_header
    %s9 = sphi 0, %s13
    %p10 = scmp.ge.s32.totalorder %s9, 6
    %s16 = sphi 0, %s28
    %s17 = sphi 0, %s24
    %s18 = sphi 0, %s16
    %s19 = sphi 0, %s17
    %s20 = sphi 0, %s18
    %s21 = sphi 0, %s19
    %s31 = sphi 0, %s33
    %s34 = sphi 0, %s31
    %s35 = sphi 0, %s34
    %s51 = sphi 0, %s35
    %s55 = sphi 0, %s55
    %s57 = sphi 0, %s55
    %s58 = sphi 0, %s57
    %s72 = sphi 0, %s58
    %s76 = sphi 0, %s76
    %s78 = sphi 0, %s76
    %s79 = sphi 0, %s78
    %s93 = sphi 0, %s79
    %s101 = sphi 0, %s103
    %s104 = sphi 0, %s101
    %s105 = sphi 0, %s104
    %s121 = sphi 0, %s105
  $region4: #{image_encoder_forward.4} parent=0 // loop_header_branch
    %12 = sbr.rel (%p10) target = $region8
  $region5: #{image_encoder_forward.4} parent=0 // loop_body
    %s14 = ssub.s32 %s9, 1
    %s15 = ssub.s32 %s9, 2
    %s22 = sadd.s32 1, %s17
    %p23 = scmp.ge.s32.totalorder %s22, 2
    %s24 = scalar_select %p23, 0, %s22
    %s25 = sadd.s32 1, %s16
    %s26 = scalar_select %p23, %s25, %s16
    %p27 = scmp.ge.s32.totalorder %s26, 2
    %s28 = scalar_select %p27, 0, %s26
    %s29 = ssub.s32 %s16, %s28
    %p30 = scmp.eq.s32.totalorder %s29, 0
    %s32 = sadd.s32 %s31, 1
    %s33 = scalar_select %p30, %s31, %s32
    %p36 = pneg %p30
    %p37 = scmp.eq.s32.totalorder %s9, 3
    %p38 = por %p36, %p37
    %p39 = scmp.ne.s32.totalorder %s31, %s34
    %p40 = scmp.eq.s32.totalorder %s9, 0
    %p41 = por %p39, %p40
    %p42 = scmp.ne.s32.totalorder %s31, %s34
    %p43 = scmp.eq.s32.totalorder %s14, 3
    %p44 = por %p42, %p43
    %p45 = scmp.ne.s32.totalorder %s34, %s35
    %p46 = scmp.eq.s32.totalorder %s14, 0
    %p47 = por %p45, %p46
    %p48 = scmp.ne.s32.totalorder %s34, %s35
    %p49 = scmp.eq.s32.totalorder %s15, 3
    %p50 = por %p48, %p49
    %p52 = scmp.ne.s32.totalorder %s35, %s51
    %p53 = scmp.eq.s32.totalorder %s15, 0
    %p54 = por %p52, %p53
    %s56 = sadd.s32 %s55, 1
    %p59 = scmp.eq.s32.totalorder %s9, 3
    %p60 = scmp.ne.s32.totalorder %s55, %s57
    %p61 = scmp.eq.s32.totalorder %s9, 0
    %p62 = por %p60, %p61
    %p63 = scmp.ne.s32.totalorder %s55, %s57
    %p64 = scmp.eq.s32.totalorder %s14, 3
    %p65 = por %p63, %p64
    %p66 = scmp.ne.s32.totalorder %s57, %s58
    %p67 = scmp.eq.s32.totalorder %s14, 0
    %p68 = por %p66, %p67
    %p69 = scmp.ne.s32.totalorder %s57, %s58
    %p70 = scmp.eq.s32.totalorder %s15, 3
    %p71 = por %p69, %p70
    %p73 = scmp.ne.s32.totalorder %s58, %s72
    %p74 = scmp.eq.s32.totalorder %s15, 0
    %p75 = por %p73, %p74
    %s77 = sadd.s32 %s76, 1
    %p80 = scmp.eq.s32.totalorder %s9, 3
    %p81 = scmp.ne.s32.totalorder %s76, %s78
    %p82 = scmp.eq.s32.totalorder %s9, 0
    %p83 = por %p81, %p82
    %p84 = scmp.ne.s32.totalorder %s76, %s78
    %p85 = scmp.eq.s32.totalorder %s14, 3
    %p86 = por %p84, %p85
    %p87 = scmp.ne.s32.totalorder %s78, %s79
    %p88 = scmp.eq.s32.totalorder %s14, 0
    %p89 = por %p87, %p88
    %p90 = scmp.ne.s32.totalorder %s78, %s79
    %p91 = scmp.eq.s32.totalorder %s15, 3
    %p92 = por %p90, %p91
    %p94 = scmp.ne.s32.totalorder %s79, %s93
    %p95 = scmp.eq.s32.totalorder %s15, 0
    %p96 = por %p94, %p95
    %s97 = ssub.s32 %s16, %s28
    %s98 = ssub.s32 %s17, %s24
    %s99 = sor.u32 %s97, %s98
    %p100 = scmp.eq.s32.totalorder %s99, 0
    %s102 = sadd.s32 %s101, 1
    %s103 = scalar_select %p100, %s101, %s102
    %p106 = pneg %p100
    %p107 = scmp.eq.s32.totalorder %s9, 3
    %p108 = por %p106, %p107
    %p109 = scmp.ne.s32.totalorder %s101, %s104
    %p110 = scmp.eq.s32.totalorder %s9, 0
    %p111 = por %p109, %p110
    %p112 = scmp.ne.s32.totalorder %s101, %s104
    %p113 = scmp.eq.s32.totalorder %s14, 3
    %p114 = por %p112, %p113
    %p115 = scmp.ne.s32.totalorder %s104, %s105
    %p116 = scmp.eq.s32.totalorder %s14, 0
    %p117 = por %p115, %p116
    %p118 = scmp.ne.s32.totalorder %s104, %s105
    %p119 = scmp.eq.s32.totalorder %s15, 3
    %p120 = por %p118, %p119
    %p122 = scmp.ne.s32.totalorder %s105, %s121
    %p123 = scmp.eq.s32.totalorder %s15, 0
    %p124 = por %p122, %p123
    %p125 = scmp.le.s32.totalorder 1, %s9
    %p126 = scmp.lt.s32.totalorder %s9, 5
    %p127 = pnand %p125, %p126
    %p128 = pneg %p127
    // Predicated region
    $region9: #{image_encoder_forward.4} parent=5 // pred_check
      _
    $region10: #{image_encoder_forward.4} parent=5 // pred_check_branch
      %130 = sbr.rel (%p127) target = $region12
    $region11: #{image_encoder_forward.4} parent=5 // pred_region
      %s131 = ssub.s32 %s9, 1
      // Predicated region
      $region13: #{image_encoder_forward.4} parent=11 // pred_check
        %p132 = pneg %p68
      $region14: #{image_encoder_forward.4} parent=11 // pred_check_branch
        %134 = sbr.rel (%p132) target = $region16
      $region15: #{image_encoder_forward.4} parent=11 // pred_region
        _
      $region16: #{image_encoder_forward.4} parent=11 // pred_fallthru
        _
      // Predicated region
      $region17: #{image_encoder_forward.4} parent=11 // pred_check
        %p135 = pneg %p89
      $region18: #{image_encoder_forward.4} parent=11 // pred_check_branch
        %137 = sbr.rel (%p135) target = $region20
      $region19: #{image_encoder_forward.4} parent=11 // pred_region
        _
      $region20: #{image_encoder_forward.4} parent=11 // pred_fallthru
        _
    $region12: #{image_encoder_forward.4} parent=5 // pred_fallthru
      _
    %p138 = scmp.lt.s32.totalorder %s9, 4
    // Predicated region
    $region21: #{image_encoder_forward.4} parent=5 // pred_check
      %p139 = pneg %p138
    $region22: #{image_encoder_forward.4} parent=5 // pred_check_branch
      %141 = sbr.rel (%p139) target = $region24
    $region23: #{image_encoder_forward.4} parent=5 // pred_region
      // Predicated region
      $region25: #{image_encoder_forward.4} parent=23 // pred_check
        %p142 = pneg %p41
      $region26: #{image_encoder_forward.4} parent=23 // pred_check_branch
        %144 = sbr.rel (%p142) target = $region28
      $region27: #{image_encoder_forward.4} parent=23 // pred_region
        %p145 = scmp.lt.s32.totalorder %s16, 1
        %s146 = scalar_select %p145, %s16, 1
        %s147 = smul.addr %s146, 51
        %s148 = smul.addr %s147, 4
        %s149 = scalar_lea.vmem %s0, %s148
      $region28: #{image_encoder_forward.4} parent=23 // pred_fallthru
        _
    $region24: #{image_encoder_forward.4} parent=5 // pred_fallthru
      _
    %p150 = scmp.le.s32.totalorder 1, %s9
    %p151 = scmp.lt.s32.totalorder %s9, 5
    %p152 = pnand %p150, %p151
    %p153 = pneg %p152
    // Predicated region
    $region29: #{image_encoder_forward.4} parent=5 // pred_check
      _
    $region30: #{image_encoder_forward.4} parent=5 // pred_check_branch
      %155 = sbr.rel (%p152) target = $region32
    $region31: #{image_encoder_forward.4} parent=5 // pred_region
      %s156 = ssub.s32 %s9, 1
      %p157 = scmp.lt.s32.totalorder %s18, 1
      %s158 = scalar_select %p157, %s18, 1
      %s159 = smul.addr %s158, 51
      %s160 = smul.addr %s159, 4
      %s161 = scalar_lea.vmem %s0, %s160
      %p162 = pneg %p47
      %p163 = pneg %p44
      %p164 = pneg %p68
      %p165 = pneg %p65
      %p166 = pneg %p89
      %p167 = pneg %p86
      %p168 = pneg %p117
      %p169 = pneg %p114
      %s170 = smul.u32 8, %s19
      %p171 = scmp.lt.s32.totalorder %s18, 1
      %s172 = scalar_select %p171, %s18, 1
      %p173 = scmp.lt.s32.totalorder %s170, 15
      %s174 = scalar_select %p173, %s170, 15
      %s175 = smul.addr %s174, 2
      %s176 = smul.addr %s172, 32
      %s177 = sadd.s32 %s175, %s176
      %s178 = smul.addr %s177, 4
      %s179 = scalar_lea.vmem %s3, %s178
      %p180 = scmp.lt.s32.totalorder %s18, 1
      %s181 = scalar_select %p180, %s18, 1
      %s182 = smul.addr %s181, 51
      %s183 = smul.addr %s182, 4
      %s184 = scalar_lea.vmem %s0, %s183
      %s185 = smul.u32 8, %s19
      %p186 = scmp.lt.s32.totalorder %s18, 1
      %s187 = scalar_select %p186, %s18, 1
      %p188 = scmp.lt.s32.totalorder %s185, 15
      %s189 = scalar_select %p188, %s185, 15
      %s190 = smul.addr %s189, 2
      %s191 = smul.addr %s187, 32
      %s192 = sadd.s32 %s190, %s191
      %s193 = smul.addr %s192, 4
      %s194 = scalar_lea.vmem %s3, %s193
      %s195 = smul.u32 8, %s19
      %s197 = smul.u32 %s19, 8
      %v198 = vld [vmem:[%s2] sm:$0x1]
      %s199 = smul.u32 %s197, 3
      %s200 = smul.addr %s199, 4
      %s201 = scalar_lea.vmem %s184, %s200
      %v202 = vld [vmem:[%s201] sm:$0xf]
      %v203 = vld [vmem:[%s201 + $0x4] sm:$0xf]
      %v204 = vld [vmem:[%s201 + $0x8] sm:$0x1]
      %v205 = vld [vmem:[%s1] sm:$0xf]
      %v206 = vld [vmem:[%s1 + $0x4] sm:$0x3]
      %s207 = scalar_lea.vmem %s1, 8
      %v208 = vld [vmem:[%s207] sm:$0xf]
      %v209 = vld [vmem:[%s207 + $0x4] sm:$0x3]
      %v213 = vunpack.c.l.b16 %v202
      %v214 = vunpack.c.l.b16 %v203
      %v215 = vunpack.c.l.b16 %v204
      %v216 = vpack.c.b16 %v214, %v213
      %v217 = vpack.c.b16 %v215, %v215
      %vm218 = vsmask.f32 7424
      %v220 = vshrl.u32 %v216, 16
      %v222 = vshll.u32 %v216, 16
      %v224 = vrot.slane %v222, 1
      %v225 = vor.u32 %v220, %v224
      %v227 = vshll.u32 %v217, 16
      %v229 = vrot.slane %v227, 1
      %v230 = vsel %vm218, %v225, %v229
      %v233 = vunpack.c.l.b16 %v208
      %v234 = vunpack.c.l.b16 %v209
      %v235 = vpack.c.b16 %v234, %v233
      %vm236 = vcmask 97280
      %v238 = vsel %vm236, %v230, 0
      %vm240 = vcmask 1045504
      %v242 = vsel %vm240, %v235, 0
      %244 = vmatprep.subr.bf16.mxu0 0
      %245 = vmatpush1.bf16.msra.mxu0 0
      %246 = vmatprep.subr.bf16.mxu0 0
      %247 = vmatpush1.bf16.msra.mxu0 0
      %248 = vmatprep.subr.bf16.mxu0 0
      %249 = vmatpush1.bf16.msra.mxu0 0
      %250 = vmatprep.subr.bf16.mxu0 0
      %251 = vmatpush1.bf16.msra.mxu0 0
      %252 = vmatprep.subr.bf16.mxu0 0
      %253 = vmatpush1.bf16.msra.mxu0 0
      %254 = vmatprep.subr.bf16.mxu0 0
      %255 = vmatpush1.bf16.msra.mxu0 0
      %256 = vmatprep.subr.bf16.mxu0 0
      %257 = vmatpush1.bf16.msra.mxu0 0
      %258 = vmatprep.subr.bf16.mxu0 0
      %259 = vmatpush1.bf16.msra.mxu0 %v242
      %260 = vmatprep.subr.bf16.mxu0 0
      %261 = vmatpush2.bf16.msra.mxu0 0
      %262 = vmatprep.subr.bf16.mxu0 0
      %263 = vmatpush2.bf16.msra.mxu0 0
      %264 = vmatprep.subr.bf16.mxu0 0
      %265 = vmatpush2.bf16.msra.mxu0 0
      %266 = vmatprep.subr.bf16.mxu0 0
      %267 = vmatpush2.bf16.msra.mxu0 0
      %268 = vmatprep.subr.bf16.mxu0 0
      %269 = vmatpush2.bf16.msra.mxu0 0
      %270 = vmatprep.subr.bf16.mxu0 0
      %271 = vmatpush2.bf16.msra.mxu0 0
      %272 = vmatprep.subr.bf16.mxu0 0
      %273 = vmatpush2.bf16.msra.mxu0 0
      %274 = vmatprep.subr.bf16.mxu0 0
      %275 = vmatpush2.bf16.msra.mxu0 0
      %276 = vmatprep.mubr.bf16.mxu0 0
      %277 = vmatmul.mubr.bf16.gmra.mxu0 %v238
      %v278 = vpop.f32.mrf.mxu0
      %v279 = vadd.f32 0.0, %v278
      %v280 = vpop.f32.mrf.mxu0
      %v281 = vpop.f32.mrf.mxu0
      %v282 = vadd.f32 0.0, %v281
      %v283 = vpop.f32.mrf.mxu0
      %284 = vdwg.mxu0
      %v287 = vunpack.c.l.b16 %v205
      %v288 = vunpack.c.l.b16 %v206
      %v289 = vpack.c.b16 %v288, %v287
      %v290 = vsel %vm236, %v216, 0
      %v293 = vsel %vm240, %v289, 0
      %295 = vmatprep.subr.bf16.mxu0 0
      %296 = vmatpush1.bf16.msra.mxu0 0
      %297 = vmatprep.subr.bf16.mxu0 0
      %298 = vmatpush1.bf16.msra.mxu0 0
      %299 = vmatprep.subr.bf16.mxu0 0
      %300 = vmatpush1.bf16.msra.mxu0 0
      %301 = vmatprep.subr.bf16.mxu0 0
      %302 = vmatpush1.bf16.msra.mxu0 0
      %303 = vmatprep.subr.bf16.mxu0 0
      %304 = vmatpush1.bf16.msra.mxu0 0
      %305 = vmatprep.subr.bf16.mxu0 0
      %306 = vmatpush1.bf16.msra.mxu0 0
      %307 = vmatprep.subr.bf16.mxu0 0
      %308 = vmatpush1.bf16.msra.mxu0 0
      %309 = vmatprep.subr.bf16.mxu0 0
      %310 = vmatpush1.bf16.msra.mxu0 %v293
      %311 = vmatprep.subr.bf16.mxu0 0
      %312 = vmatpush2.bf16.msra.mxu0 0
      %313 = vmatprep.subr.bf16.mxu0 0
      %314 = vmatpush2.bf16.msra.mxu0 0
      %315 = vmatprep.subr.bf16.mxu0 0
      %316 = vmatpush2.bf16.msra.mxu0 0
      %317 = vmatprep.subr.bf16.mxu0 0
      %318 = vmatpush2.bf16.msra.mxu0 0
      %319 = vmatprep.subr.bf16.mxu0 0
      %320 = vmatpush2.bf16.msra.mxu0 0
      %321 = vmatprep.subr.bf16.mxu0 0
      %322 = vmatpush2.bf16.msra.mxu0 0
      %323 = vmatprep.subr.bf16.mxu0 0
      %324 = vmatpush2.bf16.msra.mxu0 0
      %325 = vmatprep.subr.bf16.mxu0 0
      %326 = vmatpush2.bf16.msra.mxu0 0
      %327 = vmatprep.mubr.bf16.mxu0 0
      %328 = vmatmul.mubr.bf16.gmra.mxu0 %v290
      %v329 = vpop.f32.mrf.mxu0
      %v330 = vadd.f32 %v279, %v329
      %v331 = vpop.f32.mrf.mxu0
      %v332 = vpop.f32.mrf.mxu0
      %v333 = vadd.f32 %v282, %v332
      %v334 = vpop.f32.mrf.mxu0
      %335 = vdwg.mxu0
      %s336 = sadd.s32 %s197, 1
      %s337 = smul.u32 %s336, 3
      %s338 = smul.addr %s337, 4
      %s339 = scalar_lea.vmem %s184, %s338
      %v340 = vld [vmem:[%s339] sm:$0xf]
      %v341 = vld [vmem:[%s339 + $0x4] sm:$0xf]
      %v342 = vld [vmem:[%s339 + $0x8] sm:$0x1]
      %s343 = scalar_lea.vmem %s1, 16
      %v344 = vld [vmem:[%s343] sm:$0xf]
      %v345 = vld [vmem:[%s343 + $0x4] sm:$0x3]
      %v348 = vunpack.c.l.b16 %v340
      %v349 = vunpack.c.l.b16 %v341
      %v350 = vpack.c.b16 %v349, %v348
      %v353 = vunpack.c.l.b16 %v344
      %v354 = vunpack.c.l.b16 %v345
      %v355 = vpack.c.b16 %v354, %v353
      %v357 = vsel %vm236, %v350, 0
      %v360 = vsel %vm240, %v355, 0
      %362 = vmatprep.subr.bf16.mxu0 0
      %363 = vmatpush1.bf16.msra.mxu0 0
      %364 = vmatprep.subr.bf16.mxu0 0
      %365 = vmatpush1.bf16.msra.mxu0 0
      %366 = vmatprep.subr.bf16.mxu0 0
      %367 = vmatpush1.bf16.msra.mxu0 0
      %368 = vmatprep.subr.bf16.mxu0 0
      %369 = vmatpush1.bf16.msra.mxu0 0
      %370 = vmatprep.subr.bf16.mxu0 0
      %371 = vmatpush1.bf16.msra.mxu0 0
      %372 = vmatprep.subr.bf16.mxu0 0
      %373 = vmatpush1.bf16.msra.mxu0 0
      %374 = vmatprep.subr.bf16.mxu0 0
      %375 = vmatpush1.bf16.msra.mxu0 0
      %376 = vmatprep.subr.bf16.mxu0 0
      %377 = vmatpush1.bf16.msra.mxu0 %v360
      %378 = vmatprep.subr.bf16.mxu0 0
      %379 = vmatpush2.bf16.msra.mxu0 0
      %380 = vmatprep.subr.bf16.mxu0 0
      %381 = vmatpush2.bf16.msra.mxu0 0
      %382 = vmatprep.subr.bf16.mxu0 0
      %383 = vmatpush2.bf16.msra.mxu0 0
      %384 = vmatprep.subr.bf16.mxu0 0
      %385 = vmatpush2.bf16.msra.mxu0 0
      %386 = vmatprep.subr.bf16.mxu0 0
      %387 = vmatpush2.bf16.msra.mxu0 0
      %388 = vmatprep.subr.bf16.mxu0 0
      %389 = vmatpush2.bf16.msra.mxu0 0
      %390 = vmatprep.subr.bf16.mxu0 0
      %391 = vmatpush2.bf16.msra.mxu0 0
      %392 = vmatprep.subr.bf16.mxu0 0
      %393 = vmatpush2.bf16.msra.mxu0 0
      %394 = vmatprep.mubr.bf16.mxu0 0
      %395 = vmatmul.mubr.bf16.gmra.mxu0 %v357
      %v396 = vpop.f32.mrf.mxu0
      %v397 = vadd.f32 0.0, %v396
      %v398 = vpop.f32.mrf.mxu0
      %v399 = vpop.f32.mrf.mxu0
      %v400 = vadd.f32 0.0, %v399
      %v401 = vpop.f32.mrf.mxu0
      %402 = vdwg.mxu0
      %v403 = vadd.f32 %v330, %v397
      %v404 = vadd.f32 %v333, %v400
      %s405 = scalar_lea.vmem %s1, 24
      %v406 = vld [vmem:[%s405] sm:$0xf]
      %v407 = vld [vmem:[%s405 + $0x4] sm:$0x3]
      %v409 = vunpack.c.l.b16 %v342
      %v410 = vpack.c.b16 %v409, %v409
      %v411 = vshrl.u32 %v350, 16
      %v413 = vshll.u32 %v350, 16
      %v415 = vrot.slane %v413, 1
      %v416 = vor.u32 %v411, %v415
      %v418 = vshll.u32 %v410, 16
      %v420 = vrot.slane %v418, 1
      %v421 = vsel %vm218, %v416, %v420
      %v424 = vunpack.c.l.b16 %v406
      %v425 = vunpack.c.l.b16 %v407
      %v426 = vpack.c.b16 %v425, %v424
      %v428 = vsel %vm236, %v421, 0
      %v431 = vsel %vm240, %v426, 0
      %433 = vmatprep.subr.bf16.mxu0 0
      %434 = vmatpush1.bf16.msra.mxu0 0
      %435 = vmatprep.subr.bf16.mxu0 0
      %436 = vmatpush1.bf16.msra.mxu0 0
      %437 = vmatprep.subr.bf16.mxu0 0
      %438 = vmatpush1.bf16.msra.mxu0 0
      %439 = vmatprep.subr.bf16.mxu0 0
      %440 = vmatpush1.bf16.msra.mxu0 0
      %441 = vmatprep.subr.bf16.mxu0 0
      %442 = vmatpush1.bf16.msra.mxu0 0
      %443 = vmatprep.subr.bf16.mxu0 0
      %444 = vmatpush1.bf16.msra.mxu0 0
      %445 = vmatprep.subr.bf16.mxu0 0
      %446 = vmatpush1.bf16.msra.mxu0 0
      %447 = vmatprep.subr.bf16.mxu0 0
      %448 = vmatpush1.bf16.msra.mxu0 %v431
      %449 = vmatprep.subr.bf16.mxu0 0
      %450 = vmatpush2.bf16.msra.mxu0 0
      %451 = vmatprep.subr.bf16.mxu0 0
      %452 = vmatpush2.bf16.msra.mxu0 0
      %453 = vmatprep.subr.bf16.mxu0 0
      %454 = vmatpush2.bf16.msra.mxu0 0
      %455 = vmatprep.subr.bf16.mxu0 0
      %456 = vmatpush2.bf16.msra.mxu0 0
      %457 = vmatprep.subr.bf16.mxu0 0
      %458 = vmatpush2.bf16.msra.mxu0 0
      %459 = vmatprep.subr.bf16.mxu0 0
      %460 = vmatpush2.bf16.msra.mxu0 0
      %461 = vmatprep.subr.bf16.mxu0 0
      %462 = vmatpush2.bf16.msra.mxu0 0
      %463 = vmatprep.subr.bf16.mxu0 0
      %464 = vmatpush2.bf16.msra.mxu0 0
      %465 = vmatprep.mubr.bf16.mxu0 0
      %466 = vmatmul.mubr.bf16.gmra.mxu0 %v428
      %v467 = vpop.f32.mrf.mxu0
      %v468 = vadd.f32 0.0, %v467
      %v469 = vpop.f32.mrf.mxu0
      %v470 = vpop.f32.mrf.mxu0
      %v471 = vadd.f32 0.0, %v470
      %v472 = vpop.f32.mrf.mxu0
      %473 = vdwg.mxu0
      %v474 = vadd.f32 %v403, %v468
      %v475 = vadd.f32 %v404, %v471
      %v477 = vlaneseq
      %v478 = vshrl.u32 %v477, 7
      %v479 = vsub.s32 0, %v478
      %v480 = vrot.slane %v198, %v479
      %v482 = vadd.f32 %v474, %v480
      %v483 = vadd.f32 %v475, %v480
      %v484 = vxor.u32 %v482, 2147483648
      %v485 = vxor.u32 %v483, 2147483648
      %v486 = vmul.f32 %v484, 1.442695
      %v487 = vpow.pop %v486
      %v488 = vmul.f32 %v485, 1.442695
      %v489 = vpow.pop %v488
      %v490 = vadd.f32 %v487, 1.0
      %v491 = vadd.f32 %v489, 1.0
      %v492 = vrcp.pop %v490
      %v493 = vmul.f32 1.0, %v492
      %v494 = vrcp.pop %v491
      %v495 = vmul.f32 1.0, %v494
      %v496 = vmul.f32 %v482, %v493
      %v497 = vmul.f32 %v483, %v495
      %v498 = vpack.c.bf16 %v497, %v496
      %v500 = vunpack.c.l.b16 %v498
      %v501 = vunpack.c.h.b16 %v498
      %v502 = vpack.c.b16 %v500, %v500
      %v503 = vpack.c.b16 %v501, %v501
      %vm506 = vcmask 257024
      %507 = vst.msk [vmem:[%s194] sm:$0xf] %vm506, %v502
      %508 = vst.msk [vmem:[%s194 + $0x4] sm:$0xf] %vm506, %v503
      %v509 = vld [vmem:[%s339] sm:$0xf]
      %v510 = vld [vmem:[%s339 + $0x4] sm:$0xf]
      %v511 = vld [vmem:[%s339 + $0x8] sm:$0x1]
      %v512 = vld [vmem:[%s1] sm:$0xf]
      %v513 = vld [vmem:[%s1 + $0x4] sm:$0x3]
      %v514 = vld [vmem:[%s207] sm:$0xf]
      %v515 = vld [vmem:[%s207 + $0x4] sm:$0x3]
      %v519 = vunpack.c.l.b16 %v509
      %v520 = vunpack.c.l.b16 %v510
      %v521 = vunpack.c.l.b16 %v511
      %v522 = vpack.c.b16 %v520, %v519
      %v523 = vpack.c.b16 %v521, %v521
      %v525 = vshrl.u32 %v522, 16
      %v527 = vshll.u32 %v522, 16
      %v529 = vrot.slane %v527, 1
      %v530 = vor.u32 %v525, %v529
      %v532 = vshll.u32 %v523, 16
      %v534 = vrot.slane %v532, 1
      %v535 = vsel %vm218, %v530, %v534
      %v538 = vunpack.c.l.b16 %v514
      %v539 = vunpack.c.l.b16 %v515
      %v540 = vpack.c.b16 %v539, %v538
      %v542 = vsel %vm236, %v535, 0
      %v545 = vsel %vm240, %v540, 0
      %547 = vmatprep.subr.bf16.mxu0 0
      %548 = vmatpush1.bf16.msra.mxu0 0
      %549 = vmatprep.subr.bf16.mxu0 0
      %550 = vmatpush1.bf16.msra.mxu0 0
      %551 = vmatprep.subr.bf16.mxu0 0
      %552 = vmatpush1.bf16.msra.mxu0 0
      %553 = vmatprep.subr.bf16.mxu0 0
      %554 = vmatpush1.bf16.msra.mxu0 0
      %555 = vmatprep.subr.bf16.mxu0 0
      %556 = vmatpush1.bf16.msra.mxu0 0
      %557 = vmatprep.subr.bf16.mxu0 0
      %558 = vmatpush1.bf16.msra.mxu0 0
      %559 = vmatprep.subr.bf16.mxu0 0
      %560 = vmatpush1.bf16.msra.mxu0 0
      %561 = vmatprep.subr.bf16.mxu0 0
      %562 = vmatpush1.bf16.msra.mxu0 %v545
      %563 = vmatprep.subr.bf16.mxu0 0
      %564 = vmatpush2.bf16.msra.mxu0 0
      %565 = vmatprep.subr.bf16.mxu0 0
      %566 = vmatpush2.bf16.msra.mxu0 0
      %567 = vmatprep.subr.bf16.mxu0 0
      %568 = vmatpush2.bf16.msra.mxu0 0
      %569 = vmatprep.subr.bf16.mxu0 0
      %570 = vmatpush2.bf16.msra.mxu0 0
      %571 = vmatprep.subr.bf16.mxu0 0
      %572 = vmatpush2.bf16.msra.mxu0 0
      %573 = vmatprep.subr.bf16.mxu0 0
      %574 = vmatpush2.bf16.msra.mxu0 0
      %575 = vmatprep.subr.bf16.mxu0 0
      %576 = vmatpush2.bf16.msra.mxu0 0
      %577 = vmatprep.subr.bf16.mxu0 0
      %578 = vmatpush2.bf16.msra.mxu0 0
      %579 = vmatprep.mubr.bf16.mxu0 0
      %580 = vmatmul.mubr.bf16.gmra.mxu0 %v542
      %v581 = vpop.f32.mrf.mxu0
      %v582 = vadd.f32 0.0, %v581
      %v583 = vpop.f32.mrf.mxu0
      %v584 = vpop.f32.mrf.mxu0
      %v585 = vadd.f32 0.0, %v584
      %v586 = vpop.f32.mrf.mxu0
      %587 = vdwg.mxu0
      %v590 = vunpack.c.l.b16 %v512
      %v591 = vunpack.c.l.b16 %v513
      %v592 = vpack.c.b16 %v591, %v590
      %v593 = vsel %vm236, %v522, 0
      %v596 = vsel %vm240, %v592, 0
      %598 = vmatprep.subr.bf16.mxu0 0
      %599 = vmatpush1.bf16.msra.mxu0 0
      %600 = vmatprep.subr.bf16.mxu0 0
      %601 = vmatpush1.bf16.msra.mxu0 0
      %602 = vmatprep.subr.bf16.mxu0 0
      %603 = vmatpush1.bf16.msra.mxu0 0
      %604 = vmatprep.subr.bf16.mxu0 0
      %605 = vmatpush1.bf16.msra.mxu0 0
      %606 = vmatprep.subr.bf16.mxu0 0
      %607 = vmatpush1.bf16.msra.mxu0 0
      %608 = vmatprep.subr.bf16.mxu0 0
      %609 = vmatpush1.bf16.msra.mxu0 0
      %610 = vmatprep.subr.bf16.mxu0 0
      %611 = vmatpush1.bf16.msra.mxu0 0
      %612 = vmatprep.subr.bf16.mxu0 0
      %613 = vmatpush1.bf16.msra.mxu0 %v596
      %614 = vmatprep.subr.bf16.mxu0 0
      %615 = vmatpush2.bf16.msra.mxu0 0
      %616 = vmatprep.subr.bf16.mxu0 0
      %617 = vmatpush2.bf16.msra.mxu0 0
      %618 = vmatprep.subr.bf16.mxu0 0
      %619 = vmatpush2.bf16.msra.mxu0 0
      %620 = vmatprep.subr.bf16.mxu0 0
      %621 = vmatpush2.bf16.msra.mxu0 0
      %622 = vmatprep.subr.bf16.mxu0 0
      %623 = vmatpush2.bf16.msra.mxu0 0
      %624 = vmatprep.subr.bf16.mxu0 0
      %625 = vmatpush2.bf16.msra.mxu0 0
      %626 = vmatprep.subr.bf16.mxu0 0
      %627 = vmatpush2.bf16.msra.mxu0 0
      %628 = vmatprep.subr.bf16.mxu0 0
      %629 = vmatpush2.bf16.msra.mxu0 0
      %630 = vmatprep.mubr.bf16.mxu0 0
      %631 = vmatmul.mubr.bf16.gmra.mxu0 %v593
      %v632 = vpop.f32.mrf.mxu0
      %v633 = vadd.f32 %v582, %v632
      %v634 = vpop.f32.mrf.mxu0
      %v635 = vpop.f32.mrf.mxu0
      %v636 = vadd.f32 %v585, %v635
      %v637 = vpop.f32.mrf.mxu0
      %638 = vdwg.mxu0
      %s639 = sadd.s32 %s197, 2
      %s640 = smul.u32 %s639, 3
      %s641 = smul.addr %s640, 4
      %s642 = scalar_lea.vmem %s184, %s641
      %v643 = vld [vmem:[%s642] sm:$0xf]
      %v644 = vld [vmem:[%s642 + $0x4] sm:$0xf]
      %v645 = vld [vmem:[%s642 + $0x8] sm:$0x1]
      %v646 = vld [vmem:[%s343] sm:$0xf]
      %v647 = vld [vmem:[%s343 + $0x4] sm:$0x3]
      %v650 = vunpack.c.l.b16 %v643
      %v651 = vunpack.c.l.b16 %v644
      %v652 = vpack.c.b16 %v651, %v650
      %v655 = vunpack.c.l.b16 %v646
      %v656 = vunpack.c.l.b16 %v647
      %v657 = vpack.c.b16 %v656, %v655
      %v659 = vsel %vm236, %v652, 0
      %v662 = vsel %vm240, %v657, 0
      %664 = vmatprep.subr.bf16.mxu0 0
      %665 = vmatpush1.bf16.msra.mxu0 0
      %666 = vmatprep.subr.bf16.mxu0 0
      %667 = vmatpush1.bf16.msra.mxu0 0
      %668 = vmatprep.subr.bf16.mxu0 0
      %669 = vmatpush1.bf16.msra.mxu0 0
      %670 = vmatprep.subr.bf16.mxu0 0
      %671 = vmatpush1.bf16.msra.mxu0 0
      %672 = vmatprep.subr.bf16.mxu0 0
      %673 = vmatpush1.bf16.msra.mxu0 0
      %674 = vmatprep.subr.bf16.mxu0 0
      %675 = vmatpush1.bf16.msra.mxu0 0
      %676 = vmatprep.subr.bf16.mxu0 0
      %677 = vmatpush1.bf16.msra.mxu0 0
      %678 = vmatprep.subr.bf16.mxu0 0
      %679 = vmatpush1.bf16.msra.mxu0 %v662
      %680 = vmatprep.subr.bf16.mxu0 0
      %681 = vmatpush2.bf16.msra.mxu0 0
      %682 = vmatprep.subr.bf16.mxu0 0
      %683 = vmatpush2.bf16.msra.mxu0 0
      %684 = vmatprep.subr.bf16.mxu0 0
      %685 = vmatpush2.bf16.msra.mxu0 0
      %686 = vmatprep.subr.bf16.mxu0 0
      %687 = vmatpush2.bf16.msra.mxu0 0
      %688 = vmatprep.subr.bf16.mxu0 0
      %689 = vmatpush2.bf16.msra.mxu0 0
      %690 = vmatprep.subr.bf16.mxu0 0
      %691 = vmatpush2.bf16.msra.mxu0 0
      %692 = vmatprep.subr.bf16.mxu0 0
      %693 = vmatpush2.bf16.msra.mxu0 0
      %694 = vmatprep.subr.bf16.mxu0 0
      %695 = vmatpush2.bf16.msra.mxu0 0
      %696 = vmatprep.mubr.bf16.mxu0 0
      %697 = vmatmul.mubr.bf16.gmra.mxu0 %v659
      %v698 = vpop.f32.mrf.mxu0
      %v699 = vadd.f32 0.0, %v698
      %v700 = vpop.f32.mrf.mxu0
      %v701 = vpop.f32.mrf.mxu0
      %v702 = vadd.f32 0.0, %v701
      %v703 = vpop.f32.mrf.mxu0
      %704 = vdwg.mxu0
      %v705 = vadd.f32 %v633, %v699
      %v706 = vadd.f32 %v636, %v702
      %v707 = vld [vmem:[%s405] sm:$0xf]
      %v708 = vld [vmem:[%s405 + $0x4] sm:$0x3]
      %v710 = vunpack.c.l.b16 %v645
      %v711 = vpack.c.b16 %v710, %v710
      %v712 = vshrl.u32 %v652, 16
      %v714 = vshll.u32 %v652, 16
      %v716 = vrot.slane %v714, 1
      %v717 = vor.u32 %v712, %v716
      %v719 = vshll.u32 %v711, 16
      %v721 = vrot.slane %v719, 1
      %v722 = vsel %vm218, %v717, %v721
      %v725 = vunpack.c.l.b16 %v707
      %v726 = vunpack.c.l.b16 %v708
      %v727 = vpack.c.b16 %v726, %v725
      %v729 = vsel %vm236, %v722, 0
      %v732 = vsel %vm240, %v727, 0
      %734 = vmatprep.subr.bf16.mxu0 0
      %735 = vmatpush1.bf16.msra.mxu0 0
      %736 = vmatprep.subr.bf16.mxu0 0
      %737 = vmatpush1.bf16.msra.mxu0 0
      %738 = vmatprep.subr.bf16.mxu0 0
      %739 = vmatpush1.bf16.msra.mxu0 0
      %740 = vmatprep.subr.bf16.mxu0 0
      %741 = vmatpush1.bf16.msra.mxu0 0
      %742 = vmatprep.subr.bf16.mxu0 0
      %743 = vmatpush1.bf16.msra.mxu0 0
      %744 = vmatprep.subr.bf16.mxu0 0
      %745 = vmatpush1.bf16.msra.mxu0 0
      %746 = vmatprep.subr.bf16.mxu0 0
      %747 = vmatpush1.bf16.msra.mxu0 0
      %748 = vmatprep.subr.bf16.mxu0 0
      %749 = vmatpush1.bf16.msra.mxu0 %v732
      %750 = vmatprep.subr.bf16.mxu0 0
      %751 = vmatpush2.bf16.msra.mxu0 0
      %752 = vmatprep.subr.bf16.mxu0 0
      %753 = vmatpush2.bf16.msra.mxu0 0
      %754 = vmatprep.subr.bf16.mxu0 0
      %755 = vmatpush2.bf16.msra.mxu0 0
      %756 = vmatprep.subr.bf16.mxu0 0
      %757 = vmatpush2.bf16.msra.mxu0 0
      %758 = vmatprep.subr.bf16.mxu0 0
      %759 = vmatpush2.bf16.msra.mxu0 0
      %760 = vmatprep.subr.bf16.mxu0 0
      %761 = vmatpush2.bf16.msra.mxu0 0
      %762 = vmatprep.subr.bf16.mxu0 0
      %763 = vmatpush2.bf16.msra.mxu0 0
      %764 = vmatprep.subr.bf16.mxu0 0
      %765 = vmatpush2.bf16.msra.mxu0 0
      %766 = vmatprep.mubr.bf16.mxu0 0
      %767 = vmatmul.mubr.bf16.gmra.mxu0 %v729
      %v768 = vpop.f32.mrf.mxu0
      %v769 = vadd.f32 0.0, %v768
      %v770 = vpop.f32.mrf.mxu0
      %v771 = vpop.f32.mrf.mxu0
      %v772 = vadd.f32 0.0, %v771
      %v773 = vpop.f32.mrf.mxu0
      %774 = vdwg.mxu0
      %v775 = vadd.f32 %v705, %v769
      %v776 = vadd.f32 %v706, %v772
      %v777 = vadd.f32 %v775, %v480
      %v778 = vadd.f32 %v776, %v480
      %v779 = vxor.u32 %v777, 2147483648
      %v780 = vxor.u32 %v778, 2147483648
      %v781 = vmul.f32 %v779, 1.442695
      %v782 = vpow.pop %v781
      %v783 = vmul.f32 %v780, 1.442695
      %v784 = vpow.pop %v783
      %v785 = vadd.f32 %v782, 1.0
      %v786 = vadd.f32 %v784, 1.0
      %v787 = vrcp.pop %v785
      %v788 = vmul.f32 1.0, %v787
      %v789 = vrcp.pop %v786
      %v790 = vmul.f32 1.0, %v789
      %v791 = vmul.f32 %v777, %v788
      %v792 = vmul.f32 %v778, %v790
      %v793 = vpack.c.bf16 %v792, %v791
      %v795 = vunpack.c.l.b16 %v793
      %v796 = vunpack.c.h.b16 %v793
      %v797 = vpack.c.b16 %v795, %v795
      %v798 = vpack.c.b16 %v796, %v796
      %s801 = scalar_lea.vmem %s194, 8
      %802 = vst.msk [vmem:[%s801] sm:$0xf] %vm506, %v797
      %803 = vst.msk [vmem:[%s801 + $0x4] sm:$0xf] %vm506, %v798
      %v804 = vld [vmem:[%s642] sm:$0xf]
      %v805 = vld [vmem:[%s642 + $0x4] sm:$0xf]
      %v806 = vld [vmem:[%s642 + $0x8] sm:$0x1]
      %v807 = vld [vmem:[%s1] sm:$0xf]
      %v808 = vld [vmem:[%s1 + $0x4] sm:$0x3]
      %v809 = vld [vmem:[%s207] sm:$0xf]
      %v810 = vld [vmem:[%s207 + $0x4] sm:$0x3]
      %v814 = vunpack.c.l.b16 %v804
      %v815 = vunpack.c.l.b16 %v805
      %v816 = vunpack.c.l.b16 %v806
      %v817 = vpack.c.b16 %v815, %v814
      %v818 = vpack.c.b16 %v816, %v816
      %v820 = vshrl.u32 %v817, 16
      %v822 = vshll.u32 %v817, 16
      %v824 = vrot.slane %v822, 1
      %v825 = vor.u32 %v820, %v824
      %v827 = vshll.u32 %v818, 16
      %v829 = vrot.slane %v827, 1
      %v830 = vsel %vm218, %v825, %v829
      %v833 = vunpack.c.l.b16 %v809
      %v834 = vunpack.c.l.b16 %v810
      %v835 = vpack.c.b16 %v834, %v833
      %v837 = vsel %vm236, %v830, 0
      %v840 = vsel %vm240, %v835, 0
      %842 = vmatprep.subr.bf16.mxu0 0
      %843 = vmatpush1.bf16.msra.mxu0 0
      %844 = vmatprep.subr.bf16.mxu0 0
      %845 = vmatpush1.bf16.msra.mxu0 0
      %846 = vmatprep.subr.bf16.mxu0 0
      %847 = vmatpush1.bf16.msra.mxu0 0
      %848 = vmatprep.subr.bf16.mxu0 0
      %849 = vmatpush1.bf16.msra.mxu0 0
      %850 = vmatprep.subr.bf16.mxu0 0
      %851 = vmatpush1.bf16.msra.mxu0 0
      %852 = vmatprep.subr.bf16.mxu0 0
      %853 = vmatpush1.bf16.msra.mxu0 0
      %854 = vmatprep.subr.bf16.mxu0 0
      %855 = vmatpush1.bf16.msra.mxu0 0
      %856 = vmatprep.subr.bf16.mxu0 0
      %857 = vmatpush1.bf16.msra.mxu0 %v840
      %858 = vmatprep.subr.bf16.mxu0 0
      %859 = vmatpush2.bf16.msra.mxu0 0
      %860 = vmatprep.subr.bf16.mxu0 0
      %861 = vmatpush2.bf16.msra.mxu0 0
      %862 = vmatprep.subr.bf16.mxu0 0
      %863 = vmatpush2.bf16.msra.mxu0 0
      %864 = vmatprep.subr.bf16.mxu0 0
      %865 = vmatpush2.bf16.msra.mxu0 0
      %866 = vmatprep.subr.bf16.mxu0 0
      %867 = vmatpush2.bf16.msra.mxu0 0
      %868 = vmatprep.subr.bf16.mxu0 0
      %869 = vmatpush2.bf16.msra.mxu0 0
      %870 = vmatprep.subr.bf16.mxu0 0
      %871 = vmatpush2.bf16.msra.mxu0 0
      %872 = vmatprep.subr.bf16.mxu0 0
      %873 = vmatpush2.bf16.msra.mxu0 0
      %874 = vmatprep.mubr.bf16.mxu0 0
      %875 = vmatmul.mubr.bf16.gmra.mxu0 %v837
      %v876 = vpop.f32.mrf.mxu0
      %v877 = vadd.f32 0.0, %v876
      %v878 = vpop.f32.mrf.mxu0
      %v879 = vpop.f32.mrf.mxu0
      %v880 = vadd.f32 0.0, %v879
      %v881 = vpop.f32.mrf.mxu0
      %882 = vdwg.mxu0
      %v885 = vunpack.c.l.b16 %v807
      %v886 = vunpack.c.l.b16 %v808
      %v887 = vpack.c.b16 %v886, %v885
      %v888 = vsel %vm236, %v817, 0
      %v891 = vsel %vm240, %v887, 0
      %893 = vmatprep.subr.bf16.mxu0 0
      %894 = vmatpush1.bf16.msra.mxu0 0
      %895 = vmatprep.subr.bf16.mxu0 0
      %896 = vmatpush1.bf16.msra.mxu0 0
      %897 = vmatprep.subr.bf16.mxu0 0
      %898 = vmatpush1.bf16.msra.mxu0 0
      %899 = vmatprep.subr.bf16.mxu0 0
      %900 = vmatpush1.bf16.msra.mxu0 0
      %901 = vmatprep.subr.bf16.mxu0 0
      %902 = vmatpush1.bf16.msra.mxu0 0
      %903 = vmatprep.subr.bf16.mxu0 0
      %904 = vmatpush1.bf16.msra.mxu0 0
      %905 = vmatprep.subr.bf16.mxu0 0
      %906 = vmatpush1.bf16.msra.mxu0 0
      %907 = vmatprep.subr.bf16.mxu0 0
      %908 = vmatpush1.bf16.msra.mxu0 %v891
      %909 = vmatprep.subr.bf16.mxu0 0
      %910 = vmatpush2.bf16.msra.mxu0 0
      %911 = vmatprep.subr.bf16.mxu0 0
      %912 = vmatpush2.bf16.msra.mxu0 0
      %913 = vmatprep.subr.bf16.mxu0 0
      %914 = vmatpush2.bf16.msra.mxu0 0
      %915 = vmatprep.subr.bf16.mxu0 0
      %916 = vmatpush2.bf16.msra.mxu0 0
      %917 = vmatprep.subr.bf16.mxu0 0
      %918 = vmatpush2.bf16.msra.mxu0 0
      %919 = vmatprep.subr.bf16.mxu0 0
      %920 = vmatpush2.bf16.msra.mxu0 0
      %921 = vmatprep.subr.bf16.mxu0 0
      %922 = vmatpush2.bf16.msra.mxu0 0
      %923 = vmatprep.subr.bf16.mxu0 0
      %924 = vmatpush2.bf16.msra.mxu0 0
      %925 = vmatprep.mubr.bf16.mxu0 0
      %926 = vmatmul.mubr.bf16.gmra.mxu0 %v888
      %v927 = vpop.f32.mrf.mxu0
      %v928 = vadd.f32 %v877, %v927
      %v929 = vpop.f32.mrf.mxu0
      %v930 = vpop.f32.mrf.mxu0
      %v931 = vadd.f32 %v880, %v930
      %v932 = vpop.f32.mrf.mxu0
      %933 = vdwg.mxu0
      %s934 = sadd.s32 %s197, 3
      %s935 = smul.u32 %s934, 3
      %s936 = smul.addr %s935, 4
      %s937 = scalar_lea.vmem %s184, %s936
      %v938 = vld [vmem:[%s937] sm:$0xf]
      %v939 = vld [vmem:[%s937 + $0x4] sm:$0xf]
      %v940 = vld [vmem:[%s937 + $0x8] sm:$0x1]
      %v941 = vld [vmem:[%s343] sm:$0xf]
      %v942 = vld [vmem:[%s343 + $0x4] sm:$0x3]
      %v945 = vunpack.c.l.b16 %v938
      %v946 = vunpack.c.l.b16 %v939
      %v947 = vpack.c.b16 %v946, %v945
      %v950 = vunpack.c.l.b16 %v941
      %v951 = vunpack.c.l.b16 %v942
      %v952 = vpack.c.b16 %v951, %v950
      %v954 = vsel %vm236, %v947, 0
      %v957 = vsel %vm240, %v952, 0
      %959 = vmatprep.subr.bf16.mxu0 0
      %960 = vmatpush1.bf16.msra.mxu0 0
      %961 = vmatprep.subr.bf16.mxu0 0
      %962 = vmatpush1.bf16.msra.mxu0 0
      %963 = vmatprep.subr.bf16.mxu0 0
      %964 = vmatpush1.bf16.msra.mxu0 0
      %965 = vmatprep.subr.bf16.mxu0 0
      %966 = vmatpush1.bf16.msra.mxu0 0
      %967 = vmatprep.subr.bf16.mxu0 0
      %968 = vmatpush1.bf16.msra.mxu0 0
      %969 = vmatprep.subr.bf16.mxu0 0
      %970 = vmatpush1.bf16.msra.mxu0 0
      %971 = vmatprep.subr.bf16.mxu0 0
      %972 = vmatpush1.bf16.msra.mxu0 0
      %973 = vmatprep.subr.bf16.mxu0 0
      %974 = vmatpush1.bf16.msra.mxu0 %v957
      %975 = vmatprep.subr.bf16.mxu0 0
      %976 = vmatpush2.bf16.msra.mxu0 0
      %977 = vmatprep.subr.bf16.mxu0 0
      %978 = vmatpush2.bf16.msra.mxu0 0
      %979 = vmatprep.subr.bf16.mxu0 0
      %980 = vmatpush2.bf16.msra.mxu0 0
      %981 = vmatprep.subr.bf16.mxu0 0
      %982 = vmatpush2.bf16.msra.mxu0 0
      %983 = vmatprep.subr.bf16.mxu0 0
      %984 = vmatpush2.bf16.msra.mxu0 0
      %985 = vmatprep.subr.bf16.mxu0 0
      %986 = vmatpush2.bf16.msra.mxu0 0
      %987 = vmatprep.subr.bf16.mxu0 0
      %988 = vmatpush2.bf16.msra.mxu0 0
      %989 = vmatprep.subr.bf16.mxu0 0
      %990 = vmatpush2.bf16.msra.mxu0 0
      %991 = vmatprep.mubr.bf16.mxu0 0
      %992 = vmatmul.mubr.bf16.gmra.mxu0 %v954
      %v993 = vpop.f32.mrf.mxu0
      %v994 = vadd.f32 0.0, %v993
      %v995 = vpop.f32.mrf.mxu0
      %v996 = vpop.f32.mrf.mxu0
      %v997 = vadd.f32 0.0, %v996
      %v998 = vpop.f32.mrf.mxu0
      %999 = vdwg.mxu0
      %v1000 = vadd.f32 %v928, %v994
      %v1001 = vadd.f32 %v931, %v997
      %v1002 = vld [vmem:[%s405] sm:$0xf]
      %v1003 = vld [vmem:[%s405 + $0x4] sm:$0x3]
      %v1005 = vunpack.c.l.b16 %v940
      %v1006 = vpack.c.b16 %v1005, %v1005
      %v1007 = vshrl.u32 %v947, 16
      %v1009 = vshll.u32 %v947, 16
      %v1011 = vrot.slane %v1009, 1
      %v1012 = vor.u32 %v1007, %v1011
      %v1014 = vshll.u32 %v1006, 16
      %v1016 = vrot.slane %v1014, 1
      %v1017 = vsel %vm218, %v1012, %v1016
      %v1020 = vunpack.c.l.b16 %v1002
      %v1021 = vunpack.c.l.b16 %v1003
      %v1022 = vpack.c.b16 %v1021, %v1020
      %v1024 = vsel %vm236, %v1017, 0
      %v1027 = vsel %vm240, %v1022, 0
      %1029 = vmatprep.subr.bf16.mxu0 0
      %1030 = vmatpush1.bf16.msra.mxu0 0
      %1031 = vmatprep.subr.bf16.mxu0 0
      %1032 = vmatpush1.bf16.msra.mxu0 0
      %1033 = vmatprep.subr.bf16.mxu0 0
      %1034 = vmatpush1.bf16.msra.mxu0 0
      %1035 = vmatprep.subr.bf16.mxu0 0
      %1036 = vmatpush1.bf16.msra.mxu0 0
      %1037 = vmatprep.subr.bf16.mxu0 0
      %1038 = vmatpush1.bf16.msra.mxu0 0
      %1039 = vmatprep.subr.bf16.mxu0 0
      %1040 = vmatpush1.bf16.msra.mxu0 0
      %1041 = vmatprep.subr.bf16.mxu0 0
      %1042 = vmatpush1.bf16.msra.mxu0 0
      %1043 = vmatprep.subr.bf16.mxu0 0
      %1044 = vmatpush1.bf16.msra.mxu0 %v1027
      %1045 = vmatprep.subr.bf16.mxu0 0
      %1046 = vmatpush2.bf16.msra.mxu0 0
      %1047 = vmatprep.subr.bf16.mxu0 0
      %1048 = vmatpush2.bf16.msra.mxu0 0
      %1049 = vmatprep.subr.bf16.mxu0 0
      %1050 = vmatpush2.bf16.msra.mxu0 0
      %1051 = vmatprep.subr.bf16.mxu0 0
      %1052 = vmatpush2.bf16.msra.mxu0 0
      %1053 = vmatprep.subr.bf16.mxu0 0
      %1054 = vmatpush2.bf16.msra.mxu0 0
      %1055 = vmatprep.subr.bf16.mxu0 0
      %1056 = vmatpush2.bf16.msra.mxu0 0
      %1057 = vmatprep.subr.bf16.mxu0 0
      %1058 = vmatpush2.bf16.msra.mxu0 0
      %1059 = vmatprep.subr.bf16.mxu0 0
      %1060 = vmatpush2.bf16.msra.mxu0 0
      %1061 = vmatprep.mubr.bf16.mxu0 0
      %1062 = vmatmul.mubr.bf16.gmra.mxu0 %v1024
      %v1063 = vpop.f32.mrf.mxu0
      %v1064 = vadd.f32 0.0, %v1063
      %v1065 = vpop.f32.mrf.mxu0
      %v1066 = vpop.f32.mrf.mxu0
      %v1067 = vadd.f32 0.0, %v1066
      %v1068 = vpop.f32.mrf.mxu0
      %1069 = vdwg.mxu0
      %v1070 = vadd.f32 %v1000, %v1064
      %v1071 = vadd.f32 %v1001, %v1067
      %v1072 = vadd.f32 %v1070, %v480
      %v1073 = vadd.f32 %v1071, %v480
      %v1074 = vxor.u32 %v1072, 2147483648
      %v1075 = vxor.u32 %v1073, 2147483648
      %v1076 = vmul.f32 %v1074, 1.442695
      %v1077 = vpow.pop %v1076
      %v1078 = vmul.f32 %v1075, 1.442695
      %v1079 = vpow.pop %v1078
      %v1080 = vadd.f32 %v1077, 1.0
      %v1081 = vadd.f32 %v1079, 1.0
      %v1082 = vrcp.pop %v1080
      %v1083 = vmul.f32 1.0, %v1082
      %v1084 = vrcp.pop %v1081
      %v1085 = vmul.f32 1.0, %v1084
      %v1086 = vmul.f32 %v1072, %v1083
      %v1087 = vmul.f32 %v1073, %v1085
      %v1088 = vpack.c.bf16 %v1087, %v1086
      %v1090 = vunpack.c.l.b16 %v1088
      %v1091 = vunpack.c.h.b16 %v1088
      %v1092 = vpack.c.b16 %v1090, %v1090
      %v1093 = vpack.c.b16 %v1091, %v1091
      %s1096 = scalar_lea.vmem %s194, 16
      %1097 = vst.msk [vmem:[%s1096] sm:$0xf] %vm506, %v1092
      %1098 = vst.msk [vmem:[%s1096 + $0x4] sm:$0xf] %vm506, %v1093
      %v1099 = vld [vmem:[%s937] sm:$0xf]
      %v1100 = vld [vmem:[%s937 + $0x4] sm:$0xf]
      %v1101 = vld [vmem:[%s937 + $0x8] sm:$0x1]
      %v1102 = vld [vmem:[%s1] sm:$0xf]
      %v1103 = vld [vmem:[%s1 + $0x4] sm:$0x3]
      %v1104 = vld [vmem:[%s207] sm:$0xf]
      %v1105 = vld [vmem:[%s207 + $0x4] sm:$0x3]
      %v1109 = vunpack.c.l.b16 %v1099
      %v1110 = vunpack.c.l.b16 %v1100
      %v1111 = vunpack.c.l.b16 %v1101
      %v1112 = vpack.c.b16 %v1110, %v1109
      %v1113 = vpack.c.b16 %v1111, %v1111
      %v1115 = vshrl.u32 %v1112, 16
      %v1117 = vshll.u32 %v1112, 16
      %v1119 = vrot.slane %v1117, 1
      %v1120 = vor.u32 %v1115, %v1119
      %v1122 = vshll.u32 %v1113, 16
      %v1124 = vrot.slane %v1122, 1
      %v1125 = vsel %vm218, %v1120, %v1124
      %v1128 = vunpack.c.l.b16 %v1104
      %v1129 = vunpack.c.l.b16 %v1105
      %v1130 = vpack.c.b16 %v1129, %v1128
      %v1132 = vsel %vm236, %v1125, 0
      %v1135 = vsel %vm240, %v1130, 0
      %1137 = vmatprep.subr.bf16.mxu0 0
      %1138 = vmatpush1.bf16.msra.mxu0 0
      %1139 = vmatprep.subr.bf16.mxu0 0
      %1140 = vmatpush1.bf16.msra.mxu0 0
      %1141 = vmatprep.subr.bf16.mxu0 0
      %1142 = vmatpush1.bf16.msra.mxu0 0
      %1143 = vmatprep.subr.bf16.mxu0 0
      %1144 = vmatpush1.bf16.msra.mxu0 0
      %1145 = vmatprep.subr.bf16.mxu0 0
      %1146 = vmatpush1.bf16.msra.mxu0 0
      %1147 = vmatprep.subr.bf16.mxu0 0
      %1148 = vmatpush1.bf16.msra.mxu0 0
      %1149 = vmatprep.subr.bf16.mxu0 0
      %1150 = vmatpush1.bf16.msra.mxu0 0
      %1151 = vmatprep.subr.bf16.mxu0 0
      %1152 = vmatpush1.bf16.msra.mxu0 %v1135
      %1153 = vmatprep.subr.bf16.mxu0 0
      %1154 = vmatpush2.bf16.msra.mxu0 0
      %1155 = vmatprep.subr.bf16.mxu0 0
      %1156 = vmatpush2.bf16.msra.mxu0 0
      %1157 = vmatprep.subr.bf16.mxu0 0
      %1158 = vmatpush2.bf16.msra.mxu0 0
      %1159 = vmatprep.subr.bf16.mxu0 0
      %1160 = vmatpush2.bf16.msra.mxu0 0
      %1161 = vmatprep.subr.bf16.mxu0 0
      %1162 = vmatpush2.bf16.msra.mxu0 0
      %1163 = vmatprep.subr.bf16.mxu0 0
      %1164 = vmatpush2.bf16.msra.mxu0 0
      %1165 = vmatprep.subr.bf16.mxu0 0
      %1166 = vmatpush2.bf16.msra.mxu0 0
      %1167 = vmatprep.subr.bf16.mxu0 0
      %1168 = vmatpush2.bf16.msra.mxu0 0
      %1169 = vmatprep.mubr.bf16.mxu0 0
      %1170 = vmatmul.mubr.bf16.gmra.mxu0 %v1132
      %v1171 = vpop.f32.mrf.mxu0
      %v1172 = vadd.f32 0.0, %v1171
      %v1173 = vpop.f32.mrf.mxu0
      %v1174 = vpop.f32.mrf.mxu0
      %v1175 = vadd.f32 0.0, %v1174
      %v1176 = vpop.f32.mrf.mxu0
      %1177 = vdwg.mxu0
      %v1180 = vunpack.c.l.b16 %v1102
      %v1181 = vunpack.c.l.b16 %v1103
      %v1182 = vpack.c.b16 %v1181, %v1180
      %v1183 = vsel %vm236, %v1112, 0
      %v1186 = vsel %vm240, %v1182, 0
      %1188 = vmatprep.subr.bf16.mxu0 0
      %1189 = vmatpush1.bf16.msra.mxu0 0
      %1190 = vmatprep.subr.bf16.mxu0 0
      %1191 = vmatpush1.bf16.msra.mxu0 0
      %1192 = vmatprep.subr.bf16.mxu0 0
      %1193 = vmatpush1.bf16.msra.mxu0 0
      %1194 = vmatprep.subr.bf16.mxu0 0
      %1195 = vmatpush1.bf16.msra.mxu0 0
      %1196 = vmatprep.subr.bf16.mxu0 0
      %1197 = vmatpush1.bf16.msra.mxu0 0
      %1198 = vmatprep.subr.bf16.mxu0 0
      %1199 = vmatpush1.bf16.msra.mxu0 0
      %1200 = vmatprep.subr.bf16.mxu0 0
      %1201 = vmatpush1.bf16.msra.mxu0 0
      %1202 = vmatprep.subr.bf16.mxu0 0
      %1203 = vmatpush1.bf16.msra.mxu0 %v1186
      %1204 = vmatprep.subr.bf16.mxu0 0
      %1205 = vmatpush2.bf16.msra.mxu0 0
      %1206 = vmatprep.subr.bf16.mxu0 0
      %1207 = vmatpush2.bf16.msra.mxu0 0
      %1208 = vmatprep.subr.bf16.mxu0 0
      %1209 = vmatpush2.bf16.msra.mxu0 0
      %1210 = vmatprep.subr.bf16.mxu0 0
      %1211 = vmatpush2.bf16.msra.mxu0 0
      %1212 = vmatprep.subr.bf16.mxu0 0
      %1213 = vmatpush2.bf16.msra.mxu0 0
      %1214 = vmatprep.subr.bf16.mxu0 0
      %1215 = vmatpush2.bf16.msra.mxu0 0
      %1216 = vmatprep.subr.bf16.mxu0 0
      %1217 = vmatpush2.bf16.msra.mxu0 0
      %1218 = vmatprep.subr.bf16.mxu0 0
      %1219 = vmatpush2.bf16.msra.mxu0 0
      %1220 = vmatprep.mubr.bf16.mxu0 0
      %1221 = vmatmul.mubr.bf16.gmra.mxu0 %v1183
      %v1222 = vpop.f32.mrf.mxu0
      %v1223 = vadd.f32 %v1172, %v1222
      %v1224 = vpop.f32.mrf.mxu0
      %v1225 = vpop.f32.mrf.mxu0
      %v1226 = vadd.f32 %v1175, %v1225
      %v1227 = vpop.f32.mrf.mxu0
      %1228 = vdwg.mxu0
      %s1229 = sadd.s32 %s197, 4
      %s1230 = smul.u32 %s1229, 3
      %s1231 = smul.addr %s1230, 4
      %s1232 = scalar_lea.vmem %s184, %s1231
      %v1233 = vld [vmem:[%s1232] sm:$0xf]
      %v1234 = vld [vmem:[%s1232 + $0x4] sm:$0xf]
      %v1235 = vld [vmem:[%s1232 + $0x8] sm:$0x1]
      %v1236 = vld [vmem:[%s343] sm:$0xf]
      %v1237 = vld [vmem:[%s343 + $0x4] sm:$0x3]
      %v1240 = vunpack.c.l.b16 %v1233
      %v1241 = vunpack.c.l.b16 %v1234
      %v1242 = vpack.c.b16 %v1241, %v1240
      %v1245 = vunpack.c.l.b16 %v1236
      %v1246 = vunpack.c.l.b16 %v1237
      %v1247 = vpack.c.b16 %v1246, %v1245
      %v1249 = vsel %vm236, %v1242, 0
      %v1252 = vsel %vm240, %v1247, 0
      %1254 = vmatprep.subr.bf16.mxu0 0
      %1255 = vmatpush1.bf16.msra.mxu0 0
      %1256 = vmatprep.subr.bf16.mxu0 0
      %1257 = vmatpush1.bf16.msra.mxu0 0
      %1258 = vmatprep.subr.bf16.mxu0 0
      %1259 = vmatpush1.bf16.msra.mxu0 0
      %1260 = vmatprep.subr.bf16.mxu0 0
      %1261 = vmatpush1.bf16.msra.mxu0 0
      %1262 = vmatprep.subr.bf16.mxu0 0
      %1263 = vmatpush1.bf16.msra.mxu0 0
      %1264 = vmatprep.subr.bf16.mxu0 0
      %1265 = vmatpush1.bf16.msra.mxu0 0
      %1266 = vmatprep.subr.bf16.mxu0 0
      %1267 = vmatpush1.bf16.msra.mxu0 0
      %1268 = vmatprep.subr.bf16.mxu0 0
      %1269 = vmatpush1.bf16.msra.mxu0 %v1252
      %1270 = vmatprep.subr.bf16.mxu0 0
      %1271 = vmatpush2.bf16.msra.mxu0 0
      %1272 = vmatprep.subr.bf16.mxu0 0
      %1273 = vmatpush2.bf16.msra.mxu0 0
      %1274 = vmatprep.subr.bf16.mxu0 0
      %1275 = vmatpush2.bf16.msra.mxu0 0
      %1276 = vmatprep.subr.bf16.mxu0 0
      %1277 = vmatpush2.bf16.msra.mxu0 0
      %1278 = vmatprep.subr.bf16.mxu0 0
      %1279 = vmatpush2.bf16.msra.mxu0 0
      %1280 = vmatprep.subr.bf16.mxu0 0
      %1281 = vmatpush2.bf16.msra.mxu0 0
      %1282 = vmatprep.subr.bf16.mxu0 0
      %1283 = vmatpush2.bf16.msra.mxu0 0
      %1284 = vmatprep.subr.bf16.mxu0 0
      %1285 = vmatpush2.bf16.msra.mxu0 0
      %1286 = vmatprep.mubr.bf16.mxu0 0
      %1287 = vmatmul.mubr.bf16.gmra.mxu0 %v1249
      %v1288 = vpop.f32.mrf.mxu0
      %v1289 = vadd.f32 0.0, %v1288
      %v1290 = vpop.f32.mrf.mxu0
      %v1291 = vpop.f32.mrf.mxu0
      %v1292 = vadd.f32 0.0, %v1291
      %v1293 = vpop.f32.mrf.mxu0
      %1294 = vdwg.mxu0
      %v1295 = vadd.f32 %v1223, %v1289
      %v1296 = vadd.f32 %v1226, %v1292
      %v1297 = vld [vmem:[%s405] sm:$0xf]
      %v1298 = vld [vmem:[%s405 + $0x4] sm:$0x3]
      %v1300 = vunpack.c.l.b16 %v1235
      %v1301 = vpack.c.b16 %v1300, %v1300
      %v1302 = vshrl.u32 %v1242, 16
      %v1304 = vshll.u32 %v1242, 16
      %v1306 = vrot.slane %v1304, 1
      %v1307 = vor.u32 %v1302, %v1306
      %v1309 = vshll.u32 %v1301, 16
      %v1311 = vrot.slane %v1309, 1
      %v1312 = vsel %vm218, %v1307, %v1311
      %v1315 = vunpack.c.l.b16 %v1297
      %v1316 = vunpack.c.l.b16 %v1298
      %v1317 = vpack.c.b16 %v1316, %v1315
      %v1319 = vsel %vm236, %v1312, 0
      %v1322 = vsel %vm240, %v1317, 0
      %1324 = vmatprep.subr.bf16.mxu0 0
      %1325 = vmatpush1.bf16.msra.mxu0 0
      %1326 = vmatprep.subr.bf16.mxu0 0
      %1327 = vmatpush1.bf16.msra.mxu0 0
      %1328 = vmatprep.subr.bf16.mxu0 0
      %1329 = vmatpush1.bf16.msra.mxu0 0
      %1330 = vmatprep.subr.bf16.mxu0 0
      %1331 = vmatpush1.bf16.msra.mxu0 0
      %1332 = vmatprep.subr.bf16.mxu0 0
      %1333 = vmatpush1.bf16.msra.mxu0 0
      %1334 = vmatprep.subr.bf16.mxu0 0
      %1335 = vmatpush1.bf16.msra.mxu0 0
      %1336 = vmatprep.subr.bf16.mxu0 0
      %1337 = vmatpush1.bf16.msra.mxu0 0
      %1338 = vmatprep.subr.bf16.mxu0 0
      %1339 = vmatpush1.bf16.msra.mxu0 %v1322
      %1340 = vmatprep.subr.bf16.mxu0 0
      %1341 = vmatpush2.bf16.msra.mxu0 0
      %1342 = vmatprep.subr.bf16.mxu0 0
      %1343 = vmatpush2.bf16.msra.mxu0 0
      %1344 = vmatprep.subr.bf16.mxu0 0
      %1345 = vmatpush2.bf16.msra.mxu0 0
      %1346 = vmatprep.subr.bf16.mxu0 0
      %1347 = vmatpush2.bf16.msra.mxu0 0
      %1348 = vmatprep.subr.bf16.mxu0 0
      %1349 = vmatpush2.bf16.msra.mxu0 0
      %1350 = vmatprep.subr.bf16.mxu0 0
      %1351 = vmatpush2.bf16.msra.mxu0 0
      %1352 = vmatprep.subr.bf16.mxu0 0
      %1353 = vmatpush2.bf16.msra.mxu0 0
      %1354 = vmatprep.subr.bf16.mxu0 0
      %1355 = vmatpush2.bf16.msra.mxu0 0
      %1356 = vmatprep.mubr.bf16.mxu0 0
      %1357 = vmatmul.mubr.bf16.gmra.mxu0 %v1319
      %v1358 = vpop.f32.mrf.mxu0
      %v1359 = vadd.f32 0.0, %v1358
      %v1360 = vpop.f32.mrf.mxu0
      %v1361 = vpop.f32.mrf.mxu0
      %v1362 = vadd.f32 0.0, %v1361
      %v1363 = vpop.f32.mrf.mxu0
      %1364 = vdwg.mxu0
      %v1365 = vadd.f32 %v1295, %v1359
      %v1366 = vadd.f32 %v1296, %v1362
      %v1367 = vadd.f32 %v1365, %v480
      %v1368 = vadd.f32 %v1366, %v480
      %v1369 = vxor.u32 %v1367, 2147483648
      %v1370 = vxor.u32 %v1368, 2147483648
      %v1371 = vmul.f32 %v1369, 1.442695
      %v1372 = vpow.pop %v1371
      %v1373 = vmul.f32 %v1370, 1.442695
      %v1374 = vpow.pop %v1373
      %v1375 = vadd.f32 %v1372, 1.0
      %v1376 = vadd.f32 %v1374, 1.0
      %v1377 = vrcp.pop %v1375
      %v1378 = vmul.f32 1.0, %v1377
      %v1379 = vrcp.pop %v1376
      %v1380 = vmul.f32 1.0, %v1379
      %v1381 = vmul.f32 %v1367, %v1378
      %v1382 = vmul.f32 %v1368, %v1380
      %v1383 = vpack.c.bf16 %v1382, %v1381
      %v1385 = vunpack.c.l.b16 %v1383
      %v1386 = vunpack.c.h.b16 %v1383
      %v1387 = vpack.c.b16 %v1385, %v1385
      %v1388 = vpack.c.b16 %v1386, %v1386
      %s1391 = scalar_lea.vmem %s194, 24
      %1392 = vst.msk [vmem:[%s1391] sm:$0xf] %vm506, %v1387
      %1393 = vst.msk [vmem:[%s1391 + $0x4] sm:$0xf] %vm506, %v1388
      %v1394 = vld [vmem:[%s1232] sm:$0xf]
      %v1395 = vld [vmem:[%s1232 + $0x4] sm:$0xf]
      %v1396 = vld [vmem:[%s1232 + $0x8] sm:$0x1]
      %v1397 = vld [vmem:[%s1] sm:$0xf]
      %v1398 = vld [vmem:[%s1 + $0x4] sm:$0x3]
      %v1399 = vld [vmem:[%s207] sm:$0xf]
      %v1400 = vld [vmem:[%s207 + $0x4] sm:$0x3]
      %v1404 = vunpack.c.l.b16 %v1394
      %v1405 = vunpack.c.l.b16 %v1395
      %v1406 = vunpack.c.l.b16 %v1396
      %v1407 = vpack.c.b16 %v1405, %v1404
      %v1408 = vpack.c.b16 %v1406, %v1406
      %v1410 = vshrl.u32 %v1407, 16
      %v1412 = vshll.u32 %v1407, 16
      %v1414 = vrot.slane %v1412, 1
      %v1415 = vor.u32 %v1410, %v1414
      %v1417 = vshll.u32 %v1408, 16
      %v1419 = vrot.slane %v1417, 1
      %v1420 = vsel %vm218, %v1415, %v1419
      %v1423 = vunpack.c.l.b16 %v1399
      %v1424 = vunpack.c.l.b16 %v1400
      %v1425 = vpack.c.b16 %v1424, %v1423
      %v1427 = vsel %vm236, %v1420, 0
      %v1430 = vsel %vm240, %v1425, 0
      %1432 = vmatprep.subr.bf16.mxu0 0
      %1433 = vmatpush1.bf16.msra.mxu0 0
      %1434 = vmatprep.subr.bf16.mxu0 0
      %1435 = vmatpush1.bf16.msra.mxu0 0
      %1436 = vmatprep.subr.bf16.mxu0 0
      %1437 = vmatpush1.bf16.msra.mxu0 0
      %1438 = vmatprep.subr.bf16.mxu0 0
      %1439 = vmatpush1.bf16.msra.mxu0 0
      %1440 = vmatprep.subr.bf16.mxu0 0
      %1441 = vmatpush1.bf16.msra.mxu0 0
      %1442 = vmatprep.subr.bf16.mxu0 0
      %1443 = vmatpush1.bf16.msra.mxu0 0
      %1444 = vmatprep.subr.bf16.mxu0 0
      %1445 = vmatpush1.bf16.msra.mxu0 0
      %1446 = vmatprep.subr.bf16.mxu0 0
      %1447 = vmatpush1.bf16.msra.mxu0 %v1430
      %1448 = vmatprep.subr.bf16.mxu0 0
      %1449 = vmatpush2.bf16.msra.mxu0 0
      %1450 = vmatprep.subr.bf16.mxu0 0
      %1451 = vmatpush2.bf16.msra.mxu0 0
      %1452 = vmatprep.subr.bf16.mxu0 0
      %1453 = vmatpush2.bf16.msra.mxu0 0
      %1454 = vmatprep.subr.bf16.mxu0 0
      %1455 = vmatpush2.bf16.msra.mxu0 0
      %1456 = vmatprep.subr.bf16.mxu0 0
      %1457 = vmatpush2.bf16.msra.mxu0 0
      %1458 = vmatprep.subr.bf16.mxu0 0
      %1459 = vmatpush2.bf16.msra.mxu0 0
      %1460 = vmatprep.subr.bf16.mxu0 0
      %1461 = vmatpush2.bf16.msra.mxu0 0
      %1462 = vmatprep.subr.bf16.mxu0 0
      %1463 = vmatpush2.bf16.msra.mxu0 0
      %1464 = vmatprep.mubr.bf16.mxu0 0
      %1465 = vmatmul.mubr.bf16.gmra.mxu0 %v1427
      %v1466 = vpop.f32.mrf.mxu0
      %v1467 = vadd.f32 0.0, %v1466
      %v1468 = vpop.f32.mrf.mxu0
      %v1469 = vpop.f32.mrf.mxu0
      %v1470 = vadd.f32 0.0, %v1469
      %v1471 = vpop.f32.mrf.mxu0
      %1472 = vdwg.mxu0
      %v1475 = vunpack.c.l.b16 %v1397
      %v1476 = vunpack.c.l.b16 %v1398
      %v1477 = vpack.c.b16 %v1476, %v1475
      %v1478 = vsel %vm236, %v1407, 0
      %v1481 = vsel %vm240, %v1477, 0
      %1483 = vmatprep.subr.bf16.mxu0 0
      %1484 = vmatpush1.bf16.msra.mxu0 0
      %1485 = vmatprep.subr.bf16.mxu0 0
      %1486 = vmatpush1.bf16.msra.mxu0 0
      %1487 = vmatprep.subr.bf16.mxu0 0
      %1488 = vmatpush1.bf16.msra.mxu0 0
      %1489 = vmatprep.subr.bf16.mxu0 0
      %1490 = vmatpush1.bf16.msra.mxu0 0
      %1491 = vmatprep.subr.bf16.mxu0 0
      %1492 = vmatpush1.bf16.msra.mxu0 0
      %1493 = vmatprep.subr.bf16.mxu0 0
      %1494 = vmatpush1.bf16.msra.mxu0 0
      %1495 = vmatprep.subr.bf16.mxu0 0
      %1496 = vmatpush1.bf16.msra.mxu0 0
      %1497 = vmatprep.subr.bf16.mxu0 0
      %1498 = vmatpush1.bf16.msra.mxu0 %v1481
      %1499 = vmatprep.subr.bf16.mxu0 0
      %1500 = vmatpush2.bf16.msra.mxu0 0
      %1501 = vmatprep.subr.bf16.mxu0 0
      %1502 = vmatpush2.bf16.msra.mxu0 0
      %1503 = vmatprep.subr.bf16.mxu0 0
      %1504 = vmatpush2.bf16.msra.mxu0 0
      %1505 = vmatprep.subr.bf16.mxu0 0
      %1506 = vmatpush2.bf16.msra.mxu0 0
      %1507 = vmatprep.subr.bf16.mxu0 0
      %1508 = vmatpush2.bf16.msra.mxu0 0
      %1509 = vmatprep.subr.bf16.mxu0 0
      %1510 = vmatpush2.bf16.msra.mxu0 0
      %1511 = vmatprep.subr.bf16.mxu0 0
      %1512 = vmatpush2.bf16.msra.mxu0 0
      %1513 = vmatprep.subr.bf16.mxu0 0
      %1514 = vmatpush2.bf16.msra.mxu0 0
      %1515 = vmatprep.mubr.bf16.mxu0 0
      %1516 = vmatmul.mubr.bf16.gmra.mxu0 %v1478
      %v1517 = vpop.f32.mrf.mxu0
      %v1518 = vadd.f32 %v1467, %v1517
      %v1519 = vpop.f32.mrf.mxu0
      %v1520 = vpop.f32.mrf.mxu0
      %v1521 = vadd.f32 %v1470, %v1520
      %v1522 = vpop.f32.mrf.mxu0
      %1523 = vdwg.mxu0
      %s1524 = sadd.s32 %s197, 5
      %s1525 = smul.u32 %s1524, 3
      %s1526 = smul.addr %s1525, 4
      %s1527 = scalar_lea.vmem %s184, %s1526
      %v1528 = vld [vmem:[%s1527] sm:$0xf]
      %v1529 = vld [vmem:[%s1527 + $0x4] sm:$0xf]
      %v1530 = vld [vmem:[%s1527 + $0x8] sm:$0x1]
      %v1531 = vld [vmem:[%s343] sm:$0xf]
      %v1532 = vld [vmem:[%s343 + $0x4] sm:$0x3]
      %v1535 = vunpack.c.l.b16 %v1528
      %v1536 = vunpack.c.l.b16 %v1529
      %v1537 = vpack.c.b16 %v1536, %v1535
      %v1540 = vunpack.c.l.b16 %v1531
      %v1541 = vunpack.c.l.b16 %v1532
      %v1542 = vpack.c.b16 %v1541, %v1540
      %v1544 = vsel %vm236, %v1537, 0
      %v1547 = vsel %vm240, %v1542, 0
      %1549 = vmatprep.subr.bf16.mxu0 0
      %1550 = vmatpush1.bf16.msra.mxu0 0
      %1551 = vmatprep.subr.bf16.mxu0 0
      %1552 = vmatpush1.bf16.msra.mxu0 0
      %1553 = vmatprep.subr.bf16.mxu0 0
      %1554 = vmatpush1.bf16.msra.mxu0 0
      %1555 = vmatprep.subr.bf16.mxu0 0
      %1556 = vmatpush1.bf16.msra.mxu0 0
      %1557 = vmatprep.subr.bf16.mxu0 0
      %1558 = vmatpush1.bf16.msra.mxu0 0
      %1559 = vmatprep.subr.bf16.mxu0 0
      %1560 = vmatpush1.bf16.msra.mxu0 0
      %1561 = vmatprep.subr.bf16.mxu0 0
      %1562 = vmatpush1.bf16.msra.mxu0 0
      %1563 = vmatprep.subr.bf16.mxu0 0
      %1564 = vmatpush1.bf16.msra.mxu0 %v1547
      %1565 = vmatprep.subr.bf16.mxu0 0
      %1566 = vmatpush2.bf16.msra.mxu0 0
      %1567 = vmatprep.subr.bf16.mxu0 0
      %1568 = vmatpush2.bf16.msra.mxu0 0
      %1569 = vmatprep.subr.bf16.mxu0 0
      %1570 = vmatpush2.bf16.msra.mxu0 0
      %1571 = vmatprep.subr.bf16.mxu0 0
      %1572 = vmatpush2.bf16.msra.mxu0 0
      %1573 = vmatprep.subr.bf16.mxu0 0
      %1574 = vmatpush2.bf16.msra.mxu0 0
      %1575 = vmatprep.subr.bf16.mxu0 0
      %1576 = vmatpush2.bf16.msra.mxu0 0
      %1577 = vmatprep.subr.bf16.mxu0 0
      %1578 = vmatpush2.bf16.msra.mxu0 0
      %1579 = vmatprep.subr.bf16.mxu0 0
      %1580 = vmatpush2.bf16.msra.mxu0 0
      %1581 = vmatprep.mubr.bf16.mxu0 0
      %1582 = vmatmul.mubr.bf16.gmra.mxu0 %v1544
      %v1583 = vpop.f32.mrf.mxu0
      %v1584 = vadd.f32 0.0, %v1583
      %v1585 = vpop.f32.mrf.mxu0
      %v1586 = vpop.f32.mrf.mxu0
      %v1587 = vadd.f32 0.0, %v1586
      %v1588 = vpop.f32.mrf.mxu0
      %1589 = vdwg.mxu0
      %v1590 = vadd.f32 %v1518, %v1584
      %v1591 = vadd.f32 %v1521, %v1587
      %v1592 = vld [vmem:[%s405] sm:$0xf]
      %v1593 = vld [vmem:[%s405 + $0x4] sm:$0x3]
      %v1595 = vunpack.c.l.b16 %v1530
      %v1596 = vpack.c.b16 %v1595, %v1595
      %v1597 = vshrl.u32 %v1537, 16
      %v1599 = vshll.u32 %v1537, 16
      %v1601 = vrot.slane %v1599, 1
      %v1602 = vor.u32 %v1597, %v1601
      %v1604 = vshll.u32 %v1596, 16
      %v1606 = vrot.slane %v1604, 1
      %v1607 = vsel %vm218, %v1602, %v1606
      %v1610 = vunpack.c.l.b16 %v1592
      %v1611 = vunpack.c.l.b16 %v1593
      %v1612 = vpack.c.b16 %v1611, %v1610
      %v1614 = vsel %vm236, %v1607, 0
      %v1617 = vsel %vm240, %v1612, 0
      %1619 = vmatprep.subr.bf16.mxu0 0
      %1620 = vmatpush1.bf16.msra.mxu0 0
      %1621 = vmatprep.subr.bf16.mxu0 0
      %1622 = vmatpush1.bf16.msra.mxu0 0
      %1623 = vmatprep.subr.bf16.mxu0 0
      %1624 = vmatpush1.bf16.msra.mxu0 0
      %1625 = vmatprep.subr.bf16.mxu0 0
      %1626 = vmatpush1.bf16.msra.mxu0 0
      %1627 = vmatprep.subr.bf16.mxu0 0
      %1628 = vmatpush1.bf16.msra.mxu0 0
      %1629 = vmatprep.subr.bf16.mxu0 0
      %1630 = vmatpush1.bf16.msra.mxu0 0
      %1631 = vmatprep.subr.bf16.mxu0 0
      %1632 = vmatpush1.bf16.msra.mxu0 0
      %1633 = vmatprep.subr.bf16.mxu0 0
      %1634 = vmatpush1.bf16.msra.mxu0 %v1617
      %1635 = vmatprep.subr.bf16.mxu0 0
      %1636 = vmatpush2.bf16.msra.mxu0 0
      %1637 = vmatprep.subr.bf16.mxu0 0
      %1638 = vmatpush2.bf16.msra.mxu0 0
      %1639 = vmatprep.subr.bf16.mxu0 0
      %1640 = vmatpush2.bf16.msra.mxu0 0
      %1641 = vmatprep.subr.bf16.mxu0 0
      %1642 = vmatpush2.bf16.msra.mxu0 0
      %1643 = vmatprep.subr.bf16.mxu0 0
      %1644 = vmatpush2.bf16.msra.mxu0 0
      %1645 = vmatprep.subr.bf16.mxu0 0
      %1646 = vmatpush2.bf16.msra.mxu0 0
      %1647 = vmatprep.subr.bf16.mxu0 0
      %1648 = vmatpush2.bf16.msra.mxu0 0
      %1649 = vmatprep.subr.bf16.mxu0 0
      %1650 = vmatpush2.bf16.msra.mxu0 0
      %1651 = vmatprep.mubr.bf16.mxu0 0
      %1652 = vmatmul.mubr.bf16.gmra.mxu0 %v1614
      %v1653 = vpop.f32.mrf.mxu0
      %v1654 = vadd.f32 0.0, %v1653
      %v1655 = vpop.f32.mrf.mxu0
      %v1656 = vpop.f32.mrf.mxu0
      %v1657 = vadd.f32 0.0, %v1656
      %v1658 = vpop.f32.mrf.mxu0
      %1659 = vdwg.mxu0
      %v1660 = vadd.f32 %v1590, %v1654
      %v1661 = vadd.f32 %v1591, %v1657
      %v1662 = vadd.f32 %v1660, %v480
      %v1663 = vadd.f32 %v1661, %v480
      %v1664 = vxor.u32 %v1662, 2147483648
      %v1665 = vxor.u32 %v1663, 2147483648
      %v1666 = vmul.f32 %v1664, 1.442695
      %v1667 = vpow.pop %v1666
      %v1668 = vmul.f32 %v1665, 1.442695
      %v1669 = vpow.pop %v1668
      %v1670 = vadd.f32 %v1667, 1.0
      %v1671 = vadd.f32 %v1669, 1.0
      %v1672 = vrcp.pop %v1670
      %v1673 = vmul.f32 1.0, %v1672
      %v1674 = vrcp.pop %v1671
      %v1675 = vmul.f32 1.0, %v1674
      %v1676 = vmul.f32 %v1662, %v1673
      %v1677 = vmul.f32 %v1663, %v1675
      %v1678 = vpack.c.bf16 %v1677, %v1676
      %v1680 = vunpack.c.l.b16 %v1678
      %v1681 = vunpack.c.h.b16 %v1678
      %v1682 = vpack.c.b16 %v1680, %v1680
      %v1683 = vpack.c.b16 %v1681, %v1681
      %s1686 = scalar_lea.vmem %s194, 32
      %1687 = vst.msk [vmem:[%s1686] sm:$0xf] %vm506, %v1682
      %1688 = vst.msk [vmem:[%s1686 + $0x4] sm:$0xf] %vm506, %v1683
      %v1689 = vld [vmem:[%s1527] sm:$0xf]
      %v1690 = vld [vmem:[%s1527 + $0x4] sm:$0xf]
      %v1691 = vld [vmem:[%s1527 + $0x8] sm:$0x1]
      %v1692 = vld [vmem:[%s1] sm:$0xf]
      %v1693 = vld [vmem:[%s1 + $0x4] sm:$0x3]
      %v1694 = vld [vmem:[%s207] sm:$0xf]
      %v1695 = vld [vmem:[%s207 + $0x4] sm:$0x3]
      %v1699 = vunpack.c.l.b16 %v1689
      %v1700 = vunpack.c.l.b16 %v1690
      %v1701 = vunpack.c.l.b16 %v1691
      %v1702 = vpack.c.b16 %v1700, %v1699
      %v1703 = vpack.c.b16 %v1701, %v1701
      %v1705 = vshrl.u32 %v1702, 16
      %v1707 = vshll.u32 %v1702, 16
      %v1709 = vrot.slane %v1707, 1
      %v1710 = vor.u32 %v1705, %v1709
      %v1712 = vshll.u32 %v1703, 16
      %v1714 = vrot.slane %v1712, 1
      %v1715 = vsel %vm218, %v1710, %v1714
      %v1718 = vunpack.c.l.b16 %v1694
      %v1719 = vunpack.c.l.b16 %v1695
      %v1720 = vpack.c.b16 %v1719, %v1718
      %v1722 = vsel %vm236, %v1715, 0
      %v1725 = vsel %vm240, %v1720, 0
      %1727 = vmatprep.subr.bf16.mxu0 0
      %1728 = vmatpush1.bf16.msra.mxu0 0
      %1729 = vmatprep.subr.bf16.mxu0 0
      %1730 = vmatpush1.bf16.msra.mxu0 0
      %1731 = vmatprep.subr.bf16.mxu0 0
      %1732 = vmatpush1.bf16.msra.mxu0 0
      %1733 = vmatprep.subr.bf16.mxu0 0
      %1734 = vmatpush1.bf16.msra.mxu0 0
      %1735 = vmatprep.subr.bf16.mxu0 0
      %1736 = vmatpush1.bf16.msra.mxu0 0
      %1737 = vmatprep.subr.bf16.mxu0 0
      %1738 = vmatpush1.bf16.msra.mxu0 0
      %1739 = vmatprep.subr.bf16.mxu0 0
      %1740 = vmatpush1.bf16.msra.mxu0 0
      %1741 = vmatprep.subr.bf16.mxu0 0
      %1742 = vmatpush1.bf16.msra.mxu0 %v1725
      %1743 = vmatprep.subr.bf16.mxu0 0
      %1744 = vmatpush2.bf16.msra.mxu0 0
      %1745 = vmatprep.subr.bf16.mxu0 0
      %1746 = vmatpush2.bf16.msra.mxu0 0
      %1747 = vmatprep.subr.bf16.mxu0 0
      %1748 = vmatpush2.bf16.msra.mxu0 0
      %1749 = vmatprep.subr.bf16.mxu0 0
      %1750 = vmatpush2.bf16.msra.mxu0 0
      %1751 = vmatprep.subr.bf16.mxu0 0
      %1752 = vmatpush2.bf16.msra.mxu0 0
      %1753 = vmatprep.subr.bf16.mxu0 0
      %1754 = vmatpush2.bf16.msra.mxu0 0
      %1755 = vmatprep.subr.bf16.mxu0 0
      %1756 = vmatpush2.bf16.msra.mxu0 0
      %1757 = vmatprep.subr.bf16.mxu0 0
      %1758 = vmatpush2.bf16.msra.mxu0 0
      %1759 = vmatprep.mubr.bf16.mxu0 0
      %1760 = vmatmul.mubr.bf16.gmra.mxu0 %v1722
      %v1761 = vpop.f32.mrf.mxu0
      %v1762 = vadd.f32 0.0, %v1761
      %v1763 = vpop.f32.mrf.mxu0
      %v1764 = vpop.f32.mrf.mxu0
      %v1765 = vadd.f32 0.0, %v1764
      %v1766 = vpop.f32.mrf.mxu0
      %1767 = vdwg.mxu0
      %v1770 = vunpack.c.l.b16 %v1692
      %v1771 = vunpack.c.l.b16 %v1693
      %v1772 = vpack.c.b16 %v1771, %v1770
      %v1773 = vsel %vm236, %v1702, 0
      %v1776 = vsel %vm240, %v1772, 0
      %1778 = vmatprep.subr.bf16.mxu0 0
      %1779 = vmatpush1.bf16.msra.mxu0 0
      %1780 = vmatprep.subr.bf16.mxu0 0
      %1781 = vmatpush1.bf16.msra.mxu0 0
      %1782 = vmatprep.subr.bf16.mxu0 0
      %1783 = vmatpush1.bf16.msra.mxu0 0
      %1784 = vmatprep.subr.bf16.mxu0 0
      %1785 = vmatpush1.bf16.msra.mxu0 0
      %1786 = vmatprep.subr.bf16.mxu0 0
      %1787 = vmatpush1.bf16.msra.mxu0 0
      %1788 = vmatprep.subr.bf16.mxu0 0
      %1789 = vmatpush1.bf16.msra.mxu0 0
      %1790 = vmatprep.subr.bf16.mxu0 0
      %1791 = vmatpush1.bf16.msra.mxu0 0
      %1792 = vmatprep.subr.bf16.mxu0 0
      %1793 = vmatpush1.bf16.msra.mxu0 %v1776
      %1794 = vmatprep.subr.bf16.mxu0 0
      %1795 = vmatpush2.bf16.msra.mxu0 0
      %1796 = vmatprep.subr.bf16.mxu0 0
      %1797 = vmatpush2.bf16.msra.mxu0 0
      %1798 = vmatprep.subr.bf16.mxu0 0
      %1799 = vmatpush2.bf16.msra.mxu0 0
      %1800 = vmatprep.subr.bf16.mxu0 0
      %1801 = vmatpush2.bf16.msra.mxu0 0
      %1802 = vmatprep.subr.bf16.mxu0 0
      %1803 = vmatpush2.bf16.msra.mxu0 0
      %1804 = vmatprep.subr.bf16.mxu0 0
      %1805 = vmatpush2.bf16.msra.mxu0 0
      %1806 = vmatprep.subr.bf16.mxu0 0
      %1807 = vmatpush2.bf16.msra.mxu0 0
      %1808 = vmatprep.subr.bf16.mxu0 0
      %1809 = vmatpush2.bf16.msra.mxu0 0
      %1810 = vmatprep.mubr.bf16.mxu0 0
      %1811 = vmatmul.mubr.bf16.gmra.mxu0 %v1773
      %v1812 = vpop.f32.mrf.mxu0
      %v1813 = vadd.f32 %v1762, %v1812
      %v1814 = vpop.f32.mrf.mxu0
      %v1815 = vpop.f32.mrf.mxu0
      %v1816 = vadd.f32 %v1765, %v1815
      %v1817 = vpop.f32.mrf.mxu0
      %1818 = vdwg.mxu0
      %s1819 = sadd.s32 %s197, 6
      %s1820 = smul.u32 %s1819, 3
      %s1821 = smul.addr %s1820, 4
      %s1822 = scalar_lea.vmem %s184, %s1821
      %v1823 = vld [vmem:[%s1822] sm:$0xf]
      %v1824 = vld [vmem:[%s1822 + $0x4] sm:$0xf]
      %v1825 = vld [vmem:[%s1822 + $0x8] sm:$0x1]
      %v1826 = vld [vmem:[%s343] sm:$0xf]
      %v1827 = vld [vmem:[%s343 + $0x4] sm:$0x3]
      %v1830 = vunpack.c.l.b16 %v1823
      %v1831 = vunpack.c.l.b16 %v1824
      %v1832 = vpack.c.b16 %v1831, %v1830
      %v1835 = vunpack.c.l.b16 %v1826
      %v1836 = vunpack.c.l.b16 %v1827
      %v1837 = vpack.c.b16 %v1836, %v1835
      %v1839 = vsel %vm236, %v1832, 0
      %v1842 = vsel %vm240, %v1837, 0
      %1844 = vmatprep.subr.bf16.mxu0 0
      %1845 = vmatpush1.bf16.msra.mxu0 0
      %1846 = vmatprep.subr.bf16.mxu0 0
      %1847 = vmatpush1.bf16.msra.mxu0 0
      %1848 = vmatprep.subr.bf16.mxu0 0
      %1849 = vmatpush1.bf16.msra.mxu0 0
      %1850 = vmatprep.subr.bf16.mxu0 0
      %1851 = vmatpush1.bf16.msra.mxu0 0
      %1852 = vmatprep.subr.bf16.mxu0 0
      %1853 = vmatpush1.bf16.msra.mxu0 0
      %1854 = vmatprep.subr.bf16.mxu0 0
      %1855 = vmatpush1.bf16.msra.mxu0 0
      %1856 = vmatprep.subr.bf16.mxu0 0
      %1857 = vmatpush1.bf16.msra.mxu0 0
      %1858 = vmatprep.subr.bf16.mxu0 0
      %1859 = vmatpush1.bf16.msra.mxu0 %v1842
      %1860 = vmatprep.subr.bf16.mxu0 0
      %1861 = vmatpush2.bf16.msra.mxu0 0
      %1862 = vmatprep.subr.bf16.mxu0 0
      %1863 = vmatpush2.bf16.msra.mxu0 0
      %1864 = vmatprep.subr.bf16.mxu0 0
      %1865 = vmatpush2.bf16.msra.mxu0 0
      %1866 = vmatprep.subr.bf16.mxu0 0
      %1867 = vmatpush2.bf16.msra.mxu0 0
      %1868 = vmatprep.subr.bf16.mxu0 0
      %1869 = vmatpush2.bf16.msra.mxu0 0
      %1870 = vmatprep.subr.bf16.mxu0 0
      %1871 = vmatpush2.bf16.msra.mxu0 0
      %1872 = vmatprep.subr.bf16.mxu0 0
      %1873 = vmatpush2.bf16.msra.mxu0 0
      %1874 = vmatprep.subr.bf16.mxu0 0
      %1875 = vmatpush2.bf16.msra.mxu0 0
      %1876 = vmatprep.mubr.bf16.mxu0 0
      %1877 = vmatmul.mubr.bf16.gmra.mxu0 %v1839
      %v1878 = vpop.f32.mrf.mxu0
      %v1879 = vadd.f32 0.0, %v1878
      %v1880 = vpop.f32.mrf.mxu0
      %v1881 = vpop.f32.mrf.mxu0
      %v1882 = vadd.f32 0.0, %v1881
      %v1883 = vpop.f32.mrf.mxu0
      %1884 = vdwg.mxu0
      %v1885 = vadd.f32 %v1813, %v1879
      %v1886 = vadd.f32 %v1816, %v1882
      %v1887 = vld [vmem:[%s405] sm:$0xf]
      %v1888 = vld [vmem:[%s405 + $0x4] sm:$0x3]
      %v1890 = vunpack.c.l.b16 %v1825
      %v1891 = vpack.c.b16 %v1890, %v1890
      %v1892 = vshrl.u32 %v1832, 16
      %v1894 = vshll.u32 %v1832, 16
      %v1896 = vrot.slane %v1894, 1
      %v1897 = vor.u32 %v1892, %v1896
      %v1899 = vshll.u32 %v1891, 16
      %v1901 = vrot.slane %v1899, 1
      %v1902 = vsel %vm218, %v1897, %v1901
      %v1905 = vunpack.c.l.b16 %v1887
      %v1906 = vunpack.c.l.b16 %v1888
      %v1907 = vpack.c.b16 %v1906, %v1905
      %v1909 = vsel %vm236, %v1902, 0
      %v1912 = vsel %vm240, %v1907, 0
      %1914 = vmatprep.subr.bf16.mxu0 0
      %1915 = vmatpush1.bf16.msra.mxu0 0
      %1916 = vmatprep.subr.bf16.mxu0 0
      %1917 = vmatpush1.bf16.msra.mxu0 0
      %1918 = vmatprep.subr.bf16.mxu0 0
      %1919 = vmatpush1.bf16.msra.mxu0 0
      %1920 = vmatprep.subr.bf16.mxu0 0
      %1921 = vmatpush1.bf16.msra.mxu0 0
      %1922 = vmatprep.subr.bf16.mxu0 0
      %1923 = vmatpush1.bf16.msra.mxu0 0
      %1924 = vmatprep.subr.bf16.mxu0 0
      %1925 = vmatpush1.bf16.msra.mxu0 0
      %1926 = vmatprep.subr.bf16.mxu0 0
      %1927 = vmatpush1.bf16.msra.mxu0 0
      %1928 = vmatprep.subr.bf16.mxu0 0
      %1929 = vmatpush1.bf16.msra.mxu0 %v1912
      %1930 = vmatprep.subr.bf16.mxu0 0
      %1931 = vmatpush2.bf16.msra.mxu0 0
      %1932 = vmatprep.subr.bf16.mxu0 0
      %1933 = vmatpush2.bf16.msra.mxu0 0
      %1934 = vmatprep.subr.bf16.mxu0 0
      %1935 = vmatpush2.bf16.msra.mxu0 0
      %1936 = vmatprep.subr.bf16.mxu0 0
      %1937 = vmatpush2.bf16.msra.mxu0 0
      %1938 = vmatprep.subr.bf16.mxu0 0
      %1939 = vmatpush2.bf16.msra.mxu0 0
      %1940 = vmatprep.subr.bf16.mxu0 0
      %1941 = vmatpush2.bf16.msra.mxu0 0
      %1942 = vmatprep.subr.bf16.mxu0 0
      %1943 = vmatpush2.bf16.msra.mxu0 0
      %1944 = vmatprep.subr.bf16.mxu0 0
      %1945 = vmatpush2.bf16.msra.mxu0 0
      %1946 = vmatprep.mubr.bf16.mxu0 0
      %1947 = vmatmul.mubr.bf16.gmra.mxu0 %v1909
      %v1948 = vpop.f32.mrf.mxu0
      %v1949 = vadd.f32 0.0, %v1948
      %v1950 = vpop.f32.mrf.mxu0
      %v1951 = vpop.f32.mrf.mxu0
      %v1952 = vadd.f32 0.0, %v1951
      %v1953 = vpop.f32.mrf.mxu0
      %1954 = vdwg.mxu0
      %v1955 = vadd.f32 %v1885, %v1949
      %v1956 = vadd.f32 %v1886, %v1952
      %v1957 = vadd.f32 %v1955, %v480
      %v1958 = vadd.f32 %v1956, %v480
      %v1959 = vxor.u32 %v1957, 2147483648
      %v1960 = vxor.u32 %v1958, 2147483648
      %v1961 = vmul.f32 %v1959, 1.442695
      %v1962 = vpow.pop %v1961
      %v1963 = vmul.f32 %v1960, 1.442695
      %v1964 = vpow.pop %v1963
      %v1965 = vadd.f32 %v1962, 1.0
      %v1966 = vadd.f32 %v1964, 1.0
      %v1967 = vrcp.pop %v1965
      %v1968 = vmul.f32 1.0, %v1967
      %v1969 = vrcp.pop %v1966
      %v1970 = vmul.f32 1.0, %v1969
      %v1971 = vmul.f32 %v1957, %v1968
      %v1972 = vmul.f32 %v1958, %v1970
      %v1973 = vpack.c.bf16 %v1972, %v1971
      %v1975 = vunpack.c.l.b16 %v1973
      %v1976 = vunpack.c.h.b16 %v1973
      %v1977 = vpack.c.b16 %v1975, %v1975
      %v1978 = vpack.c.b16 %v1976, %v1976
      %s1981 = scalar_lea.vmem %s194, 40
      %1982 = vst.msk [vmem:[%s1981] sm:$0xf] %vm506, %v1977
      %1983 = vst.msk [vmem:[%s1981 + $0x4] sm:$0xf] %vm506, %v1978
      %v1984 = vld [vmem:[%s1822] sm:$0xf]
      %v1985 = vld [vmem:[%s1822 + $0x4] sm:$0xf]
      %v1986 = vld [vmem:[%s1822 + $0x8] sm:$0x1]
      %v1987 = vld [vmem:[%s1] sm:$0xf]
      %v1988 = vld [vmem:[%s1 + $0x4] sm:$0x3]
      %v1989 = vld [vmem:[%s207] sm:$0xf]
      %v1990 = vld [vmem:[%s207 + $0x4] sm:$0x3]
      %v1994 = vunpack.c.l.b16 %v1984
      %v1995 = vunpack.c.l.b16 %v1985
      %v1996 = vunpack.c.l.b16 %v1986
      %v1997 = vpack.c.b16 %v1995, %v1994
      %v1998 = vpack.c.b16 %v1996, %v1996
      %v2000 = vshrl.u32 %v1997, 16
      %v2002 = vshll.u32 %v1997, 16
      %v2004 = vrot.slane %v2002, 1
      %v2005 = vor.u32 %v2000, %v2004
      %v2007 = vshll.u32 %v1998, 16
      %v2009 = vrot.slane %v2007, 1
      %v2010 = vsel %vm218, %v2005, %v2009
      %v2013 = vunpack.c.l.b16 %v1989
      %v2014 = vunpack.c.l.b16 %v1990
      %v2015 = vpack.c.b16 %v2014, %v2013
      %v2017 = vsel %vm236, %v2010, 0
      %v2020 = vsel %vm240, %v2015, 0
      %2022 = vmatprep.subr.bf16.mxu0 0
      %2023 = vmatpush1.bf16.msra.mxu0 0
      %2024 = vmatprep.subr.bf16.mxu0 0
      %2025 = vmatpush1.bf16.msra.mxu0 0
      %2026 = vmatprep.subr.bf16.mxu0 0
      %2027 = vmatpush1.bf16.msra.mxu0 0
      %2028 = vmatprep.subr.bf16.mxu0 0
      %2029 = vmatpush1.bf16.msra.mxu0 0
      %2030 = vmatprep.subr.bf16.mxu0 0
      %2031 = vmatpush1.bf16.msra.mxu0 0
      %2032 = vmatprep.subr.bf16.mxu0 0
      %2033 = vmatpush1.bf16.msra.mxu0 0
      %2034 = vmatprep.subr.bf16.mxu0 0
      %2035 = vmatpush1.bf16.msra.mxu0 0
      %2036 = vmatprep.subr.bf16.mxu0 0
      %2037 = vmatpush1.bf16.msra.mxu0 %v2020
      %2038 = vmatprep.subr.bf16.mxu0 0
      %2039 = vmatpush2.bf16.msra.mxu0 0
      %2040 = vmatprep.subr.bf16.mxu0 0
      %2041 = vmatpush2.bf16.msra.mxu0 0
      %2042 = vmatprep.subr.bf16.mxu0 0
      %2043 = vmatpush2.bf16.msra.mxu0 0
      %2044 = vmatprep.subr.bf16.mxu0 0
      %2045 = vmatpush2.bf16.msra.mxu0 0
      %2046 = vmatprep.subr.bf16.mxu0 0
      %2047 = vmatpush2.bf16.msra.mxu0 0
      %2048 = vmatprep.subr.bf16.mxu0 0
      %2049 = vmatpush2.bf16.msra.mxu0 0
      %2050 = vmatprep.subr.bf16.mxu0 0
      %2051 = vmatpush2.bf16.msra.mxu0 0
      %2052 = vmatprep.subr.bf16.mxu0 0
      %2053 = vmatpush2.bf16.msra.mxu0 0
      %2054 = vmatprep.mubr.bf16.mxu0 0
      %2055 = vmatmul.mubr.bf16.gmra.mxu0 %v2017
      %v2056 = vpop.f32.mrf.mxu0
      %v2057 = vadd.f32 0.0, %v2056
      %v2058 = vpop.f32.mrf.mxu0
      %v2059 = vpop.f32.mrf.mxu0
      %v2060 = vadd.f32 0.0, %v2059
      %v2061 = vpop.f32.mrf.mxu0
      %2062 = vdwg.mxu0
      %v2065 = vunpack.c.l.b16 %v1987
      %v2066 = vunpack.c.l.b16 %v1988
      %v2067 = vpack.c.b16 %v2066, %v2065
      %v2068 = vsel %vm236, %v1997, 0
      %v2071 = vsel %vm240, %v2067, 0
      %2073 = vmatprep.subr.bf16.mxu0 0
      %2074 = vmatpush1.bf16.msra.mxu0 0
      %2075 = vmatprep.subr.bf16.mxu0 0
      %2076 = vmatpush1.bf16.msra.mxu0 0
      %2077 = vmatprep.subr.bf16.mxu0 0
      %2078 = vmatpush1.bf16.msra.mxu0 0
      %2079 = vmatprep.subr.bf16.mxu0 0
      %2080 = vmatpush1.bf16.msra.mxu0 0
      %2081 = vmatprep.subr.bf16.mxu0 0
      %2082 = vmatpush1.bf16.msra.mxu0 0
      %2083 = vmatprep.subr.bf16.mxu0 0
      %2084 = vmatpush1.bf16.msra.mxu0 0
      %2085 = vmatprep.subr.bf16.mxu0 0
      %2086 = vmatpush1.bf16.msra.mxu0 0
      %2087 = vmatprep.subr.bf16.mxu0 0
      %2088 = vmatpush1.bf16.msra.mxu0 %v2071
      %2089 = vmatprep.subr.bf16.mxu0 0
      %2090 = vmatpush2.bf16.msra.mxu0 0
      %2091 = vmatprep.subr.bf16.mxu0 0
      %2092 = vmatpush2.bf16.msra.mxu0 0
      %2093 = vmatprep.subr.bf16.mxu0 0
      %2094 = vmatpush2.bf16.msra.mxu0 0
      %2095 = vmatprep.subr.bf16.mxu0 0
      %2096 = vmatpush2.bf16.msra.mxu0 0
      %2097 = vmatprep.subr.bf16.mxu0 0
      %2098 = vmatpush2.bf16.msra.mxu0 0
      %2099 = vmatprep.subr.bf16.mxu0 0
      %2100 = vmatpush2.bf16.msra.mxu0 0
      %2101 = vmatprep.subr.bf16.mxu0 0
      %2102 = vmatpush2.bf16.msra.mxu0 0
      %2103 = vmatprep.subr.bf16.mxu0 0
      %2104 = vmatpush2.bf16.msra.mxu0 0
      %2105 = vmatprep.mubr.bf16.mxu0 0
      %2106 = vmatmul.mubr.bf16.gmra.mxu0 %v2068
      %v2107 = vpop.f32.mrf.mxu0
      %v2108 = vadd.f32 %v2057, %v2107
      %v2109 = vpop.f32.mrf.mxu0
      %v2110 = vpop.f32.mrf.mxu0
      %v2111 = vadd.f32 %v2060, %v2110
      %v2112 = vpop.f32.mrf.mxu0
      %2113 = vdwg.mxu0
      %s2114 = sadd.s32 %s197, 7
      %s2115 = smul.u32 %s2114, 3
      %s2116 = smul.addr %s2115, 4
      %s2117 = scalar_lea.vmem %s184, %s2116
      %v2118 = vld [vmem:[%s2117] sm:$0xf]
      %v2119 = vld [vmem:[%s2117 + $0x4] sm:$0xf]
      %v2120 = vld [vmem:[%s2117 + $0x8] sm:$0x1]
      %v2121 = vld [vmem:[%s343] sm:$0xf]
      %v2122 = vld [vmem:[%s343 + $0x4] sm:$0x3]
      %v2125 = vunpack.c.l.b16 %v2118
      %v2126 = vunpack.c.l.b16 %v2119
      %v2127 = vpack.c.b16 %v2126, %v2125
      %v2130 = vunpack.c.l.b16 %v2121
      %v2131 = vunpack.c.l.b16 %v2122
      %v2132 = vpack.c.b16 %v2131, %v2130
      %v2134 = vsel %vm236, %v2127, 0
      %v2137 = vsel %vm240, %v2132, 0
      %2139 = vmatprep.subr.bf16.mxu0 0
      %2140 = vmatpush1.bf16.msra.mxu0 0
      %2141 = vmatprep.subr.bf16.mxu0 0
      %2142 = vmatpush1.bf16.msra.mxu0 0
      %2143 = vmatprep.subr.bf16.mxu0 0
      %2144 = vmatpush1.bf16.msra.mxu0 0
      %2145 = vmatprep.subr.bf16.mxu0 0
      %2146 = vmatpush1.bf16.msra.mxu0 0
      %2147 = vmatprep.subr.bf16.mxu0 0
      %2148 = vmatpush1.bf16.msra.mxu0 0
      %2149 = vmatprep.subr.bf16.mxu0 0
      %2150 = vmatpush1.bf16.msra.mxu0 0
      %2151 = vmatprep.subr.bf16.mxu0 0
      %2152 = vmatpush1.bf16.msra.mxu0 0
      %2153 = vmatprep.subr.bf16.mxu0 0
      %2154 = vmatpush1.bf16.msra.mxu0 %v2137
      %2155 = vmatprep.subr.bf16.mxu0 0
      %2156 = vmatpush2.bf16.msra.mxu0 0
      %2157 = vmatprep.subr.bf16.mxu0 0
      %2158 = vmatpush2.bf16.msra.mxu0 0
      %2159 = vmatprep.subr.bf16.mxu0 0
      %2160 = vmatpush2.bf16.msra.mxu0 0
      %2161 = vmatprep.subr.bf16.mxu0 0
      %2162 = vmatpush2.bf16.msra.mxu0 0
      %2163 = vmatprep.subr.bf16.mxu0 0
      %2164 = vmatpush2.bf16.msra.mxu0 0
      %2165 = vmatprep.subr.bf16.mxu0 0
      %2166 = vmatpush2.bf16.msra.mxu0 0
      %2167 = vmatprep.subr.bf16.mxu0 0
      %2168 = vmatpush2.bf16.msra.mxu0 0
      %2169 = vmatprep.subr.bf16.mxu0 0
      %2170 = vmatpush2.bf16.msra.mxu0 0
      %2171 = vmatprep.mubr.bf16.mxu0 0
      %2172 = vmatmul.mubr.bf16.gmra.mxu0 %v2134
      %v2173 = vpop.f32.mrf.mxu0
      %v2174 = vadd.f32 0.0, %v2173
      %v2175 = vpop.f32.mrf.mxu0
      %v2176 = vpop.f32.mrf.mxu0
      %v2177 = vadd.f32 0.0, %v2176
      %v2178 = vpop.f32.mrf.mxu0
      %2179 = vdwg.mxu0
      %v2180 = vadd.f32 %v2108, %v2174
      %v2181 = vadd.f32 %v2111, %v2177
      %v2182 = vld [vmem:[%s405] sm:$0xf]
      %v2183 = vld [vmem:[%s405 + $0x4] sm:$0x3]
      %v2185 = vunpack.c.l.b16 %v2120
      %v2186 = vpack.c.b16 %v2185, %v2185
      %v2187 = vshrl.u32 %v2127, 16
      %v2189 = vshll.u32 %v2127, 16
      %v2191 = vrot.slane %v2189, 1
      %v2192 = vor.u32 %v2187, %v2191
      %v2194 = vshll.u32 %v2186, 16
      %v2196 = vrot.slane %v2194, 1
      %v2197 = vsel %vm218, %v2192, %v2196
      %v2200 = vunpack.c.l.b16 %v2182
      %v2201 = vunpack.c.l.b16 %v2183
      %v2202 = vpack.c.b16 %v2201, %v2200
      %v2204 = vsel %vm236, %v2197, 0
      %v2207 = vsel %vm240, %v2202, 0
      %2209 = vmatprep.subr.bf16.mxu0 0
      %2210 = vmatpush1.bf16.msra.mxu0 0
      %2211 = vmatprep.subr.bf16.mxu0 0
      %2212 = vmatpush1.bf16.msra.mxu0 0
      %2213 = vmatprep.subr.bf16.mxu0 0
      %2214 = vmatpush1.bf16.msra.mxu0 0
      %2215 = vmatprep.subr.bf16.mxu0 0
      %2216 = vmatpush1.bf16.msra.mxu0 0
      %2217 = vmatprep.subr.bf16.mxu0 0
      %2218 = vmatpush1.bf16.msra.mxu0 0
      %2219 = vmatprep.subr.bf16.mxu0 0
      %2220 = vmatpush1.bf16.msra.mxu0 0
      %2221 = vmatprep.subr.bf16.mxu0 0
      %2222 = vmatpush1.bf16.msra.mxu0 0
      %2223 = vmatprep.subr.bf16.mxu0 0
      %2224 = vmatpush1.bf16.msra.mxu0 %v2207
      %2225 = vmatprep.subr.bf16.mxu0 0
      %2226 = vmatpush2.bf16.msra.mxu0 0
      %2227 = vmatprep.subr.bf16.mxu0 0
      %2228 = vmatpush2.bf16.msra.mxu0 0
      %2229 = vmatprep.subr.bf16.mxu0 0
      %2230 = vmatpush2.bf16.msra.mxu0 0
      %2231 = vmatprep.subr.bf16.mxu0 0
      %2232 = vmatpush2.bf16.msra.mxu0 0
      %2233 = vmatprep.subr.bf16.mxu0 0
      %2234 = vmatpush2.bf16.msra.mxu0 0
      %2235 = vmatprep.subr.bf16.mxu0 0
      %2236 = vmatpush2.bf16.msra.mxu0 0
      %2237 = vmatprep.subr.bf16.mxu0 0
      %2238 = vmatpush2.bf16.msra.mxu0 0
      %2239 = vmatprep.subr.bf16.mxu0 0
      %2240 = vmatpush2.bf16.msra.mxu0 0
      %2241 = vmatprep.mubr.bf16.mxu0 0
      %2242 = vmatmul.mubr.bf16.gmra.mxu0 %v2204
      %v2243 = vpop.f32.mrf.mxu0
      %v2244 = vadd.f32 0.0, %v2243
      %v2245 = vpop.f32.mrf.mxu0
      %v2246 = vpop.f32.mrf.mxu0
      %v2247 = vadd.f32 0.0, %v2246
      %v2248 = vpop.f32.mrf.mxu0
      %2249 = vdwg.mxu0
      %v2250 = vadd.f32 %v2180, %v2244
      %v2251 = vadd.f32 %v2181, %v2247
      %v2252 = vadd.f32 %v2250, %v480
      %v2253 = vadd.f32 %v2251, %v480
      %v2254 = vxor.u32 %v2252, 2147483648
      %v2255 = vxor.u32 %v2253, 2147483648
      %v2256 = vmul.f32 %v2254, 1.442695
      %v2257 = vpow.pop %v2256
      %v2258 = vmul.f32 %v2255, 1.442695
      %v2259 = vpow.pop %v2258
      %v2260 = vadd.f32 %v2257, 1.0
      %v2261 = vadd.f32 %v2259, 1.0
      %v2262 = vrcp.pop %v2260
      %v2263 = vmul.f32 1.0, %v2262
      %v2264 = vrcp.pop %v2261
      %v2265 = vmul.f32 1.0, %v2264
      %v2266 = vmul.f32 %v2252, %v2263
      %v2267 = vmul.f32 %v2253, %v2265
      %v2268 = vpack.c.bf16 %v2267, %v2266
      %v2270 = vunpack.c.l.b16 %v2268
      %v2271 = vunpack.c.h.b16 %v2268
      %v2272 = vpack.c.b16 %v2270, %v2270
      %v2273 = vpack.c.b16 %v2271, %v2271
      %s2276 = scalar_lea.vmem %s194, 48
      %2277 = vst.msk [vmem:[%s2276] sm:$0xf] %vm506, %v2272
      %2278 = vst.msk [vmem:[%s2276 + $0x4] sm:$0xf] %vm506, %v2273
      %v2279 = vld [vmem:[%s2117] sm:$0xf]
      %v2280 = vld [vmem:[%s2117 + $0x4] sm:$0xf]
      %v2281 = vld [vmem:[%s2117 + $0x8] sm:$0x1]
      %v2282 = vld [vmem:[%s1] sm:$0xf]
      %v2283 = vld [vmem:[%s1 + $0x4] sm:$0x3]
      %v2284 = vld [vmem:[%s207] sm:$0xf]
      %v2285 = vld [vmem:[%s207 + $0x4] sm:$0x3]
      %v2289 = vunpack.c.l.b16 %v2279
      %v2290 = vunpack.c.l.b16 %v2280
      %v2291 = vunpack.c.l.b16 %v2281
      %v2292 = vpack.c.b16 %v2290, %v2289
      %v2293 = vpack.c.b16 %v2291, %v2291
      %v2295 = vshrl.u32 %v2292, 16
      %v2297 = vshll.u32 %v2292, 16
      %v2299 = vrot.slane %v2297, 1
      %v2300 = vor.u32 %v2295, %v2299
      %v2302 = vshll.u32 %v2293, 16
      %v2304 = vrot.slane %v2302, 1
      %v2305 = vsel %vm218, %v2300, %v2304
      %v2308 = vunpack.c.l.b16 %v2284
      %v2309 = vunpack.c.l.b16 %v2285
      %v2310 = vpack.c.b16 %v2309, %v2308
      %v2312 = vsel %vm236, %v2305, 0
      %v2315 = vsel %vm240, %v2310, 0
      %2317 = vmatprep.subr.bf16.mxu0 0
      %2318 = vmatpush1.bf16.msra.mxu0 0
      %2319 = vmatprep.subr.bf16.mxu0 0
      %2320 = vmatpush1.bf16.msra.mxu0 0
      %2321 = vmatprep.subr.bf16.mxu0 0
      %2322 = vmatpush1.bf16.msra.mxu0 0
      %2323 = vmatprep.subr.bf16.mxu0 0
      %2324 = vmatpush1.bf16.msra.mxu0 0
      %2325 = vmatprep.subr.bf16.mxu0 0
      %2326 = vmatpush1.bf16.msra.mxu0 0
      %2327 = vmatprep.subr.bf16.mxu0 0
      %2328 = vmatpush1.bf16.msra.mxu0 0
      %2329 = vmatprep.subr.bf16.mxu0 0
      %2330 = vmatpush1.bf16.msra.mxu0 0
      %2331 = vmatprep.subr.bf16.mxu0 0
      %2332 = vmatpush1.bf16.msra.mxu0 %v2315
      %2333 = vmatprep.subr.bf16.mxu0 0
      %2334 = vmatpush2.bf16.msra.mxu0 0
      %2335 = vmatprep.subr.bf16.mxu0 0
      %2336 = vmatpush2.bf16.msra.mxu0 0
      %2337 = vmatprep.subr.bf16.mxu0 0
      %2338 = vmatpush2.bf16.msra.mxu0 0
      %2339 = vmatprep.subr.bf16.mxu0 0
      %2340 = vmatpush2.bf16.msra.mxu0 0
      %2341 = vmatprep.subr.bf16.mxu0 0
      %2342 = vmatpush2.bf16.msra.mxu0 0
      %2343 = vmatprep.subr.bf16.mxu0 0
      %2344 = vmatpush2.bf16.msra.mxu0 0
      %2345 = vmatprep.subr.bf16.mxu0 0
      %2346 = vmatpush2.bf16.msra.mxu0 0
      %2347 = vmatprep.subr.bf16.mxu0 0
      %2348 = vmatpush2.bf16.msra.mxu0 0
      %2349 = vmatprep.mubr.bf16.mxu0 0
      %2350 = vmatmul.mubr.bf16.gmra.mxu0 %v2312
      %v2351 = vpop.f32.mrf.mxu0
      %v2352 = vadd.f32 0.0, %v2351
      %v2353 = vpop.f32.mrf.mxu0
      %v2354 = vpop.f32.mrf.mxu0
      %v2355 = vadd.f32 0.0, %v2354
      %v2356 = vpop.f32.mrf.mxu0
      %2357 = vdwg.mxu0
      %v2360 = vunpack.c.l.b16 %v2282
      %v2361 = vunpack.c.l.b16 %v2283
      %v2362 = vpack.c.b16 %v2361, %v2360
      %v2363 = vsel %vm236, %v2292, 0
      %v2366 = vsel %vm240, %v2362, 0
      %2368 = vmatprep.subr.bf16.mxu0 0
      %2369 = vmatpush1.bf16.msra.mxu0 0
      %2370 = vmatprep.subr.bf16.mxu0 0
      %2371 = vmatpush1.bf16.msra.mxu0 0
      %2372 = vmatprep.subr.bf16.mxu0 0
      %2373 = vmatpush1.bf16.msra.mxu0 0
      %2374 = vmatprep.subr.bf16.mxu0 0
      %2375 = vmatpush1.bf16.msra.mxu0 0
      %2376 = vmatprep.subr.bf16.mxu0 0
      %2377 = vmatpush1.bf16.msra.mxu0 0
      %2378 = vmatprep.subr.bf16.mxu0 0
      %2379 = vmatpush1.bf16.msra.mxu0 0
      %2380 = vmatprep.subr.bf16.mxu0 0
      %2381 = vmatpush1.bf16.msra.mxu0 0
      %2382 = vmatprep.subr.bf16.mxu0 0
      %2383 = vmatpush1.bf16.msra.mxu0 %v2366
      %2384 = vmatprep.subr.bf16.mxu0 0
      %2385 = vmatpush2.bf16.msra.mxu0 0
      %2386 = vmatprep.subr.bf16.mxu0 0
      %2387 = vmatpush2.bf16.msra.mxu0 0
      %2388 = vmatprep.subr.bf16.mxu0 0
      %2389 = vmatpush2.bf16.msra.mxu0 0
      %2390 = vmatprep.subr.bf16.mxu0 0
      %2391 = vmatpush2.bf16.msra.mxu0 0
      %2392 = vmatprep.subr.bf16.mxu0 0
      %2393 = vmatpush2.bf16.msra.mxu0 0
      %2394 = vmatprep.subr.bf16.mxu0 0
      %2395 = vmatpush2.bf16.msra.mxu0 0
      %2396 = vmatprep.subr.bf16.mxu0 0
      %2397 = vmatpush2.bf16.msra.mxu0 0
      %2398 = vmatprep.subr.bf16.mxu0 0
      %2399 = vmatpush2.bf16.msra.mxu0 0
      %2400 = vmatprep.mubr.bf16.mxu0 0
      %2401 = vmatmul.mubr.bf16.gmra.mxu0 %v2363
      %v2402 = vpop.f32.mrf.mxu0
      %v2403 = vadd.f32 %v2352, %v2402
      %v2404 = vpop.f32.mrf.mxu0
      %v2405 = vpop.f32.mrf.mxu0
      %v2406 = vadd.f32 %v2355, %v2405
      %v2407 = vpop.f32.mrf.mxu0
      %2408 = vdwg.mxu0
      %s2409 = sadd.s32 %s197, 8
      %s2410 = smul.u32 %s2409, 3
      %s2411 = smul.addr %s2410, 4
      %s2412 = scalar_lea.vmem %s184, %s2411
      %v2413 = vld [vmem:[%s2412] sm:$0xf]
      %v2414 = vld [vmem:[%s2412 + $0x4] sm:$0xf]
      %v2415 = vld [vmem:[%s2412 + $0x8] sm:$0x1]
      %v2416 = vld [vmem:[%s343] sm:$0xf]
      %v2417 = vld [vmem:[%s343 + $0x4] sm:$0x3]
      %v2420 = vunpack.c.l.b16 %v2413
      %v2421 = vunpack.c.l.b16 %v2414
      %v2422 = vpack.c.b16 %v2421, %v2420
      %v2425 = vunpack.c.l.b16 %v2416
      %v2426 = vunpack.c.l.b16 %v2417
      %v2427 = vpack.c.b16 %v2426, %v2425
      %v2429 = vsel %vm236, %v2422, 0
      %v2432 = vsel %vm240, %v2427, 0
      %2434 = vmatprep.subr.bf16.mxu0 0
      %2435 = vmatpush1.bf16.msra.mxu0 0
      %2436 = vmatprep.subr.bf16.mxu0 0
      %2437 = vmatpush1.bf16.msra.mxu0 0
      %2438 = vmatprep.subr.bf16.mxu0 0
      %2439 = vmatpush1.bf16.msra.mxu0 0
      %2440 = vmatprep.subr.bf16.mxu0 0
      %2441 = vmatpush1.bf16.msra.mxu0 0
      %2442 = vmatprep.subr.bf16.mxu0 0
      %2443 = vmatpush1.bf16.msra.mxu0 0
      %2444 = vmatprep.subr.bf16.mxu0 0
      %2445 = vmatpush1.bf16.msra.mxu0 0
      %2446 = vmatprep.subr.bf16.mxu0 0
      %2447 = vmatpush1.bf16.msra.mxu0 0
      %2448 = vmatprep.subr.bf16.mxu0 0
      %2449 = vmatpush1.bf16.msra.mxu0 %v2432
      %2450 = vmatprep.subr.bf16.mxu0 0
      %2451 = vmatpush2.bf16.msra.mxu0 0
      %2452 = vmatprep.subr.bf16.mxu0 0
      %2453 = vmatpush2.bf16.msra.mxu0 0
      %2454 = vmatprep.subr.bf16.mxu0 0
      %2455 = vmatpush2.bf16.msra.mxu0 0
      %2456 = vmatprep.subr.bf16.mxu0 0
      %2457 = vmatpush2.bf16.msra.mxu0 0
      %2458 = vmatprep.subr.bf16.mxu0 0
      %2459 = vmatpush2.bf16.msra.mxu0 0
      %2460 = vmatprep.subr.bf16.mxu0 0
      %2461 = vmatpush2.bf16.msra.mxu0 0
      %2462 = vmatprep.subr.bf16.mxu0 0
      %2463 = vmatpush2.bf16.msra.mxu0 0
      %2464 = vmatprep.subr.bf16.mxu0 0
      %2465 = vmatpush2.bf16.msra.mxu0 0
      %2466 = vmatprep.mubr.bf16.mxu0 0
      %2467 = vmatmul.mubr.bf16.gmra.mxu0 %v2429
      %v2468 = vpop.f32.mrf.mxu0
      %v2469 = vadd.f32 0.0, %v2468
      %v2470 = vpop.f32.mrf.mxu0
      %v2471 = vpop.f32.mrf.mxu0
      %v2472 = vadd.f32 0.0, %v2471
      %v2473 = vpop.f32.mrf.mxu0
      %2474 = vdwg.mxu0
      %v2475 = vadd.f32 %v2403, %v2469
      %v2476 = vadd.f32 %v2406, %v2472
      %v2477 = vld [vmem:[%s405] sm:$0xf]
      %v2478 = vld [vmem:[%s405 + $0x4] sm:$0x3]
      %v2480 = vunpack.c.l.b16 %v2415
      %v2481 = vpack.c.b16 %v2480, %v2480
      %v2482 = vshrl.u32 %v2422, 16
      %v2484 = vshll.u32 %v2422, 16
      %v2486 = vrot.slane %v2484, 1
      %v2487 = vor.u32 %v2482, %v2486
      %v2489 = vshll.u32 %v2481, 16
      %v2491 = vrot.slane %v2489, 1
      %v2492 = vsel %vm218, %v2487, %v2491
      %v2495 = vunpack.c.l.b16 %v2477
      %v2496 = vunpack.c.l.b16 %v2478
      %v2497 = vpack.c.b16 %v2496, %v2495
      %v2499 = vsel %vm236, %v2492, 0
      %v2502 = vsel %vm240, %v2497, 0
      %2504 = vmatprep.subr.bf16.mxu0 0
      %2505 = vmatpush1.bf16.msra.mxu0 0
      %2506 = vmatprep.subr.bf16.mxu0 0
      %2507 = vmatpush1.bf16.msra.mxu0 0
      %2508 = vmatprep.subr.bf16.mxu0 0
      %2509 = vmatpush1.bf16.msra.mxu0 0
      %2510 = vmatprep.subr.bf16.mxu0 0
      %2511 = vmatpush1.bf16.msra.mxu0 0
      %2512 = vmatprep.subr.bf16.mxu0 0
      %2513 = vmatpush1.bf16.msra.mxu0 0
      %2514 = vmatprep.subr.bf16.mxu0 0
      %2515 = vmatpush1.bf16.msra.mxu0 0
      %2516 = vmatprep.subr.bf16.mxu0 0
      %2517 = vmatpush1.bf16.msra.mxu0 0
      %2518 = vmatprep.subr.bf16.mxu0 0
      %2519 = vmatpush1.bf16.msra.mxu0 %v2502
      %2520 = vmatprep.subr.bf16.mxu0 0
      %2521 = vmatpush2.bf16.msra.mxu0 0
      %2522 = vmatprep.subr.bf16.mxu0 0
      %2523 = vmatpush2.bf16.msra.mxu0 0
      %2524 = vmatprep.subr.bf16.mxu0 0
      %2525 = vmatpush2.bf16.msra.mxu0 0
      %2526 = vmatprep.subr.bf16.mxu0 0
      %2527 = vmatpush2.bf16.msra.mxu0 0
      %2528 = vmatprep.subr.bf16.mxu0 0
      %2529 = vmatpush2.bf16.msra.mxu0 0
      %2530 = vmatprep.subr.bf16.mxu0 0
      %2531 = vmatpush2.bf16.msra.mxu0 0
      %2532 = vmatprep.subr.bf16.mxu0 0
      %2533 = vmatpush2.bf16.msra.mxu0 0
      %2534 = vmatprep.subr.bf16.mxu0 0
      %2535 = vmatpush2.bf16.msra.mxu0 0
      %2536 = vmatprep.mubr.bf16.mxu0 0
      %2537 = vmatmul.mubr.bf16.gmra.mxu0 %v2499
      %v2538 = vpop.f32.mrf.mxu0
      %v2539 = vadd.f32 0.0, %v2538
      %v2540 = vpop.f32.mrf.mxu0
      %v2541 = vpop.f32.mrf.mxu0
      %v2542 = vadd.f32 0.0, %v2541
      %v2543 = vpop.f32.mrf.mxu0
      %2544 = vdwg.mxu0
      %v2545 = vadd.f32 %v2475, %v2539
      %v2546 = vadd.f32 %v2476, %v2542
      %v2547 = vadd.f32 %v2545, %v480
      %v2548 = vadd.f32 %v2546, %v480
      %v2549 = vxor.u32 %v2547, 2147483648
      %v2550 = vxor.u32 %v2548, 2147483648
      %v2551 = vmul.f32 %v2549, 1.442695
      %v2552 = vpow.pop %v2551
      %v2553 = vmul.f32 %v2550, 1.442695
      %v2554 = vpow.pop %v2553
      %v2555 = vadd.f32 %v2552, 1.0
      %v2556 = vadd.f32 %v2554, 1.0
      %v2557 = vrcp.pop %v2555
      %v2558 = vmul.f32 1.0, %v2557
      %v2559 = vrcp.pop %v2556
      %v2560 = vmul.f32 1.0, %v2559
      %v2561 = vmul.f32 %v2547, %v2558
      %v2562 = vmul.f32 %v2548, %v2560
      %v2563 = vpack.c.bf16 %v2562, %v2561
      %v2565 = vunpack.c.l.b16 %v2563
      %v2566 = vunpack.c.h.b16 %v2563
      %v2567 = vpack.c.b16 %v2565, %v2565
      %v2568 = vpack.c.b16 %v2566, %v2566
      %s2571 = scalar_lea.vmem %s194, 56
      %2572 = vst.msk [vmem:[%s2571] sm:$0xf] %vm506, %v2567
      %2573 = vst.msk [vmem:[%s2571 + $0x4] sm:$0xf] %vm506, %v2568
      %s2574 = smul.u32 8, %s19
      %p2575 = scmp.lt.s32.totalorder %s18, 1
      %s2576 = scalar_select %p2575, %s18, 1
      %p2577 = scmp.lt.s32.totalorder %s2574, 15
      %s2578 = scalar_select %p2577, %s2574, 15
      %s2579 = smul.addr %s2578, 2
      %s2580 = smul.addr %s2576, 32
      %s2581 = sadd.s32 %s2579, %s2580
      %s2582 = smul.addr %s2581, 4
      %s2583 = scalar_lea.vmem %s3, %s2582
      // Predicated region
      $region33: #{image_encoder_forward.4} parent=31 // pred_check
        %p2584 = pneg %p114
      $region34: #{image_encoder_forward.4} parent=31 // pred_check_branch
        %2586 = sbr.rel (%p2584) target = $region36
      $region35: #{image_encoder_forward.4} parent=31 // pred_region
        %s2587 = smul.u32 8, %s19
      $region36: #{image_encoder_forward.4} parent=31 // pred_fallthru
        _
    $region32: #{image_encoder_forward.4} parent=5 // pred_fallthru
      _
    %p2588 = scmp.le.s32.totalorder 2, %s9
    // Predicated region
    $region37: #{image_encoder_forward.4} parent=5 // pred_check
      %p2589 = pneg %p2588
    $region38: #{image_encoder_forward.4} parent=5 // pred_check_branch
      %2591 = sbr.rel (%p2589) target = $region40
    $region39: #{image_encoder_forward.4} parent=5 // pred_region
      %s2592 = ssub.s32 %s9, 2
      // Predicated region
      $region41: #{image_encoder_forward.4} parent=39 // pred_check
        %p2593 = pneg %p120
      $region42: #{image_encoder_forward.4} parent=39 // pred_check_branch
        %2595 = sbr.rel (%p2593) target = $region44
      $region43: #{image_encoder_forward.4} parent=39 // pred_region
        %s2596 = smul.u32 8, %s21
        %p2597 = scmp.lt.s32.totalorder %s20, 1
        %s2598 = scalar_select %p2597, %s20, 1
        %p2599 = scmp.lt.s32.totalorder %s2596, 15
        %s2600 = scalar_select %p2599, %s2596, 15
        %s2601 = smul.addr %s2600, 2
        %s2602 = smul.addr %s2598, 32
        %s2603 = sadd.s32 %s2601, %s2602
        %s2604 = smul.addr %s2603, 4
        %s2605 = scalar_lea.vmem %s3, %s2604
      $region44: #{image_encoder_forward.4} parent=39 // pred_fallthru
        _
    $region40: #{image_encoder_forward.4} parent=5 // pred_fallthru
      _
  $region6: #{image_encoder_forward.4} parent=0 // loop_footer
    %s13 = sadd.s32 1, %s9
  $region7: #{image_encoder_forward.4} parent=0 // loop_footer_branch
    %8 = sbr.rel target = $region3
  $region8: #{image_encoder_forward.4} parent=0 // loop_exit
    _

// kernel: image_encoder_forward.5
$region0: #{image_encoder_forward.5}
  #allocation0 [shape = 'u32[]', space=smem, size = 0x4, offset = 0x4, fixed_abs, tag = 'smem constant byte address 0x4 - core index']
  #allocation1 [shape = 'u32[144,128]{1,0:T(1,128)}', space=vmem, size = 0x12000, scoped, tag = 'internal scratch']
  %s0 = inlined_call_operand.vmem [shape: bf16[2,9,9,128], index: 0, kind: input, shape index: {}]
  %s1 = inlined_call_operand.vmem [shape: bf16[4,128,64], index: 1, kind: input, shape index: {}]
  %s2 = inlined_call_operand.vmem [shape: f32[1,64], index: 2, kind: input, shape index: {}]
  %s3 = inlined_call_operand.vmem [shape: bf16[2,8,8,64], index: 3, kind: output, shape index: {}]
  %s4 = sld [smem:[#allocation0]]
  $region45: #{image_encoder_forward.5} parent=0
    _
  %s6 = ssub.s32 1, %s4
  %s7 = scalar_select 0, %s6, %s4
  loop: start=0, step=1, limit=6
  $region2: #{image_encoder_forward.5} parent=0 // loop_pre_header
    _
  $region3: #{image_encoder_forward.5} parent=0 // loop_header
    %s9 = sphi 0, %s13
    %p10 = scmp.ge.s32.totalorder %s9, 6
    %s16 = sphi 0, %s28
    %s17 = sphi 0, %s24
    %s18 = sphi 0, %s16
    %s19 = sphi 0, %s17
    %s20 = sphi 0, %s18
    %s21 = sphi 0, %s19
    %s31 = sphi 0, %s33
    %s34 = sphi 0, %s31
    %s35 = sphi 0, %s34
    %s51 = sphi 0, %s35
    %s55 = sphi 0, %s55
    %s57 = sphi 0, %s55
    %s58 = sphi 0, %s57
    %s72 = sphi 0, %s58
    %s76 = sphi 0, %s76
    %s78 = sphi 0, %s76
    %s79 = sphi 0, %s78
    %s93 = sphi 0, %s79
    %s101 = sphi 0, %s103
    %s104 = sphi 0, %s101
    %s105 = sphi 0, %s104
    %s121 = sphi 0, %s105
  $region4: #{image_encoder_forward.5} parent=0 // loop_header_branch
    %12 = sbr.rel (%p10) target = $region8
  $region5: #{image_encoder_forward.5} parent=0 // loop_body
    %s14 = ssub.s32 %s9, 1
    %s15 = ssub.s32 %s9, 2
    %s22 = sadd.s32 1, %s17
    %p23 = scmp.ge.s32.totalorder %s22, 2
    %s24 = scalar_select %p23, 0, %s22
    %s25 = sadd.s32 1, %s16
    %s26 = scalar_select %p23, %s25, %s16
    %p27 = scmp.ge.s32.totalorder %s26, 2
    %s28 = scalar_select %p27, 0, %s26
    %s29 = ssub.s32 %s16, %s28
    %p30 = scmp.eq.s32.totalorder %s29, 0
    %s32 = sadd.s32 %s31, 1
    %s33 = scalar_select %p30, %s31, %s32
    %p36 = pneg %p30
    %p37 = scmp.eq.s32.totalorder %s9, 3
    %p38 = por %p36, %p37
    %p39 = scmp.ne.s32.totalorder %s31, %s34
    %p40 = scmp.eq.s32.totalorder %s9, 0
    %p41 = por %p39, %p40
    %p42 = scmp.ne.s32.totalorder %s31, %s34
    %p43 = scmp.eq.s32.totalorder %s14, 3
    %p44 = por %p42, %p43
    %p45 = scmp.ne.s32.totalorder %s34, %s35
    %p46 = scmp.eq.s32.totalorder %s14, 0
    %p47 = por %p45, %p46
    %p48 = scmp.ne.s32.totalorder %s34, %s35
    %p49 = scmp.eq.s32.totalorder %s15, 3
    %p50 = por %p48, %p49
    %p52 = scmp.ne.s32.totalorder %s35, %s51
    %p53 = scmp.eq.s32.totalorder %s15, 0
    %p54 = por %p52, %p53
    %s56 = sadd.s32 %s55, 1
    %p59 = scmp.eq.s32.totalorder %s9, 3
    %p60 = scmp.ne.s32.totalorder %s55, %s57
    %p61 = scmp.eq.s32.totalorder %s9, 0
    %p62 = por %p60, %p61
    %p63 = scmp.ne.s32.totalorder %s55, %s57
    %p64 = scmp.eq.s32.totalorder %s14, 3
    %p65 = por %p63, %p64
    %p66 = scmp.ne.s32.totalorder %s57, %s58
    %p67 = scmp.eq.s32.totalorder %s14, 0
    %p68 = por %p66, %p67
    %p69 = scmp.ne.s32.totalorder %s57, %s58
    %p70 = scmp.eq.s32.totalorder %s15, 3
    %p71 = por %p69, %p70
    %p73 = scmp.ne.s32.totalorder %s58, %s72
    %p74 = scmp.eq.s32.totalorder %s15, 0
    %p75 = por %p73, %p74
    %s77 = sadd.s32 %s76, 1
    %p80 = scmp.eq.s32.totalorder %s9, 3
    %p81 = scmp.ne.s32.totalorder %s76, %s78
    %p82 = scmp.eq.s32.totalorder %s9, 0
    %p83 = por %p81, %p82
    %p84 = scmp.ne.s32.totalorder %s76, %s78
    %p85 = scmp.eq.s32.totalorder %s14, 3
    %p86 = por %p84, %p85
    %p87 = scmp.ne.s32.totalorder %s78, %s79
    %p88 = scmp.eq.s32.totalorder %s14, 0
    %p89 = por %p87, %p88
    %p90 = scmp.ne.s32.totalorder %s78, %s79
    %p91 = scmp.eq.s32.totalorder %s15, 3
    %p92 = por %p90, %p91
    %p94 = scmp.ne.s32.totalorder %s79, %s93
    %p95 = scmp.eq.s32.totalorder %s15, 0
    %p96 = por %p94, %p95
    %s97 = ssub.s32 %s16, %s28
    %s98 = ssub.s32 %s17, %s24
    %s99 = sor.u32 %s97, %s98
    %p100 = scmp.eq.s32.totalorder %s99, 0
    %s102 = sadd.s32 %s101, 1
    %s103 = scalar_select %p100, %s101, %s102
    %p106 = pneg %p100
    %p107 = scmp.eq.s32.totalorder %s9, 3
    %p108 = por %p106, %p107
    %p109 = scmp.ne.s32.totalorder %s101, %s104
    %p110 = scmp.eq.s32.totalorder %s9, 0
    %p111 = por %p109, %p110
    %p112 = scmp.ne.s32.totalorder %s101, %s104
    %p113 = scmp.eq.s32.totalorder %s14, 3
    %p114 = por %p112, %p113
    %p115 = scmp.ne.s32.totalorder %s104, %s105
    %p116 = scmp.eq.s32.totalorder %s14, 0
    %p117 = por %p115, %p116
    %p118 = scmp.ne.s32.totalorder %s104, %s105
    %p119 = scmp.eq.s32.totalorder %s15, 3
    %p120 = por %p118, %p119
    %p122 = scmp.ne.s32.totalorder %s105, %s121
    %p123 = scmp.eq.s32.totalorder %s15, 0
    %p124 = por %p122, %p123
    %p125 = scmp.le.s32.totalorder 1, %s9
    %p126 = scmp.lt.s32.totalorder %s9, 5
    %p127 = pnand %p125, %p126
    %p128 = pneg %p127
    // Predicated region
    $region9: #{image_encoder_forward.5} parent=5 // pred_check
      _
    $region10: #{image_encoder_forward.5} parent=5 // pred_check_branch
      %130 = sbr.rel (%p127) target = $region12
    $region11: #{image_encoder_forward.5} parent=5 // pred_region
      %s131 = ssub.s32 %s9, 1
      // Predicated region
      $region13: #{image_encoder_forward.5} parent=11 // pred_check
        %p132 = pneg %p68
      $region14: #{image_encoder_forward.5} parent=11 // pred_check_branch
        %134 = sbr.rel (%p132) target = $region16
      $region15: #{image_encoder_forward.5} parent=11 // pred_region
        _
      $region16: #{image_encoder_forward.5} parent=11 // pred_fallthru
        _
      // Predicated region
      $region17: #{image_encoder_forward.5} parent=11 // pred_check
        %p135 = pneg %p89
      $region18: #{image_encoder_forward.5} parent=11 // pred_check_branch
        %137 = sbr.rel (%p135) target = $region20
      $region19: #{image_encoder_forward.5} parent=11 // pred_region
        _
      $region20: #{image_encoder_forward.5} parent=11 // pred_fallthru
        _
    $region12: #{image_encoder_forward.5} parent=5 // pred_fallthru
      _
    %p138 = scmp.lt.s32.totalorder %s9, 4
    // Predicated region
    $region21: #{image_encoder_forward.5} parent=5 // pred_check
      %p139 = pneg %p138
    $region22: #{image_encoder_forward.5} parent=5 // pred_check_branch
      %141 = sbr.rel (%p139) target = $region24
    $region23: #{image_encoder_forward.5} parent=5 // pred_region
      // Predicated region
      $region25: #{image_encoder_forward.5} parent=23 // pred_check
        %p142 = pneg %p41
      $region26: #{image_encoder_forward.5} parent=23 // pred_check_branch
        %144 = sbr.rel (%p142) target = $region28
      $region27: #{image_encoder_forward.5} parent=23 // pred_region
        %p145 = scmp.lt.s32.totalorder %s16, 1
        %s146 = scalar_select %p145, %s16, 1
        %s147 = smul.addr %s146, 18
        %s148 = smul.addr %s147, 4
        %s149 = scalar_lea.vmem %s0, %s148
      $region28: #{image_encoder_forward.5} parent=23 // pred_fallthru
        _
    $region24: #{image_encoder_forward.5} parent=5 // pred_fallthru
      _
    %p150 = scmp.le.s32.totalorder 1, %s9
    %p151 = scmp.lt.s32.totalorder %s9, 5
    %p152 = pnand %p150, %p151
    %p153 = pneg %p152
    // Predicated region
    $region29: #{image_encoder_forward.5} parent=5 // pred_check
      _
    $region30: #{image_encoder_forward.5} parent=5 // pred_check_branch
      %155 = sbr.rel (%p152) target = $region32
    $region31: #{image_encoder_forward.5} parent=5 // pred_region
      %s156 = ssub.s32 %s9, 1
      %p157 = scmp.lt.s32.totalorder %s18, 1
      %s158 = scalar_select %p157, %s18, 1
      %s159 = smul.addr %s158, 18
      %s160 = smul.addr %s159, 4
      %s161 = scalar_lea.vmem %s0, %s160
      %p162 = pneg %p47
      %p163 = pneg %p44
      %p164 = pneg %p68
      %p165 = pneg %p65
      %p166 = pneg %p89
      %p167 = pneg %p86
      %p168 = pneg %p117
      %p169 = pneg %p114
      %s170 = smul.u32 4, %s19
      %p171 = scmp.lt.s32.totalorder %s18, 1
      %s172 = scalar_select %p171, %s18, 1
      %p173 = scmp.lt.s32.totalorder %s170, 7
      %s174 = scalar_select %p173, %s170, 7
      %s175 = smul.addr %s172, 8
      %s176 = sadd.s32 %s174, %s175
      %s177 = smul.addr %s176, 4
      %s178 = scalar_lea.vmem %s3, %s177
      %p179 = scmp.lt.s32.totalorder %s18, 1
      %s180 = scalar_select %p179, %s18, 1
      %s181 = smul.addr %s180, 18
      %s182 = smul.addr %s181, 4
      %s183 = scalar_lea.vmem %s0, %s182
      %s184 = smul.u32 4, %s19
      %p185 = scmp.lt.s32.totalorder %s18, 1
      %s186 = scalar_select %p185, %s18, 1
      %p187 = scmp.lt.s32.totalorder %s184, 7
      %s188 = scalar_select %p187, %s184, 7
      %s189 = smul.addr %s186, 8
      %s190 = sadd.s32 %s188, %s189
      %s191 = smul.addr %s190, 4
      %s192 = scalar_lea.vmem %s3, %s191
      %s193 = smul.u32 4, %s19
      %s195 = smul.u32 %s19, 4
      %v196 = vld [vmem:[%s2] sm:$0x1]
      %s197 = smul.u32 %s195, 2
      %s198 = smul.addr %s197, 4
      %s199 = scalar_lea.vmem %s183, %s198
      %v200 = vld [vmem:[%s199] sm:$0xf]
      %v201 = vld [vmem:[%s199 + $0x4] sm:$0x1]
      %v202 = vld [vmem:[%s1] sm:$0xf]
      %v203 = vld [vmem:[%s1 + $0x4] sm:$0xf]
      %v204 = vld [vmem:[%s1 + $0x8] sm:$0xf]
      %v205 = vld [vmem:[%s1 + $0xc] sm:$0xf]
      %v206 = vld [vmem:[%s1 + $0x10] sm:$0xf]
      %v207 = vld [vmem:[%s1 + $0x14] sm:$0xf]
      %v208 = vld [vmem:[%s1 + $0x18] sm:$0xf]
      %v209 = vld [vmem:[%s1 + $0x1c] sm:$0xf]
      %v210 = vld [vmem:[%s1 + $0x20] sm:$0xf]
      %v211 = vld [vmem:[%s1 + $0x24] sm:$0xf]
      %v212 = vld [vmem:[%s1 + $0x28] sm:$0xf]
      %v213 = vld [vmem:[%s1 + $0x2c] sm:$0xf]
      %v214 = vld [vmem:[%s1 + $0x30] sm:$0xf]
      %v215 = vld [vmem:[%s1 + $0x34] sm:$0xf]
      %v216 = vld [vmem:[%s1 + $0x38] sm:$0xf]
      %v217 = vld [vmem:[%s1 + $0x3c] sm:$0xf]
      %s218 = scalar_lea.vmem %s1, 64
      %v219 = vld [vmem:[%s218] sm:$0xf]
      %v220 = vld [vmem:[%s218 + $0x4] sm:$0xf]
      %v221 = vld [vmem:[%s218 + $0x8] sm:$0xf]
      %v222 = vld [vmem:[%s218 + $0xc] sm:$0xf]
      %v223 = vld [vmem:[%s218 + $0x10] sm:$0xf]
      %v224 = vld [vmem:[%s218 + $0x14] sm:$0xf]
      %v225 = vld [vmem:[%s218 + $0x18] sm:$0xf]
      %v226 = vld [vmem:[%s218 + $0x1c] sm:$0xf]
      %v227 = vld [vmem:[%s218 + $0x20] sm:$0xf]
      %v228 = vld [vmem:[%s218 + $0x24] sm:$0xf]
      %v229 = vld [vmem:[%s218 + $0x28] sm:$0xf]
      %v230 = vld [vmem:[%s218 + $0x2c] sm:$0xf]
      %v231 = vld [vmem:[%s218 + $0x30] sm:$0xf]
      %v232 = vld [vmem:[%s218 + $0x34] sm:$0xf]
      %v233 = vld [vmem:[%s218 + $0x38] sm:$0xf]
      %v234 = vld [vmem:[%s218 + $0x3c] sm:$0xf]
      %v237 = vunpack.c.l.b16 %v200
      %v238 = vunpack.c.l.b16 %v201
      %v239 = vpack.c.b16 %v238, %v237
      %v241 = vshrl.u32 %v239, 16
      %v243 = vshll.u32 %v239, 16
      %v245 = vrot.slane %v243, 1
      %v246 = vor.u32 %v241, %v245
      %v264 = vunpack.c.l.b16 %v219
      %v265 = vunpack.c.l.b16 %v220
      %v266 = vunpack.c.l.b16 %v221
      %v267 = vunpack.c.l.b16 %v222
      %v268 = vunpack.c.l.b16 %v223
      %v269 = vunpack.c.l.b16 %v224
      %v270 = vunpack.c.l.b16 %v225
      %v271 = vunpack.c.l.b16 %v226
      %v272 = vunpack.c.l.b16 %v227
      %v273 = vunpack.c.l.b16 %v228
      %v274 = vunpack.c.l.b16 %v229
      %v275 = vunpack.c.l.b16 %v230
      %v276 = vunpack.c.l.b16 %v231
      %v277 = vunpack.c.l.b16 %v232
      %v278 = vunpack.c.l.b16 %v233
      %v279 = vunpack.c.l.b16 %v234
      %v280 = vpack.c.b16 %v265, %v264
      %v281 = vpack.c.b16 %v267, %v266
      %v282 = vpack.c.b16 %v269, %v268
      %v283 = vpack.c.b16 %v271, %v270
      %v284 = vpack.c.b16 %v273, %v272
      %v285 = vpack.c.b16 %v275, %v274
      %v286 = vpack.c.b16 %v277, %v276
      %v287 = vpack.c.b16 %v279, %v278
      %296 = vmatprep.subr.bf16.mxu0 0
      %297 = vmatpush1.bf16.msra.mxu0 %v287
      %298 = vmatprep.subr.bf16.mxu0 0
      %299 = vmatpush1.bf16.msra.mxu0 %v286
      %300 = vmatprep.subr.bf16.mxu0 0
      %301 = vmatpush1.bf16.msra.mxu0 %v285
      %302 = vmatprep.subr.bf16.mxu0 0
      %303 = vmatpush1.bf16.msra.mxu0 %v284
      %304 = vmatprep.subr.bf16.mxu0 0
      %305 = vmatpush1.bf16.msra.mxu0 %v283
      %306 = vmatprep.subr.bf16.mxu0 0
      %307 = vmatpush1.bf16.msra.mxu0 %v282
      %308 = vmatprep.subr.bf16.mxu0 0
      %309 = vmatpush1.bf16.msra.mxu0 %v281
      %310 = vmatprep.subr.bf16.mxu0 0
      %311 = vmatpush1.bf16.msra.mxu0 %v280
      %312 = vmatprep.subr.bf16.mxu0 0
      %313 = vmatpush2.bf16.msra.mxu0 0
      %314 = vmatprep.subr.bf16.mxu0 0
      %315 = vmatpush2.bf16.msra.mxu0 0
      %316 = vmatprep.subr.bf16.mxu0 0
      %317 = vmatpush2.bf16.msra.mxu0 0
      %318 = vmatprep.subr.bf16.mxu0 0
      %319 = vmatpush2.bf16.msra.mxu0 0
      %320 = vmatprep.subr.bf16.mxu0 0
      %321 = vmatpush2.bf16.msra.mxu0 0
      %322 = vmatprep.subr.bf16.mxu0 0
      %323 = vmatpush2.bf16.msra.mxu0 0
      %324 = vmatprep.subr.bf16.mxu0 0
      %325 = vmatpush2.bf16.msra.mxu0 0
      %326 = vmatprep.subr.bf16.mxu0 0
      %327 = vmatpush2.bf16.msra.mxu0 0
      %328 = vmatprep.mubr.bf16.mxu0 0
      %329 = vmatmul.mubr.bf16.gmra.mxu0 %v246
      %v330 = vpop.f32.mrf.mxu0
      %v331 = vadd.f32 0.0, %v330
      %v332 = vpop.f32.mrf.mxu0
      %v333 = vpop.f32.mrf.mxu0
      %v334 = vpop.f32.mrf.mxu0
      %335 = vdwg.mxu0
      %v352 = vunpack.c.l.b16 %v202
      %v353 = vunpack.c.l.b16 %v203
      %v354 = vunpack.c.l.b16 %v204
      %v355 = vunpack.c.l.b16 %v205
      %v356 = vunpack.c.l.b16 %v206
      %v357 = vunpack.c.l.b16 %v207
      %v358 = vunpack.c.l.b16 %v208
      %v359 = vunpack.c.l.b16 %v209
      %v360 = vunpack.c.l.b16 %v210
      %v361 = vunpack.c.l.b16 %v211
      %v362 = vunpack.c.l.b16 %v212
      %v363 = vunpack.c.l.b16 %v213
      %v364 = vunpack.c.l.b16 %v214
      %v365 = vunpack.c.l.b16 %v215
      %v366 = vunpack.c.l.b16 %v216
      %v367 = vunpack.c.l.b16 %v217
      %v368 = vpack.c.b16 %v353, %v352
      %v369 = vpack.c.b16 %v355, %v354
      %v370 = vpack.c.b16 %v357, %v356
      %v371 = vpack.c.b16 %v359, %v358
      %v372 = vpack.c.b16 %v361, %v360
      %v373 = vpack.c.b16 %v363, %v362
      %v374 = vpack.c.b16 %v365, %v364
      %v375 = vpack.c.b16 %v367, %v366
      %384 = vmatprep.subr.bf16.mxu0 0
      %385 = vmatpush1.bf16.msra.mxu0 %v375
      %386 = vmatprep.subr.bf16.mxu0 0
      %387 = vmatpush1.bf16.msra.mxu0 %v374
      %388 = vmatprep.subr.bf16.mxu0 0
      %389 = vmatpush1.bf16.msra.mxu0 %v373
      %390 = vmatprep.subr.bf16.mxu0 0
      %391 = vmatpush1.bf16.msra.mxu0 %v372
      %392 = vmatprep.subr.bf16.mxu0 0
      %393 = vmatpush1.bf16.msra.mxu0 %v371
      %394 = vmatprep.subr.bf16.mxu0 0
      %395 = vmatpush1.bf16.msra.mxu0 %v370
      %396 = vmatprep.subr.bf16.mxu0 0
      %397 = vmatpush1.bf16.msra.mxu0 %v369
      %398 = vmatprep.subr.bf16.mxu0 0
      %399 = vmatpush1.bf16.msra.mxu0 %v368
      %400 = vmatprep.subr.bf16.mxu0 0
      %401 = vmatpush2.bf16.msra.mxu0 0
      %402 = vmatprep.subr.bf16.mxu0 0
      %403 = vmatpush2.bf16.msra.mxu0 0
      %404 = vmatprep.subr.bf16.mxu0 0
      %405 = vmatpush2.bf16.msra.mxu0 0
      %406 = vmatprep.subr.bf16.mxu0 0
      %407 = vmatpush2.bf16.msra.mxu0 0
      %408 = vmatprep.subr.bf16.mxu0 0
      %409 = vmatpush2.bf16.msra.mxu0 0
      %410 = vmatprep.subr.bf16.mxu0 0
      %411 = vmatpush2.bf16.msra.mxu0 0
      %412 = vmatprep.subr.bf16.mxu0 0
      %413 = vmatpush2.bf16.msra.mxu0 0
      %414 = vmatprep.subr.bf16.mxu0 0
      %415 = vmatpush2.bf16.msra.mxu0 0
      %416 = vmatprep.mubr.bf16.mxu0 0
      %417 = vmatmul.mubr.bf16.gmra.mxu0 %v200
      %v418 = vpop.f32.mrf.mxu0
      %v419 = vadd.f32 %v331, %v418
      %v420 = vpop.f32.mrf.mxu0
      %v421 = vpop.f32.mrf.mxu0
      %v422 = vpop.f32.mrf.mxu0
      %423 = vdwg.mxu0
      %s424 = sadd.s32 %s195, 1
      %s425 = smul.u32 %s424, 2
      %s426 = smul.addr %s425, 4
      %s427 = scalar_lea.vmem %s183, %s426
      %v428 = vld [vmem:[%s427] sm:$0xf]
      %v429 = vld [vmem:[%s427 + $0x4] sm:$0x1]
      %s430 = scalar_lea.vmem %s1, 128
      %v431 = vld [vmem:[%s430] sm:$0xf]
      %v432 = vld [vmem:[%s430 + $0x4] sm:$0xf]
      %v433 = vld [vmem:[%s430 + $0x8] sm:$0xf]
      %v434 = vld [vmem:[%s430 + $0xc] sm:$0xf]
      %v435 = vld [vmem:[%s430 + $0x10] sm:$0xf]
      %v436 = vld [vmem:[%s430 + $0x14] sm:$0xf]
      %v437 = vld [vmem:[%s430 + $0x18] sm:$0xf]
      %v438 = vld [vmem:[%s430 + $0x1c] sm:$0xf]
      %v439 = vld [vmem:[%s430 + $0x20] sm:$0xf]
      %v440 = vld [vmem:[%s430 + $0x24] sm:$0xf]
      %v441 = vld [vmem:[%s430 + $0x28] sm:$0xf]
      %v442 = vld [vmem:[%s430 + $0x2c] sm:$0xf]
      %v443 = vld [vmem:[%s430 + $0x30] sm:$0xf]
      %v444 = vld [vmem:[%s430 + $0x34] sm:$0xf]
      %v445 = vld [vmem:[%s430 + $0x38] sm:$0xf]
      %v446 = vld [vmem:[%s430 + $0x3c] sm:$0xf]
      %v463 = vunpack.c.l.b16 %v431
      %v464 = vunpack.c.l.b16 %v432
      %v465 = vunpack.c.l.b16 %v433
      %v466 = vunpack.c.l.b16 %v434
      %v467 = vunpack.c.l.b16 %v435
      %v468 = vunpack.c.l.b16 %v436
      %v469 = vunpack.c.l.b16 %v437
      %v470 = vunpack.c.l.b16 %v438
      %v471 = vunpack.c.l.b16 %v439
      %v472 = vunpack.c.l.b16 %v440
      %v473 = vunpack.c.l.b16 %v441
      %v474 = vunpack.c.l.b16 %v442
      %v475 = vunpack.c.l.b16 %v443
      %v476 = vunpack.c.l.b16 %v444
      %v477 = vunpack.c.l.b16 %v445
      %v478 = vunpack.c.l.b16 %v446
      %v479 = vpack.c.b16 %v464, %v463
      %v480 = vpack.c.b16 %v466, %v465
      %v481 = vpack.c.b16 %v468, %v467
      %v482 = vpack.c.b16 %v470, %v469
      %v483 = vpack.c.b16 %v472, %v471
      %v484 = vpack.c.b16 %v474, %v473
      %v485 = vpack.c.b16 %v476, %v475
      %v486 = vpack.c.b16 %v478, %v477
      %495 = vmatprep.subr.bf16.mxu0 0
      %496 = vmatpush1.bf16.msra.mxu0 %v486
      %497 = vmatprep.subr.bf16.mxu0 0
      %498 = vmatpush1.bf16.msra.mxu0 %v485
      %499 = vmatprep.subr.bf16.mxu0 0
      %500 = vmatpush1.bf16.msra.mxu0 %v484
      %501 = vmatprep.subr.bf16.mxu0 0
      %502 = vmatpush1.bf16.msra.mxu0 %v483
      %503 = vmatprep.subr.bf16.mxu0 0
      %504 = vmatpush1.bf16.msra.mxu0 %v482
      %505 = vmatprep.subr.bf16.mxu0 0
      %506 = vmatpush1.bf16.msra.mxu0 %v481
      %507 = vmatprep.subr.bf16.mxu0 0
      %508 = vmatpush1.bf16.msra.mxu0 %v480
      %509 = vmatprep.subr.bf16.mxu0 0
      %510 = vmatpush1.bf16.msra.mxu0 %v479
      %511 = vmatprep.subr.bf16.mxu0 0
      %512 = vmatpush2.bf16.msra.mxu0 0
      %513 = vmatprep.subr.bf16.mxu0 0
      %514 = vmatpush2.bf16.msra.mxu0 0
      %515 = vmatprep.subr.bf16.mxu0 0
      %516 = vmatpush2.bf16.msra.mxu0 0
      %517 = vmatprep.subr.bf16.mxu0 0
      %518 = vmatpush2.bf16.msra.mxu0 0
      %519 = vmatprep.subr.bf16.mxu0 0
      %520 = vmatpush2.bf16.msra.mxu0 0
      %521 = vmatprep.subr.bf16.mxu0 0
      %522 = vmatpush2.bf16.msra.mxu0 0
      %523 = vmatprep.subr.bf16.mxu0 0
      %524 = vmatpush2.bf16.msra.mxu0 0
      %525 = vmatprep.subr.bf16.mxu0 0
      %526 = vmatpush2.bf16.msra.mxu0 0
      %527 = vmatprep.mubr.bf16.mxu0 0
      %528 = vmatmul.mubr.bf16.gmra.mxu0 %v428
      %v529 = vpop.f32.mrf.mxu0
      %v530 = vadd.f32 0.0, %v529
      %v531 = vpop.f32.mrf.mxu0
      %v532 = vpop.f32.mrf.mxu0
      %v533 = vpop.f32.mrf.mxu0
      %534 = vdwg.mxu0
      %v535 = vadd.f32 %v419, %v530
      %s536 = scalar_lea.vmem %s1, 192
      %v537 = vld [vmem:[%s536] sm:$0xf]
      %v538 = vld [vmem:[%s536 + $0x4] sm:$0xf]
      %v539 = vld [vmem:[%s536 + $0x8] sm:$0xf]
      %v540 = vld [vmem:[%s536 + $0xc] sm:$0xf]
      %v541 = vld [vmem:[%s536 + $0x10] sm:$0xf]
      %v542 = vld [vmem:[%s536 + $0x14] sm:$0xf]
      %v543 = vld [vmem:[%s536 + $0x18] sm:$0xf]
      %v544 = vld [vmem:[%s536 + $0x1c] sm:$0xf]
      %v545 = vld [vmem:[%s536 + $0x20] sm:$0xf]
      %v546 = vld [vmem:[%s536 + $0x24] sm:$0xf]
      %v547 = vld [vmem:[%s536 + $0x28] sm:$0xf]
      %v548 = vld [vmem:[%s536 + $0x2c] sm:$0xf]
      %v549 = vld [vmem:[%s536 + $0x30] sm:$0xf]
      %v550 = vld [vmem:[%s536 + $0x34] sm:$0xf]
      %v551 = vld [vmem:[%s536 + $0x38] sm:$0xf]
      %v552 = vld [vmem:[%s536 + $0x3c] sm:$0xf]
      %v555 = vunpack.c.l.b16 %v428
      %v556 = vunpack.c.l.b16 %v429
      %v557 = vpack.c.b16 %v556, %v555
      %v559 = vshrl.u32 %v557, 16
      %v561 = vshll.u32 %v557, 16
      %v563 = vrot.slane %v561, 1
      %v564 = vor.u32 %v559, %v563
      %v582 = vunpack.c.l.b16 %v537
      %v583 = vunpack.c.l.b16 %v538
      %v584 = vunpack.c.l.b16 %v539
      %v585 = vunpack.c.l.b16 %v540
      %v586 = vunpack.c.l.b16 %v541
      %v587 = vunpack.c.l.b16 %v542
      %v588 = vunpack.c.l.b16 %v543
      %v589 = vunpack.c.l.b16 %v544
      %v590 = vunpack.c.l.b16 %v545
      %v591 = vunpack.c.l.b16 %v546
      %v592 = vunpack.c.l.b16 %v547
      %v593 = vunpack.c.l.b16 %v548
      %v594 = vunpack.c.l.b16 %v549
      %v595 = vunpack.c.l.b16 %v550
      %v596 = vunpack.c.l.b16 %v551
      %v597 = vunpack.c.l.b16 %v552
      %v598 = vpack.c.b16 %v583, %v582
      %v599 = vpack.c.b16 %v585, %v584
      %v600 = vpack.c.b16 %v587, %v586
      %v601 = vpack.c.b16 %v589, %v588
      %v602 = vpack.c.b16 %v591, %v590
      %v603 = vpack.c.b16 %v593, %v592
      %v604 = vpack.c.b16 %v595, %v594
      %v605 = vpack.c.b16 %v597, %v596
      %614 = vmatprep.subr.bf16.mxu0 0
      %615 = vmatpush1.bf16.msra.mxu0 %v605
      %616 = vmatprep.subr.bf16.mxu0 0
      %617 = vmatpush1.bf16.msra.mxu0 %v604
      %618 = vmatprep.subr.bf16.mxu0 0
      %619 = vmatpush1.bf16.msra.mxu0 %v603
      %620 = vmatprep.subr.bf16.mxu0 0
      %621 = vmatpush1.bf16.msra.mxu0 %v602
      %622 = vmatprep.subr.bf16.mxu0 0
      %623 = vmatpush1.bf16.msra.mxu0 %v601
      %624 = vmatprep.subr.bf16.mxu0 0
      %625 = vmatpush1.bf16.msra.mxu0 %v600
      %626 = vmatprep.subr.bf16.mxu0 0
      %627 = vmatpush1.bf16.msra.mxu0 %v599
      %628 = vmatprep.subr.bf16.mxu0 0
      %629 = vmatpush1.bf16.msra.mxu0 %v598
      %630 = vmatprep.subr.bf16.mxu0 0
      %631 = vmatpush2.bf16.msra.mxu0 0
      %632 = vmatprep.subr.bf16.mxu0 0
      %633 = vmatpush2.bf16.msra.mxu0 0
      %634 = vmatprep.subr.bf16.mxu0 0
      %635 = vmatpush2.bf16.msra.mxu0 0
      %636 = vmatprep.subr.bf16.mxu0 0
      %637 = vmatpush2.bf16.msra.mxu0 0
      %638 = vmatprep.subr.bf16.mxu0 0
      %639 = vmatpush2.bf16.msra.mxu0 0
      %640 = vmatprep.subr.bf16.mxu0 0
      %641 = vmatpush2.bf16.msra.mxu0 0
      %642 = vmatprep.subr.bf16.mxu0 0
      %643 = vmatpush2.bf16.msra.mxu0 0
      %644 = vmatprep.subr.bf16.mxu0 0
      %645 = vmatpush2.bf16.msra.mxu0 0
      %646 = vmatprep.mubr.bf16.mxu0 0
      %647 = vmatmul.mubr.bf16.gmra.mxu0 %v564
      %v648 = vpop.f32.mrf.mxu0
      %v649 = vadd.f32 0.0, %v648
      %v650 = vpop.f32.mrf.mxu0
      %v651 = vpop.f32.mrf.mxu0
      %v652 = vpop.f32.mrf.mxu0
      %653 = vdwg.mxu0
      %v654 = vadd.f32 %v535, %v649
      %v656 = vlaneseq
      %v657 = vshrl.u32 %v656, 7
      %v658 = vsub.s32 0, %v657
      %v659 = vrot.slane %v196, %v658
      %v661 = vadd.f32 %v654, %v659
      %v662 = vxor.u32 %v661, 2147483648
      %v663 = vmul.f32 %v662, 1.442695
      %v664 = vpow.pop %v663
      %v665 = vadd.f32 %v664, 1.0
      %v666 = vrcp.pop %v665
      %v667 = vmul.f32 1.0, %v666
      %v668 = vmul.f32 %v661, %v667
      %v669 = vpack.c.bf16 %v668, %v668
      %vm670 = vcmask 519168
      %671 = vst.msk [vmem:[%s192] sm:$0xf] %vm670, %v669
      %v672 = vld [vmem:[%s427] sm:$0xf]
      %v673 = vld [vmem:[%s427 + $0x4] sm:$0x1]
      %v674 = vld [vmem:[%s1] sm:$0xf]
      %v675 = vld [vmem:[%s1 + $0x4] sm:$0xf]
      %v676 = vld [vmem:[%s1 + $0x8] sm:$0xf]
      %v677 = vld [vmem:[%s1 + $0xc] sm:$0xf]
      %v678 = vld [vmem:[%s1 + $0x10] sm:$0xf]
      %v679 = vld [vmem:[%s1 + $0x14] sm:$0xf]
      %v680 = vld [vmem:[%s1 + $0x18] sm:$0xf]
      %v681 = vld [vmem:[%s1 + $0x1c] sm:$0xf]
      %v682 = vld [vmem:[%s1 + $0x20] sm:$0xf]
      %v683 = vld [vmem:[%s1 + $0x24] sm:$0xf]
      %v684 = vld [vmem:[%s1 + $0x28] sm:$0xf]
      %v685 = vld [vmem:[%s1 + $0x2c] sm:$0xf]
      %v686 = vld [vmem:[%s1 + $0x30] sm:$0xf]
      %v687 = vld [vmem:[%s1 + $0x34] sm:$0xf]
      %v688 = vld [vmem:[%s1 + $0x38] sm:$0xf]
      %v689 = vld [vmem:[%s1 + $0x3c] sm:$0xf]
      %v690 = vld [vmem:[%s218] sm:$0xf]
      %v691 = vld [vmem:[%s218 + $0x4] sm:$0xf]
      %v692 = vld [vmem:[%s218 + $0x8] sm:$0xf]
      %v693 = vld [vmem:[%s218 + $0xc] sm:$0xf]
      %v694 = vld [vmem:[%s218 + $0x10] sm:$0xf]
      %v695 = vld [vmem:[%s218 + $0x14] sm:$0xf]
      %v696 = vld [vmem:[%s218 + $0x18] sm:$0xf]
      %v697 = vld [vmem:[%s218 + $0x1c] sm:$0xf]
      %v698 = vld [vmem:[%s218 + $0x20] sm:$0xf]
      %v699 = vld [vmem:[%s218 + $0x24] sm:$0xf]
      %v700 = vld [vmem:[%s218 + $0x28] sm:$0xf]
      %v701 = vld [vmem:[%s218 + $0x2c] sm:$0xf]
      %v702 = vld [vmem:[%s218 + $0x30] sm:$0xf]
      %v703 = vld [vmem:[%s218 + $0x34] sm:$0xf]
      %v704 = vld [vmem:[%s218 + $0x38] sm:$0xf]
      %v705 = vld [vmem:[%s218 + $0x3c] sm:$0xf]
      %v708 = vunpack.c.l.b16 %v672
      %v709 = vunpack.c.l.b16 %v673
      %v710 = vpack.c.b16 %v709, %v708
      %v712 = vshrl.u32 %v710, 16
      %v714 = vshll.u32 %v710, 16
      %v716 = vrot.slane %v714, 1
      %v717 = vor.u32 %v712, %v716
      %v735 = vunpack.c.l.b16 %v690
      %v736 = vunpack.c.l.b16 %v691
      %v737 = vunpack.c.l.b16 %v692
      %v738 = vunpack.c.l.b16 %v693
      %v739 = vunpack.c.l.b16 %v694
      %v740 = vunpack.c.l.b16 %v695
      %v741 = vunpack.c.l.b16 %v696
      %v742 = vunpack.c.l.b16 %v697
      %v743 = vunpack.c.l.b16 %v698
      %v744 = vunpack.c.l.b16 %v699
      %v745 = vunpack.c.l.b16 %v700
      %v746 = vunpack.c.l.b16 %v701
      %v747 = vunpack.c.l.b16 %v702
      %v748 = vunpack.c.l.b16 %v703
      %v749 = vunpack.c.l.b16 %v704
      %v750 = vunpack.c.l.b16 %v705
      %v751 = vpack.c.b16 %v736, %v735
      %v752 = vpack.c.b16 %v738, %v737
      %v753 = vpack.c.b16 %v740, %v739
      %v754 = vpack.c.b16 %v742, %v741
      %v755 = vpack.c.b16 %v744, %v743
      %v756 = vpack.c.b16 %v746, %v745
      %v757 = vpack.c.b16 %v748, %v747
      %v758 = vpack.c.b16 %v750, %v749
      %767 = vmatprep.subr.bf16.mxu0 0
      %768 = vmatpush1.bf16.msra.mxu0 %v758
      %769 = vmatprep.subr.bf16.mxu0 0
      %770 = vmatpush1.bf16.msra.mxu0 %v757
      %771 = vmatprep.subr.bf16.mxu0 0
      %772 = vmatpush1.bf16.msra.mxu0 %v756
      %773 = vmatprep.subr.bf16.mxu0 0
      %774 = vmatpush1.bf16.msra.mxu0 %v755
      %775 = vmatprep.subr.bf16.mxu0 0
      %776 = vmatpush1.bf16.msra.mxu0 %v754
      %777 = vmatprep.subr.bf16.mxu0 0
      %778 = vmatpush1.bf16.msra.mxu0 %v753
      %779 = vmatprep.subr.bf16.mxu0 0
      %780 = vmatpush1.bf16.msra.mxu0 %v752
      %781 = vmatprep.subr.bf16.mxu0 0
      %782 = vmatpush1.bf16.msra.mxu0 %v751
      %783 = vmatprep.subr.bf16.mxu0 0
      %784 = vmatpush2.bf16.msra.mxu0 0
      %785 = vmatprep.subr.bf16.mxu0 0
      %786 = vmatpush2.bf16.msra.mxu0 0
      %787 = vmatprep.subr.bf16.mxu0 0
      %788 = vmatpush2.bf16.msra.mxu0 0
      %789 = vmatprep.subr.bf16.mxu0 0
      %790 = vmatpush2.bf16.msra.mxu0 0
      %791 = vmatprep.subr.bf16.mxu0 0
      %792 = vmatpush2.bf16.msra.mxu0 0
      %793 = vmatprep.subr.bf16.mxu0 0
      %794 = vmatpush2.bf16.msra.mxu0 0
      %795 = vmatprep.subr.bf16.mxu0 0
      %796 = vmatpush2.bf16.msra.mxu0 0
      %797 = vmatprep.subr.bf16.mxu0 0
      %798 = vmatpush2.bf16.msra.mxu0 0
      %799 = vmatprep.mubr.bf16.mxu0 0
      %800 = vmatmul.mubr.bf16.gmra.mxu0 %v717
      %v801 = vpop.f32.mrf.mxu0
      %v802 = vadd.f32 0.0, %v801
      %v803 = vpop.f32.mrf.mxu0
      %v804 = vpop.f32.mrf.mxu0
      %v805 = vpop.f32.mrf.mxu0
      %806 = vdwg.mxu0
      %v823 = vunpack.c.l.b16 %v674
      %v824 = vunpack.c.l.b16 %v675
      %v825 = vunpack.c.l.b16 %v676
      %v826 = vunpack.c.l.b16 %v677
      %v827 = vunpack.c.l.b16 %v678
      %v828 = vunpack.c.l.b16 %v679
      %v829 = vunpack.c.l.b16 %v680
      %v830 = vunpack.c.l.b16 %v681
      %v831 = vunpack.c.l.b16 %v682
      %v832 = vunpack.c.l.b16 %v683
      %v833 = vunpack.c.l.b16 %v684
      %v834 = vunpack.c.l.b16 %v685
      %v835 = vunpack.c.l.b16 %v686
      %v836 = vunpack.c.l.b16 %v687
      %v837 = vunpack.c.l.b16 %v688
      %v838 = vunpack.c.l.b16 %v689
      %v839 = vpack.c.b16 %v824, %v823
      %v840 = vpack.c.b16 %v826, %v825
      %v841 = vpack.c.b16 %v828, %v827
      %v842 = vpack.c.b16 %v830, %v829
      %v843 = vpack.c.b16 %v832, %v831
      %v844 = vpack.c.b16 %v834, %v833
      %v845 = vpack.c.b16 %v836, %v835
      %v846 = vpack.c.b16 %v838, %v837
      %855 = vmatprep.subr.bf16.mxu0 0
      %856 = vmatpush1.bf16.msra.mxu0 %v846
      %857 = vmatprep.subr.bf16.mxu0 0
      %858 = vmatpush1.bf16.msra.mxu0 %v845
      %859 = vmatprep.subr.bf16.mxu0 0
      %860 = vmatpush1.bf16.msra.mxu0 %v844
      %861 = vmatprep.subr.bf16.mxu0 0
      %862 = vmatpush1.bf16.msra.mxu0 %v843
      %863 = vmatprep.subr.bf16.mxu0 0
      %864 = vmatpush1.bf16.msra.mxu0 %v842
      %865 = vmatprep.subr.bf16.mxu0 0
      %866 = vmatpush1.bf16.msra.mxu0 %v841
      %867 = vmatprep.subr.bf16.mxu0 0
      %868 = vmatpush1.bf16.msra.mxu0 %v840
      %869 = vmatprep.subr.bf16.mxu0 0
      %870 = vmatpush1.bf16.msra.mxu0 %v839
      %871 = vmatprep.subr.bf16.mxu0 0
      %872 = vmatpush2.bf16.msra.mxu0 0
      %873 = vmatprep.subr.bf16.mxu0 0
      %874 = vmatpush2.bf16.msra.mxu0 0
      %875 = vmatprep.subr.bf16.mxu0 0
      %876 = vmatpush2.bf16.msra.mxu0 0
      %877 = vmatprep.subr.bf16.mxu0 0
      %878 = vmatpush2.bf16.msra.mxu0 0
      %879 = vmatprep.subr.bf16.mxu0 0
      %880 = vmatpush2.bf16.msra.mxu0 0
      %881 = vmatprep.subr.bf16.mxu0 0
      %882 = vmatpush2.bf16.msra.mxu0 0
      %883 = vmatprep.subr.bf16.mxu0 0
      %884 = vmatpush2.bf16.msra.mxu0 0
      %885 = vmatprep.subr.bf16.mxu0 0
      %886 = vmatpush2.bf16.msra.mxu0 0
      %887 = vmatprep.mubr.bf16.mxu0 0
      %888 = vmatmul.mubr.bf16.gmra.mxu0 %v672
      %v889 = vpop.f32.mrf.mxu0
      %v890 = vadd.f32 %v802, %v889
      %v891 = vpop.f32.mrf.mxu0
      %v892 = vpop.f32.mrf.mxu0
      %v893 = vpop.f32.mrf.mxu0
      %894 = vdwg.mxu0
      %s895 = sadd.s32 %s195, 2
      %s896 = smul.u32 %s895, 2
      %s897 = smul.addr %s896, 4
      %s898 = scalar_lea.vmem %s183, %s897
      %v899 = vld [vmem:[%s898] sm:$0xf]
      %v900 = vld [vmem:[%s898 + $0x4] sm:$0x1]
      %v901 = vld [vmem:[%s430] sm:$0xf]
      %v902 = vld [vmem:[%s430 + $0x4] sm:$0xf]
      %v903 = vld [vmem:[%s430 + $0x8] sm:$0xf]
      %v904 = vld [vmem:[%s430 + $0xc] sm:$0xf]
      %v905 = vld [vmem:[%s430 + $0x10] sm:$0xf]
      %v906 = vld [vmem:[%s430 + $0x14] sm:$0xf]
      %v907 = vld [vmem:[%s430 + $0x18] sm:$0xf]
      %v908 = vld [vmem:[%s430 + $0x1c] sm:$0xf]
      %v909 = vld [vmem:[%s430 + $0x20] sm:$0xf]
      %v910 = vld [vmem:[%s430 + $0x24] sm:$0xf]
      %v911 = vld [vmem:[%s430 + $0x28] sm:$0xf]
      %v912 = vld [vmem:[%s430 + $0x2c] sm:$0xf]
      %v913 = vld [vmem:[%s430 + $0x30] sm:$0xf]
      %v914 = vld [vmem:[%s430 + $0x34] sm:$0xf]
      %v915 = vld [vmem:[%s430 + $0x38] sm:$0xf]
      %v916 = vld [vmem:[%s430 + $0x3c] sm:$0xf]
      %v933 = vunpack.c.l.b16 %v901
      %v934 = vunpack.c.l.b16 %v902
      %v935 = vunpack.c.l.b16 %v903
      %v936 = vunpack.c.l.b16 %v904
      %v937 = vunpack.c.l.b16 %v905
      %v938 = vunpack.c.l.b16 %v906
      %v939 = vunpack.c.l.b16 %v907
      %v940 = vunpack.c.l.b16 %v908
      %v941 = vunpack.c.l.b16 %v909
      %v942 = vunpack.c.l.b16 %v910
      %v943 = vunpack.c.l.b16 %v911
      %v944 = vunpack.c.l.b16 %v912
      %v945 = vunpack.c.l.b16 %v913
      %v946 = vunpack.c.l.b16 %v914
      %v947 = vunpack.c.l.b16 %v915
      %v948 = vunpack.c.l.b16 %v916
      %v949 = vpack.c.b16 %v934, %v933
      %v950 = vpack.c.b16 %v936, %v935
      %v951 = vpack.c.b16 %v938, %v937
      %v952 = vpack.c.b16 %v940, %v939
      %v953 = vpack.c.b16 %v942, %v941
      %v954 = vpack.c.b16 %v944, %v943
      %v955 = vpack.c.b16 %v946, %v945
      %v956 = vpack.c.b16 %v948, %v947
      %965 = vmatprep.subr.bf16.mxu0 0
      %966 = vmatpush1.bf16.msra.mxu0 %v956
      %967 = vmatprep.subr.bf16.mxu0 0
      %968 = vmatpush1.bf16.msra.mxu0 %v955
      %969 = vmatprep.subr.bf16.mxu0 0
      %970 = vmatpush1.bf16.msra.mxu0 %v954
      %971 = vmatprep.subr.bf16.mxu0 0
      %972 = vmatpush1.bf16.msra.mxu0 %v953
      %973 = vmatprep.subr.bf16.mxu0 0
      %974 = vmatpush1.bf16.msra.mxu0 %v952
      %975 = vmatprep.subr.bf16.mxu0 0
      %976 = vmatpush1.bf16.msra.mxu0 %v951
      %977 = vmatprep.subr.bf16.mxu0 0
      %978 = vmatpush1.bf16.msra.mxu0 %v950
      %979 = vmatprep.subr.bf16.mxu0 0
      %980 = vmatpush1.bf16.msra.mxu0 %v949
      %981 = vmatprep.subr.bf16.mxu0 0
      %982 = vmatpush2.bf16.msra.mxu0 0
      %983 = vmatprep.subr.bf16.mxu0 0
      %984 = vmatpush2.bf16.msra.mxu0 0
      %985 = vmatprep.subr.bf16.mxu0 0
      %986 = vmatpush2.bf16.msra.mxu0 0
      %987 = vmatprep.subr.bf16.mxu0 0
      %988 = vmatpush2.bf16.msra.mxu0 0
      %989 = vmatprep.subr.bf16.mxu0 0
      %990 = vmatpush2.bf16.msra.mxu0 0
      %991 = vmatprep.subr.bf16.mxu0 0
      %992 = vmatpush2.bf16.msra.mxu0 0
      %993 = vmatprep.subr.bf16.mxu0 0
      %994 = vmatpush2.bf16.msra.mxu0 0
      %995 = vmatprep.subr.bf16.mxu0 0
      %996 = vmatpush2.bf16.msra.mxu0 0
      %997 = vmatprep.mubr.bf16.mxu0 0
      %998 = vmatmul.mubr.bf16.gmra.mxu0 %v899
      %v999 = vpop.f32.mrf.mxu0
      %v1000 = vadd.f32 0.0, %v999
      %v1001 = vpop.f32.mrf.mxu0
      %v1002 = vpop.f32.mrf.mxu0
      %v1003 = vpop.f32.mrf.mxu0
      %1004 = vdwg.mxu0
      %v1005 = vadd.f32 %v890, %v1000
      %v1006 = vld [vmem:[%s536] sm:$0xf]
      %v1007 = vld [vmem:[%s536 + $0x4] sm:$0xf]
      %v1008 = vld [vmem:[%s536 + $0x8] sm:$0xf]
      %v1009 = vld [vmem:[%s536 + $0xc] sm:$0xf]
      %v1010 = vld [vmem:[%s536 + $0x10] sm:$0xf]
      %v1011 = vld [vmem:[%s536 + $0x14] sm:$0xf]
      %v1012 = vld [vmem:[%s536 + $0x18] sm:$0xf]
      %v1013 = vld [vmem:[%s536 + $0x1c] sm:$0xf]
      %v1014 = vld [vmem:[%s536 + $0x20] sm:$0xf]
      %v1015 = vld [vmem:[%s536 + $0x24] sm:$0xf]
      %v1016 = vld [vmem:[%s536 + $0x28] sm:$0xf]
      %v1017 = vld [vmem:[%s536 + $0x2c] sm:$0xf]
      %v1018 = vld [vmem:[%s536 + $0x30] sm:$0xf]
      %v1019 = vld [vmem:[%s536 + $0x34] sm:$0xf]
      %v1020 = vld [vmem:[%s536 + $0x38] sm:$0xf]
      %v1021 = vld [vmem:[%s536 + $0x3c] sm:$0xf]
      %v1024 = vunpack.c.l.b16 %v899
      %v1025 = vunpack.c.l.b16 %v900
      %v1026 = vpack.c.b16 %v1025, %v1024
      %v1028 = vshrl.u32 %v1026, 16
      %v1030 = vshll.u32 %v1026, 16
      %v1032 = vrot.slane %v1030, 1
      %v1033 = vor.u32 %v1028, %v1032
      %v1051 = vunpack.c.l.b16 %v1006
      %v1052 = vunpack.c.l.b16 %v1007
      %v1053 = vunpack.c.l.b16 %v1008
      %v1054 = vunpack.c.l.b16 %v1009
      %v1055 = vunpack.c.l.b16 %v1010
      %v1056 = vunpack.c.l.b16 %v1011
      %v1057 = vunpack.c.l.b16 %v1012
      %v1058 = vunpack.c.l.b16 %v1013
      %v1059 = vunpack.c.l.b16 %v1014
      %v1060 = vunpack.c.l.b16 %v1015
      %v1061 = vunpack.c.l.b16 %v1016
      %v1062 = vunpack.c.l.b16 %v1017
      %v1063 = vunpack.c.l.b16 %v1018
      %v1064 = vunpack.c.l.b16 %v1019
      %v1065 = vunpack.c.l.b16 %v1020
      %v1066 = vunpack.c.l.b16 %v1021
      %v1067 = vpack.c.b16 %v1052, %v1051
      %v1068 = vpack.c.b16 %v1054, %v1053
      %v1069 = vpack.c.b16 %v1056, %v1055
      %v1070 = vpack.c.b16 %v1058, %v1057
      %v1071 = vpack.c.b16 %v1060, %v1059
      %v1072 = vpack.c.b16 %v1062, %v1061
      %v1073 = vpack.c.b16 %v1064, %v1063
      %v1074 = vpack.c.b16 %v1066, %v1065
      %1083 = vmatprep.subr.bf16.mxu0 0
      %1084 = vmatpush1.bf16.msra.mxu0 %v1074
      %1085 = vmatprep.subr.bf16.mxu0 0
      %1086 = vmatpush1.bf16.msra.mxu0 %v1073
      %1087 = vmatprep.subr.bf16.mxu0 0
      %1088 = vmatpush1.bf16.msra.mxu0 %v1072
      %1089 = vmatprep.subr.bf16.mxu0 0
      %1090 = vmatpush1.bf16.msra.mxu0 %v1071
      %1091 = vmatprep.subr.bf16.mxu0 0
      %1092 = vmatpush1.bf16.msra.mxu0 %v1070
      %1093 = vmatprep.subr.bf16.mxu0 0
      %1094 = vmatpush1.bf16.msra.mxu0 %v1069
      %1095 = vmatprep.subr.bf16.mxu0 0
      %1096 = vmatpush1.bf16.msra.mxu0 %v1068
      %1097 = vmatprep.subr.bf16.mxu0 0
      %1098 = vmatpush1.bf16.msra.mxu0 %v1067
      %1099 = vmatprep.subr.bf16.mxu0 0
      %1100 = vmatpush2.bf16.msra.mxu0 0
      %1101 = vmatprep.subr.bf16.mxu0 0
      %1102 = vmatpush2.bf16.msra.mxu0 0
      %1103 = vmatprep.subr.bf16.mxu0 0
      %1104 = vmatpush2.bf16.msra.mxu0 0
      %1105 = vmatprep.subr.bf16.mxu0 0
      %1106 = vmatpush2.bf16.msra.mxu0 0
      %1107 = vmatprep.subr.bf16.mxu0 0
      %1108 = vmatpush2.bf16.msra.mxu0 0
      %1109 = vmatprep.subr.bf16.mxu0 0
      %1110 = vmatpush2.bf16.msra.mxu0 0
      %1111 = vmatprep.subr.bf16.mxu0 0
      %1112 = vmatpush2.bf16.msra.mxu0 0
      %1113 = vmatprep.subr.bf16.mxu0 0
      %1114 = vmatpush2.bf16.msra.mxu0 0
      %1115 = vmatprep.mubr.bf16.mxu0 0
      %1116 = vmatmul.mubr.bf16.gmra.mxu0 %v1033
      %v1117 = vpop.f32.mrf.mxu0
      %v1118 = vadd.f32 0.0, %v1117
      %v1119 = vpop.f32.mrf.mxu0
      %v1120 = vpop.f32.mrf.mxu0
      %v1121 = vpop.f32.mrf.mxu0
      %1122 = vdwg.mxu0
      %v1123 = vadd.f32 %v1005, %v1118
      %v1124 = vadd.f32 %v1123, %v659
      %v1125 = vxor.u32 %v1124, 2147483648
      %v1126 = vmul.f32 %v1125, 1.442695
      %v1127 = vpow.pop %v1126
      %v1128 = vadd.f32 %v1127, 1.0
      %v1129 = vrcp.pop %v1128
      %v1130 = vmul.f32 1.0, %v1129
      %v1131 = vmul.f32 %v1124, %v1130
      %v1132 = vpack.c.bf16 %v1131, %v1131
      %s1133 = scalar_lea.vmem %s192, 4
      %1134 = vst.msk [vmem:[%s1133] sm:$0xf] %vm670, %v1132
      %v1135 = vld [vmem:[%s898] sm:$0xf]
      %v1136 = vld [vmem:[%s898 + $0x4] sm:$0x1]
      %v1137 = vld [vmem:[%s1] sm:$0xf]
      %v1138 = vld [vmem:[%s1 + $0x4] sm:$0xf]
      %v1139 = vld [vmem:[%s1 + $0x8] sm:$0xf]
      %v1140 = vld [vmem:[%s1 + $0xc] sm:$0xf]
      %v1141 = vld [vmem:[%s1 + $0x10] sm:$0xf]
      %v1142 = vld [vmem:[%s1 + $0x14] sm:$0xf]
      %v1143 = vld [vmem:[%s1 + $0x18] sm:$0xf]
      %v1144 = vld [vmem:[%s1 + $0x1c] sm:$0xf]
      %v1145 = vld [vmem:[%s1 + $0x20] sm:$0xf]
      %v1146 = vld [vmem:[%s1 + $0x24] sm:$0xf]
      %v1147 = vld [vmem:[%s1 + $0x28] sm:$0xf]
      %v1148 = vld [vmem:[%s1 + $0x2c] sm:$0xf]
      %v1149 = vld [vmem:[%s1 + $0x30] sm:$0xf]
      %v1150 = vld [vmem:[%s1 + $0x34] sm:$0xf]
      %v1151 = vld [vmem:[%s1 + $0x38] sm:$0xf]
      %v1152 = vld [vmem:[%s1 + $0x3c] sm:$0xf]
      %v1153 = vld [vmem:[%s218] sm:$0xf]
      %v1154 = vld [vmem:[%s218 + $0x4] sm:$0xf]
      %v1155 = vld [vmem:[%s218 + $0x8] sm:$0xf]
      %v1156 = vld [vmem:[%s218 + $0xc] sm:$0xf]
      %v1157 = vld [vmem:[%s218 + $0x10] sm:$0xf]
      %v1158 = vld [vmem:[%s218 + $0x14] sm:$0xf]
      %v1159 = vld [vmem:[%s218 + $0x18] sm:$0xf]
      %v1160 = vld [vmem:[%s218 + $0x1c] sm:$0xf]
      %v1161 = vld [vmem:[%s218 + $0x20] sm:$0xf]
      %v1162 = vld [vmem:[%s218 + $0x24] sm:$0xf]
      %v1163 = vld [vmem:[%s218 + $0x28] sm:$0xf]
      %v1164 = vld [vmem:[%s218 + $0x2c] sm:$0xf]
      %v1165 = vld [vmem:[%s218 + $0x30] sm:$0xf]
      %v1166 = vld [vmem:[%s218 + $0x34] sm:$0xf]
      %v1167 = vld [vmem:[%s218 + $0x38] sm:$0xf]
      %v1168 = vld [vmem:[%s218 + $0x3c] sm:$0xf]
      %v1171 = vunpack.c.l.b16 %v1135
      %v1172 = vunpack.c.l.b16 %v1136
      %v1173 = vpack.c.b16 %v1172, %v1171
      %v1175 = vshrl.u32 %v1173, 16
      %v1177 = vshll.u32 %v1173, 16
      %v1179 = vrot.slane %v1177, 1
      %v1180 = vor.u32 %v1175, %v1179
      %v1198 = vunpack.c.l.b16 %v1153
      %v1199 = vunpack.c.l.b16 %v1154
      %v1200 = vunpack.c.l.b16 %v1155
      %v1201 = vunpack.c.l.b16 %v1156
      %v1202 = vunpack.c.l.b16 %v1157
      %v1203 = vunpack.c.l.b16 %v1158
      %v1204 = vunpack.c.l.b16 %v1159
      %v1205 = vunpack.c.l.b16 %v1160
      %v1206 = vunpack.c.l.b16 %v1161
      %v1207 = vunpack.c.l.b16 %v1162
      %v1208 = vunpack.c.l.b16 %v1163
      %v1209 = vunpack.c.l.b16 %v1164
      %v1210 = vunpack.c.l.b16 %v1165
      %v1211 = vunpack.c.l.b16 %v1166
      %v1212 = vunpack.c.l.b16 %v1167
      %v1213 = vunpack.c.l.b16 %v1168
      %v1214 = vpack.c.b16 %v1199, %v1198
      %v1215 = vpack.c.b16 %v1201, %v1200
      %v1216 = vpack.c.b16 %v1203, %v1202
      %v1217 = vpack.c.b16 %v1205, %v1204
      %v1218 = vpack.c.b16 %v1207, %v1206
      %v1219 = vpack.c.b16 %v1209, %v1208
      %v1220 = vpack.c.b16 %v1211, %v1210
      %v1221 = vpack.c.b16 %v1213, %v1212
      %1230 = vmatprep.subr.bf16.mxu0 0
      %1231 = vmatpush1.bf16.msra.mxu0 %v1221
      %1232 = vmatprep.subr.bf16.mxu0 0
      %1233 = vmatpush1.bf16.msra.mxu0 %v1220
      %1234 = vmatprep.subr.bf16.mxu0 0
      %1235 = vmatpush1.bf16.msra.mxu0 %v1219
      %1236 = vmatprep.subr.bf16.mxu0 0
      %1237 = vmatpush1.bf16.msra.mxu0 %v1218
      %1238 = vmatprep.subr.bf16.mxu0 0
      %1239 = vmatpush1.bf16.msra.mxu0 %v1217
      %1240 = vmatprep.subr.bf16.mxu0 0
      %1241 = vmatpush1.bf16.msra.mxu0 %v1216
      %1242 = vmatprep.subr.bf16.mxu0 0
      %1243 = vmatpush1.bf16.msra.mxu0 %v1215
      %1244 = vmatprep.subr.bf16.mxu0 0
      %1245 = vmatpush1.bf16.msra.mxu0 %v1214
      %1246 = vmatprep.subr.bf16.mxu0 0
      %1247 = vmatpush2.bf16.msra.mxu0 0
      %1248 = vmatprep.subr.bf16.mxu0 0
      %1249 = vmatpush2.bf16.msra.mxu0 0
      %1250 = vmatprep.subr.bf16.mxu0 0
      %1251 = vmatpush2.bf16.msra.mxu0 0
      %1252 = vmatprep.subr.bf16.mxu0 0
      %1253 = vmatpush2.bf16.msra.mxu0 0
      %1254 = vmatprep.subr.bf16.mxu0 0
      %1255 = vmatpush2.bf16.msra.mxu0 0
      %1256 = vmatprep.subr.bf16.mxu0 0
      %1257 = vmatpush2.bf16.msra.mxu0 0
      %1258 = vmatprep.subr.bf16.mxu0 0
      %1259 = vmatpush2.bf16.msra.mxu0 0
      %1260 = vmatprep.subr.bf16.mxu0 0
      %1261 = vmatpush2.bf16.msra.mxu0 0
      %1262 = vmatprep.mubr.bf16.mxu0 0
      %1263 = vmatmul.mubr.bf16.gmra.mxu0 %v1180
      %v1264 = vpop.f32.mrf.mxu0
      %v1265 = vadd.f32 0.0, %v1264
      %v1266 = vpop.f32.mrf.mxu0
      %v1267 = vpop.f32.mrf.mxu0
      %v1268 = vpop.f32.mrf.mxu0
      %1269 = vdwg.mxu0
      %v1286 = vunpack.c.l.b16 %v1137
      %v1287 = vunpack.c.l.b16 %v1138
      %v1288 = vunpack.c.l.b16 %v1139
      %v1289 = vunpack.c.l.b16 %v1140
      %v1290 = vunpack.c.l.b16 %v1141
      %v1291 = vunpack.c.l.b16 %v1142
      %v1292 = vunpack.c.l.b16 %v1143
      %v1293 = vunpack.c.l.b16 %v1144
      %v1294 = vunpack.c.l.b16 %v1145
      %v1295 = vunpack.c.l.b16 %v1146
      %v1296 = vunpack.c.l.b16 %v1147
      %v1297 = vunpack.c.l.b16 %v1148
      %v1298 = vunpack.c.l.b16 %v1149
      %v1299 = vunpack.c.l.b16 %v1150
      %v1300 = vunpack.c.l.b16 %v1151
      %v1301 = vunpack.c.l.b16 %v1152
      %v1302 = vpack.c.b16 %v1287, %v1286
      %v1303 = vpack.c.b16 %v1289, %v1288
      %v1304 = vpack.c.b16 %v1291, %v1290
      %v1305 = vpack.c.b16 %v1293, %v1292
      %v1306 = vpack.c.b16 %v1295, %v1294
      %v1307 = vpack.c.b16 %v1297, %v1296
      %v1308 = vpack.c.b16 %v1299, %v1298
      %v1309 = vpack.c.b16 %v1301, %v1300
      %1318 = vmatprep.subr.bf16.mxu0 0
      %1319 = vmatpush1.bf16.msra.mxu0 %v1309
      %1320 = vmatprep.subr.bf16.mxu0 0
      %1321 = vmatpush1.bf16.msra.mxu0 %v1308
      %1322 = vmatprep.subr.bf16.mxu0 0
      %1323 = vmatpush1.bf16.msra.mxu0 %v1307
      %1324 = vmatprep.subr.bf16.mxu0 0
      %1325 = vmatpush1.bf16.msra.mxu0 %v1306
      %1326 = vmatprep.subr.bf16.mxu0 0
      %1327 = vmatpush1.bf16.msra.mxu0 %v1305
      %1328 = vmatprep.subr.bf16.mxu0 0
      %1329 = vmatpush1.bf16.msra.mxu0 %v1304
      %1330 = vmatprep.subr.bf16.mxu0 0
      %1331 = vmatpush1.bf16.msra.mxu0 %v1303
      %1332 = vmatprep.subr.bf16.mxu0 0
      %1333 = vmatpush1.bf16.msra.mxu0 %v1302
      %1334 = vmatprep.subr.bf16.mxu0 0
      %1335 = vmatpush2.bf16.msra.mxu0 0
      %1336 = vmatprep.subr.bf16.mxu0 0
      %1337 = vmatpush2.bf16.msra.mxu0 0
      %1338 = vmatprep.subr.bf16.mxu0 0
      %1339 = vmatpush2.bf16.msra.mxu0 0
      %1340 = vmatprep.subr.bf16.mxu0 0
      %1341 = vmatpush2.bf16.msra.mxu0 0
      %1342 = vmatprep.subr.bf16.mxu0 0
      %1343 = vmatpush2.bf16.msra.mxu0 0
      %1344 = vmatprep.subr.bf16.mxu0 0
      %1345 = vmatpush2.bf16.msra.mxu0 0
      %1346 = vmatprep.subr.bf16.mxu0 0
      %1347 = vmatpush2.bf16.msra.mxu0 0
      %1348 = vmatprep.subr.bf16.mxu0 0
      %1349 = vmatpush2.bf16.msra.mxu0 0
      %1350 = vmatprep.mubr.bf16.mxu0 0
      %1351 = vmatmul.mubr.bf16.gmra.mxu0 %v1135
      %v1352 = vpop.f32.mrf.mxu0
      %v1353 = vadd.f32 %v1265, %v1352
      %v1354 = vpop.f32.mrf.mxu0
      %v1355 = vpop.f32.mrf.mxu0
      %v1356 = vpop.f32.mrf.mxu0
      %1357 = vdwg.mxu0
      %s1358 = sadd.s32 %s195, 3
      %s1359 = smul.u32 %s1358, 2
      %s1360 = smul.addr %s1359, 4
      %s1361 = scalar_lea.vmem %s183, %s1360
      %v1362 = vld [vmem:[%s1361] sm:$0xf]
      %v1363 = vld [vmem:[%s1361 + $0x4] sm:$0x1]
      %v1364 = vld [vmem:[%s430] sm:$0xf]
      %v1365 = vld [vmem:[%s430 + $0x4] sm:$0xf]
      %v1366 = vld [vmem:[%s430 + $0x8] sm:$0xf]
      %v1367 = vld [vmem:[%s430 + $0xc] sm:$0xf]
      %v1368 = vld [vmem:[%s430 + $0x10] sm:$0xf]
      %v1369 = vld [vmem:[%s430 + $0x14] sm:$0xf]
      %v1370 = vld [vmem:[%s430 + $0x18] sm:$0xf]
      %v1371 = vld [vmem:[%s430 + $0x1c] sm:$0xf]
      %v1372 = vld [vmem:[%s430 + $0x20] sm:$0xf]
      %v1373 = vld [vmem:[%s430 + $0x24] sm:$0xf]
      %v1374 = vld [vmem:[%s430 + $0x28] sm:$0xf]
      %v1375 = vld [vmem:[%s430 + $0x2c] sm:$0xf]
      %v1376 = vld [vmem:[%s430 + $0x30] sm:$0xf]
      %v1377 = vld [vmem:[%s430 + $0x34] sm:$0xf]
      %v1378 = vld [vmem:[%s430 + $0x38] sm:$0xf]
      %v1379 = vld [vmem:[%s430 + $0x3c] sm:$0xf]
      %v1396 = vunpack.c.l.b16 %v1364
      %v1397 = vunpack.c.l.b16 %v1365
      %v1398 = vunpack.c.l.b16 %v1366
      %v1399 = vunpack.c.l.b16 %v1367
      %v1400 = vunpack.c.l.b16 %v1368
      %v1401 = vunpack.c.l.b16 %v1369
      %v1402 = vunpack.c.l.b16 %v1370
      %v1403 = vunpack.c.l.b16 %v1371
      %v1404 = vunpack.c.l.b16 %v1372
      %v1405 = vunpack.c.l.b16 %v1373
      %v1406 = vunpack.c.l.b16 %v1374
      %v1407 = vunpack.c.l.b16 %v1375
      %v1408 = vunpack.c.l.b16 %v1376
      %v1409 = vunpack.c.l.b16 %v1377
      %v1410 = vunpack.c.l.b16 %v1378
      %v1411 = vunpack.c.l.b16 %v1379
      %v1412 = vpack.c.b16 %v1397, %v1396
      %v1413 = vpack.c.b16 %v1399, %v1398
      %v1414 = vpack.c.b16 %v1401, %v1400
      %v1415 = vpack.c.b16 %v1403, %v1402
      %v1416 = vpack.c.b16 %v1405, %v1404
      %v1417 = vpack.c.b16 %v1407, %v1406
      %v1418 = vpack.c.b16 %v1409, %v1408
      %v1419 = vpack.c.b16 %v1411, %v1410
      %1428 = vmatprep.subr.bf16.mxu0 0
      %1429 = vmatpush1.bf16.msra.mxu0 %v1419
      %1430 = vmatprep.subr.bf16.mxu0 0
      %1431 = vmatpush1.bf16.msra.mxu0 %v1418
      %1432 = vmatprep.subr.bf16.mxu0 0
      %1433 = vmatpush1.bf16.msra.mxu0 %v1417
      %1434 = vmatprep.subr.bf16.mxu0 0
      %1435 = vmatpush1.bf16.msra.mxu0 %v1416
      %1436 = vmatprep.subr.bf16.mxu0 0
      %1437 = vmatpush1.bf16.msra.mxu0 %v1415
      %1438 = vmatprep.subr.bf16.mxu0 0
      %1439 = vmatpush1.bf16.msra.mxu0 %v1414
      %1440 = vmatprep.subr.bf16.mxu0 0
      %1441 = vmatpush1.bf16.msra.mxu0 %v1413
      %1442 = vmatprep.subr.bf16.mxu0 0
      %1443 = vmatpush1.bf16.msra.mxu0 %v1412
      %1444 = vmatprep.subr.bf16.mxu0 0
      %1445 = vmatpush2.bf16.msra.mxu0 0
      %1446 = vmatprep.subr.bf16.mxu0 0
      %1447 = vmatpush2.bf16.msra.mxu0 0
      %1448 = vmatprep.subr.bf16.mxu0 0
      %1449 = vmatpush2.bf16.msra.mxu0 0
      %1450 = vmatprep.subr.bf16.mxu0 0
      %1451 = vmatpush2.bf16.msra.mxu0 0
      %1452 = vmatprep.subr.bf16.mxu0 0
      %1453 = vmatpush2.bf16.msra.mxu0 0
      %1454 = vmatprep.subr.bf16.mxu0 0
      %1455 = vmatpush2.bf16.msra.mxu0 0
      %1456 = vmatprep.subr.bf16.mxu0 0
      %1457 = vmatpush2.bf16.msra.mxu0 0
      %1458 = vmatprep.subr.bf16.mxu0 0
      %1459 = vmatpush2.bf16.msra.mxu0 0
      %1460 = vmatprep.mubr.bf16.mxu0 0
      %1461 = vmatmul.mubr.bf16.gmra.mxu0 %v1362
      %v1462 = vpop.f32.mrf.mxu0
      %v1463 = vadd.f32 0.0, %v1462
      %v1464 = vpop.f32.mrf.mxu0
      %v1465 = vpop.f32.mrf.mxu0
      %v1466 = vpop.f32.mrf.mxu0
      %1467 = vdwg.mxu0
      %v1468 = vadd.f32 %v1353, %v1463
      %v1469 = vld [vmem:[%s536] sm:$0xf]
      %v1470 = vld [vmem:[%s536 + $0x4] sm:$0xf]
      %v1471 = vld [vmem:[%s536 + $0x8] sm:$0xf]
      %v1472 = vld [vmem:[%s536 + $0xc] sm:$0xf]
      %v1473 = vld [vmem:[%s536 + $0x10] sm:$0xf]
      %v1474 = vld [vmem:[%s536 + $0x14] sm:$0xf]
      %v1475 = vld [vmem:[%s536 + $0x18] sm:$0xf]
      %v1476 = vld [vmem:[%s536 + $0x1c] sm:$0xf]
      %v1477 = vld [vmem:[%s536 + $0x20] sm:$0xf]
      %v1478 = vld [vmem:[%s536 + $0x24] sm:$0xf]
      %v1479 = vld [vmem:[%s536 + $0x28] sm:$0xf]
      %v1480 = vld [vmem:[%s536 + $0x2c] sm:$0xf]
      %v1481 = vld [vmem:[%s536 + $0x30] sm:$0xf]
      %v1482 = vld [vmem:[%s536 + $0x34] sm:$0xf]
      %v1483 = vld [vmem:[%s536 + $0x38] sm:$0xf]
      %v1484 = vld [vmem:[%s536 + $0x3c] sm:$0xf]
      %v1487 = vunpack.c.l.b16 %v1362
      %v1488 = vunpack.c.l.b16 %v1363
      %v1489 = vpack.c.b16 %v1488, %v1487
      %v1491 = vshrl.u32 %v1489, 16
      %v1493 = vshll.u32 %v1489, 16
      %v1495 = vrot.slane %v1493, 1
      %v1496 = vor.u32 %v1491, %v1495
      %v1514 = vunpack.c.l.b16 %v1469
      %v1515 = vunpack.c.l.b16 %v1470
      %v1516 = vunpack.c.l.b16 %v1471
      %v1517 = vunpack.c.l.b16 %v1472
      %v1518 = vunpack.c.l.b16 %v1473
      %v1519 = vunpack.c.l.b16 %v1474
      %v1520 = vunpack.c.l.b16 %v1475
      %v1521 = vunpack.c.l.b16 %v1476
      %v1522 = vunpack.c.l.b16 %v1477
      %v1523 = vunpack.c.l.b16 %v1478
      %v1524 = vunpack.c.l.b16 %v1479
      %v1525 = vunpack.c.l.b16 %v1480
      %v1526 = vunpack.c.l.b16 %v1481
      %v1527 = vunpack.c.l.b16 %v1482
      %v1528 = vunpack.c.l.b16 %v1483
      %v1529 = vunpack.c.l.b16 %v1484
      %v1530 = vpack.c.b16 %v1515, %v1514
      %v1531 = vpack.c.b16 %v1517, %v1516
      %v1532 = vpack.c.b16 %v1519, %v1518
      %v1533 = vpack.c.b16 %v1521, %v1520
      %v1534 = vpack.c.b16 %v1523, %v1522
      %v1535 = vpack.c.b16 %v1525, %v1524
      %v1536 = vpack.c.b16 %v1527, %v1526
      %v1537 = vpack.c.b16 %v1529, %v1528
      %1546 = vmatprep.subr.bf16.mxu0 0
      %1547 = vmatpush1.bf16.msra.mxu0 %v1537
      %1548 = vmatprep.subr.bf16.mxu0 0
      %1549 = vmatpush1.bf16.msra.mxu0 %v1536
      %1550 = vmatprep.subr.bf16.mxu0 0
      %1551 = vmatpush1.bf16.msra.mxu0 %v1535
      %1552 = vmatprep.subr.bf16.mxu0 0
      %1553 = vmatpush1.bf16.msra.mxu0 %v1534
      %1554 = vmatprep.subr.bf16.mxu0 0
      %1555 = vmatpush1.bf16.msra.mxu0 %v1533
      %1556 = vmatprep.subr.bf16.mxu0 0
      %1557 = vmatpush1.bf16.msra.mxu0 %v1532
      %1558 = vmatprep.subr.bf16.mxu0 0
      %1559 = vmatpush1.bf16.msra.mxu0 %v1531
      %1560 = vmatprep.subr.bf16.mxu0 0
      %1561 = vmatpush1.bf16.msra.mxu0 %v1530
      %1562 = vmatprep.subr.bf16.mxu0 0
      %1563 = vmatpush2.bf16.msra.mxu0 0
      %1564 = vmatprep.subr.bf16.mxu0 0
      %1565 = vmatpush2.bf16.msra.mxu0 0
      %1566 = vmatprep.subr.bf16.mxu0 0
      %1567 = vmatpush2.bf16.msra.mxu0 0
      %1568 = vmatprep.subr.bf16.mxu0 0
      %1569 = vmatpush2.bf16.msra.mxu0 0
      %1570 = vmatprep.subr.bf16.mxu0 0
      %1571 = vmatpush2.bf16.msra.mxu0 0
      %1572 = vmatprep.subr.bf16.mxu0 0
      %1573 = vmatpush2.bf16.msra.mxu0 0
      %1574 = vmatprep.subr.bf16.mxu0 0
      %1575 = vmatpush2.bf16.msra.mxu0 0
      %1576 = vmatprep.subr.bf16.mxu0 0
      %1577 = vmatpush2.bf16.msra.mxu0 0
      %1578 = vmatprep.mubr.bf16.mxu0 0
      %1579 = vmatmul.mubr.bf16.gmra.mxu0 %v1496
      %v1580 = vpop.f32.mrf.mxu0
      %v1581 = vadd.f32 0.0, %v1580
      %v1582 = vpop.f32.mrf.mxu0
      %v1583 = vpop.f32.mrf.mxu0
      %v1584 = vpop.f32.mrf.mxu0
      %1585 = vdwg.mxu0
      %v1586 = vadd.f32 %v1468, %v1581
      %v1587 = vadd.f32 %v1586, %v659
      %v1588 = vxor.u32 %v1587, 2147483648
      %v1589 = vmul.f32 %v1588, 1.442695
      %v1590 = vpow.pop %v1589
      %v1591 = vadd.f32 %v1590, 1.0
      %v1592 = vrcp.pop %v1591
      %v1593 = vmul.f32 1.0, %v1592
      %v1594 = vmul.f32 %v1587, %v1593
      %v1595 = vpack.c.bf16 %v1594, %v1594
      %s1596 = scalar_lea.vmem %s192, 8
      %1597 = vst.msk [vmem:[%s1596] sm:$0xf] %vm670, %v1595
      %v1598 = vld [vmem:[%s1361] sm:$0xf]
      %v1599 = vld [vmem:[%s1361 + $0x4] sm:$0x1]
      %v1600 = vld [vmem:[%s1] sm:$0xf]
      %v1601 = vld [vmem:[%s1 + $0x4] sm:$0xf]
      %v1602 = vld [vmem:[%s1 + $0x8] sm:$0xf]
      %v1603 = vld [vmem:[%s1 + $0xc] sm:$0xf]
      %v1604 = vld [vmem:[%s1 + $0x10] sm:$0xf]
      %v1605 = vld [vmem:[%s1 + $0x14] sm:$0xf]
      %v1606 = vld [vmem:[%s1 + $0x18] sm:$0xf]
      %v1607 = vld [vmem:[%s1 + $0x1c] sm:$0xf]
      %v1608 = vld [vmem:[%s1 + $0x20] sm:$0xf]
      %v1609 = vld [vmem:[%s1 + $0x24] sm:$0xf]
      %v1610 = vld [vmem:[%s1 + $0x28] sm:$0xf]
      %v1611 = vld [vmem:[%s1 + $0x2c] sm:$0xf]
      %v1612 = vld [vmem:[%s1 + $0x30] sm:$0xf]
      %v1613 = vld [vmem:[%s1 + $0x34] sm:$0xf]
      %v1614 = vld [vmem:[%s1 + $0x38] sm:$0xf]
      %v1615 = vld [vmem:[%s1 + $0x3c] sm:$0xf]
      %v1616 = vld [vmem:[%s218] sm:$0xf]
      %v1617 = vld [vmem:[%s218 + $0x4] sm:$0xf]
      %v1618 = vld [vmem:[%s218 + $0x8] sm:$0xf]
      %v1619 = vld [vmem:[%s218 + $0xc] sm:$0xf]
      %v1620 = vld [vmem:[%s218 + $0x10] sm:$0xf]
      %v1621 = vld [vmem:[%s218 + $0x14] sm:$0xf]
      %v1622 = vld [vmem:[%s218 + $0x18] sm:$0xf]
      %v1623 = vld [vmem:[%s218 + $0x1c] sm:$0xf]
      %v1624 = vld [vmem:[%s218 + $0x20] sm:$0xf]
      %v1625 = vld [vmem:[%s218 + $0x24] sm:$0xf]
      %v1626 = vld [vmem:[%s218 + $0x28] sm:$0xf]
      %v1627 = vld [vmem:[%s218 + $0x2c] sm:$0xf]
      %v1628 = vld [vmem:[%s218 + $0x30] sm:$0xf]
      %v1629 = vld [vmem:[%s218 + $0x34] sm:$0xf]
      %v1630 = vld [vmem:[%s218 + $0x38] sm:$0xf]
      %v1631 = vld [vmem:[%s218 + $0x3c] sm:$0xf]
      %v1634 = vunpack.c.l.b16 %v1598
      %v1635 = vunpack.c.l.b16 %v1599
      %v1636 = vpack.c.b16 %v1635, %v1634
      %v1638 = vshrl.u32 %v1636, 16
      %v1640 = vshll.u32 %v1636, 16
      %v1642 = vrot.slane %v1640, 1
      %v1643 = vor.u32 %v1638, %v1642
      %v1661 = vunpack.c.l.b16 %v1616
      %v1662 = vunpack.c.l.b16 %v1617
      %v1663 = vunpack.c.l.b16 %v1618
      %v1664 = vunpack.c.l.b16 %v1619
      %v1665 = vunpack.c.l.b16 %v1620
      %v1666 = vunpack.c.l.b16 %v1621
      %v1667 = vunpack.c.l.b16 %v1622
      %v1668 = vunpack.c.l.b16 %v1623
      %v1669 = vunpack.c.l.b16 %v1624
      %v1670 = vunpack.c.l.b16 %v1625
      %v1671 = vunpack.c.l.b16 %v1626
      %v1672 = vunpack.c.l.b16 %v1627
      %v1673 = vunpack.c.l.b16 %v1628
      %v1674 = vunpack.c.l.b16 %v1629
      %v1675 = vunpack.c.l.b16 %v1630
      %v1676 = vunpack.c.l.b16 %v1631
      %v1677 = vpack.c.b16 %v1662, %v1661
      %v1678 = vpack.c.b16 %v1664, %v1663
      %v1679 = vpack.c.b16 %v1666, %v1665
      %v1680 = vpack.c.b16 %v1668, %v1667
      %v1681 = vpack.c.b16 %v1670, %v1669
      %v1682 = vpack.c.b16 %v1672, %v1671
      %v1683 = vpack.c.b16 %v1674, %v1673
      %v1684 = vpack.c.b16 %v1676, %v1675
      %1693 = vmatprep.subr.bf16.mxu0 0
      %1694 = vmatpush1.bf16.msra.mxu0 %v1684
      %1695 = vmatprep.subr.bf16.mxu0 0
      %1696 = vmatpush1.bf16.msra.mxu0 %v1683
      %1697 = vmatprep.subr.bf16.mxu0 0
      %1698 = vmatpush1.bf16.msra.mxu0 %v1682
      %1699 = vmatprep.subr.bf16.mxu0 0
      %1700 = vmatpush1.bf16.msra.mxu0 %v1681
      %1701 = vmatprep.subr.bf16.mxu0 0
      %1702 = vmatpush1.bf16.msra.mxu0 %v1680
      %1703 = vmatprep.subr.bf16.mxu0 0
      %1704 = vmatpush1.bf16.msra.mxu0 %v1679
      %1705 = vmatprep.subr.bf16.mxu0 0
      %1706 = vmatpush1.bf16.msra.mxu0 %v1678
      %1707 = vmatprep.subr.bf16.mxu0 0
      %1708 = vmatpush1.bf16.msra.mxu0 %v1677
      %1709 = vmatprep.subr.bf16.mxu0 0
      %1710 = vmatpush2.bf16.msra.mxu0 0
      %1711 = vmatprep.subr.bf16.mxu0 0
      %1712 = vmatpush2.bf16.msra.mxu0 0
      %1713 = vmatprep.subr.bf16.mxu0 0
      %1714 = vmatpush2.bf16.msra.mxu0 0
      %1715 = vmatprep.subr.bf16.mxu0 0
      %1716 = vmatpush2.bf16.msra.mxu0 0
      %1717 = vmatprep.subr.bf16.mxu0 0
      %1718 = vmatpush2.bf16.msra.mxu0 0
      %1719 = vmatprep.subr.bf16.mxu0 0
      %1720 = vmatpush2.bf16.msra.mxu0 0
      %1721 = vmatprep.subr.bf16.mxu0 0
      %1722 = vmatpush2.bf16.msra.mxu0 0
      %1723 = vmatprep.subr.bf16.mxu0 0
      %1724 = vmatpush2.bf16.msra.mxu0 0
      %1725 = vmatprep.mubr.bf16.mxu0 0
      %1726 = vmatmul.mubr.bf16.gmra.mxu0 %v1643
      %v1727 = vpop.f32.mrf.mxu0
      %v1728 = vadd.f32 0.0, %v1727
      %v1729 = vpop.f32.mrf.mxu0
      %v1730 = vpop.f32.mrf.mxu0
      %v1731 = vpop.f32.mrf.mxu0
      %1732 = vdwg.mxu0
      %v1749 = vunpack.c.l.b16 %v1600
      %v1750 = vunpack.c.l.b16 %v1601
      %v1751 = vunpack.c.l.b16 %v1602
      %v1752 = vunpack.c.l.b16 %v1603
      %v1753 = vunpack.c.l.b16 %v1604
      %v1754 = vunpack.c.l.b16 %v1605
      %v1755 = vunpack.c.l.b16 %v1606
      %v1756 = vunpack.c.l.b16 %v1607
      %v1757 = vunpack.c.l.b16 %v1608
      %v1758 = vunpack.c.l.b16 %v1609
      %v1759 = vunpack.c.l.b16 %v1610
      %v1760 = vunpack.c.l.b16 %v1611
      %v1761 = vunpack.c.l.b16 %v1612
      %v1762 = vunpack.c.l.b16 %v1613
      %v1763 = vunpack.c.l.b16 %v1614
      %v1764 = vunpack.c.l.b16 %v1615
      %v1765 = vpack.c.b16 %v1750, %v1749
      %v1766 = vpack.c.b16 %v1752, %v1751
      %v1767 = vpack.c.b16 %v1754, %v1753
      %v1768 = vpack.c.b16 %v1756, %v1755
      %v1769 = vpack.c.b16 %v1758, %v1757
      %v1770 = vpack.c.b16 %v1760, %v1759
      %v1771 = vpack.c.b16 %v1762, %v1761
      %v1772 = vpack.c.b16 %v1764, %v1763
      %1781 = vmatprep.subr.bf16.mxu0 0
      %1782 = vmatpush1.bf16.msra.mxu0 %v1772
      %1783 = vmatprep.subr.bf16.mxu0 0
      %1784 = vmatpush1.bf16.msra.mxu0 %v1771
      %1785 = vmatprep.subr.bf16.mxu0 0
      %1786 = vmatpush1.bf16.msra.mxu0 %v1770
      %1787 = vmatprep.subr.bf16.mxu0 0
      %1788 = vmatpush1.bf16.msra.mxu0 %v1769
      %1789 = vmatprep.subr.bf16.mxu0 0
      %1790 = vmatpush1.bf16.msra.mxu0 %v1768
      %1791 = vmatprep.subr.bf16.mxu0 0
      %1792 = vmatpush1.bf16.msra.mxu0 %v1767
      %1793 = vmatprep.subr.bf16.mxu0 0
      %1794 = vmatpush1.bf16.msra.mxu0 %v1766
      %1795 = vmatprep.subr.bf16.mxu0 0
      %1796 = vmatpush1.bf16.msra.mxu0 %v1765
      %1797 = vmatprep.subr.bf16.mxu0 0
      %1798 = vmatpush2.bf16.msra.mxu0 0
      %1799 = vmatprep.subr.bf16.mxu0 0
      %1800 = vmatpush2.bf16.msra.mxu0 0
      %1801 = vmatprep.subr.bf16.mxu0 0
      %1802 = vmatpush2.bf16.msra.mxu0 0
      %1803 = vmatprep.subr.bf16.mxu0 0
      %1804 = vmatpush2.bf16.msra.mxu0 0
      %1805 = vmatprep.subr.bf16.mxu0 0
      %1806 = vmatpush2.bf16.msra.mxu0 0
      %1807 = vmatprep.subr.bf16.mxu0 0
      %1808 = vmatpush2.bf16.msra.mxu0 0
      %1809 = vmatprep.subr.bf16.mxu0 0
      %1810 = vmatpush2.bf16.msra.mxu0 0
      %1811 = vmatprep.subr.bf16.mxu0 0
      %1812 = vmatpush2.bf16.msra.mxu0 0
      %1813 = vmatprep.mubr.bf16.mxu0 0
      %1814 = vmatmul.mubr.bf16.gmra.mxu0 %v1598
      %v1815 = vpop.f32.mrf.mxu0
      %v1816 = vadd.f32 %v1728, %v1815
      %v1817 = vpop.f32.mrf.mxu0
      %v1818 = vpop.f32.mrf.mxu0
      %v1819 = vpop.f32.mrf.mxu0
      %1820 = vdwg.mxu0
      %s1821 = sadd.s32 %s195, 4
      %s1822 = smul.u32 %s1821, 2
      %s1823 = smul.addr %s1822, 4
      %s1824 = scalar_lea.vmem %s183, %s1823
      %v1825 = vld [vmem:[%s1824] sm:$0xf]
      %v1826 = vld [vmem:[%s1824 + $0x4] sm:$0x1]
      %v1827 = vld [vmem:[%s430] sm:$0xf]
      %v1828 = vld [vmem:[%s430 + $0x4] sm:$0xf]
      %v1829 = vld [vmem:[%s430 + $0x8] sm:$0xf]
      %v1830 = vld [vmem:[%s430 + $0xc] sm:$0xf]
      %v1831 = vld [vmem:[%s430 + $0x10] sm:$0xf]
      %v1832 = vld [vmem:[%s430 + $0x14] sm:$0xf]
      %v1833 = vld [vmem:[%s430 + $0x18] sm:$0xf]
      %v1834 = vld [vmem:[%s430 + $0x1c] sm:$0xf]
      %v1835 = vld [vmem:[%s430 + $0x20] sm:$0xf]
      %v1836 = vld [vmem:[%s430 + $0x24] sm:$0xf]
      %v1837 = vld [vmem:[%s430 + $0x28] sm:$0xf]
      %v1838 = vld [vmem:[%s430 + $0x2c] sm:$0xf]
      %v1839 = vld [vmem:[%s430 + $0x30] sm:$0xf]
      %v1840 = vld [vmem:[%s430 + $0x34] sm:$0xf]
      %v1841 = vld [vmem:[%s430 + $0x38] sm:$0xf]
      %v1842 = vld [vmem:[%s430 + $0x3c] sm:$0xf]
      %v1859 = vunpack.c.l.b16 %v1827
      %v1860 = vunpack.c.l.b16 %v1828
      %v1861 = vunpack.c.l.b16 %v1829
      %v1862 = vunpack.c.l.b16 %v1830
      %v1863 = vunpack.c.l.b16 %v1831
      %v1864 = vunpack.c.l.b16 %v1832
      %v1865 = vunpack.c.l.b16 %v1833
      %v1866 = vunpack.c.l.b16 %v1834
      %v1867 = vunpack.c.l.b16 %v1835
      %v1868 = vunpack.c.l.b16 %v1836
      %v1869 = vunpack.c.l.b16 %v1837
      %v1870 = vunpack.c.l.b16 %v1838
      %v1871 = vunpack.c.l.b16 %v1839
      %v1872 = vunpack.c.l.b16 %v1840
      %v1873 = vunpack.c.l.b16 %v1841
      %v1874 = vunpack.c.l.b16 %v1842
      %v1875 = vpack.c.b16 %v1860, %v1859
      %v1876 = vpack.c.b16 %v1862, %v1861
      %v1877 = vpack.c.b16 %v1864, %v1863
      %v1878 = vpack.c.b16 %v1866, %v1865
      %v1879 = vpack.c.b16 %v1868, %v1867
      %v1880 = vpack.c.b16 %v1870, %v1869
      %v1881 = vpack.c.b16 %v1872, %v1871
      %v1882 = vpack.c.b16 %v1874, %v1873
      %1891 = vmatprep.subr.bf16.mxu0 0
      %1892 = vmatpush1.bf16.msra.mxu0 %v1882
      %1893 = vmatprep.subr.bf16.mxu0 0
      %1894 = vmatpush1.bf16.msra.mxu0 %v1881
      %1895 = vmatprep.subr.bf16.mxu0 0
      %1896 = vmatpush1.bf16.msra.mxu0 %v1880
      %1897 = vmatprep.subr.bf16.mxu0 0
      %1898 = vmatpush1.bf16.msra.mxu0 %v1879
      %1899 = vmatprep.subr.bf16.mxu0 0
      %1900 = vmatpush1.bf16.msra.mxu0 %v1878
      %1901 = vmatprep.subr.bf16.mxu0 0
      %1902 = vmatpush1.bf16.msra.mxu0 %v1877
      %1903 = vmatprep.subr.bf16.mxu0 0
      %1904 = vmatpush1.bf16.msra.mxu0 %v1876
      %1905 = vmatprep.subr.bf16.mxu0 0
      %1906 = vmatpush1.bf16.msra.mxu0 %v1875
      %1907 = vmatprep.subr.bf16.mxu0 0
      %1908 = vmatpush2.bf16.msra.mxu0 0
      %1909 = vmatprep.subr.bf16.mxu0 0
      %1910 = vmatpush2.bf16.msra.mxu0 0
      %1911 = vmatprep.subr.bf16.mxu0 0
      %1912 = vmatpush2.bf16.msra.mxu0 0
      %1913 = vmatprep.subr.bf16.mxu0 0
      %1914 = vmatpush2.bf16.msra.mxu0 0
      %1915 = vmatprep.subr.bf16.mxu0 0
      %1916 = vmatpush2.bf16.msra.mxu0 0
      %1917 = vmatprep.subr.bf16.mxu0 0
      %1918 = vmatpush2.bf16.msra.mxu0 0
      %1919 = vmatprep.subr.bf16.mxu0 0
      %1920 = vmatpush2.bf16.msra.mxu0 0
      %1921 = vmatprep.subr.bf16.mxu0 0
      %1922 = vmatpush2.bf16.msra.mxu0 0
      %1923 = vmatprep.mubr.bf16.mxu0 0
      %1924 = vmatmul.mubr.bf16.gmra.mxu0 %v1825
      %v1925 = vpop.f32.mrf.mxu0
      %v1926 = vadd.f32 0.0, %v1925
      %v1927 = vpop.f32.mrf.mxu0
      %v1928 = vpop.f32.mrf.mxu0
      %v1929 = vpop.f32.mrf.mxu0
      %1930 = vdwg.mxu0
      %v1931 = vadd.f32 %v1816, %v1926
      %v1932 = vld [vmem:[%s536] sm:$0xf]
      %v1933 = vld [vmem:[%s536 + $0x4] sm:$0xf]
      %v1934 = vld [vmem:[%s536 + $0x8] sm:$0xf]
      %v1935 = vld [vmem:[%s536 + $0xc] sm:$0xf]
      %v1936 = vld [vmem:[%s536 + $0x10] sm:$0xf]
      %v1937 = vld [vmem:[%s536 + $0x14] sm:$0xf]
      %v1938 = vld [vmem:[%s536 + $0x18] sm:$0xf]
      %v1939 = vld [vmem:[%s536 + $0x1c] sm:$0xf]
      %v1940 = vld [vmem:[%s536 + $0x20] sm:$0xf]
      %v1941 = vld [vmem:[%s536 + $0x24] sm:$0xf]
      %v1942 = vld [vmem:[%s536 + $0x28] sm:$0xf]
      %v1943 = vld [vmem:[%s536 + $0x2c] sm:$0xf]
      %v1944 = vld [vmem:[%s536 + $0x30] sm:$0xf]
      %v1945 = vld [vmem:[%s536 + $0x34] sm:$0xf]
      %v1946 = vld [vmem:[%s536 + $0x38] sm:$0xf]
      %v1947 = vld [vmem:[%s536 + $0x3c] sm:$0xf]
      %v1950 = vunpack.c.l.b16 %v1825
      %v1951 = vunpack.c.l.b16 %v1826
      %v1952 = vpack.c.b16 %v1951, %v1950
      %v1954 = vshrl.u32 %v1952, 16
      %v1956 = vshll.u32 %v1952, 16
      %v1958 = vrot.slane %v1956, 1
      %v1959 = vor.u32 %v1954, %v1958
      %v1977 = vunpack.c.l.b16 %v1932
      %v1978 = vunpack.c.l.b16 %v1933
      %v1979 = vunpack.c.l.b16 %v1934
      %v1980 = vunpack.c.l.b16 %v1935
      %v1981 = vunpack.c.l.b16 %v1936
      %v1982 = vunpack.c.l.b16 %v1937
      %v1983 = vunpack.c.l.b16 %v1938
      %v1984 = vunpack.c.l.b16 %v1939
      %v1985 = vunpack.c.l.b16 %v1940
      %v1986 = vunpack.c.l.b16 %v1941
      %v1987 = vunpack.c.l.b16 %v1942
      %v1988 = vunpack.c.l.b16 %v1943
      %v1989 = vunpack.c.l.b16 %v1944
      %v1990 = vunpack.c.l.b16 %v1945
      %v1991 = vunpack.c.l.b16 %v1946
      %v1992 = vunpack.c.l.b16 %v1947
      %v1993 = vpack.c.b16 %v1978, %v1977
      %v1994 = vpack.c.b16 %v1980, %v1979
      %v1995 = vpack.c.b16 %v1982, %v1981
      %v1996 = vpack.c.b16 %v1984, %v1983
      %v1997 = vpack.c.b16 %v1986, %v1985
      %v1998 = vpack.c.b16 %v1988, %v1987
      %v1999 = vpack.c.b16 %v1990, %v1989
      %v2000 = vpack.c.b16 %v1992, %v1991
      %2009 = vmatprep.subr.bf16.mxu0 0
      %2010 = vmatpush1.bf16.msra.mxu0 %v2000
      %2011 = vmatprep.subr.bf16.mxu0 0
      %2012 = vmatpush1.bf16.msra.mxu0 %v1999
      %2013 = vmatprep.subr.bf16.mxu0 0
      %2014 = vmatpush1.bf16.msra.mxu0 %v1998
      %2015 = vmatprep.subr.bf16.mxu0 0
      %2016 = vmatpush1.bf16.msra.mxu0 %v1997
      %2017 = vmatprep.subr.bf16.mxu0 0
      %2018 = vmatpush1.bf16.msra.mxu0 %v1996
      %2019 = vmatprep.subr.bf16.mxu0 0
      %2020 = vmatpush1.bf16.msra.mxu0 %v1995
      %2021 = vmatprep.subr.bf16.mxu0 0
      %2022 = vmatpush1.bf16.msra.mxu0 %v1994
      %2023 = vmatprep.subr.bf16.mxu0 0
      %2024 = vmatpush1.bf16.msra.mxu0 %v1993
      %2025 = vmatprep.subr.bf16.mxu0 0
      %2026 = vmatpush2.bf16.msra.mxu0 0
      %2027 = vmatprep.subr.bf16.mxu0 0
      %2028 = vmatpush2.bf16.msra.mxu0 0
      %2029 = vmatprep.subr.bf16.mxu0 0
      %2030 = vmatpush2.bf16.msra.mxu0 0
      %2031 = vmatprep.subr.bf16.mxu0 0
      %2032 = vmatpush2.bf16.msra.mxu0 0
      %2033 = vmatprep.subr.bf16.mxu0 0
      %2034 = vmatpush2.bf16.msra.mxu0 0
      %2035 = vmatprep.subr.bf16.mxu0 0
      %2036 = vmatpush2.bf16.msra.mxu0 0
      %2037 = vmatprep.subr.bf16.mxu0 0
      %2038 = vmatpush2.bf16.msra.mxu0 0
      %2039 = vmatprep.subr.bf16.mxu0 0
      %2040 = vmatpush2.bf16.msra.mxu0 0
      %2041 = vmatprep.mubr.bf16.mxu0 0
      %2042 = vmatmul.mubr.bf16.gmra.mxu0 %v1959
      %v2043 = vpop.f32.mrf.mxu0
      %v2044 = vadd.f32 0.0, %v2043
      %v2045 = vpop.f32.mrf.mxu0
      %v2046 = vpop.f32.mrf.mxu0
      %v2047 = vpop.f32.mrf.mxu0
      %2048 = vdwg.mxu0
      %v2049 = vadd.f32 %v1931, %v2044
      %v2050 = vadd.f32 %v2049, %v659
      %v2051 = vxor.u32 %v2050, 2147483648
      %v2052 = vmul.f32 %v2051, 1.442695
      %v2053 = vpow.pop %v2052
      %v2054 = vadd.f32 %v2053, 1.0
      %v2055 = vrcp.pop %v2054
      %v2056 = vmul.f32 1.0, %v2055
      %v2057 = vmul.f32 %v2050, %v2056
      %v2058 = vpack.c.bf16 %v2057, %v2057
      %s2059 = scalar_lea.vmem %s192, 12
      %2060 = vst.msk [vmem:[%s2059] sm:$0xf] %vm670, %v2058
      %s2061 = smul.u32 4, %s19
      %p2062 = scmp.lt.s32.totalorder %s18, 1
      %s2063 = scalar_select %p2062, %s18, 1
      %p2064 = scmp.lt.s32.totalorder %s2061, 7
      %s2065 = scalar_select %p2064, %s2061, 7
      %s2066 = smul.addr %s2063, 8
      %s2067 = sadd.s32 %s2065, %s2066
      %s2068 = smul.addr %s2067, 4
      %s2069 = scalar_lea.vmem %s3, %s2068
      // Predicated region
      $region33: #{image_encoder_forward.5} parent=31 // pred_check
        %p2070 = pneg %p114
      $region34: #{image_encoder_forward.5} parent=31 // pred_check_branch
        %2072 = sbr.rel (%p2070) target = $region36
      $region35: #{image_encoder_forward.5} parent=31 // pred_region
        %s2073 = smul.u32 4, %s19
      $region36: #{image_encoder_forward.5} parent=31 // pred_fallthru
        _
    $region32: #{image_encoder_forward.5} parent=5 // pred_fallthru
      _
    %p2074 = scmp.le.s32.totalorder 2, %s9
    // Predicated region
    $region37: #{image_encoder_forward.5} parent=5 // pred_check
      %p2075 = pneg %p2074
    $region38: #{image_encoder_forward.5} parent=5 // pred_check_branch
      %2077 = sbr.rel (%p2075) target = $region40
    $region39: #{image_encoder_forward.5} parent=5 // pred_region
      %s2078 = ssub.s32 %s9, 2
      // Predicated region
      $region41: #{image_encoder_forward.5} parent=39 // pred_check
        %p2079 = pneg %p120
      $region42: #{image_encoder_forward.5} parent=39 // pred_check_branch
        %2081 = sbr.rel (%p2079) target = $region44
      $region43: #{image_encoder_forward.5} parent=39 // pred_region
        %s2082 = smul.u32 4, %s21
        %p2083 = scmp.lt.s32.totalorder %s20, 1
        %s2084 = scalar_select %p2083, %s20, 1
        %p2085 = scmp.lt.s32.totalorder %s2082, 7
        %s2086 = scalar_select %p2085, %s2082, 7
        %s2087 = smul.addr %s2084, 8
        %s2088 = sadd.s32 %s2086, %s2087
        %s2089 = smul.addr %s2088, 4
        %s2090 = scalar_lea.vmem %s3, %s2089
      $region44: #{image_encoder_forward.5} parent=39 // pred_fallthru
        _
    $region40: #{image_encoder_forward.5} parent=5 // pred_fallthru
      _
  $region6: #{image_encoder_forward.5} parent=0 // loop_footer
    %s13 = sadd.s32 1, %s9
  $region7: #{image_encoder_forward.5} parent=0 // loop_footer_branch
    %8 = sbr.rel target = $region3
  $region8: #{image_encoder_forward.5} parent=0 // loop_exit
    _

// kernel: image_encoder_forward.6
$region0: #{image_encoder_forward.6}
  #allocation0 [shape = 'u32[]', space=smem, size = 0x4, offset = 0x4, fixed_abs, tag = 'smem constant byte address 0x4 - core index']
  #allocation1 [shape = 'u32[144,128]{1,0:T(1,128)}', space=vmem, size = 0x12000, scoped, tag = 'internal scratch']
  %s0 = inlined_call_operand.vmem [shape: bf16[2,5,5,256], index: 0, kind: input, shape index: {}]
  %s1 = inlined_call_operand.vmem [shape: bf16[4,256,128], index: 1, kind: input, shape index: {}]
  %s2 = inlined_call_operand.vmem [shape: f32[1,128], index: 2, kind: input, shape index: {}]
  %s3 = inlined_call_operand.vmem [shape: bf16[2,4,4,128], index: 3, kind: output, shape index: {}]
  %s4 = sld [smem:[#allocation0]]
  $region45: #{image_encoder_forward.6} parent=0
    _
  %s6 = ssub.s32 1, %s4
  %s7 = scalar_select 0, %s6, %s4
  loop: start=0, step=1, limit=6
  $region2: #{image_encoder_forward.6} parent=0 // loop_pre_header
    _
  $region3: #{image_encoder_forward.6} parent=0 // loop_header
    %s9 = sphi 0, %s13
    %p10 = scmp.ge.s32.totalorder %s9, 6
    %s16 = sphi 0, %s28
    %s17 = sphi 0, %s24
    %s18 = sphi 0, %s16
    %s19 = sphi 0, %s17
    %s20 = sphi 0, %s18
    %s21 = sphi 0, %s19
    %s31 = sphi 0, %s33
    %s34 = sphi 0, %s31
    %s35 = sphi 0, %s34
    %s51 = sphi 0, %s35
    %s55 = sphi 0, %s55
    %s57 = sphi 0, %s55
    %s58 = sphi 0, %s57
    %s72 = sphi 0, %s58
    %s76 = sphi 0, %s76
    %s78 = sphi 0, %s76
    %s79 = sphi 0, %s78
    %s93 = sphi 0, %s79
    %s101 = sphi 0, %s103
    %s104 = sphi 0, %s101
    %s105 = sphi 0, %s104
    %s121 = sphi 0, %s105
  $region4: #{image_encoder_forward.6} parent=0 // loop_header_branch
    %12 = sbr.rel (%p10) target = $region8
  $region5: #{image_encoder_forward.6} parent=0 // loop_body
    %s14 = ssub.s32 %s9, 1
    %s15 = ssub.s32 %s9, 2
    %s22 = sadd.s32 1, %s17
    %p23 = scmp.ge.s32.totalorder %s22, 2
    %s24 = scalar_select %p23, 0, %s22
    %s25 = sadd.s32 1, %s16
    %s26 = scalar_select %p23, %s25, %s16
    %p27 = scmp.ge.s32.totalorder %s26, 2
    %s28 = scalar_select %p27, 0, %s26
    %s29 = ssub.s32 %s16, %s28
    %p30 = scmp.eq.s32.totalorder %s29, 0
    %s32 = sadd.s32 %s31, 1
    %s33 = scalar_select %p30, %s31, %s32
    %p36 = pneg %p30
    %p37 = scmp.eq.s32.totalorder %s9, 3
    %p38 = por %p36, %p37
    %p39 = scmp.ne.s32.totalorder %s31, %s34
    %p40 = scmp.eq.s32.totalorder %s9, 0
    %p41 = por %p39, %p40
    %p42 = scmp.ne.s32.totalorder %s31, %s34
    %p43 = scmp.eq.s32.totalorder %s14, 3
    %p44 = por %p42, %p43
    %p45 = scmp.ne.s32.totalorder %s34, %s35
    %p46 = scmp.eq.s32.totalorder %s14, 0
    %p47 = por %p45, %p46
    %p48 = scmp.ne.s32.totalorder %s34, %s35
    %p49 = scmp.eq.s32.totalorder %s15, 3
    %p50 = por %p48, %p49
    %p52 = scmp.ne.s32.totalorder %s35, %s51
    %p53 = scmp.eq.s32.totalorder %s15, 0
    %p54 = por %p52, %p53
    %s56 = sadd.s32 %s55, 1
    %p59 = scmp.eq.s32.totalorder %s9, 3
    %p60 = scmp.ne.s32.totalorder %s55, %s57
    %p61 = scmp.eq.s32.totalorder %s9, 0
    %p62 = por %p60, %p61
    %p63 = scmp.ne.s32.totalorder %s55, %s57
    %p64 = scmp.eq.s32.totalorder %s14, 3
    %p65 = por %p63, %p64
    %p66 = scmp.ne.s32.totalorder %s57, %s58
    %p67 = scmp.eq.s32.totalorder %s14, 0
    %p68 = por %p66, %p67
    %p69 = scmp.ne.s32.totalorder %s57, %s58
    %p70 = scmp.eq.s32.totalorder %s15, 3
    %p71 = por %p69, %p70
    %p73 = scmp.ne.s32.totalorder %s58, %s72
    %p74 = scmp.eq.s32.totalorder %s15, 0
    %p75 = por %p73, %p74
    %s77 = sadd.s32 %s76, 1
    %p80 = scmp.eq.s32.totalorder %s9, 3
    %p81 = scmp.ne.s32.totalorder %s76, %s78
    %p82 = scmp.eq.s32.totalorder %s9, 0
    %p83 = por %p81, %p82
    %p84 = scmp.ne.s32.totalorder %s76, %s78
    %p85 = scmp.eq.s32.totalorder %s14, 3
    %p86 = por %p84, %p85
    %p87 = scmp.ne.s32.totalorder %s78, %s79
    %p88 = scmp.eq.s32.totalorder %s14, 0
    %p89 = por %p87, %p88
    %p90 = scmp.ne.s32.totalorder %s78, %s79
    %p91 = scmp.eq.s32.totalorder %s15, 3
    %p92 = por %p90, %p91
    %p94 = scmp.ne.s32.totalorder %s79, %s93
    %p95 = scmp.eq.s32.totalorder %s15, 0
    %p96 = por %p94, %p95
    %s97 = ssub.s32 %s16, %s28
    %s98 = ssub.s32 %s17, %s24
    %s99 = sor.u32 %s97, %s98
    %p100 = scmp.eq.s32.totalorder %s99, 0
    %s102 = sadd.s32 %s101, 1
    %s103 = scalar_select %p100, %s101, %s102
    %p106 = pneg %p100
    %p107 = scmp.eq.s32.totalorder %s9, 3
    %p108 = por %p106, %p107
    %p109 = scmp.ne.s32.totalorder %s101, %s104
    %p110 = scmp.eq.s32.totalorder %s9, 0
    %p111 = por %p109, %p110
    %p112 = scmp.ne.s32.totalorder %s101, %s104
    %p113 = scmp.eq.s32.totalorder %s14, 3
    %p114 = por %p112, %p113
    %p115 = scmp.ne.s32.totalorder %s104, %s105
    %p116 = scmp.eq.s32.totalorder %s14, 0
    %p117 = por %p115, %p116
    %p118 = scmp.ne.s32.totalorder %s104, %s105
    %p119 = scmp.eq.s32.totalorder %s15, 3
    %p120 = por %p118, %p119
    %p122 = scmp.ne.s32.totalorder %s105, %s121
    %p123 = scmp.eq.s32.totalorder %s15, 0
    %p124 = por %p122, %p123
    %p125 = scmp.le.s32.totalorder 1, %s9
    %p126 = scmp.lt.s32.totalorder %s9, 5
    %p127 = pnand %p125, %p126
    %p128 = pneg %p127
    // Predicated region
    $region9: #{image_encoder_forward.6} parent=5 // pred_check
      _
    $region10: #{image_encoder_forward.6} parent=5 // pred_check_branch
      %130 = sbr.rel (%p127) target = $region12
    $region11: #{image_encoder_forward.6} parent=5 // pred_region
      %s131 = ssub.s32 %s9, 1
      // Predicated region
      $region13: #{image_encoder_forward.6} parent=11 // pred_check
        %p132 = pneg %p68
      $region14: #{image_encoder_forward.6} parent=11 // pred_check_branch
        %134 = sbr.rel (%p132) target = $region16
      $region15: #{image_encoder_forward.6} parent=11 // pred_region
        _
      $region16: #{image_encoder_forward.6} parent=11 // pred_fallthru
        _
      // Predicated region
      $region17: #{image_encoder_forward.6} parent=11 // pred_check
        %p135 = pneg %p89
      $region18: #{image_encoder_forward.6} parent=11 // pred_check_branch
        %137 = sbr.rel (%p135) target = $region20
      $region19: #{image_encoder_forward.6} parent=11 // pred_region
        _
      $region20: #{image_encoder_forward.6} parent=11 // pred_fallthru
        _
    $region12: #{image_encoder_forward.6} parent=5 // pred_fallthru
      _
    %p138 = scmp.lt.s32.totalorder %s9, 4
    // Predicated region
    $region21: #{image_encoder_forward.6} parent=5 // pred_check
      %p139 = pneg %p138
    $region22: #{image_encoder_forward.6} parent=5 // pred_check_branch
      %141 = sbr.rel (%p139) target = $region24
    $region23: #{image_encoder_forward.6} parent=5 // pred_region
      // Predicated region
      $region25: #{image_encoder_forward.6} parent=23 // pred_check
        %p142 = pneg %p41
      $region26: #{image_encoder_forward.6} parent=23 // pred_check_branch
        %144 = sbr.rel (%p142) target = $region28
      $region27: #{image_encoder_forward.6} parent=23 // pred_region
        %p145 = scmp.lt.s32.totalorder %s16, 1
        %s146 = scalar_select %p145, %s16, 1
        %s147 = smul.addr %s146, 10
        %s148 = smul.addr %s147, 4
        %s149 = scalar_lea.vmem %s0, %s148
      $region28: #{image_encoder_forward.6} parent=23 // pred_fallthru
        _
    $region24: #{image_encoder_forward.6} parent=5 // pred_fallthru
      _
    %p150 = scmp.le.s32.totalorder 1, %s9
    %p151 = scmp.lt.s32.totalorder %s9, 5
    %p152 = pnand %p150, %p151
    %p153 = pneg %p152
    // Predicated region
    $region29: #{image_encoder_forward.6} parent=5 // pred_check
      _
    $region30: #{image_encoder_forward.6} parent=5 // pred_check_branch
      %155 = sbr.rel (%p152) target = $region32
    $region31: #{image_encoder_forward.6} parent=5 // pred_region
      %s156 = ssub.s32 %s9, 1
      %p157 = scmp.lt.s32.totalorder %s18, 1
      %s158 = scalar_select %p157, %s18, 1
      %s159 = smul.addr %s158, 10
      %s160 = smul.addr %s159, 4
      %s161 = scalar_lea.vmem %s0, %s160
      %p162 = pneg %p47
      %p163 = pneg %p44
      %p164 = pneg %p68
      %p165 = pneg %p65
      %p166 = pneg %p89
      %p167 = pneg %p86
      %p168 = pneg %p117
      %p169 = pneg %p114
      %s170 = smul.u32 2, %s19
      %p171 = scmp.lt.s32.totalorder %s18, 1
      %s172 = scalar_select %p171, %s18, 1
      %p173 = scmp.lt.s32.totalorder %s170, 3
      %s174 = scalar_select %p173, %s170, 3
      %s175 = smul.addr %s172, 4
      %s176 = sadd.s32 %s174, %s175
      %s177 = smul.addr %s176, 2
      %s178 = scalar_lea.vmem %s3, %s177
      %p179 = scmp.lt.s32.totalorder %s18, 1
      %s180 = scalar_select %p179, %s18, 1
      %s181 = smul.addr %s180, 10
      %s182 = smul.addr %s181, 4
      %s183 = scalar_lea.vmem %s0, %s182
      %s184 = smul.u32 2, %s19
      %p185 = scmp.lt.s32.totalorder %s18, 1
      %s186 = scalar_select %p185, %s18, 1
      %p187 = scmp.lt.s32.totalorder %s184, 3
      %s188 = scalar_select %p187, %s184, 3
      %s189 = smul.addr %s186, 4
      %s190 = sadd.s32 %s188, %s189
      %s191 = smul.addr %s190, 2
      %s192 = scalar_lea.vmem %s3, %s191
      %s193 = smul.u32 2, %s19
      %s195 = smul.u32 %s19, 2
      %v196 = vld [vmem:[%s2] sm:$0x1]
      %s197 = smul.u32 %s195, 2
      %s198 = smul.addr %s197, 4
      %s199 = scalar_lea.vmem %s183, %s198
      %v200 = vld [vmem:[%s199] sm:$0x77]
      %v201 = vld [vmem:[%s1] sm:$0xf]
      %v202 = vld [vmem:[%s1 + $0x4] sm:$0xf]
      %v203 = vld [vmem:[%s1 + $0x8] sm:$0xf]
      %v204 = vld [vmem:[%s1 + $0xc] sm:$0xf]
      %v205 = vld [vmem:[%s1 + $0x10] sm:$0xf]
      %v206 = vld [vmem:[%s1 + $0x14] sm:$0xf]
      %v207 = vld [vmem:[%s1 + $0x18] sm:$0xf]
      %v208 = vld [vmem:[%s1 + $0x1c] sm:$0xf]
      %v209 = vld [vmem:[%s1 + $0x20] sm:$0xf]
      %v210 = vld [vmem:[%s1 + $0x24] sm:$0xf]
      %v211 = vld [vmem:[%s1 + $0x28] sm:$0xf]
      %v212 = vld [vmem:[%s1 + $0x2c] sm:$0xf]
      %v213 = vld [vmem:[%s1 + $0x30] sm:$0xf]
      %v214 = vld [vmem:[%s1 + $0x34] sm:$0xf]
      %v215 = vld [vmem:[%s1 + $0x38] sm:$0xf]
      %v216 = vld [vmem:[%s1 + $0x3c] sm:$0xf]
      %v217 = vld [vmem:[%s1 + $0x40] sm:$0xf]
      %v218 = vld [vmem:[%s1 + $0x44] sm:$0xf]
      %v219 = vld [vmem:[%s1 + $0x48] sm:$0xf]
      %v220 = vld [vmem:[%s1 + $0x4c] sm:$0xf]
      %v221 = vld [vmem:[%s1 + $0x50] sm:$0xf]
      %v222 = vld [vmem:[%s1 + $0x54] sm:$0xf]
      %v223 = vld [vmem:[%s1 + $0x58] sm:$0xf]
      %v224 = vld [vmem:[%s1 + $0x5c] sm:$0xf]
      %v225 = vld [vmem:[%s1 + $0x60] sm:$0xf]
      %v226 = vld [vmem:[%s1 + $0x64] sm:$0xf]
      %v227 = vld [vmem:[%s1 + $0x68] sm:$0xf]
      %v228 = vld [vmem:[%s1 + $0x6c] sm:$0xf]
      %v229 = vld [vmem:[%s1 + $0x70] sm:$0xf]
      %v230 = vld [vmem:[%s1 + $0x74] sm:$0xf]
      %v231 = vld [vmem:[%s1 + $0x78] sm:$0xf]
      %v232 = vld [vmem:[%s1 + $0x7c] sm:$0xf]
      %s233 = scalar_lea.vmem %s1, 128
      %v234 = vld [vmem:[%s233] sm:$0xf]
      %v235 = vld [vmem:[%s233 + $0x4] sm:$0xf]
      %v236 = vld [vmem:[%s233 + $0x8] sm:$0xf]
      %v237 = vld [vmem:[%s233 + $0xc] sm:$0xf]
      %v238 = vld [vmem:[%s233 + $0x10] sm:$0xf]
      %v239 = vld [vmem:[%s233 + $0x14] sm:$0xf]
      %v240 = vld [vmem:[%s233 + $0x18] sm:$0xf]
      %v241 = vld [vmem:[%s233 + $0x1c] sm:$0xf]
      %v242 = vld [vmem:[%s233 + $0x20] sm:$0xf]
      %v243 = vld [vmem:[%s233 + $0x24] sm:$0xf]
      %v244 = vld [vmem:[%s233 + $0x28] sm:$0xf]
      %v245 = vld [vmem:[%s233 + $0x2c] sm:$0xf]
      %v246 = vld [vmem:[%s233 + $0x30] sm:$0xf]
      %v247 = vld [vmem:[%s233 + $0x34] sm:$0xf]
      %v248 = vld [vmem:[%s233 + $0x38] sm:$0xf]
      %v249 = vld [vmem:[%s233 + $0x3c] sm:$0xf]
      %v250 = vld [vmem:[%s233 + $0x40] sm:$0xf]
      %v251 = vld [vmem:[%s233 + $0x44] sm:$0xf]
      %v252 = vld [vmem:[%s233 + $0x48] sm:$0xf]
      %v253 = vld [vmem:[%s233 + $0x4c] sm:$0xf]
      %v254 = vld [vmem:[%s233 + $0x50] sm:$0xf]
      %v255 = vld [vmem:[%s233 + $0x54] sm:$0xf]
      %v256 = vld [vmem:[%s233 + $0x58] sm:$0xf]
      %v257 = vld [vmem:[%s233 + $0x5c] sm:$0xf]
      %v258 = vld [vmem:[%s233 + $0x60] sm:$0xf]
      %v259 = vld [vmem:[%s233 + $0x64] sm:$0xf]
      %v260 = vld [vmem:[%s233 + $0x68] sm:$0xf]
      %v261 = vld [vmem:[%s233 + $0x6c] sm:$0xf]
      %v262 = vld [vmem:[%s233 + $0x70] sm:$0xf]
      %v263 = vld [vmem:[%s233 + $0x74] sm:$0xf]
      %v264 = vld [vmem:[%s233 + $0x78] sm:$0xf]
      %v265 = vld [vmem:[%s233 + $0x7c] sm:$0xf]
      %v267 = vunpack.c.l.b16 %v200
      %v268 = vunpack.c.h.b16 %v200
      %v269 = vpack.c.b16 %v267, %v267
      %v270 = vpack.c.b16 %v268, %v268
      %v272 = vshrl.u32 %v269, 16
      %v274 = vshll.u32 %v269, 16
      %v276 = vrot.slane %v274, 1
      %v277 = vor.u32 %v272, %v276
      %v279 = vshrl.u32 %v270, 16
      %v281 = vshll.u32 %v270, 16
      %v283 = vrot.slane %v281, 1
      %v284 = vor.u32 %v279, %v283
      %v319 = vunpack.c.l.b16 %v234
      %v320 = vunpack.c.l.b16 %v235
      %v321 = vunpack.c.l.b16 %v236
      %v322 = vunpack.c.l.b16 %v237
      %v323 = vunpack.c.l.b16 %v238
      %v324 = vunpack.c.l.b16 %v239
      %v325 = vunpack.c.l.b16 %v240
      %v326 = vunpack.c.l.b16 %v241
      %v327 = vunpack.c.l.b16 %v242
      %v328 = vunpack.c.l.b16 %v243
      %v329 = vunpack.c.l.b16 %v244
      %v330 = vunpack.c.l.b16 %v245
      %v331 = vunpack.c.l.b16 %v246
      %v332 = vunpack.c.l.b16 %v247
      %v333 = vunpack.c.l.b16 %v248
      %v334 = vunpack.c.l.b16 %v249
      %v335 = vunpack.c.l.b16 %v250
      %v336 = vunpack.c.l.b16 %v251
      %v337 = vunpack.c.l.b16 %v252
      %v338 = vunpack.c.l.b16 %v253
      %v339 = vunpack.c.l.b16 %v254
      %v340 = vunpack.c.l.b16 %v255
      %v341 = vunpack.c.l.b16 %v256
      %v342 = vunpack.c.l.b16 %v257
      %v343 = vunpack.c.l.b16 %v258
      %v344 = vunpack.c.l.b16 %v259
      %v345 = vunpack.c.l.b16 %v260
      %v346 = vunpack.c.l.b16 %v261
      %v347 = vunpack.c.l.b16 %v262
      %v348 = vunpack.c.l.b16 %v263
      %v349 = vunpack.c.l.b16 %v264
      %v350 = vunpack.c.l.b16 %v265
      %v351 = vpack.c.b16 %v320, %v319
      %v352 = vpack.c.b16 %v322, %v321
      %v353 = vpack.c.b16 %v324, %v323
      %v354 = vpack.c.b16 %v326, %v325
      %v355 = vpack.c.b16 %v328, %v327
      %v356 = vpack.c.b16 %v330, %v329
      %v357 = vpack.c.b16 %v332, %v331
      %v358 = vpack.c.b16 %v334, %v333
      %v359 = vpack.c.b16 %v336, %v335
      %v360 = vpack.c.b16 %v338, %v337
      %v361 = vpack.c.b16 %v340, %v339
      %v362 = vpack.c.b16 %v342, %v341
      %v363 = vpack.c.b16 %v344, %v343
      %v364 = vpack.c.b16 %v346, %v345
      %v365 = vpack.c.b16 %v348, %v347
      %v366 = vpack.c.b16 %v350, %v349
      %383 = vmatprep.subr.bf16.mxu0 0
      %384 = vmatpush1.bf16.msra.mxu0 %v358
      %385 = vmatprep.subr.bf16.mxu0 0
      %386 = vmatpush1.bf16.msra.mxu0 %v357
      %387 = vmatprep.subr.bf16.mxu0 0
      %388 = vmatpush1.bf16.msra.mxu0 %v356
      %389 = vmatprep.subr.bf16.mxu0 0
      %390 = vmatpush1.bf16.msra.mxu0 %v355
      %391 = vmatprep.subr.bf16.mxu0 0
      %392 = vmatpush1.bf16.msra.mxu0 %v354
      %393 = vmatprep.subr.bf16.mxu0 0
      %394 = vmatpush1.bf16.msra.mxu0 %v353
      %395 = vmatprep.subr.bf16.mxu0 0
      %396 = vmatpush1.bf16.msra.mxu0 %v352
      %397 = vmatprep.subr.bf16.mxu0 0
      %398 = vmatpush1.bf16.msra.mxu0 %v351
      %399 = vmatprep.subr.bf16.mxu0 0
      %400 = vmatpush2.bf16.msra.mxu0 %v366
      %401 = vmatprep.subr.bf16.mxu0 0
      %402 = vmatpush2.bf16.msra.mxu0 %v365
      %403 = vmatprep.subr.bf16.mxu0 0
      %404 = vmatpush2.bf16.msra.mxu0 %v364
      %405 = vmatprep.subr.bf16.mxu0 0
      %406 = vmatpush2.bf16.msra.mxu0 %v363
      %407 = vmatprep.subr.bf16.mxu0 0
      %408 = vmatpush2.bf16.msra.mxu0 %v362
      %409 = vmatprep.subr.bf16.mxu0 0
      %410 = vmatpush2.bf16.msra.mxu0 %v361
      %411 = vmatprep.subr.bf16.mxu0 0
      %412 = vmatpush2.bf16.msra.mxu0 %v360
      %413 = vmatprep.subr.bf16.mxu0 0
      %414 = vmatpush2.bf16.msra.mxu0 %v359
      %415 = vmatprep.mubr.bf16.mxu0 %v284
      %416 = vmatmul.mubr.bf16.gmra.mxu0 %v277
      %v417 = vpop.f32.mrf.mxu0
      %v418 = vadd.f32 0.0, %v417
      %v419 = vpop.f32.mrf.mxu0
      %v420 = vpop.f32.mrf.mxu0
      %v421 = vpop.f32.mrf.mxu0
      %422 = vdwg.mxu0
      %v457 = vunpack.c.l.b16 %v201
      %v458 = vunpack.c.l.b16 %v202
      %v459 = vunpack.c.l.b16 %v203
      %v460 = vunpack.c.l.b16 %v204
      %v461 = vunpack.c.l.b16 %v205
      %v462 = vunpack.c.l.b16 %v206
      %v463 = vunpack.c.l.b16 %v207
      %v464 = vunpack.c.l.b16 %v208
      %v465 = vunpack.c.l.b16 %v209
      %v466 = vunpack.c.l.b16 %v210
      %v467 = vunpack.c.l.b16 %v211
      %v468 = vunpack.c.l.b16 %v212
      %v469 = vunpack.c.l.b16 %v213
      %v470 = vunpack.c.l.b16 %v214
      %v471 = vunpack.c.l.b16 %v215
      %v472 = vunpack.c.l.b16 %v216
      %v473 = vunpack.c.l.b16 %v217
      %v474 = vunpack.c.l.b16 %v218
      %v475 = vunpack.c.l.b16 %v219
      %v476 = vunpack.c.l.b16 %v220
      %v477 = vunpack.c.l.b16 %v221
      %v478 = vunpack.c.l.b16 %v222
      %v479 = vunpack.c.l.b16 %v223
      %v480 = vunpack.c.l.b16 %v224
      %v481 = vunpack.c.l.b16 %v225
      %v482 = vunpack.c.l.b16 %v226
      %v483 = vunpack.c.l.b16 %v227
      %v484 = vunpack.c.l.b16 %v228
      %v485 = vunpack.c.l.b16 %v229
      %v486 = vunpack.c.l.b16 %v230
      %v487 = vunpack.c.l.b16 %v231
      %v488 = vunpack.c.l.b16 %v232
      %v489 = vpack.c.b16 %v458, %v457
      %v490 = vpack.c.b16 %v460, %v459
      %v491 = vpack.c.b16 %v462, %v461
      %v492 = vpack.c.b16 %v464, %v463
      %v493 = vpack.c.b16 %v466, %v465
      %v494 = vpack.c.b16 %v468, %v467
      %v495 = vpack.c.b16 %v470, %v469
      %v496 = vpack.c.b16 %v472, %v471
      %v497 = vpack.c.b16 %v474, %v473
      %v498 = vpack.c.b16 %v476, %v475
      %v499 = vpack.c.b16 %v478, %v477
      %v500 = vpack.c.b16 %v480, %v479
      %v501 = vpack.c.b16 %v482, %v481
      %v502 = vpack.c.b16 %v484, %v483
      %v503 = vpack.c.b16 %v486, %v485
      %v504 = vpack.c.b16 %v488, %v487
      %521 = vmatprep.subr.bf16.mxu0 0
      %522 = vmatpush1.bf16.msra.mxu0 %v496
      %523 = vmatprep.subr.bf16.mxu0 0
      %524 = vmatpush1.bf16.msra.mxu0 %v495
      %525 = vmatprep.subr.bf16.mxu0 0
      %526 = vmatpush1.bf16.msra.mxu0 %v494
      %527 = vmatprep.subr.bf16.mxu0 0
      %528 = vmatpush1.bf16.msra.mxu0 %v493
      %529 = vmatprep.subr.bf16.mxu0 0
      %530 = vmatpush1.bf16.msra.mxu0 %v492
      %531 = vmatprep.subr.bf16.mxu0 0
      %532 = vmatpush1.bf16.msra.mxu0 %v491
      %533 = vmatprep.subr.bf16.mxu0 0
      %534 = vmatpush1.bf16.msra.mxu0 %v490
      %535 = vmatprep.subr.bf16.mxu0 0
      %536 = vmatpush1.bf16.msra.mxu0 %v489
      %537 = vmatprep.subr.bf16.mxu0 0
      %538 = vmatpush2.bf16.msra.mxu0 %v504
      %539 = vmatprep.subr.bf16.mxu0 0
      %540 = vmatpush2.bf16.msra.mxu0 %v503
      %541 = vmatprep.subr.bf16.mxu0 0
      %542 = vmatpush2.bf16.msra.mxu0 %v502
      %543 = vmatprep.subr.bf16.mxu0 0
      %544 = vmatpush2.bf16.msra.mxu0 %v501
      %545 = vmatprep.subr.bf16.mxu0 0
      %546 = vmatpush2.bf16.msra.mxu0 %v500
      %547 = vmatprep.subr.bf16.mxu0 0
      %548 = vmatpush2.bf16.msra.mxu0 %v499
      %549 = vmatprep.subr.bf16.mxu0 0
      %550 = vmatpush2.bf16.msra.mxu0 %v498
      %551 = vmatprep.subr.bf16.mxu0 0
      %552 = vmatpush2.bf16.msra.mxu0 %v497
      %553 = vmatprep.mubr.bf16.mxu0 %v270
      %554 = vmatmul.mubr.bf16.gmra.mxu0 %v269
      %v555 = vpop.f32.mrf.mxu0
      %v556 = vadd.f32 %v418, %v555
      %v557 = vpop.f32.mrf.mxu0
      %v558 = vpop.f32.mrf.mxu0
      %v559 = vpop.f32.mrf.mxu0
      %560 = vdwg.mxu0
      %s561 = sadd.s32 %s195, 1
      %s562 = smul.u32 %s561, 2
      %s563 = smul.addr %s562, 4
      %s564 = scalar_lea.vmem %s183, %s563
      %v565 = vld [vmem:[%s564] sm:$0x77]
      %s566 = scalar_lea.vmem %s1, 256
      %v567 = vld [vmem:[%s566] sm:$0xf]
      %v568 = vld [vmem:[%s566 + $0x4] sm:$0xf]
      %v569 = vld [vmem:[%s566 + $0x8] sm:$0xf]
      %v570 = vld [vmem:[%s566 + $0xc] sm:$0xf]
      %v571 = vld [vmem:[%s566 + $0x10] sm:$0xf]
      %v572 = vld [vmem:[%s566 + $0x14] sm:$0xf]
      %v573 = vld [vmem:[%s566 + $0x18] sm:$0xf]
      %v574 = vld [vmem:[%s566 + $0x1c] sm:$0xf]
      %v575 = vld [vmem:[%s566 + $0x20] sm:$0xf]
      %v576 = vld [vmem:[%s566 + $0x24] sm:$0xf]
      %v577 = vld [vmem:[%s566 + $0x28] sm:$0xf]
      %v578 = vld [vmem:[%s566 + $0x2c] sm:$0xf]
      %v579 = vld [vmem:[%s566 + $0x30] sm:$0xf]
      %v580 = vld [vmem:[%s566 + $0x34] sm:$0xf]
      %v581 = vld [vmem:[%s566 + $0x38] sm:$0xf]
      %v582 = vld [vmem:[%s566 + $0x3c] sm:$0xf]
      %v583 = vld [vmem:[%s566 + $0x40] sm:$0xf]
      %v584 = vld [vmem:[%s566 + $0x44] sm:$0xf]
      %v585 = vld [vmem:[%s566 + $0x48] sm:$0xf]
      %v586 = vld [vmem:[%s566 + $0x4c] sm:$0xf]
      %v587 = vld [vmem:[%s566 + $0x50] sm:$0xf]
      %v588 = vld [vmem:[%s566 + $0x54] sm:$0xf]
      %v589 = vld [vmem:[%s566 + $0x58] sm:$0xf]
      %v590 = vld [vmem:[%s566 + $0x5c] sm:$0xf]
      %v591 = vld [vmem:[%s566 + $0x60] sm:$0xf]
      %v592 = vld [vmem:[%s566 + $0x64] sm:$0xf]
      %v593 = vld [vmem:[%s566 + $0x68] sm:$0xf]
      %v594 = vld [vmem:[%s566 + $0x6c] sm:$0xf]
      %v595 = vld [vmem:[%s566 + $0x70] sm:$0xf]
      %v596 = vld [vmem:[%s566 + $0x74] sm:$0xf]
      %v597 = vld [vmem:[%s566 + $0x78] sm:$0xf]
      %v598 = vld [vmem:[%s566 + $0x7c] sm:$0xf]
      %v600 = vunpack.c.l.b16 %v565
      %v601 = vunpack.c.h.b16 %v565
      %v602 = vpack.c.b16 %v600, %v600
      %v603 = vpack.c.b16 %v601, %v601
      %v638 = vunpack.c.l.b16 %v567
      %v639 = vunpack.c.l.b16 %v568
      %v640 = vunpack.c.l.b16 %v569
      %v641 = vunpack.c.l.b16 %v570
      %v642 = vunpack.c.l.b16 %v571
      %v643 = vunpack.c.l.b16 %v572
      %v644 = vunpack.c.l.b16 %v573
      %v645 = vunpack.c.l.b16 %v574
      %v646 = vunpack.c.l.b16 %v575
      %v647 = vunpack.c.l.b16 %v576
      %v648 = vunpack.c.l.b16 %v577
      %v649 = vunpack.c.l.b16 %v578
      %v650 = vunpack.c.l.b16 %v579
      %v651 = vunpack.c.l.b16 %v580
      %v652 = vunpack.c.l.b16 %v581
      %v653 = vunpack.c.l.b16 %v582
      %v654 = vunpack.c.l.b16 %v583
      %v655 = vunpack.c.l.b16 %v584
      %v656 = vunpack.c.l.b16 %v585
      %v657 = vunpack.c.l.b16 %v586
      %v658 = vunpack.c.l.b16 %v587
      %v659 = vunpack.c.l.b16 %v588
      %v660 = vunpack.c.l.b16 %v589
      %v661 = vunpack.c.l.b16 %v590
      %v662 = vunpack.c.l.b16 %v591
      %v663 = vunpack.c.l.b16 %v592
      %v664 = vunpack.c.l.b16 %v593
      %v665 = vunpack.c.l.b16 %v594
      %v666 = vunpack.c.l.b16 %v595
      %v667 = vunpack.c.l.b16 %v596
      %v668 = vunpack.c.l.b16 %v597
      %v669 = vunpack.c.l.b16 %v598
      %v670 = vpack.c.b16 %v639, %v638
      %v671 = vpack.c.b16 %v641, %v640
      %v672 = vpack.c.b16 %v643, %v642
      %v673 = vpack.c.b16 %v645, %v644
      %v674 = vpack.c.b16 %v647, %v646
      %v675 = vpack.c.b16 %v649, %v648
      %v676 = vpack.c.b16 %v651, %v650
      %v677 = vpack.c.b16 %v653, %v652
      %v678 = vpack.c.b16 %v655, %v654
      %v679 = vpack.c.b16 %v657, %v656
      %v680 = vpack.c.b16 %v659, %v658
      %v681 = vpack.c.b16 %v661, %v660
      %v682 = vpack.c.b16 %v663, %v662
      %v683 = vpack.c.b16 %v665, %v664
      %v684 = vpack.c.b16 %v667, %v666
      %v685 = vpack.c.b16 %v669, %v668
      %702 = vmatprep.subr.bf16.mxu0 0
      %703 = vmatpush1.bf16.msra.mxu0 %v677
      %704 = vmatprep.subr.bf16.mxu0 0
      %705 = vmatpush1.bf16.msra.mxu0 %v676
      %706 = vmatprep.subr.bf16.mxu0 0
      %707 = vmatpush1.bf16.msra.mxu0 %v675
      %708 = vmatprep.subr.bf16.mxu0 0
      %709 = vmatpush1.bf16.msra.mxu0 %v674
      %710 = vmatprep.subr.bf16.mxu0 0
      %711 = vmatpush1.bf16.msra.mxu0 %v673
      %712 = vmatprep.subr.bf16.mxu0 0
      %713 = vmatpush1.bf16.msra.mxu0 %v672
      %714 = vmatprep.subr.bf16.mxu0 0
      %715 = vmatpush1.bf16.msra.mxu0 %v671
      %716 = vmatprep.subr.bf16.mxu0 0
      %717 = vmatpush1.bf16.msra.mxu0 %v670
      %718 = vmatprep.subr.bf16.mxu0 0
      %719 = vmatpush2.bf16.msra.mxu0 %v685
      %720 = vmatprep.subr.bf16.mxu0 0
      %721 = vmatpush2.bf16.msra.mxu0 %v684
      %722 = vmatprep.subr.bf16.mxu0 0
      %723 = vmatpush2.bf16.msra.mxu0 %v683
      %724 = vmatprep.subr.bf16.mxu0 0
      %725 = vmatpush2.bf16.msra.mxu0 %v682
      %726 = vmatprep.subr.bf16.mxu0 0
      %727 = vmatpush2.bf16.msra.mxu0 %v681
      %728 = vmatprep.subr.bf16.mxu0 0
      %729 = vmatpush2.bf16.msra.mxu0 %v680
      %730 = vmatprep.subr.bf16.mxu0 0
      %731 = vmatpush2.bf16.msra.mxu0 %v679
      %732 = vmatprep.subr.bf16.mxu0 0
      %733 = vmatpush2.bf16.msra.mxu0 %v678
      %734 = vmatprep.mubr.bf16.mxu0 %v603
      %735 = vmatmul.mubr.bf16.gmra.mxu0 %v602
      %v736 = vpop.f32.mrf.mxu0
      %v737 = vadd.f32 0.0, %v736
      %v738 = vpop.f32.mrf.mxu0
      %v739 = vpop.f32.mrf.mxu0
      %v740 = vpop.f32.mrf.mxu0
      %741 = vdwg.mxu0
      %v742 = vadd.f32 %v556, %v737
      %s743 = scalar_lea.vmem %s1, 384
      %v744 = vld [vmem:[%s743] sm:$0xf]
      %v745 = vld [vmem:[%s743 + $0x4] sm:$0xf]
      %v746 = vld [vmem:[%s743 + $0x8] sm:$0xf]
      %v747 = vld [vmem:[%s743 + $0xc] sm:$0xf]
      %v748 = vld [vmem:[%s743 + $0x10] sm:$0xf]
      %v749 = vld [vmem:[%s743 + $0x14] sm:$0xf]
      %v750 = vld [vmem:[%s743 + $0x18] sm:$0xf]
      %v751 = vld [vmem:[%s743 + $0x1c] sm:$0xf]
      %v752 = vld [vmem:[%s743 + $0x20] sm:$0xf]
      %v753 = vld [vmem:[%s743 + $0x24] sm:$0xf]
      %v754 = vld [vmem:[%s743 + $0x28] sm:$0xf]
      %v755 = vld [vmem:[%s743 + $0x2c] sm:$0xf]
      %v756 = vld [vmem:[%s743 + $0x30] sm:$0xf]
      %v757 = vld [vmem:[%s743 + $0x34] sm:$0xf]
      %v758 = vld [vmem:[%s743 + $0x38] sm:$0xf]
      %v759 = vld [vmem:[%s743 + $0x3c] sm:$0xf]
      %v760 = vld [vmem:[%s743 + $0x40] sm:$0xf]
      %v761 = vld [vmem:[%s743 + $0x44] sm:$0xf]
      %v762 = vld [vmem:[%s743 + $0x48] sm:$0xf]
      %v763 = vld [vmem:[%s743 + $0x4c] sm:$0xf]
      %v764 = vld [vmem:[%s743 + $0x50] sm:$0xf]
      %v765 = vld [vmem:[%s743 + $0x54] sm:$0xf]
      %v766 = vld [vmem:[%s743 + $0x58] sm:$0xf]
      %v767 = vld [vmem:[%s743 + $0x5c] sm:$0xf]
      %v768 = vld [vmem:[%s743 + $0x60] sm:$0xf]
      %v769 = vld [vmem:[%s743 + $0x64] sm:$0xf]
      %v770 = vld [vmem:[%s743 + $0x68] sm:$0xf]
      %v771 = vld [vmem:[%s743 + $0x6c] sm:$0xf]
      %v772 = vld [vmem:[%s743 + $0x70] sm:$0xf]
      %v773 = vld [vmem:[%s743 + $0x74] sm:$0xf]
      %v774 = vld [vmem:[%s743 + $0x78] sm:$0xf]
      %v775 = vld [vmem:[%s743 + $0x7c] sm:$0xf]
      %v777 = vshrl.u32 %v602, 16
      %v779 = vshll.u32 %v602, 16
      %v781 = vrot.slane %v779, 1
      %v782 = vor.u32 %v777, %v781
      %v784 = vshrl.u32 %v603, 16
      %v786 = vshll.u32 %v603, 16
      %v788 = vrot.slane %v786, 1
      %v789 = vor.u32 %v784, %v788
      %v824 = vunpack.c.l.b16 %v744
      %v825 = vunpack.c.l.b16 %v745
      %v826 = vunpack.c.l.b16 %v746
      %v827 = vunpack.c.l.b16 %v747
      %v828 = vunpack.c.l.b16 %v748
      %v829 = vunpack.c.l.b16 %v749
      %v830 = vunpack.c.l.b16 %v750
      %v831 = vunpack.c.l.b16 %v751
      %v832 = vunpack.c.l.b16 %v752
      %v833 = vunpack.c.l.b16 %v753
      %v834 = vunpack.c.l.b16 %v754
      %v835 = vunpack.c.l.b16 %v755
      %v836 = vunpack.c.l.b16 %v756
      %v837 = vunpack.c.l.b16 %v757
      %v838 = vunpack.c.l.b16 %v758
      %v839 = vunpack.c.l.b16 %v759
      %v840 = vunpack.c.l.b16 %v760
      %v841 = vunpack.c.l.b16 %v761
      %v842 = vunpack.c.l.b16 %v762
      %v843 = vunpack.c.l.b16 %v763
      %v844 = vunpack.c.l.b16 %v764
      %v845 = vunpack.c.l.b16 %v765
      %v846 = vunpack.c.l.b16 %v766
      %v847 = vunpack.c.l.b16 %v767
      %v848 = vunpack.c.l.b16 %v768
      %v849 = vunpack.c.l.b16 %v769
      %v850 = vunpack.c.l.b16 %v770
      %v851 = vunpack.c.l.b16 %v771
      %v852 = vunpack.c.l.b16 %v772
      %v853 = vunpack.c.l.b16 %v773
      %v854 = vunpack.c.l.b16 %v774
      %v855 = vunpack.c.l.b16 %v775
      %v856 = vpack.c.b16 %v825, %v824
      %v857 = vpack.c.b16 %v827, %v826
      %v858 = vpack.c.b16 %v829, %v828
      %v859 = vpack.c.b16 %v831, %v830
      %v860 = vpack.c.b16 %v833, %v832
      %v861 = vpack.c.b16 %v835, %v834
      %v862 = vpack.c.b16 %v837, %v836
      %v863 = vpack.c.b16 %v839, %v838
      %v864 = vpack.c.b16 %v841, %v840
      %v865 = vpack.c.b16 %v843, %v842
      %v866 = vpack.c.b16 %v845, %v844
      %v867 = vpack.c.b16 %v847, %v846
      %v868 = vpack.c.b16 %v849, %v848
      %v869 = vpack.c.b16 %v851, %v850
      %v870 = vpack.c.b16 %v853, %v852
      %v871 = vpack.c.b16 %v855, %v854
      %888 = vmatprep.subr.bf16.mxu0 0
      %889 = vmatpush1.bf16.msra.mxu0 %v863
      %890 = vmatprep.subr.bf16.mxu0 0
      %891 = vmatpush1.bf16.msra.mxu0 %v862
      %892 = vmatprep.subr.bf16.mxu0 0
      %893 = vmatpush1.bf16.msra.mxu0 %v861
      %894 = vmatprep.subr.bf16.mxu0 0
      %895 = vmatpush1.bf16.msra.mxu0 %v860
      %896 = vmatprep.subr.bf16.mxu0 0
      %897 = vmatpush1.bf16.msra.mxu0 %v859
      %898 = vmatprep.subr.bf16.mxu0 0
      %899 = vmatpush1.bf16.msra.mxu0 %v858
      %900 = vmatprep.subr.bf16.mxu0 0
      %901 = vmatpush1.bf16.msra.mxu0 %v857
      %902 = vmatprep.subr.bf16.mxu0 0
      %903 = vmatpush1.bf16.msra.mxu0 %v856
      %904 = vmatprep.subr.bf16.mxu0 0
      %905 = vmatpush2.bf16.msra.mxu0 %v871
      %906 = vmatprep.subr.bf16.mxu0 0
      %907 = vmatpush2.bf16.msra.mxu0 %v870
      %908 = vmatprep.subr.bf16.mxu0 0
      %909 = vmatpush2.bf16.msra.mxu0 %v869
      %910 = vmatprep.subr.bf16.mxu0 0
      %911 = vmatpush2.bf16.msra.mxu0 %v868
      %912 = vmatprep.subr.bf16.mxu0 0
      %913 = vmatpush2.bf16.msra.mxu0 %v867
      %914 = vmatprep.subr.bf16.mxu0 0
      %915 = vmatpush2.bf16.msra.mxu0 %v866
      %916 = vmatprep.subr.bf16.mxu0 0
      %917 = vmatpush2.bf16.msra.mxu0 %v865
      %918 = vmatprep.subr.bf16.mxu0 0
      %919 = vmatpush2.bf16.msra.mxu0 %v864
      %920 = vmatprep.mubr.bf16.mxu0 %v789
      %921 = vmatmul.mubr.bf16.gmra.mxu0 %v782
      %v922 = vpop.f32.mrf.mxu0
      %v923 = vadd.f32 0.0, %v922
      %v924 = vpop.f32.mrf.mxu0
      %v925 = vpop.f32.mrf.mxu0
      %v926 = vpop.f32.mrf.mxu0
      %927 = vdwg.mxu0
      %v928 = vadd.f32 %v742, %v923
      %v930 = vlaneseq
      %v931 = vshrl.u32 %v930, 7
      %v932 = vsub.s32 0, %v931
      %v933 = vrot.slane %v196, %v932
      %v935 = vadd.f32 %v928, %v933
      %v936 = vxor.u32 %v935, 2147483648
      %v937 = vmul.f32 %v936, 1.442695
      %v938 = vpow.pop %v937
      %v939 = vadd.f32 %v938, 1.0
      %v940 = vrcp.pop %v939
      %v941 = vmul.f32 1.0, %v940
      %v942 = vmul.f32 %v935, %v941
      %v943 = vpack.c.bf16 %v942, %v942
      %944 = vst [vmem:[%s192] sm:$0x3] %v943
      %v945 = vld [vmem:[%s564] sm:$0x77]
      %v946 = vld [vmem:[%s1] sm:$0xf]
      %v947 = vld [vmem:[%s1 + $0x4] sm:$0xf]
      %v948 = vld [vmem:[%s1 + $0x8] sm:$0xf]
      %v949 = vld [vmem:[%s1 + $0xc] sm:$0xf]
      %v950 = vld [vmem:[%s1 + $0x10] sm:$0xf]
      %v951 = vld [vmem:[%s1 + $0x14] sm:$0xf]
      %v952 = vld [vmem:[%s1 + $0x18] sm:$0xf]
      %v953 = vld [vmem:[%s1 + $0x1c] sm:$0xf]
      %v954 = vld [vmem:[%s1 + $0x20] sm:$0xf]
      %v955 = vld [vmem:[%s1 + $0x24] sm:$0xf]
      %v956 = vld [vmem:[%s1 + $0x28] sm:$0xf]
      %v957 = vld [vmem:[%s1 + $0x2c] sm:$0xf]
      %v958 = vld [vmem:[%s1 + $0x30] sm:$0xf]
      %v959 = vld [vmem:[%s1 + $0x34] sm:$0xf]
      %v960 = vld [vmem:[%s1 + $0x38] sm:$0xf]
      %v961 = vld [vmem:[%s1 + $0x3c] sm:$0xf]
      %v962 = vld [vmem:[%s1 + $0x40] sm:$0xf]
      %v963 = vld [vmem:[%s1 + $0x44] sm:$0xf]
      %v964 = vld [vmem:[%s1 + $0x48] sm:$0xf]
      %v965 = vld [vmem:[%s1 + $0x4c] sm:$0xf]
      %v966 = vld [vmem:[%s1 + $0x50] sm:$0xf]
      %v967 = vld [vmem:[%s1 + $0x54] sm:$0xf]
      %v968 = vld [vmem:[%s1 + $0x58] sm:$0xf]
      %v969 = vld [vmem:[%s1 + $0x5c] sm:$0xf]
      %v970 = vld [vmem:[%s1 + $0x60] sm:$0xf]
      %v971 = vld [vmem:[%s1 + $0x64] sm:$0xf]
      %v972 = vld [vmem:[%s1 + $0x68] sm:$0xf]
      %v973 = vld [vmem:[%s1 + $0x6c] sm:$0xf]
      %v974 = vld [vmem:[%s1 + $0x70] sm:$0xf]
      %v975 = vld [vmem:[%s1 + $0x74] sm:$0xf]
      %v976 = vld [vmem:[%s1 + $0x78] sm:$0xf]
      %v977 = vld [vmem:[%s1 + $0x7c] sm:$0xf]
      %v978 = vld [vmem:[%s233] sm:$0xf]
      %v979 = vld [vmem:[%s233 + $0x4] sm:$0xf]
      %v980 = vld [vmem:[%s233 + $0x8] sm:$0xf]
      %v981 = vld [vmem:[%s233 + $0xc] sm:$0xf]
      %v982 = vld [vmem:[%s233 + $0x10] sm:$0xf]
      %v983 = vld [vmem:[%s233 + $0x14] sm:$0xf]
      %v984 = vld [vmem:[%s233 + $0x18] sm:$0xf]
      %v985 = vld [vmem:[%s233 + $0x1c] sm:$0xf]
      %v986 = vld [vmem:[%s233 + $0x20] sm:$0xf]
      %v987 = vld [vmem:[%s233 + $0x24] sm:$0xf]
      %v988 = vld [vmem:[%s233 + $0x28] sm:$0xf]
      %v989 = vld [vmem:[%s233 + $0x2c] sm:$0xf]
      %v990 = vld [vmem:[%s233 + $0x30] sm:$0xf]
      %v991 = vld [vmem:[%s233 + $0x34] sm:$0xf]
      %v992 = vld [vmem:[%s233 + $0x38] sm:$0xf]
      %v993 = vld [vmem:[%s233 + $0x3c] sm:$0xf]
      %v994 = vld [vmem:[%s233 + $0x40] sm:$0xf]
      %v995 = vld [vmem:[%s233 + $0x44] sm:$0xf]
      %v996 = vld [vmem:[%s233 + $0x48] sm:$0xf]
      %v997 = vld [vmem:[%s233 + $0x4c] sm:$0xf]
      %v998 = vld [vmem:[%s233 + $0x50] sm:$0xf]
      %v999 = vld [vmem:[%s233 + $0x54] sm:$0xf]
      %v1000 = vld [vmem:[%s233 + $0x58] sm:$0xf]
      %v1001 = vld [vmem:[%s233 + $0x5c] sm:$0xf]
      %v1002 = vld [vmem:[%s233 + $0x60] sm:$0xf]
      %v1003 = vld [vmem:[%s233 + $0x64] sm:$0xf]
      %v1004 = vld [vmem:[%s233 + $0x68] sm:$0xf]
      %v1005 = vld [vmem:[%s233 + $0x6c] sm:$0xf]
      %v1006 = vld [vmem:[%s233 + $0x70] sm:$0xf]
      %v1007 = vld [vmem:[%s233 + $0x74] sm:$0xf]
      %v1008 = vld [vmem:[%s233 + $0x78] sm:$0xf]
      %v1009 = vld [vmem:[%s233 + $0x7c] sm:$0xf]
      %v1011 = vunpack.c.l.b16 %v945
      %v1012 = vunpack.c.h.b16 %v945
      %v1013 = vpack.c.b16 %v1011, %v1011
      %v1014 = vpack.c.b16 %v1012, %v1012
      %v1016 = vshrl.u32 %v1013, 16
      %v1018 = vshll.u32 %v1013, 16
      %v1020 = vrot.slane %v1018, 1
      %v1021 = vor.u32 %v1016, %v1020
      %v1023 = vshrl.u32 %v1014, 16
      %v1025 = vshll.u32 %v1014, 16
      %v1027 = vrot.slane %v1025, 1
      %v1028 = vor.u32 %v1023, %v1027
      %v1063 = vunpack.c.l.b16 %v978
      %v1064 = vunpack.c.l.b16 %v979
      %v1065 = vunpack.c.l.b16 %v980
      %v1066 = vunpack.c.l.b16 %v981
      %v1067 = vunpack.c.l.b16 %v982
      %v1068 = vunpack.c.l.b16 %v983
      %v1069 = vunpack.c.l.b16 %v984
      %v1070 = vunpack.c.l.b16 %v985
      %v1071 = vunpack.c.l.b16 %v986
      %v1072 = vunpack.c.l.b16 %v987
      %v1073 = vunpack.c.l.b16 %v988
      %v1074 = vunpack.c.l.b16 %v989
      %v1075 = vunpack.c.l.b16 %v990
      %v1076 = vunpack.c.l.b16 %v991
      %v1077 = vunpack.c.l.b16 %v992
      %v1078 = vunpack.c.l.b16 %v993
      %v1079 = vunpack.c.l.b16 %v994
      %v1080 = vunpack.c.l.b16 %v995
      %v1081 = vunpack.c.l.b16 %v996
      %v1082 = vunpack.c.l.b16 %v997
      %v1083 = vunpack.c.l.b16 %v998
      %v1084 = vunpack.c.l.b16 %v999
      %v1085 = vunpack.c.l.b16 %v1000
      %v1086 = vunpack.c.l.b16 %v1001
      %v1087 = vunpack.c.l.b16 %v1002
      %v1088 = vunpack.c.l.b16 %v1003
      %v1089 = vunpack.c.l.b16 %v1004
      %v1090 = vunpack.c.l.b16 %v1005
      %v1091 = vunpack.c.l.b16 %v1006
      %v1092 = vunpack.c.l.b16 %v1007
      %v1093 = vunpack.c.l.b16 %v1008
      %v1094 = vunpack.c.l.b16 %v1009
      %v1095 = vpack.c.b16 %v1064, %v1063
      %v1096 = vpack.c.b16 %v1066, %v1065
      %v1097 = vpack.c.b16 %v1068, %v1067
      %v1098 = vpack.c.b16 %v1070, %v1069
      %v1099 = vpack.c.b16 %v1072, %v1071
      %v1100 = vpack.c.b16 %v1074, %v1073
      %v1101 = vpack.c.b16 %v1076, %v1075
      %v1102 = vpack.c.b16 %v1078, %v1077
      %v1103 = vpack.c.b16 %v1080, %v1079
      %v1104 = vpack.c.b16 %v1082, %v1081
      %v1105 = vpack.c.b16 %v1084, %v1083
      %v1106 = vpack.c.b16 %v1086, %v1085
      %v1107 = vpack.c.b16 %v1088, %v1087
      %v1108 = vpack.c.b16 %v1090, %v1089
      %v1109 = vpack.c.b16 %v1092, %v1091
      %v1110 = vpack.c.b16 %v1094, %v1093
      %1127 = vmatprep.subr.bf16.mxu0 0
      %1128 = vmatpush1.bf16.msra.mxu0 %v1102
      %1129 = vmatprep.subr.bf16.mxu0 0
      %1130 = vmatpush1.bf16.msra.mxu0 %v1101
      %1131 = vmatprep.subr.bf16.mxu0 0
      %1132 = vmatpush1.bf16.msra.mxu0 %v1100
      %1133 = vmatprep.subr.bf16.mxu0 0
      %1134 = vmatpush1.bf16.msra.mxu0 %v1099
      %1135 = vmatprep.subr.bf16.mxu0 0
      %1136 = vmatpush1.bf16.msra.mxu0 %v1098
      %1137 = vmatprep.subr.bf16.mxu0 0
      %1138 = vmatpush1.bf16.msra.mxu0 %v1097
      %1139 = vmatprep.subr.bf16.mxu0 0
      %1140 = vmatpush1.bf16.msra.mxu0 %v1096
      %1141 = vmatprep.subr.bf16.mxu0 0
      %1142 = vmatpush1.bf16.msra.mxu0 %v1095
      %1143 = vmatprep.subr.bf16.mxu0 0
      %1144 = vmatpush2.bf16.msra.mxu0 %v1110
      %1145 = vmatprep.subr.bf16.mxu0 0
      %1146 = vmatpush2.bf16.msra.mxu0 %v1109
      %1147 = vmatprep.subr.bf16.mxu0 0
      %1148 = vmatpush2.bf16.msra.mxu0 %v1108
      %1149 = vmatprep.subr.bf16.mxu0 0
      %1150 = vmatpush2.bf16.msra.mxu0 %v1107
      %1151 = vmatprep.subr.bf16.mxu0 0
      %1152 = vmatpush2.bf16.msra.mxu0 %v1106
      %1153 = vmatprep.subr.bf16.mxu0 0
      %1154 = vmatpush2.bf16.msra.mxu0 %v1105
      %1155 = vmatprep.subr.bf16.mxu0 0
      %1156 = vmatpush2.bf16.msra.mxu0 %v1104
      %1157 = vmatprep.subr.bf16.mxu0 0
      %1158 = vmatpush2.bf16.msra.mxu0 %v1103
      %1159 = vmatprep.mubr.bf16.mxu0 %v1028
      %1160 = vmatmul.mubr.bf16.gmra.mxu0 %v1021
      %v1161 = vpop.f32.mrf.mxu0
      %v1162 = vadd.f32 0.0, %v1161
      %v1163 = vpop.f32.mrf.mxu0
      %v1164 = vpop.f32.mrf.mxu0
      %v1165 = vpop.f32.mrf.mxu0
      %1166 = vdwg.mxu0
      %v1201 = vunpack.c.l.b16 %v946
      %v1202 = vunpack.c.l.b16 %v947
      %v1203 = vunpack.c.l.b16 %v948
      %v1204 = vunpack.c.l.b16 %v949
      %v1205 = vunpack.c.l.b16 %v950
      %v1206 = vunpack.c.l.b16 %v951
      %v1207 = vunpack.c.l.b16 %v952
      %v1208 = vunpack.c.l.b16 %v953
      %v1209 = vunpack.c.l.b16 %v954
      %v1210 = vunpack.c.l.b16 %v955
      %v1211 = vunpack.c.l.b16 %v956
      %v1212 = vunpack.c.l.b16 %v957
      %v1213 = vunpack.c.l.b16 %v958
      %v1214 = vunpack.c.l.b16 %v959
      %v1215 = vunpack.c.l.b16 %v960
      %v1216 = vunpack.c.l.b16 %v961
      %v1217 = vunpack.c.l.b16 %v962
      %v1218 = vunpack.c.l.b16 %v963
      %v1219 = vunpack.c.l.b16 %v964
      %v1220 = vunpack.c.l.b16 %v965
      %v1221 = vunpack.c.l.b16 %v966
      %v1222 = vunpack.c.l.b16 %v967
      %v1223 = vunpack.c.l.b16 %v968
      %v1224 = vunpack.c.l.b16 %v969
      %v1225 = vunpack.c.l.b16 %v970
      %v1226 = vunpack.c.l.b16 %v971
      %v1227 = vunpack.c.l.b16 %v972
      %v1228 = vunpack.c.l.b16 %v973
      %v1229 = vunpack.c.l.b16 %v974
      %v1230 = vunpack.c.l.b16 %v975
      %v1231 = vunpack.c.l.b16 %v976
      %v1232 = vunpack.c.l.b16 %v977
      %v1233 = vpack.c.b16 %v1202, %v1201
      %v1234 = vpack.c.b16 %v1204, %v1203
      %v1235 = vpack.c.b16 %v1206, %v1205
      %v1236 = vpack.c.b16 %v1208, %v1207
      %v1237 = vpack.c.b16 %v1210, %v1209
      %v1238 = vpack.c.b16 %v1212, %v1211
      %v1239 = vpack.c.b16 %v1214, %v1213
      %v1240 = vpack.c.b16 %v1216, %v1215
      %v1241 = vpack.c.b16 %v1218, %v1217
      %v1242 = vpack.c.b16 %v1220, %v1219
      %v1243 = vpack.c.b16 %v1222, %v1221
      %v1244 = vpack.c.b16 %v1224, %v1223
      %v1245 = vpack.c.b16 %v1226, %v1225
      %v1246 = vpack.c.b16 %v1228, %v1227
      %v1247 = vpack.c.b16 %v1230, %v1229
      %v1248 = vpack.c.b16 %v1232, %v1231
      %1265 = vmatprep.subr.bf16.mxu0 0
      %1266 = vmatpush1.bf16.msra.mxu0 %v1240
      %1267 = vmatprep.subr.bf16.mxu0 0
      %1268 = vmatpush1.bf16.msra.mxu0 %v1239
      %1269 = vmatprep.subr.bf16.mxu0 0
      %1270 = vmatpush1.bf16.msra.mxu0 %v1238
      %1271 = vmatprep.subr.bf16.mxu0 0
      %1272 = vmatpush1.bf16.msra.mxu0 %v1237
      %1273 = vmatprep.subr.bf16.mxu0 0
      %1274 = vmatpush1.bf16.msra.mxu0 %v1236
      %1275 = vmatprep.subr.bf16.mxu0 0
      %1276 = vmatpush1.bf16.msra.mxu0 %v1235
      %1277 = vmatprep.subr.bf16.mxu0 0
      %1278 = vmatpush1.bf16.msra.mxu0 %v1234
      %1279 = vmatprep.subr.bf16.mxu0 0
      %1280 = vmatpush1.bf16.msra.mxu0 %v1233
      %1281 = vmatprep.subr.bf16.mxu0 0
      %1282 = vmatpush2.bf16.msra.mxu0 %v1248
      %1283 = vmatprep.subr.bf16.mxu0 0
      %1284 = vmatpush2.bf16.msra.mxu0 %v1247
      %1285 = vmatprep.subr.bf16.mxu0 0
      %1286 = vmatpush2.bf16.msra.mxu0 %v1246
      %1287 = vmatprep.subr.bf16.mxu0 0
      %1288 = vmatpush2.bf16.msra.mxu0 %v1245
      %1289 = vmatprep.subr.bf16.mxu0 0
      %1290 = vmatpush2.bf16.msra.mxu0 %v1244
      %1291 = vmatprep.subr.bf16.mxu0 0
      %1292 = vmatpush2.bf16.msra.mxu0 %v1243
      %1293 = vmatprep.subr.bf16.mxu0 0
      %1294 = vmatpush2.bf16.msra.mxu0 %v1242
      %1295 = vmatprep.subr.bf16.mxu0 0
      %1296 = vmatpush2.bf16.msra.mxu0 %v1241
      %1297 = vmatprep.mubr.bf16.mxu0 %v1014
      %1298 = vmatmul.mubr.bf16.gmra.mxu0 %v1013
      %v1299 = vpop.f32.mrf.mxu0
      %v1300 = vadd.f32 %v1162, %v1299
      %v1301 = vpop.f32.mrf.mxu0
      %v1302 = vpop.f32.mrf.mxu0
      %v1303 = vpop.f32.mrf.mxu0
      %1304 = vdwg.mxu0
      %s1305 = sadd.s32 %s195, 2
      %s1306 = smul.u32 %s1305, 2
      %s1307 = smul.addr %s1306, 4
      %s1308 = scalar_lea.vmem %s183, %s1307
      %v1309 = vld [vmem:[%s1308] sm:$0x77]
      %v1310 = vld [vmem:[%s566] sm:$0xf]
      %v1311 = vld [vmem:[%s566 + $0x4] sm:$0xf]
      %v1312 = vld [vmem:[%s566 + $0x8] sm:$0xf]
      %v1313 = vld [vmem:[%s566 + $0xc] sm:$0xf]
      %v1314 = vld [vmem:[%s566 + $0x10] sm:$0xf]
      %v1315 = vld [vmem:[%s566 + $0x14] sm:$0xf]
      %v1316 = vld [vmem:[%s566 + $0x18] sm:$0xf]
      %v1317 = vld [vmem:[%s566 + $0x1c] sm:$0xf]
      %v1318 = vld [vmem:[%s566 + $0x20] sm:$0xf]
      %v1319 = vld [vmem:[%s566 + $0x24] sm:$0xf]
      %v1320 = vld [vmem:[%s566 + $0x28] sm:$0xf]
      %v1321 = vld [vmem:[%s566 + $0x2c] sm:$0xf]
      %v1322 = vld [vmem:[%s566 + $0x30] sm:$0xf]
      %v1323 = vld [vmem:[%s566 + $0x34] sm:$0xf]
      %v1324 = vld [vmem:[%s566 + $0x38] sm:$0xf]
      %v1325 = vld [vmem:[%s566 + $0x3c] sm:$0xf]
      %v1326 = vld [vmem:[%s566 + $0x40] sm:$0xf]
      %v1327 = vld [vmem:[%s566 + $0x44] sm:$0xf]
      %v1328 = vld [vmem:[%s566 + $0x48] sm:$0xf]
      %v1329 = vld [vmem:[%s566 + $0x4c] sm:$0xf]
      %v1330 = vld [vmem:[%s566 + $0x50] sm:$0xf]
      %v1331 = vld [vmem:[%s566 + $0x54] sm:$0xf]
      %v1332 = vld [vmem:[%s566 + $0x58] sm:$0xf]
      %v1333 = vld [vmem:[%s566 + $0x5c] sm:$0xf]
      %v1334 = vld [vmem:[%s566 + $0x60] sm:$0xf]
      %v1335 = vld [vmem:[%s566 + $0x64] sm:$0xf]
      %v1336 = vld [vmem:[%s566 + $0x68] sm:$0xf]
      %v1337 = vld [vmem:[%s566 + $0x6c] sm:$0xf]
      %v1338 = vld [vmem:[%s566 + $0x70] sm:$0xf]
      %v1339 = vld [vmem:[%s566 + $0x74] sm:$0xf]
      %v1340 = vld [vmem:[%s566 + $0x78] sm:$0xf]
      %v1341 = vld [vmem:[%s566 + $0x7c] sm:$0xf]
      %v1343 = vunpack.c.l.b16 %v1309
      %v1344 = vunpack.c.h.b16 %v1309
      %v1345 = vpack.c.b16 %v1343, %v1343
      %v1346 = vpack.c.b16 %v1344, %v1344
      %v1381 = vunpack.c.l.b16 %v1310
      %v1382 = vunpack.c.l.b16 %v1311
      %v1383 = vunpack.c.l.b16 %v1312
      %v1384 = vunpack.c.l.b16 %v1313
      %v1385 = vunpack.c.l.b16 %v1314
      %v1386 = vunpack.c.l.b16 %v1315
      %v1387 = vunpack.c.l.b16 %v1316
      %v1388 = vunpack.c.l.b16 %v1317
      %v1389 = vunpack.c.l.b16 %v1318
      %v1390 = vunpack.c.l.b16 %v1319
      %v1391 = vunpack.c.l.b16 %v1320
      %v1392 = vunpack.c.l.b16 %v1321
      %v1393 = vunpack.c.l.b16 %v1322
      %v1394 = vunpack.c.l.b16 %v1323
      %v1395 = vunpack.c.l.b16 %v1324
      %v1396 = vunpack.c.l.b16 %v1325
      %v1397 = vunpack.c.l.b16 %v1326
      %v1398 = vunpack.c.l.b16 %v1327
      %v1399 = vunpack.c.l.b16 %v1328
      %v1400 = vunpack.c.l.b16 %v1329
      %v1401 = vunpack.c.l.b16 %v1330
      %v1402 = vunpack.c.l.b16 %v1331
      %v1403 = vunpack.c.l.b16 %v1332
      %v1404 = vunpack.c.l.b16 %v1333
      %v1405 = vunpack.c.l.b16 %v1334
      %v1406 = vunpack.c.l.b16 %v1335
      %v1407 = vunpack.c.l.b16 %v1336
      %v1408 = vunpack.c.l.b16 %v1337
      %v1409 = vunpack.c.l.b16 %v1338
      %v1410 = vunpack.c.l.b16 %v1339
      %v1411 = vunpack.c.l.b16 %v1340
      %v1412 = vunpack.c.l.b16 %v1341
      %v1413 = vpack.c.b16 %v1382, %v1381
      %v1414 = vpack.c.b16 %v1384, %v1383
      %v1415 = vpack.c.b16 %v1386, %v1385
      %v1416 = vpack.c.b16 %v1388, %v1387
      %v1417 = vpack.c.b16 %v1390, %v1389
      %v1418 = vpack.c.b16 %v1392, %v1391
      %v1419 = vpack.c.b16 %v1394, %v1393
      %v1420 = vpack.c.b16 %v1396, %v1395
      %v1421 = vpack.c.b16 %v1398, %v1397
      %v1422 = vpack.c.b16 %v1400, %v1399
      %v1423 = vpack.c.b16 %v1402, %v1401
      %v1424 = vpack.c.b16 %v1404, %v1403
      %v1425 = vpack.c.b16 %v1406, %v1405
      %v1426 = vpack.c.b16 %v1408, %v1407
      %v1427 = vpack.c.b16 %v1410, %v1409
      %v1428 = vpack.c.b16 %v1412, %v1411
      %1445 = vmatprep.subr.bf16.mxu0 0
      %1446 = vmatpush1.bf16.msra.mxu0 %v1420
      %1447 = vmatprep.subr.bf16.mxu0 0
      %1448 = vmatpush1.bf16.msra.mxu0 %v1419
      %1449 = vmatprep.subr.bf16.mxu0 0
      %1450 = vmatpush1.bf16.msra.mxu0 %v1418
      %1451 = vmatprep.subr.bf16.mxu0 0
      %1452 = vmatpush1.bf16.msra.mxu0 %v1417
      %1453 = vmatprep.subr.bf16.mxu0 0
      %1454 = vmatpush1.bf16.msra.mxu0 %v1416
      %1455 = vmatprep.subr.bf16.mxu0 0
      %1456 = vmatpush1.bf16.msra.mxu0 %v1415
      %1457 = vmatprep.subr.bf16.mxu0 0
      %1458 = vmatpush1.bf16.msra.mxu0 %v1414
      %1459 = vmatprep.subr.bf16.mxu0 0
      %1460 = vmatpush1.bf16.msra.mxu0 %v1413
      %1461 = vmatprep.subr.bf16.mxu0 0
      %1462 = vmatpush2.bf16.msra.mxu0 %v1428
      %1463 = vmatprep.subr.bf16.mxu0 0
      %1464 = vmatpush2.bf16.msra.mxu0 %v1427
      %1465 = vmatprep.subr.bf16.mxu0 0
      %1466 = vmatpush2.bf16.msra.mxu0 %v1426
      %1467 = vmatprep.subr.bf16.mxu0 0
      %1468 = vmatpush2.bf16.msra.mxu0 %v1425
      %1469 = vmatprep.subr.bf16.mxu0 0
      %1470 = vmatpush2.bf16.msra.mxu0 %v1424
      %1471 = vmatprep.subr.bf16.mxu0 0
      %1472 = vmatpush2.bf16.msra.mxu0 %v1423
      %1473 = vmatprep.subr.bf16.mxu0 0
      %1474 = vmatpush2.bf16.msra.mxu0 %v1422
      %1475 = vmatprep.subr.bf16.mxu0 0
      %1476 = vmatpush2.bf16.msra.mxu0 %v1421
      %1477 = vmatprep.mubr.bf16.mxu0 %v1346
      %1478 = vmatmul.mubr.bf16.gmra.mxu0 %v1345
      %v1479 = vpop.f32.mrf.mxu0
      %v1480 = vadd.f32 0.0, %v1479
      %v1481 = vpop.f32.mrf.mxu0
      %v1482 = vpop.f32.mrf.mxu0
      %v1483 = vpop.f32.mrf.mxu0
      %1484 = vdwg.mxu0
      %v1485 = vadd.f32 %v1300, %v1480
      %v1486 = vld [vmem:[%s743] sm:$0xf]
      %v1487 = vld [vmem:[%s743 + $0x4] sm:$0xf]
      %v1488 = vld [vmem:[%s743 + $0x8] sm:$0xf]
      %v1489 = vld [vmem:[%s743 + $0xc] sm:$0xf]
      %v1490 = vld [vmem:[%s743 + $0x10] sm:$0xf]
      %v1491 = vld [vmem:[%s743 + $0x14] sm:$0xf]
      %v1492 = vld [vmem:[%s743 + $0x18] sm:$0xf]
      %v1493 = vld [vmem:[%s743 + $0x1c] sm:$0xf]
      %v1494 = vld [vmem:[%s743 + $0x20] sm:$0xf]
      %v1495 = vld [vmem:[%s743 + $0x24] sm:$0xf]
      %v1496 = vld [vmem:[%s743 + $0x28] sm:$0xf]
      %v1497 = vld [vmem:[%s743 + $0x2c] sm:$0xf]
      %v1498 = vld [vmem:[%s743 + $0x30] sm:$0xf]
      %v1499 = vld [vmem:[%s743 + $0x34] sm:$0xf]
      %v1500 = vld [vmem:[%s743 + $0x38] sm:$0xf]
      %v1501 = vld [vmem:[%s743 + $0x3c] sm:$0xf]
      %v1502 = vld [vmem:[%s743 + $0x40] sm:$0xf]
      %v1503 = vld [vmem:[%s743 + $0x44] sm:$0xf]
      %v1504 = vld [vmem:[%s743 + $0x48] sm:$0xf]
      %v1505 = vld [vmem:[%s743 + $0x4c] sm:$0xf]
      %v1506 = vld [vmem:[%s743 + $0x50] sm:$0xf]
      %v1507 = vld [vmem:[%s743 + $0x54] sm:$0xf]
      %v1508 = vld [vmem:[%s743 + $0x58] sm:$0xf]
      %v1509 = vld [vmem:[%s743 + $0x5c] sm:$0xf]
      %v1510 = vld [vmem:[%s743 + $0x60] sm:$0xf]
      %v1511 = vld [vmem:[%s743 + $0x64] sm:$0xf]
      %v1512 = vld [vmem:[%s743 + $0x68] sm:$0xf]
      %v1513 = vld [vmem:[%s743 + $0x6c] sm:$0xf]
      %v1514 = vld [vmem:[%s743 + $0x70] sm:$0xf]
      %v1515 = vld [vmem:[%s743 + $0x74] sm:$0xf]
      %v1516 = vld [vmem:[%s743 + $0x78] sm:$0xf]
      %v1517 = vld [vmem:[%s743 + $0x7c] sm:$0xf]
      %v1519 = vshrl.u32 %v1345, 16
      %v1521 = vshll.u32 %v1345, 16
      %v1523 = vrot.slane %v1521, 1
      %v1524 = vor.u32 %v1519, %v1523
      %v1526 = vshrl.u32 %v1346, 16
      %v1528 = vshll.u32 %v1346, 16
      %v1530 = vrot.slane %v1528, 1
      %v1531 = vor.u32 %v1526, %v1530
      %v1566 = vunpack.c.l.b16 %v1486
      %v1567 = vunpack.c.l.b16 %v1487
      %v1568 = vunpack.c.l.b16 %v1488
      %v1569 = vunpack.c.l.b16 %v1489
      %v1570 = vunpack.c.l.b16 %v1490
      %v1571 = vunpack.c.l.b16 %v1491
      %v1572 = vunpack.c.l.b16 %v1492
      %v1573 = vunpack.c.l.b16 %v1493
      %v1574 = vunpack.c.l.b16 %v1494
      %v1575 = vunpack.c.l.b16 %v1495
      %v1576 = vunpack.c.l.b16 %v1496
      %v1577 = vunpack.c.l.b16 %v1497
      %v1578 = vunpack.c.l.b16 %v1498
      %v1579 = vunpack.c.l.b16 %v1499
      %v1580 = vunpack.c.l.b16 %v1500
      %v1581 = vunpack.c.l.b16 %v1501
      %v1582 = vunpack.c.l.b16 %v1502
      %v1583 = vunpack.c.l.b16 %v1503
      %v1584 = vunpack.c.l.b16 %v1504
      %v1585 = vunpack.c.l.b16 %v1505
      %v1586 = vunpack.c.l.b16 %v1506
      %v1587 = vunpack.c.l.b16 %v1507
      %v1588 = vunpack.c.l.b16 %v1508
      %v1589 = vunpack.c.l.b16 %v1509
      %v1590 = vunpack.c.l.b16 %v1510
      %v1591 = vunpack.c.l.b16 %v1511
      %v1592 = vunpack.c.l.b16 %v1512
      %v1593 = vunpack.c.l.b16 %v1513
      %v1594 = vunpack.c.l.b16 %v1514
      %v1595 = vunpack.c.l.b16 %v1515
      %v1596 = vunpack.c.l.b16 %v1516
      %v1597 = vunpack.c.l.b16 %v1517
      %v1598 = vpack.c.b16 %v1567, %v1566
      %v1599 = vpack.c.b16 %v1569, %v1568
      %v1600 = vpack.c.b16 %v1571, %v1570
      %v1601 = vpack.c.b16 %v1573, %v1572
      %v1602 = vpack.c.b16 %v1575, %v1574
      %v1603 = vpack.c.b16 %v1577, %v1576
      %v1604 = vpack.c.b16 %v1579, %v1578
      %v1605 = vpack.c.b16 %v1581, %v1580
      %v1606 = vpack.c.b16 %v1583, %v1582
      %v1607 = vpack.c.b16 %v1585, %v1584
      %v1608 = vpack.c.b16 %v1587, %v1586
      %v1609 = vpack.c.b16 %v1589, %v1588
      %v1610 = vpack.c.b16 %v1591, %v1590
      %v1611 = vpack.c.b16 %v1593, %v1592
      %v1612 = vpack.c.b16 %v1595, %v1594
      %v1613 = vpack.c.b16 %v1597, %v1596
      %1630 = vmatprep.subr.bf16.mxu0 0
      %1631 = vmatpush1.bf16.msra.mxu0 %v1605
      %1632 = vmatprep.subr.bf16.mxu0 0
      %1633 = vmatpush1.bf16.msra.mxu0 %v1604
      %1634 = vmatprep.subr.bf16.mxu0 0
      %1635 = vmatpush1.bf16.msra.mxu0 %v1603
      %1636 = vmatprep.subr.bf16.mxu0 0
      %1637 = vmatpush1.bf16.msra.mxu0 %v1602
      %1638 = vmatprep.subr.bf16.mxu0 0
      %1639 = vmatpush1.bf16.msra.mxu0 %v1601
      %1640 = vmatprep.subr.bf16.mxu0 0
      %1641 = vmatpush1.bf16.msra.mxu0 %v1600
      %1642 = vmatprep.subr.bf16.mxu0 0
      %1643 = vmatpush1.bf16.msra.mxu0 %v1599
      %1644 = vmatprep.subr.bf16.mxu0 0
      %1645 = vmatpush1.bf16.msra.mxu0 %v1598
      %1646 = vmatprep.subr.bf16.mxu0 0
      %1647 = vmatpush2.bf16.msra.mxu0 %v1613
      %1648 = vmatprep.subr.bf16.mxu0 0
      %1649 = vmatpush2.bf16.msra.mxu0 %v1612
      %1650 = vmatprep.subr.bf16.mxu0 0
      %1651 = vmatpush2.bf16.msra.mxu0 %v1611
      %1652 = vmatprep.subr.bf16.mxu0 0
      %1653 = vmatpush2.bf16.msra.mxu0 %v1610
      %1654 = vmatprep.subr.bf16.mxu0 0
      %1655 = vmatpush2.bf16.msra.mxu0 %v1609
      %1656 = vmatprep.subr.bf16.mxu0 0
      %1657 = vmatpush2.bf16.msra.mxu0 %v1608
      %1658 = vmatprep.subr.bf16.mxu0 0
      %1659 = vmatpush2.bf16.msra.mxu0 %v1607
      %1660 = vmatprep.subr.bf16.mxu0 0
      %1661 = vmatpush2.bf16.msra.mxu0 %v1606
      %1662 = vmatprep.mubr.bf16.mxu0 %v1531
      %1663 = vmatmul.mubr.bf16.gmra.mxu0 %v1524
      %v1664 = vpop.f32.mrf.mxu0
      %v1665 = vadd.f32 0.0, %v1664
      %v1666 = vpop.f32.mrf.mxu0
      %v1667 = vpop.f32.mrf.mxu0
      %v1668 = vpop.f32.mrf.mxu0
      %1669 = vdwg.mxu0
      %v1670 = vadd.f32 %v1485, %v1665
      %v1671 = vadd.f32 %v1670, %v933
      %v1672 = vxor.u32 %v1671, 2147483648
      %v1673 = vmul.f32 %v1672, 1.442695
      %v1674 = vpow.pop %v1673
      %v1675 = vadd.f32 %v1674, 1.0
      %v1676 = vrcp.pop %v1675
      %v1677 = vmul.f32 1.0, %v1676
      %v1678 = vmul.f32 %v1671, %v1677
      %v1679 = vpack.c.bf16 %v1678, %v1678
      %s1680 = scalar_lea.vmem %s192, 2
      %1681 = vst [vmem:[%s1680] sm:$0x3] %v1679
      %s1682 = smul.u32 2, %s19
      %p1683 = scmp.lt.s32.totalorder %s18, 1
      %s1684 = scalar_select %p1683, %s18, 1
      %p1685 = scmp.lt.s32.totalorder %s1682, 3
      %s1686 = scalar_select %p1685, %s1682, 3
      %s1687 = smul.addr %s1684, 4
      %s1688 = sadd.s32 %s1686, %s1687
      %s1689 = smul.addr %s1688, 2
      %s1690 = scalar_lea.vmem %s3, %s1689
      // Predicated region
      $region33: #{image_encoder_forward.6} parent=31 // pred_check
        %p1691 = pneg %p114
      $region34: #{image_encoder_forward.6} parent=31 // pred_check_branch
        %1693 = sbr.rel (%p1691) target = $region36
      $region35: #{image_encoder_forward.6} parent=31 // pred_region
        %s1694 = smul.u32 2, %s19
      $region36: #{image_encoder_forward.6} parent=31 // pred_fallthru
        _
    $region32: #{image_encoder_forward.6} parent=5 // pred_fallthru
      _
    %p1695 = scmp.le.s32.totalorder 2, %s9
    // Predicated region
    $region37: #{image_encoder_forward.6} parent=5 // pred_check
      %p1696 = pneg %p1695
    $region38: #{image_encoder_forward.6} parent=5 // pred_check_branch
      %1698 = sbr.rel (%p1696) target = $region40
    $region39: #{image_encoder_forward.6} parent=5 // pred_region
      %s1699 = ssub.s32 %s9, 2
      // Predicated region
      $region41: #{image_encoder_forward.6} parent=39 // pred_check
        %p1700 = pneg %p120
      $region42: #{image_encoder_forward.6} parent=39 // pred_check_branch
        %1702 = sbr.rel (%p1700) target = $region44
      $region43: #{image_encoder_forward.6} parent=39 // pred_region
        %s1703 = smul.u32 2, %s21
        %p1704 = scmp.lt.s32.totalorder %s20, 1
        %s1705 = scalar_select %p1704, %s20, 1
        %p1706 = scmp.lt.s32.totalorder %s1703, 3
        %s1707 = scalar_select %p1706, %s1703, 3
        %s1708 = smul.addr %s1705, 4
        %s1709 = sadd.s32 %s1707, %s1708
        %s1710 = smul.addr %s1709, 2
        %s1711 = scalar_lea.vmem %s3, %s1710
      $region44: #{image_encoder_forward.6} parent=39 // pred_fallthru
        _
    $region40: #{image_encoder_forward.6} parent=5 // pred_fallthru
      _
  $region6: #{image_encoder_forward.6} parent=0 // loop_footer
    %s13 = sadd.s32 1, %s9
  $region7: #{image_encoder_forward.6} parent=0 // loop_footer_branch
    %8 = sbr.rel target = $region3
  $region8: #{image_encoder_forward.6} parent=0 // loop_exit
    _

// kernel: image_encoder_forward.7
$region0: #{image_encoder_forward.7}
  #allocation0 [shape = 'u32[]', space=smem, size = 0x4, offset = 0x4, fixed_abs, tag = 'smem constant byte address 0x4 - core index']
  #allocation1 [shape = 'u32[144,128]{1,0:T(1,128)}', space=vmem, size = 0x12000, scoped, tag = 'internal scratch']
  %s0 = inlined_call_operand.vmem [shape: bf16[8,2048], index: 0, kind: input, shape index: {}]
  %s1 = inlined_call_operand.vmem [shape: bf16[2048,256], index: 1, kind: input, shape index: {}]
  %s2 = inlined_call_operand.vmem [shape: f32[1,256], index: 2, kind: input, shape index: {}]
  %s3 = inlined_call_operand.vmem [shape: bf16[256,512], index: 3, kind: input, shape index: {}]
  %s4 = inlined_call_operand.vmem [shape: f32[1,512], index: 4, kind: input, shape index: {}]
  %s5 = inlined_call_operand.vmem [shape: bf16[512,128], index: 5, kind: input, shape index: {}]
  %s6 = inlined_call_operand.vmem [shape: f32[1,128], index: 6, kind: input, shape index: {}]
  %s7 = inlined_call_operand.vmem [shape: f32[8,128], index: 7, kind: output, shape index: {}]
  %s8 = sld [smem:[#allocation0]]
  $region38: #{image_encoder_forward.7} parent=0
    _
  %s10 = ssub.s32 1, %s8
  %s11 = scalar_select 0, %s10, %s8
  // Predicated region
  $region2: #{image_encoder_forward.7} parent=0 // pred_check
    _
  $region3: #{image_encoder_forward.7} parent=0 // pred_check_branch
    %13 = sbr.rel (0) target = $region5
  $region4: #{image_encoder_forward.7} parent=0 // pred_region
    _
  $region5: #{image_encoder_forward.7} parent=0 // pred_fallthru
    _
  // Predicated region
  $region6: #{image_encoder_forward.7} parent=0 // pred_check
    _
  $region7: #{image_encoder_forward.7} parent=0 // pred_check_branch
    %15 = sbr.rel (0) target = $region9
  $region8: #{image_encoder_forward.7} parent=0 // pred_region
    _
  $region9: #{image_encoder_forward.7} parent=0 // pred_fallthru
    _
  // Predicated region
  $region10: #{image_encoder_forward.7} parent=0 // pred_check
    _
  $region11: #{image_encoder_forward.7} parent=0 // pred_check_branch
    %17 = sbr.rel (0) target = $region13
  $region12: #{image_encoder_forward.7} parent=0 // pred_region
    _
  $region13: #{image_encoder_forward.7} parent=0 // pred_fallthru
    _
  // Predicated region
  $region14: #{image_encoder_forward.7} parent=0 // pred_check
    _
  $region15: #{image_encoder_forward.7} parent=0 // pred_check_branch
    %19 = sbr.rel (0) target = $region17
  $region16: #{image_encoder_forward.7} parent=0 // pred_region
    _
  $region17: #{image_encoder_forward.7} parent=0 // pred_fallthru
    _
  // Predicated region
  $region18: #{image_encoder_forward.7} parent=0 // pred_check
    _
  $region19: #{image_encoder_forward.7} parent=0 // pred_check_branch
    %21 = sbr.rel (0) target = $region21
  $region20: #{image_encoder_forward.7} parent=0 // pred_region
    _
  $region21: #{image_encoder_forward.7} parent=0 // pred_fallthru
    _
  // Predicated region
  $region22: #{image_encoder_forward.7} parent=0 // pred_check
    _
  $region23: #{image_encoder_forward.7} parent=0 // pred_check_branch
    %23 = sbr.rel (0) target = $region25
  $region24: #{image_encoder_forward.7} parent=0 // pred_region
    _
  $region25: #{image_encoder_forward.7} parent=0 // pred_fallthru
    _
  // Predicated region
  $region26: #{image_encoder_forward.7} parent=0 // pred_check
    _
  $region27: #{image_encoder_forward.7} parent=0 // pred_check_branch
    %25 = sbr.rel (0) target = $region29
  $region28: #{image_encoder_forward.7} parent=0 // pred_region
    _
  $region29: #{image_encoder_forward.7} parent=0 // pred_fallthru
    _
  %v27 = vld [vmem:[%s0] sm:$0xff]
  %v28 = vld [vmem:[%s0 + $0x8] sm:$0xff]
  %v29 = vld [vmem:[%s0 + $0x10] sm:$0xff]
  %v30 = vld [vmem:[%s0 + $0x18] sm:$0xff]
  %v31 = vld [vmem:[%s0 + $0x20] sm:$0xff]
  %v32 = vld [vmem:[%s0 + $0x28] sm:$0xff]
  %v33 = vld [vmem:[%s0 + $0x30] sm:$0xff]
  %v34 = vld [vmem:[%s0 + $0x38] sm:$0xff]
  %v35 = vld [vmem:[%s1] sm:$0xff]
  %v36 = vld [vmem:[%s1 + $0x8] sm:$0xff]
  %v37 = vld [vmem:[%s1 + $0x10] sm:$0xff]
  %v38 = vld [vmem:[%s1 + $0x18] sm:$0xff]
  %v39 = vld [vmem:[%s1 + $0x20] sm:$0xff]
  %v40 = vld [vmem:[%s1 + $0x28] sm:$0xff]
  %v41 = vld [vmem:[%s1 + $0x30] sm:$0xff]
  %v42 = vld [vmem:[%s1 + $0x38] sm:$0xff]
  %v43 = vld [vmem:[%s1 + $0x40] sm:$0xff]
  %v44 = vld [vmem:[%s1 + $0x48] sm:$0xff]
  %v45 = vld [vmem:[%s1 + $0x50] sm:$0xff]
  %v46 = vld [vmem:[%s1 + $0x58] sm:$0xff]
  %v47 = vld [vmem:[%s1 + $0x60] sm:$0xff]
  %v48 = vld [vmem:[%s1 + $0x68] sm:$0xff]
  %v49 = vld [vmem:[%s1 + $0x70] sm:$0xff]
  %v50 = vld [vmem:[%s1 + $0x78] sm:$0xff]
  %v51 = vld [vmem:[%s1 + $0x80] sm:$0xff]
  %v52 = vld [vmem:[%s1 + $0x88] sm:$0xff]
  %v53 = vld [vmem:[%s1 + $0x90] sm:$0xff]
  %v54 = vld [vmem:[%s1 + $0x98] sm:$0xff]
  %v55 = vld [vmem:[%s1 + $0xa0] sm:$0xff]
  %v56 = vld [vmem:[%s1 + $0xa8] sm:$0xff]
  %v57 = vld [vmem:[%s1 + $0xb0] sm:$0xff]
  %v58 = vld [vmem:[%s1 + $0xb8] sm:$0xff]
  %v59 = vld [vmem:[%s1 + $0xc0] sm:$0xff]
  %v60 = vld [vmem:[%s1 + $0xc8] sm:$0xff]
  %v61 = vld [vmem:[%s1 + $0xd0] sm:$0xff]
  %v62 = vld [vmem:[%s1 + $0xd8] sm:$0xff]
  %v63 = vld [vmem:[%s1 + $0xe0] sm:$0xff]
  %v64 = vld [vmem:[%s1 + $0xe8] sm:$0xff]
  %v65 = vld [vmem:[%s1 + $0xf0] sm:$0xff]
  %v66 = vld [vmem:[%s1 + $0xf8] sm:$0xff]
  %v67 = vld [vmem:[%s1 + $0x100] sm:$0xff]
  %v68 = vld [vmem:[%s1 + $0x108] sm:$0xff]
  %v69 = vld [vmem:[%s1 + $0x110] sm:$0xff]
  %v70 = vld [vmem:[%s1 + $0x118] sm:$0xff]
  %v71 = vld [vmem:[%s1 + $0x120] sm:$0xff]
  %v72 = vld [vmem:[%s1 + $0x128] sm:$0xff]
  %v73 = vld [vmem:[%s1 + $0x130] sm:$0xff]
  %v74 = vld [vmem:[%s1 + $0x138] sm:$0xff]
  %v75 = vld [vmem:[%s1 + $0x140] sm:$0xff]
  %v76 = vld [vmem:[%s1 + $0x148] sm:$0xff]
  %v77 = vld [vmem:[%s1 + $0x150] sm:$0xff]
  %v78 = vld [vmem:[%s1 + $0x158] sm:$0xff]
  %v79 = vld [vmem:[%s1 + $0x160] sm:$0xff]
  %v80 = vld [vmem:[%s1 + $0x168] sm:$0xff]
  %v81 = vld [vmem:[%s1 + $0x170] sm:$0xff]
  %v82 = vld [vmem:[%s1 + $0x178] sm:$0xff]
  %v83 = vld [vmem:[%s1 + $0x180] sm:$0xff]
  %v84 = vld [vmem:[%s1 + $0x188] sm:$0xff]
  %v85 = vld [vmem:[%s1 + $0x190] sm:$0xff]
  %v86 = vld [vmem:[%s1 + $0x198] sm:$0xff]
  %v87 = vld [vmem:[%s1 + $0x1a0] sm:$0xff]
  %v88 = vld [vmem:[%s1 + $0x1a8] sm:$0xff]
  %v89 = vld [vmem:[%s1 + $0x1b0] sm:$0xff]
  %v90 = vld [vmem:[%s1 + $0x1b8] sm:$0xff]
  %v91 = vld [vmem:[%s1 + $0x1c0] sm:$0xff]
  %v92 = vld [vmem:[%s1 + $0x1c8] sm:$0xff]
  %v93 = vld [vmem:[%s1 + $0x1d0] sm:$0xff]
  %v94 = vld [vmem:[%s1 + $0x1d8] sm:$0xff]
  %v95 = vld [vmem:[%s1 + $0x1e0] sm:$0xff]
  %v96 = vld [vmem:[%s1 + $0x1e8] sm:$0xff]
  %v97 = vld [vmem:[%s1 + $0x1f0] sm:$0xff]
  %v98 = vld [vmem:[%s1 + $0x1f8] sm:$0xff]
  %v99 = vld [vmem:[%s1 + $0x200] sm:$0xff]
  %v100 = vld [vmem:[%s1 + $0x208] sm:$0xff]
  %v101 = vld [vmem:[%s1 + $0x210] sm:$0xff]
  %v102 = vld [vmem:[%s1 + $0x218] sm:$0xff]
  %v103 = vld [vmem:[%s1 + $0x220] sm:$0xff]
  %v104 = vld [vmem:[%s1 + $0x228] sm:$0xff]
  %v105 = vld [vmem:[%s1 + $0x230] sm:$0xff]
  %v106 = vld [vmem:[%s1 + $0x238] sm:$0xff]
  %v107 = vld [vmem:[%s1 + $0x240] sm:$0xff]
  %v108 = vld [vmem:[%s1 + $0x248] sm:$0xff]
  %v109 = vld [vmem:[%s1 + $0x250] sm:$0xff]
  %v110 = vld [vmem:[%s1 + $0x258] sm:$0xff]
  %v111 = vld [vmem:[%s1 + $0x260] sm:$0xff]
  %v112 = vld [vmem:[%s1 + $0x268] sm:$0xff]
  %v113 = vld [vmem:[%s1 + $0x270] sm:$0xff]
  %v114 = vld [vmem:[%s1 + $0x278] sm:$0xff]
  %v115 = vld [vmem:[%s1 + $0x280] sm:$0xff]
  %v116 = vld [vmem:[%s1 + $0x288] sm:$0xff]
  %v117 = vld [vmem:[%s1 + $0x290] sm:$0xff]
  %v118 = vld [vmem:[%s1 + $0x298] sm:$0xff]
  %v119 = vld [vmem:[%s1 + $0x2a0] sm:$0xff]
  %v120 = vld [vmem:[%s1 + $0x2a8] sm:$0xff]
  %v121 = vld [vmem:[%s1 + $0x2b0] sm:$0xff]
  %v122 = vld [vmem:[%s1 + $0x2b8] sm:$0xff]
  %v123 = vld [vmem:[%s1 + $0x2c0] sm:$0xff]
  %v124 = vld [vmem:[%s1 + $0x2c8] sm:$0xff]
  %v125 = vld [vmem:[%s1 + $0x2d0] sm:$0xff]
  %v126 = vld [vmem:[%s1 + $0x2d8] sm:$0xff]
  %v127 = vld [vmem:[%s1 + $0x2e0] sm:$0xff]
  %v128 = vld [vmem:[%s1 + $0x2e8] sm:$0xff]
  %v129 = vld [vmem:[%s1 + $0x2f0] sm:$0xff]
  %v130 = vld [vmem:[%s1 + $0x2f8] sm:$0xff]
  %v131 = vld [vmem:[%s1 + $0x300] sm:$0xff]
  %v132 = vld [vmem:[%s1 + $0x308] sm:$0xff]
  %v133 = vld [vmem:[%s1 + $0x310] sm:$0xff]
  %v134 = vld [vmem:[%s1 + $0x318] sm:$0xff]
  %v135 = vld [vmem:[%s1 + $0x320] sm:$0xff]
  %v136 = vld [vmem:[%s1 + $0x328] sm:$0xff]
  %v137 = vld [vmem:[%s1 + $0x330] sm:$0xff]
  %v138 = vld [vmem:[%s1 + $0x338] sm:$0xff]
  %v139 = vld [vmem:[%s1 + $0x340] sm:$0xff]
  %v140 = vld [vmem:[%s1 + $0x348] sm:$0xff]
  %v141 = vld [vmem:[%s1 + $0x350] sm:$0xff]
  %v142 = vld [vmem:[%s1 + $0x358] sm:$0xff]
  %v143 = vld [vmem:[%s1 + $0x360] sm:$0xff]
  %v144 = vld [vmem:[%s1 + $0x368] sm:$0xff]
  %v145 = vld [vmem:[%s1 + $0x370] sm:$0xff]
  %v146 = vld [vmem:[%s1 + $0x378] sm:$0xff]
  %v147 = vld [vmem:[%s1 + $0x380] sm:$0xff]
  %v148 = vld [vmem:[%s1 + $0x388] sm:$0xff]
  %v149 = vld [vmem:[%s1 + $0x390] sm:$0xff]
  %v150 = vld [vmem:[%s1 + $0x398] sm:$0xff]
  %v151 = vld [vmem:[%s1 + $0x3a0] sm:$0xff]
  %v152 = vld [vmem:[%s1 + $0x3a8] sm:$0xff]
  %v153 = vld [vmem:[%s1 + $0x3b0] sm:$0xff]
  %v154 = vld [vmem:[%s1 + $0x3b8] sm:$0xff]
  %v155 = vld [vmem:[%s1 + $0x3c0] sm:$0xff]
  %v156 = vld [vmem:[%s1 + $0x3c8] sm:$0xff]
  %v157 = vld [vmem:[%s1 + $0x3d0] sm:$0xff]
  %v158 = vld [vmem:[%s1 + $0x3d8] sm:$0xff]
  %v159 = vld [vmem:[%s1 + $0x3e0] sm:$0xff]
  %v160 = vld [vmem:[%s1 + $0x3e8] sm:$0xff]
  %v161 = vld [vmem:[%s1 + $0x3f0] sm:$0xff]
  %v162 = vld [vmem:[%s1 + $0x3f8] sm:$0xff]
  %v163 = vld [vmem:[%s1 + $0x400] sm:$0xff]
  %v164 = vld [vmem:[%s1 + $0x408] sm:$0xff]
  %v165 = vld [vmem:[%s1 + $0x410] sm:$0xff]
  %v166 = vld [vmem:[%s1 + $0x418] sm:$0xff]
  %v167 = vld [vmem:[%s1 + $0x420] sm:$0xff]
  %v168 = vld [vmem:[%s1 + $0x428] sm:$0xff]
  %v169 = vld [vmem:[%s1 + $0x430] sm:$0xff]
  %v170 = vld [vmem:[%s1 + $0x438] sm:$0xff]
  %v171 = vld [vmem:[%s1 + $0x440] sm:$0xff]
  %v172 = vld [vmem:[%s1 + $0x448] sm:$0xff]
  %v173 = vld [vmem:[%s1 + $0x450] sm:$0xff]
  %v174 = vld [vmem:[%s1 + $0x458] sm:$0xff]
  %v175 = vld [vmem:[%s1 + $0x460] sm:$0xff]
  %v176 = vld [vmem:[%s1 + $0x468] sm:$0xff]
  %v177 = vld [vmem:[%s1 + $0x470] sm:$0xff]
  %v178 = vld [vmem:[%s1 + $0x478] sm:$0xff]
  %v179 = vld [vmem:[%s1 + $0x480] sm:$0xff]
  %v180 = vld [vmem:[%s1 + $0x488] sm:$0xff]
  %v181 = vld [vmem:[%s1 + $0x490] sm:$0xff]
  %v182 = vld [vmem:[%s1 + $0x498] sm:$0xff]
  %v183 = vld [vmem:[%s1 + $0x4a0] sm:$0xff]
  %v184 = vld [vmem:[%s1 + $0x4a8] sm:$0xff]
  %v185 = vld [vmem:[%s1 + $0x4b0] sm:$0xff]
  %v186 = vld [vmem:[%s1 + $0x4b8] sm:$0xff]
  %v187 = vld [vmem:[%s1 + $0x4c0] sm:$0xff]
  %v188 = vld [vmem:[%s1 + $0x4c8] sm:$0xff]
  %v189 = vld [vmem:[%s1 + $0x4d0] sm:$0xff]
  %v190 = vld [vmem:[%s1 + $0x4d8] sm:$0xff]
  %v191 = vld [vmem:[%s1 + $0x4e0] sm:$0xff]
  %v192 = vld [vmem:[%s1 + $0x4e8] sm:$0xff]
  %v193 = vld [vmem:[%s1 + $0x4f0] sm:$0xff]
  %v194 = vld [vmem:[%s1 + $0x4f8] sm:$0xff]
  %v195 = vld [vmem:[%s1 + $0x500] sm:$0xff]
  %v196 = vld [vmem:[%s1 + $0x508] sm:$0xff]
  %v197 = vld [vmem:[%s1 + $0x510] sm:$0xff]
  %v198 = vld [vmem:[%s1 + $0x518] sm:$0xff]
  %v199 = vld [vmem:[%s1 + $0x520] sm:$0xff]
  %v200 = vld [vmem:[%s1 + $0x528] sm:$0xff]
  %v201 = vld [vmem:[%s1 + $0x530] sm:$0xff]
  %v202 = vld [vmem:[%s1 + $0x538] sm:$0xff]
  %v203 = vld [vmem:[%s1 + $0x540] sm:$0xff]
  %v204 = vld [vmem:[%s1 + $0x548] sm:$0xff]
  %v205 = vld [vmem:[%s1 + $0x550] sm:$0xff]
  %v206 = vld [vmem:[%s1 + $0x558] sm:$0xff]
  %v207 = vld [vmem:[%s1 + $0x560] sm:$0xff]
  %v208 = vld [vmem:[%s1 + $0x568] sm:$0xff]
  %v209 = vld [vmem:[%s1 + $0x570] sm:$0xff]
  %v210 = vld [vmem:[%s1 + $0x578] sm:$0xff]
  %v211 = vld [vmem:[%s1 + $0x580] sm:$0xff]
  %v212 = vld [vmem:[%s1 + $0x588] sm:$0xff]
  %v213 = vld [vmem:[%s1 + $0x590] sm:$0xff]
  %v214 = vld [vmem:[%s1 + $0x598] sm:$0xff]
  %v215 = vld [vmem:[%s1 + $0x5a0] sm:$0xff]
  %v216 = vld [vmem:[%s1 + $0x5a8] sm:$0xff]
  %v217 = vld [vmem:[%s1 + $0x5b0] sm:$0xff]
  %v218 = vld [vmem:[%s1 + $0x5b8] sm:$0xff]
  %v219 = vld [vmem:[%s1 + $0x5c0] sm:$0xff]
  %v220 = vld [vmem:[%s1 + $0x5c8] sm:$0xff]
  %v221 = vld [vmem:[%s1 + $0x5d0] sm:$0xff]
  %v222 = vld [vmem:[%s1 + $0x5d8] sm:$0xff]
  %v223 = vld [vmem:[%s1 + $0x5e0] sm:$0xff]
  %v224 = vld [vmem:[%s1 + $0x5e8] sm:$0xff]
  %v225 = vld [vmem:[%s1 + $0x5f0] sm:$0xff]
  %v226 = vld [vmem:[%s1 + $0x5f8] sm:$0xff]
  %v227 = vld [vmem:[%s1 + $0x600] sm:$0xff]
  %v228 = vld [vmem:[%s1 + $0x608] sm:$0xff]
  %v229 = vld [vmem:[%s1 + $0x610] sm:$0xff]
  %v230 = vld [vmem:[%s1 + $0x618] sm:$0xff]
  %v231 = vld [vmem:[%s1 + $0x620] sm:$0xff]
  %v232 = vld [vmem:[%s1 + $0x628] sm:$0xff]
  %v233 = vld [vmem:[%s1 + $0x630] sm:$0xff]
  %v234 = vld [vmem:[%s1 + $0x638] sm:$0xff]
  %v235 = vld [vmem:[%s1 + $0x640] sm:$0xff]
  %v236 = vld [vmem:[%s1 + $0x648] sm:$0xff]
  %v237 = vld [vmem:[%s1 + $0x650] sm:$0xff]
  %v238 = vld [vmem:[%s1 + $0x658] sm:$0xff]
  %v239 = vld [vmem:[%s1 + $0x660] sm:$0xff]
  %v240 = vld [vmem:[%s1 + $0x668] sm:$0xff]
  %v241 = vld [vmem:[%s1 + $0x670] sm:$0xff]
  %v242 = vld [vmem:[%s1 + $0x678] sm:$0xff]
  %v243 = vld [vmem:[%s1 + $0x680] sm:$0xff]
  %v244 = vld [vmem:[%s1 + $0x688] sm:$0xff]
  %v245 = vld [vmem:[%s1 + $0x690] sm:$0xff]
  %v246 = vld [vmem:[%s1 + $0x698] sm:$0xff]
  %v247 = vld [vmem:[%s1 + $0x6a0] sm:$0xff]
  %v248 = vld [vmem:[%s1 + $0x6a8] sm:$0xff]
  %v249 = vld [vmem:[%s1 + $0x6b0] sm:$0xff]
  %v250 = vld [vmem:[%s1 + $0x6b8] sm:$0xff]
  %v251 = vld [vmem:[%s1 + $0x6c0] sm:$0xff]
  %v252 = vld [vmem:[%s1 + $0x6c8] sm:$0xff]
  %v253 = vld [vmem:[%s1 + $0x6d0] sm:$0xff]
  %v254 = vld [vmem:[%s1 + $0x6d8] sm:$0xff]
  %v255 = vld [vmem:[%s1 + $0x6e0] sm:$0xff]
  %v256 = vld [vmem:[%s1 + $0x6e8] sm:$0xff]
  %v257 = vld [vmem:[%s1 + $0x6f0] sm:$0xff]
  %v258 = vld [vmem:[%s1 + $0x6f8] sm:$0xff]
  %v259 = vld [vmem:[%s1 + $0x700] sm:$0xff]
  %v260 = vld [vmem:[%s1 + $0x708] sm:$0xff]
  %v261 = vld [vmem:[%s1 + $0x710] sm:$0xff]
  %v262 = vld [vmem:[%s1 + $0x718] sm:$0xff]
  %v263 = vld [vmem:[%s1 + $0x720] sm:$0xff]
  %v264 = vld [vmem:[%s1 + $0x728] sm:$0xff]
  %v265 = vld [vmem:[%s1 + $0x730] sm:$0xff]
  %v266 = vld [vmem:[%s1 + $0x738] sm:$0xff]
  %v267 = vld [vmem:[%s1 + $0x740] sm:$0xff]
  %v268 = vld [vmem:[%s1 + $0x748] sm:$0xff]
  %v269 = vld [vmem:[%s1 + $0x750] sm:$0xff]
  %v270 = vld [vmem:[%s1 + $0x758] sm:$0xff]
  %v271 = vld [vmem:[%s1 + $0x760] sm:$0xff]
  %v272 = vld [vmem:[%s1 + $0x768] sm:$0xff]
  %v273 = vld [vmem:[%s1 + $0x770] sm:$0xff]
  %v274 = vld [vmem:[%s1 + $0x778] sm:$0xff]
  %v275 = vld [vmem:[%s1 + $0x780] sm:$0xff]
  %v276 = vld [vmem:[%s1 + $0x788] sm:$0xff]
  %v277 = vld [vmem:[%s1 + $0x790] sm:$0xff]
  %v278 = vld [vmem:[%s1 + $0x798] sm:$0xff]
  %v279 = vld [vmem:[%s1 + $0x7a0] sm:$0xff]
  %v280 = vld [vmem:[%s1 + $0x7a8] sm:$0xff]
  %v281 = vld [vmem:[%s1 + $0x7b0] sm:$0xff]
  %v282 = vld [vmem:[%s1 + $0x7b8] sm:$0xff]
  %v283 = vld [vmem:[%s1 + $0x7c0] sm:$0xff]
  %v284 = vld [vmem:[%s1 + $0x7c8] sm:$0xff]
  %v285 = vld [vmem:[%s1 + $0x7d0] sm:$0xff]
  %v286 = vld [vmem:[%s1 + $0x7d8] sm:$0xff]
  %v287 = vld [vmem:[%s1 + $0x7e0] sm:$0xff]
  %v288 = vld [vmem:[%s1 + $0x7e8] sm:$0xff]
  %v289 = vld [vmem:[%s1 + $0x7f0] sm:$0xff]
  %v290 = vld [vmem:[%s1 + $0x7f8] sm:$0xff]
  %v291 = vld [vmem:[%s2] sm:$0x3]
  %v293 = vlaneseq
  %v294 = vshrl.u32 %v293, 7
  %v295 = vsub.s32 0, %v294
  %v296 = vrot.slane %v291, %v295
  %v297 = vlaneseq
  %v298 = vshrl.u32 %v297, 7
  %v299 = vsub.s32 1, %v298
  %v300 = vrot.slane %v291, %v299
  %v311 = vunpack.c.l.b16 %v27
  %v312 = vunpack.c.h.b16 %v27
  %v313 = vunpack.c.l.b16 %v28
  %v314 = vunpack.c.h.b16 %v28
  %v315 = vunpack.c.l.b16 %v29
  %v316 = vunpack.c.h.b16 %v29
  %v317 = vunpack.c.l.b16 %v30
  %v318 = vunpack.c.h.b16 %v30
  %v319 = vunpack.c.l.b16 %v31
  %v320 = vunpack.c.h.b16 %v31
  %v321 = vunpack.c.l.b16 %v32
  %v322 = vunpack.c.h.b16 %v32
  %v323 = vunpack.c.l.b16 %v33
  %v324 = vunpack.c.h.b16 %v33
  %v325 = vunpack.c.l.b16 %v34
  %v326 = vunpack.c.h.b16 %v34
  %v327 = vpack.c.b16 %v311, %v311
  %v328 = vpack.c.b16 %v312, %v312
  %v329 = vpack.c.b16 %v313, %v313
  %v330 = vpack.c.b16 %v314, %v314
  %v331 = vpack.c.b16 %v315, %v315
  %v332 = vpack.c.b16 %v316, %v316
  %v333 = vpack.c.b16 %v317, %v317
  %v334 = vpack.c.b16 %v318, %v318
  %v335 = vpack.c.b16 %v319, %v319
  %v336 = vpack.c.b16 %v320, %v320
  %v337 = vpack.c.b16 %v321, %v321
  %v338 = vpack.c.b16 %v322, %v322
  %v339 = vpack.c.b16 %v323, %v323
  %v340 = vpack.c.b16 %v324, %v324
  %v341 = vpack.c.b16 %v325, %v325
  %v342 = vpack.c.b16 %v326, %v326
  %v615 = vunpack.c.l.b16 %v35
  %v616 = vunpack.c.h.b16 %v35
  %v617 = vunpack.c.l.b16 %v36
  %v618 = vunpack.c.h.b16 %v36
  %v619 = vunpack.c.l.b16 %v37
  %v620 = vunpack.c.h.b16 %v37
  %v621 = vunpack.c.l.b16 %v38
  %v622 = vunpack.c.h.b16 %v38
  %v623 = vunpack.c.l.b16 %v39
  %v624 = vunpack.c.h.b16 %v39
  %v625 = vunpack.c.l.b16 %v40
  %v626 = vunpack.c.h.b16 %v40
  %v627 = vunpack.c.l.b16 %v41
  %v628 = vunpack.c.h.b16 %v41
  %v629 = vunpack.c.l.b16 %v42
  %v630 = vunpack.c.h.b16 %v42
  %v631 = vunpack.c.l.b16 %v43
  %v632 = vunpack.c.h.b16 %v43
  %v633 = vunpack.c.l.b16 %v44
  %v634 = vunpack.c.h.b16 %v44
  %v635 = vunpack.c.l.b16 %v45
  %v636 = vunpack.c.h.b16 %v45
  %v637 = vunpack.c.l.b16 %v46
  %v638 = vunpack.c.h.b16 %v46
  %v639 = vunpack.c.l.b16 %v47
  %v640 = vunpack.c.h.b16 %v47
  %v641 = vunpack.c.l.b16 %v48
  %v642 = vunpack.c.h.b16 %v48
  %v643 = vunpack.c.l.b16 %v49
  %v644 = vunpack.c.h.b16 %v49
  %v645 = vunpack.c.l.b16 %v50
  %v646 = vunpack.c.h.b16 %v50
  %v647 = vunpack.c.l.b16 %v51
  %v648 = vunpack.c.h.b16 %v51
  %v649 = vunpack.c.l.b16 %v52
  %v650 = vunpack.c.h.b16 %v52
  %v651 = vunpack.c.l.b16 %v53
  %v652 = vunpack.c.h.b16 %v53
  %v653 = vunpack.c.l.b16 %v54
  %v654 = vunpack.c.h.b16 %v54
  %v655 = vunpack.c.l.b16 %v55
  %v656 = vunpack.c.h.b16 %v55
  %v657 = vunpack.c.l.b16 %v56
  %v658 = vunpack.c.h.b16 %v56
  %v659 = vunpack.c.l.b16 %v57
  %v660 = vunpack.c.h.b16 %v57
  %v661 = vunpack.c.l.b16 %v58
  %v662 = vunpack.c.h.b16 %v58
  %v663 = vunpack.c.l.b16 %v59
  %v664 = vunpack.c.h.b16 %v59
  %v665 = vunpack.c.l.b16 %v60
  %v666 = vunpack.c.h.b16 %v60
  %v667 = vunpack.c.l.b16 %v61
  %v668 = vunpack.c.h.b16 %v61
  %v669 = vunpack.c.l.b16 %v62
  %v670 = vunpack.c.h.b16 %v62
  %v671 = vunpack.c.l.b16 %v63
  %v672 = vunpack.c.h.b16 %v63
  %v673 = vunpack.c.l.b16 %v64
  %v674 = vunpack.c.h.b16 %v64
  %v675 = vunpack.c.l.b16 %v65
  %v676 = vunpack.c.h.b16 %v65
  %v677 = vunpack.c.l.b16 %v66
  %v678 = vunpack.c.h.b16 %v66
  %v679 = vunpack.c.l.b16 %v67
  %v680 = vunpack.c.h.b16 %v67
  %v681 = vunpack.c.l.b16 %v68
  %v682 = vunpack.c.h.b16 %v68
  %v683 = vunpack.c.l.b16 %v69
  %v684 = vunpack.c.h.b16 %v69
  %v685 = vunpack.c.l.b16 %v70
  %v686 = vunpack.c.h.b16 %v70
  %v687 = vunpack.c.l.b16 %v71
  %v688 = vunpack.c.h.b16 %v71
  %v689 = vunpack.c.l.b16 %v72
  %v690 = vunpack.c.h.b16 %v72
  %v691 = vunpack.c.l.b16 %v73
  %v692 = vunpack.c.h.b16 %v73
  %v693 = vunpack.c.l.b16 %v74
  %v694 = vunpack.c.h.b16 %v74
  %v695 = vunpack.c.l.b16 %v75
  %v696 = vunpack.c.h.b16 %v75
  %v697 = vunpack.c.l.b16 %v76
  %v698 = vunpack.c.h.b16 %v76
  %v699 = vunpack.c.l.b16 %v77
  %v700 = vunpack.c.h.b16 %v77
  %v701 = vunpack.c.l.b16 %v78
  %v702 = vunpack.c.h.b16 %v78
  %v703 = vunpack.c.l.b16 %v79
  %v704 = vunpack.c.h.b16 %v79
  %v705 = vunpack.c.l.b16 %v80
  %v706 = vunpack.c.h.b16 %v80
  %v707 = vunpack.c.l.b16 %v81
  %v708 = vunpack.c.h.b16 %v81
  %v709 = vunpack.c.l.b16 %v82
  %v710 = vunpack.c.h.b16 %v82
  %v711 = vunpack.c.l.b16 %v83
  %v712 = vunpack.c.h.b16 %v83
  %v713 = vunpack.c.l.b16 %v84
  %v714 = vunpack.c.h.b16 %v84
  %v715 = vunpack.c.l.b16 %v85
  %v716 = vunpack.c.h.b16 %v85
  %v717 = vunpack.c.l.b16 %v86
  %v718 = vunpack.c.h.b16 %v86
  %v719 = vunpack.c.l.b16 %v87
  %v720 = vunpack.c.h.b16 %v87
  %v721 = vunpack.c.l.b16 %v88
  %v722 = vunpack.c.h.b16 %v88
  %v723 = vunpack.c.l.b16 %v89
  %v724 = vunpack.c.h.b16 %v89
  %v725 = vunpack.c.l.b16 %v90
  %v726 = vunpack.c.h.b16 %v90
  %v727 = vunpack.c.l.b16 %v91
  %v728 = vunpack.c.h.b16 %v91
  %v729 = vunpack.c.l.b16 %v92
  %v730 = vunpack.c.h.b16 %v92
  %v731 = vunpack.c.l.b16 %v93
  %v732 = vunpack.c.h.b16 %v93
  %v733 = vunpack.c.l.b16 %v94
  %v734 = vunpack.c.h.b16 %v94
  %v735 = vunpack.c.l.b16 %v95
  %v736 = vunpack.c.h.b16 %v95
  %v737 = vunpack.c.l.b16 %v96
  %v738 = vunpack.c.h.b16 %v96
  %v739 = vunpack.c.l.b16 %v97
  %v740 = vunpack.c.h.b16 %v97
  %v741 = vunpack.c.l.b16 %v98
  %v742 = vunpack.c.h.b16 %v98
  %v743 = vunpack.c.l.b16 %v99
  %v744 = vunpack.c.h.b16 %v99
  %v745 = vunpack.c.l.b16 %v100
  %v746 = vunpack.c.h.b16 %v100
  %v747 = vunpack.c.l.b16 %v101
  %v748 = vunpack.c.h.b16 %v101
  %v749 = vunpack.c.l.b16 %v102
  %v750 = vunpack.c.h.b16 %v102
  %v751 = vunpack.c.l.b16 %v103
  %v752 = vunpack.c.h.b16 %v103
  %v753 = vunpack.c.l.b16 %v104
  %v754 = vunpack.c.h.b16 %v104
  %v755 = vunpack.c.l.b16 %v105
  %v756 = vunpack.c.h.b16 %v105
  %v757 = vunpack.c.l.b16 %v106
  %v758 = vunpack.c.h.b16 %v106
  %v759 = vunpack.c.l.b16 %v107
  %v760 = vunpack.c.h.b16 %v107
  %v761 = vunpack.c.l.b16 %v108
  %v762 = vunpack.c.h.b16 %v108
  %v763 = vunpack.c.l.b16 %v109
  %v764 = vunpack.c.h.b16 %v109
  %v765 = vunpack.c.l.b16 %v110
  %v766 = vunpack.c.h.b16 %v110
  %v767 = vunpack.c.l.b16 %v111
  %v768 = vunpack.c.h.b16 %v111
  %v769 = vunpack.c.l.b16 %v112
  %v770 = vunpack.c.h.b16 %v112
  %v771 = vunpack.c.l.b16 %v113
  %v772 = vunpack.c.h.b16 %v113
  %v773 = vunpack.c.l.b16 %v114
  %v774 = vunpack.c.h.b16 %v114
  %v775 = vunpack.c.l.b16 %v115
  %v776 = vunpack.c.h.b16 %v115
  %v777 = vunpack.c.l.b16 %v116
  %v778 = vunpack.c.h.b16 %v116
  %v779 = vunpack.c.l.b16 %v117
  %v780 = vunpack.c.h.b16 %v117
  %v781 = vunpack.c.l.b16 %v118
  %v782 = vunpack.c.h.b16 %v118
  %v783 = vunpack.c.l.b16 %v119
  %v784 = vunpack.c.h.b16 %v119
  %v785 = vunpack.c.l.b16 %v120
  %v786 = vunpack.c.h.b16 %v120
  %v787 = vunpack.c.l.b16 %v121
  %v788 = vunpack.c.h.b16 %v121
  %v789 = vunpack.c.l.b16 %v122
  %v790 = vunpack.c.h.b16 %v122
  %v791 = vunpack.c.l.b16 %v123
  %v792 = vunpack.c.h.b16 %v123
  %v793 = vunpack.c.l.b16 %v124
  %v794 = vunpack.c.h.b16 %v124
  %v795 = vunpack.c.l.b16 %v125
  %v796 = vunpack.c.h.b16 %v125
  %v797 = vunpack.c.l.b16 %v126
  %v798 = vunpack.c.h.b16 %v126
  %v799 = vunpack.c.l.b16 %v127
  %v800 = vunpack.c.h.b16 %v127
  %v801 = vunpack.c.l.b16 %v128
  %v802 = vunpack.c.h.b16 %v128
  %v803 = vunpack.c.l.b16 %v129
  %v804 = vunpack.c.h.b16 %v129
  %v805 = vunpack.c.l.b16 %v130
  %v806 = vunpack.c.h.b16 %v130
  %v807 = vunpack.c.l.b16 %v131
  %v808 = vunpack.c.h.b16 %v131
  %v809 = vunpack.c.l.b16 %v132
  %v810 = vunpack.c.h.b16 %v132
  %v811 = vunpack.c.l.b16 %v133
  %v812 = vunpack.c.h.b16 %v133
  %v813 = vunpack.c.l.b16 %v134
  %v814 = vunpack.c.h.b16 %v134
  %v815 = vunpack.c.l.b16 %v135
  %v816 = vunpack.c.h.b16 %v135
  %v817 = vunpack.c.l.b16 %v136
  %v818 = vunpack.c.h.b16 %v136
  %v819 = vunpack.c.l.b16 %v137
  %v820 = vunpack.c.h.b16 %v137
  %v821 = vunpack.c.l.b16 %v138
  %v822 = vunpack.c.h.b16 %v138
  %v823 = vunpack.c.l.b16 %v139
  %v824 = vunpack.c.h.b16 %v139
  %v825 = vunpack.c.l.b16 %v140
  %v826 = vunpack.c.h.b16 %v140
  %v827 = vunpack.c.l.b16 %v141
  %v828 = vunpack.c.h.b16 %v141
  %v829 = vunpack.c.l.b16 %v142
  %v830 = vunpack.c.h.b16 %v142
  %v831 = vunpack.c.l.b16 %v143
  %v832 = vunpack.c.h.b16 %v143
  %v833 = vunpack.c.l.b16 %v144
  %v834 = vunpack.c.h.b16 %v144
  %v835 = vunpack.c.l.b16 %v145
  %v836 = vunpack.c.h.b16 %v145
  %v837 = vunpack.c.l.b16 %v146
  %v838 = vunpack.c.h.b16 %v146
  %v839 = vunpack.c.l.b16 %v147
  %v840 = vunpack.c.h.b16 %v147
  %v841 = vunpack.c.l.b16 %v148
  %v842 = vunpack.c.h.b16 %v148
  %v843 = vunpack.c.l.b16 %v149
  %v844 = vunpack.c.h.b16 %v149
  %v845 = vunpack.c.l.b16 %v150
  %v846 = vunpack.c.h.b16 %v150
  %v847 = vunpack.c.l.b16 %v151
  %v848 = vunpack.c.h.b16 %v151
  %v849 = vunpack.c.l.b16 %v152
  %v850 = vunpack.c.h.b16 %v152
  %v851 = vunpack.c.l.b16 %v153
  %v852 = vunpack.c.h.b16 %v153
  %v853 = vunpack.c.l.b16 %v154
  %v854 = vunpack.c.h.b16 %v154
  %v855 = vunpack.c.l.b16 %v155
  %v856 = vunpack.c.h.b16 %v155
  %v857 = vunpack.c.l.b16 %v156
  %v858 = vunpack.c.h.b16 %v156
  %v859 = vunpack.c.l.b16 %v157
  %v860 = vunpack.c.h.b16 %v157
  %v861 = vunpack.c.l.b16 %v158
  %v862 = vunpack.c.h.b16 %v158
  %v863 = vunpack.c.l.b16 %v159
  %v864 = vunpack.c.h.b16 %v159
  %v865 = vunpack.c.l.b16 %v160
  %v866 = vunpack.c.h.b16 %v160
  %v867 = vunpack.c.l.b16 %v161
  %v868 = vunpack.c.h.b16 %v161
  %v869 = vunpack.c.l.b16 %v162
  %v870 = vunpack.c.h.b16 %v162
  %v871 = vunpack.c.l.b16 %v163
  %v872 = vunpack.c.h.b16 %v163
  %v873 = vunpack.c.l.b16 %v164
  %v874 = vunpack.c.h.b16 %v164
  %v875 = vunpack.c.l.b16 %v165
  %v876 = vunpack.c.h.b16 %v165
  %v877 = vunpack.c.l.b16 %v166
  %v878 = vunpack.c.h.b16 %v166
  %v879 = vunpack.c.l.b16 %v167
  %v880 = vunpack.c.h.b16 %v167
  %v881 = vunpack.c.l.b16 %v168
  %v882 = vunpack.c.h.b16 %v168
  %v883 = vunpack.c.l.b16 %v169
  %v884 = vunpack.c.h.b16 %v169
  %v885 = vunpack.c.l.b16 %v170
  %v886 = vunpack.c.h.b16 %v170
  %v887 = vunpack.c.l.b16 %v171
  %v888 = vunpack.c.h.b16 %v171
  %v889 = vunpack.c.l.b16 %v172
  %v890 = vunpack.c.h.b16 %v172
  %v891 = vunpack.c.l.b16 %v173
  %v892 = vunpack.c.h.b16 %v173
  %v893 = vunpack.c.l.b16 %v174
  %v894 = vunpack.c.h.b16 %v174
  %v895 = vunpack.c.l.b16 %v175
  %v896 = vunpack.c.h.b16 %v175
  %v897 = vunpack.c.l.b16 %v176
  %v898 = vunpack.c.h.b16 %v176
  %v899 = vunpack.c.l.b16 %v177
  %v900 = vunpack.c.h.b16 %v177
  %v901 = vunpack.c.l.b16 %v178
  %v902 = vunpack.c.h.b16 %v178
  %v903 = vunpack.c.l.b16 %v179
  %v904 = vunpack.c.h.b16 %v179
  %v905 = vunpack.c.l.b16 %v180
  %v906 = vunpack.c.h.b16 %v180
  %v907 = vunpack.c.l.b16 %v181
  %v908 = vunpack.c.h.b16 %v181
  %v909 = vunpack.c.l.b16 %v182
  %v910 = vunpack.c.h.b16 %v182
  %v911 = vunpack.c.l.b16 %v183
  %v912 = vunpack.c.h.b16 %v183
  %v913 = vunpack.c.l.b16 %v184
  %v914 = vunpack.c.h.b16 %v184
  %v915 = vunpack.c.l.b16 %v185
  %v916 = vunpack.c.h.b16 %v185
  %v917 = vunpack.c.l.b16 %v186
  %v918 = vunpack.c.h.b16 %v186
  %v919 = vunpack.c.l.b16 %v187
  %v920 = vunpack.c.h.b16 %v187
  %v921 = vunpack.c.l.b16 %v188
  %v922 = vunpack.c.h.b16 %v188
  %v923 = vunpack.c.l.b16 %v189
  %v924 = vunpack.c.h.b16 %v189
  %v925 = vunpack.c.l.b16 %v190
  %v926 = vunpack.c.h.b16 %v190
  %v927 = vunpack.c.l.b16 %v191
  %v928 = vunpack.c.h.b16 %v191
  %v929 = vunpack.c.l.b16 %v192
  %v930 = vunpack.c.h.b16 %v192
  %v931 = vunpack.c.l.b16 %v193
  %v932 = vunpack.c.h.b16 %v193
  %v933 = vunpack.c.l.b16 %v194
  %v934 = vunpack.c.h.b16 %v194
  %v935 = vunpack.c.l.b16 %v195
  %v936 = vunpack.c.h.b16 %v195
  %v937 = vunpack.c.l.b16 %v196
  %v938 = vunpack.c.h.b16 %v196
  %v939 = vunpack.c.l.b16 %v197
  %v940 = vunpack.c.h.b16 %v197
  %v941 = vunpack.c.l.b16 %v198
  %v942 = vunpack.c.h.b16 %v198
  %v943 = vunpack.c.l.b16 %v199
  %v944 = vunpack.c.h.b16 %v199
  %v945 = vunpack.c.l.b16 %v200
  %v946 = vunpack.c.h.b16 %v200
  %v947 = vunpack.c.l.b16 %v201
  %v948 = vunpack.c.h.b16 %v201
  %v949 = vunpack.c.l.b16 %v202
  %v950 = vunpack.c.h.b16 %v202
  %v951 = vunpack.c.l.b16 %v203
  %v952 = vunpack.c.h.b16 %v203
  %v953 = vunpack.c.l.b16 %v204
  %v954 = vunpack.c.h.b16 %v204
  %v955 = vunpack.c.l.b16 %v205
  %v956 = vunpack.c.h.b16 %v205
  %v957 = vunpack.c.l.b16 %v206
  %v958 = vunpack.c.h.b16 %v206
  %v959 = vunpack.c.l.b16 %v207
  %v960 = vunpack.c.h.b16 %v207
  %v961 = vunpack.c.l.b16 %v208
  %v962 = vunpack.c.h.b16 %v208
  %v963 = vunpack.c.l.b16 %v209
  %v964 = vunpack.c.h.b16 %v209
  %v965 = vunpack.c.l.b16 %v210
  %v966 = vunpack.c.h.b16 %v210
  %v967 = vunpack.c.l.b16 %v211
  %v968 = vunpack.c.h.b16 %v211
  %v969 = vunpack.c.l.b16 %v212
  %v970 = vunpack.c.h.b16 %v212
  %v971 = vunpack.c.l.b16 %v213
  %v972 = vunpack.c.h.b16 %v213
  %v973 = vunpack.c.l.b16 %v214
  %v974 = vunpack.c.h.b16 %v214
  %v975 = vunpack.c.l.b16 %v215
  %v976 = vunpack.c.h.b16 %v215
  %v977 = vunpack.c.l.b16 %v216
  %v978 = vunpack.c.h.b16 %v216
  %v979 = vunpack.c.l.b16 %v217
  %v980 = vunpack.c.h.b16 %v217
  %v981 = vunpack.c.l.b16 %v218
  %v982 = vunpack.c.h.b16 %v218
  %v983 = vunpack.c.l.b16 %v219
  %v984 = vunpack.c.h.b16 %v219
  %v985 = vunpack.c.l.b16 %v220
  %v986 = vunpack.c.h.b16 %v220
  %v987 = vunpack.c.l.b16 %v221
  %v988 = vunpack.c.h.b16 %v221
  %v989 = vunpack.c.l.b16 %v222
  %v990 = vunpack.c.h.b16 %v222
  %v991 = vunpack.c.l.b16 %v223
  %v992 = vunpack.c.h.b16 %v223
  %v993 = vunpack.c.l.b16 %v224
  %v994 = vunpack.c.h.b16 %v224
  %v995 = vunpack.c.l.b16 %v225
  %v996 = vunpack.c.h.b16 %v225
  %v997 = vunpack.c.l.b16 %v226
  %v998 = vunpack.c.h.b16 %v226
  %v999 = vunpack.c.l.b16 %v227
  %v1000 = vunpack.c.h.b16 %v227
  %v1001 = vunpack.c.l.b16 %v228
  %v1002 = vunpack.c.h.b16 %v228
  %v1003 = vunpack.c.l.b16 %v229
  %v1004 = vunpack.c.h.b16 %v229
  %v1005 = vunpack.c.l.b16 %v230
  %v1006 = vunpack.c.h.b16 %v230
  %v1007 = vunpack.c.l.b16 %v231
  %v1008 = vunpack.c.h.b16 %v231
  %v1009 = vunpack.c.l.b16 %v232
  %v1010 = vunpack.c.h.b16 %v232
  %v1011 = vunpack.c.l.b16 %v233
  %v1012 = vunpack.c.h.b16 %v233
  %v1013 = vunpack.c.l.b16 %v234
  %v1014 = vunpack.c.h.b16 %v234
  %v1015 = vunpack.c.l.b16 %v235
  %v1016 = vunpack.c.h.b16 %v235
  %v1017 = vunpack.c.l.b16 %v236
  %v1018 = vunpack.c.h.b16 %v236
  %v1019 = vunpack.c.l.b16 %v237
  %v1020 = vunpack.c.h.b16 %v237
  %v1021 = vunpack.c.l.b16 %v238
  %v1022 = vunpack.c.h.b16 %v238
  %v1023 = vunpack.c.l.b16 %v239
  %v1024 = vunpack.c.h.b16 %v239
  %v1025 = vunpack.c.l.b16 %v240
  %v1026 = vunpack.c.h.b16 %v240
  %v1027 = vunpack.c.l.b16 %v241
  %v1028 = vunpack.c.h.b16 %v241
  %v1029 = vunpack.c.l.b16 %v242
  %v1030 = vunpack.c.h.b16 %v242
  %v1031 = vunpack.c.l.b16 %v243
  %v1032 = vunpack.c.h.b16 %v243
  %v1033 = vunpack.c.l.b16 %v244
  %v1034 = vunpack.c.h.b16 %v244
  %v1035 = vunpack.c.l.b16 %v245
  %v1036 = vunpack.c.h.b16 %v245
  %v1037 = vunpack.c.l.b16 %v246
  %v1038 = vunpack.c.h.b16 %v246
  %v1039 = vunpack.c.l.b16 %v247
  %v1040 = vunpack.c.h.b16 %v247
  %v1041 = vunpack.c.l.b16 %v248
  %v1042 = vunpack.c.h.b16 %v248
  %v1043 = vunpack.c.l.b16 %v249
  %v1044 = vunpack.c.h.b16 %v249
  %v1045 = vunpack.c.l.b16 %v250
  %v1046 = vunpack.c.h.b16 %v250
  %v1047 = vunpack.c.l.b16 %v251
  %v1048 = vunpack.c.h.b16 %v251
  %v1049 = vunpack.c.l.b16 %v252
  %v1050 = vunpack.c.h.b16 %v252
  %v1051 = vunpack.c.l.b16 %v253
  %v1052 = vunpack.c.h.b16 %v253
  %v1053 = vunpack.c.l.b16 %v254
  %v1054 = vunpack.c.h.b16 %v254
  %v1055 = vunpack.c.l.b16 %v255
  %v1056 = vunpack.c.h.b16 %v255
  %v1057 = vunpack.c.l.b16 %v256
  %v1058 = vunpack.c.h.b16 %v256
  %v1059 = vunpack.c.l.b16 %v257
  %v1060 = vunpack.c.h.b16 %v257
  %v1061 = vunpack.c.l.b16 %v258
  %v1062 = vunpack.c.h.b16 %v258
  %v1063 = vunpack.c.l.b16 %v259
  %v1064 = vunpack.c.h.b16 %v259
  %v1065 = vunpack.c.l.b16 %v260
  %v1066 = vunpack.c.h.b16 %v260
  %v1067 = vunpack.c.l.b16 %v261
  %v1068 = vunpack.c.h.b16 %v261
  %v1069 = vunpack.c.l.b16 %v262
  %v1070 = vunpack.c.h.b16 %v262
  %v1071 = vunpack.c.l.b16 %v263
  %v1072 = vunpack.c.h.b16 %v263
  %v1073 = vunpack.c.l.b16 %v264
  %v1074 = vunpack.c.h.b16 %v264
  %v1075 = vunpack.c.l.b16 %v265
  %v1076 = vunpack.c.h.b16 %v265
  %v1077 = vunpack.c.l.b16 %v266
  %v1078 = vunpack.c.h.b16 %v266
  %v1079 = vunpack.c.l.b16 %v267
  %v1080 = vunpack.c.h.b16 %v267
  %v1081 = vunpack.c.l.b16 %v268
  %v1082 = vunpack.c.h.b16 %v268
  %v1083 = vunpack.c.l.b16 %v269
  %v1084 = vunpack.c.h.b16 %v269
  %v1085 = vunpack.c.l.b16 %v270
  %v1086 = vunpack.c.h.b16 %v270
  %v1087 = vunpack.c.l.b16 %v271
  %v1088 = vunpack.c.h.b16 %v271
  %v1089 = vunpack.c.l.b16 %v272
  %v1090 = vunpack.c.h.b16 %v272
  %v1091 = vunpack.c.l.b16 %v273
  %v1092 = vunpack.c.h.b16 %v273
  %v1093 = vunpack.c.l.b16 %v274
  %v1094 = vunpack.c.h.b16 %v274
  %v1095 = vunpack.c.l.b16 %v275
  %v1096 = vunpack.c.h.b16 %v275
  %v1097 = vunpack.c.l.b16 %v276
  %v1098 = vunpack.c.h.b16 %v276
  %v1099 = vunpack.c.l.b16 %v277
  %v1100 = vunpack.c.h.b16 %v277
  %v1101 = vunpack.c.l.b16 %v278
  %v1102 = vunpack.c.h.b16 %v278
  %v1103 = vunpack.c.l.b16 %v279
  %v1104 = vunpack.c.h.b16 %v279
  %v1105 = vunpack.c.l.b16 %v280
  %v1106 = vunpack.c.h.b16 %v280
  %v1107 = vunpack.c.l.b16 %v281
  %v1108 = vunpack.c.h.b16 %v281
  %v1109 = vunpack.c.l.b16 %v282
  %v1110 = vunpack.c.h.b16 %v282
  %v1111 = vunpack.c.l.b16 %v283
  %v1112 = vunpack.c.h.b16 %v283
  %v1113 = vunpack.c.l.b16 %v284
  %v1114 = vunpack.c.h.b16 %v284
  %v1115 = vunpack.c.l.b16 %v285
  %v1116 = vunpack.c.h.b16 %v285
  %v1117 = vunpack.c.l.b16 %v286
  %v1118 = vunpack.c.h.b16 %v286
  %v1119 = vunpack.c.l.b16 %v287
  %v1120 = vunpack.c.h.b16 %v287
  %v1121 = vunpack.c.l.b16 %v288
  %v1122 = vunpack.c.h.b16 %v288
  %v1123 = vunpack.c.l.b16 %v289
  %v1124 = vunpack.c.h.b16 %v289
  %v1125 = vunpack.c.l.b16 %v290
  %v1126 = vunpack.c.h.b16 %v290
  %v1127 = vpack.c.b16 %v617, %v615
  %v1128 = vpack.c.b16 %v618, %v616
  %v1129 = vpack.c.b16 %v621, %v619
  %v1130 = vpack.c.b16 %v622, %v620
  %v1131 = vpack.c.b16 %v625, %v623
  %v1132 = vpack.c.b16 %v626, %v624
  %v1133 = vpack.c.b16 %v629, %v627
  %v1134 = vpack.c.b16 %v630, %v628
  %v1135 = vpack.c.b16 %v633, %v631
  %v1136 = vpack.c.b16 %v634, %v632
  %v1137 = vpack.c.b16 %v637, %v635
  %v1138 = vpack.c.b16 %v638, %v636
  %v1139 = vpack.c.b16 %v641, %v639
  %v1140 = vpack.c.b16 %v642, %v640
  %v1141 = vpack.c.b16 %v645, %v643
  %v1142 = vpack.c.b16 %v646, %v644
  %v1143 = vpack.c.b16 %v649, %v647
  %v1144 = vpack.c.b16 %v650, %v648
  %v1145 = vpack.c.b16 %v653, %v651
  %v1146 = vpack.c.b16 %v654, %v652
  %v1147 = vpack.c.b16 %v657, %v655
  %v1148 = vpack.c.b16 %v658, %v656
  %v1149 = vpack.c.b16 %v661, %v659
  %v1150 = vpack.c.b16 %v662, %v660
  %v1151 = vpack.c.b16 %v665, %v663
  %v1152 = vpack.c.b16 %v666, %v664
  %v1153 = vpack.c.b16 %v669, %v667
  %v1154 = vpack.c.b16 %v670, %v668
  %v1155 = vpack.c.b16 %v673, %v671
  %v1156 = vpack.c.b16 %v674, %v672
  %v1157 = vpack.c.b16 %v677, %v675
  %v1158 = vpack.c.b16 %v678, %v676
  %v1159 = vpack.c.b16 %v681, %v679
  %v1160 = vpack.c.b16 %v682, %v680
  %v1161 = vpack.c.b16 %v685, %v683
  %v1162 = vpack.c.b16 %v686, %v684
  %v1163 = vpack.c.b16 %v689, %v687
  %v1164 = vpack.c.b16 %v690, %v688
  %v1165 = vpack.c.b16 %v693, %v691
  %v1166 = vpack.c.b16 %v694, %v692
  %v1167 = vpack.c.b16 %v697, %v695
  %v1168 = vpack.c.b16 %v698, %v696
  %v1169 = vpack.c.b16 %v701, %v699
  %v1170 = vpack.c.b16 %v702, %v700
  %v1171 = vpack.c.b16 %v705, %v703
  %v1172 = vpack.c.b16 %v706, %v704
  %v1173 = vpack.c.b16 %v709, %v707
  %v1174 = vpack.c.b16 %v710, %v708
  %v1175 = vpack.c.b16 %v713, %v711
  %v1176 = vpack.c.b16 %v714, %v712
  %v1177 = vpack.c.b16 %v717, %v715
  %v1178 = vpack.c.b16 %v718, %v716
  %v1179 = vpack.c.b16 %v721, %v719
  %v1180 = vpack.c.b16 %v722, %v720
  %v1181 = vpack.c.b16 %v725, %v723
  %v1182 = vpack.c.b16 %v726, %v724
  %v1183 = vpack.c.b16 %v729, %v727
  %v1184 = vpack.c.b16 %v730, %v728
  %v1185 = vpack.c.b16 %v733, %v731
  %v1186 = vpack.c.b16 %v734, %v732
  %v1187 = vpack.c.b16 %v737, %v735
  %v1188 = vpack.c.b16 %v738, %v736
  %v1189 = vpack.c.b16 %v741, %v739
  %v1190 = vpack.c.b16 %v742, %v740
  %v1191 = vpack.c.b16 %v745, %v743
  %v1192 = vpack.c.b16 %v746, %v744
  %v1193 = vpack.c.b16 %v749, %v747
  %v1194 = vpack.c.b16 %v750, %v748
  %v1195 = vpack.c.b16 %v753, %v751
  %v1196 = vpack.c.b16 %v754, %v752
  %v1197 = vpack.c.b16 %v757, %v755
  %v1198 = vpack.c.b16 %v758, %v756
  %v1199 = vpack.c.b16 %v761, %v759
  %v1200 = vpack.c.b16 %v762, %v760
  %v1201 = vpack.c.b16 %v765, %v763
  %v1202 = vpack.c.b16 %v766, %v764
  %v1203 = vpack.c.b16 %v769, %v767
  %v1204 = vpack.c.b16 %v770, %v768
  %v1205 = vpack.c.b16 %v773, %v771
  %v1206 = vpack.c.b16 %v774, %v772
  %v1207 = vpack.c.b16 %v777, %v775
  %v1208 = vpack.c.b16 %v778, %v776
  %v1209 = vpack.c.b16 %v781, %v779
  %v1210 = vpack.c.b16 %v782, %v780
  %v1211 = vpack.c.b16 %v785, %v783
  %v1212 = vpack.c.b16 %v786, %v784
  %v1213 = vpack.c.b16 %v789, %v787
  %v1214 = vpack.c.b16 %v790, %v788
  %v1215 = vpack.c.b16 %v793, %v791
  %v1216 = vpack.c.b16 %v794, %v792
  %v1217 = vpack.c.b16 %v797, %v795
  %v1218 = vpack.c.b16 %v798, %v796
  %v1219 = vpack.c.b16 %v801, %v799
  %v1220 = vpack.c.b16 %v802, %v800
  %v1221 = vpack.c.b16 %v805, %v803
  %v1222 = vpack.c.b16 %v806, %v804
  %v1223 = vpack.c.b16 %v809, %v807
  %v1224 = vpack.c.b16 %v810, %v808
  %v1225 = vpack.c.b16 %v813, %v811
  %v1226 = vpack.c.b16 %v814, %v812
  %v1227 = vpack.c.b16 %v817, %v815
  %v1228 = vpack.c.b16 %v818, %v816
  %v1229 = vpack.c.b16 %v821, %v819
  %v1230 = vpack.c.b16 %v822, %v820
  %v1231 = vpack.c.b16 %v825, %v823
  %v1232 = vpack.c.b16 %v826, %v824
  %v1233 = vpack.c.b16 %v829, %v827
  %v1234 = vpack.c.b16 %v830, %v828
  %v1235 = vpack.c.b16 %v833, %v831
  %v1236 = vpack.c.b16 %v834, %v832
  %v1237 = vpack.c.b16 %v837, %v835
  %v1238 = vpack.c.b16 %v838, %v836
  %v1239 = vpack.c.b16 %v841, %v839
  %v1240 = vpack.c.b16 %v842, %v840
  %v1241 = vpack.c.b16 %v845, %v843
  %v1242 = vpack.c.b16 %v846, %v844
  %v1243 = vpack.c.b16 %v849, %v847
  %v1244 = vpack.c.b16 %v850, %v848
  %v1245 = vpack.c.b16 %v853, %v851
  %v1246 = vpack.c.b16 %v854, %v852
  %v1247 = vpack.c.b16 %v857, %v855
  %v1248 = vpack.c.b16 %v858, %v856
  %v1249 = vpack.c.b16 %v861, %v859
  %v1250 = vpack.c.b16 %v862, %v860
  %v1251 = vpack.c.b16 %v865, %v863
  %v1252 = vpack.c.b16 %v866, %v864
  %v1253 = vpack.c.b16 %v869, %v867
  %v1254 = vpack.c.b16 %v870, %v868
  %v1255 = vpack.c.b16 %v873, %v871
  %v1256 = vpack.c.b16 %v874, %v872
  %v1257 = vpack.c.b16 %v877, %v875
  %v1258 = vpack.c.b16 %v878, %v876
  %v1259 = vpack.c.b16 %v881, %v879
  %v1260 = vpack.c.b16 %v882, %v880
  %v1261 = vpack.c.b16 %v885, %v883
  %v1262 = vpack.c.b16 %v886, %v884
  %v1263 = vpack.c.b16 %v889, %v887
  %v1264 = vpack.c.b16 %v890, %v888
  %v1265 = vpack.c.b16 %v893, %v891
  %v1266 = vpack.c.b16 %v894, %v892
  %v1267 = vpack.c.b16 %v897, %v895
  %v1268 = vpack.c.b16 %v898, %v896
  %v1269 = vpack.c.b16 %v901, %v899
  %v1270 = vpack.c.b16 %v902, %v900
  %v1271 = vpack.c.b16 %v905, %v903
  %v1272 = vpack.c.b16 %v906, %v904
  %v1273 = vpack.c.b16 %v909, %v907
  %v1274 = vpack.c.b16 %v910, %v908
  %v1275 = vpack.c.b16 %v913, %v911
  %v1276 = vpack.c.b16 %v914, %v912
  %v1277 = vpack.c.b16 %v917, %v915
  %v1278 = vpack.c.b16 %v918, %v916
  %v1279 = vpack.c.b16 %v921, %v919
  %v1280 = vpack.c.b16 %v922, %v920
  %v1281 = vpack.c.b16 %v925, %v923
  %v1282 = vpack.c.b16 %v926, %v924
  %v1283 = vpack.c.b16 %v929, %v927
  %v1284 = vpack.c.b16 %v930, %v928
  %v1285 = vpack.c.b16 %v933, %v931
  %v1286 = vpack.c.b16 %v934, %v932
  %v1287 = vpack.c.b16 %v937, %v935
  %v1288 = vpack.c.b16 %v938, %v936
  %v1289 = vpack.c.b16 %v941, %v939
  %v1290 = vpack.c.b16 %v942, %v940
  %v1291 = vpack.c.b16 %v945, %v943
  %v1292 = vpack.c.b16 %v946, %v944
  %v1293 = vpack.c.b16 %v949, %v947
  %v1294 = vpack.c.b16 %v950, %v948
  %v1295 = vpack.c.b16 %v953, %v951
  %v1296 = vpack.c.b16 %v954, %v952
  %v1297 = vpack.c.b16 %v957, %v955
  %v1298 = vpack.c.b16 %v958, %v956
  %v1299 = vpack.c.b16 %v961, %v959
  %v1300 = vpack.c.b16 %v962, %v960
  %v1301 = vpack.c.b16 %v965, %v963
  %v1302 = vpack.c.b16 %v966, %v964
  %v1303 = vpack.c.b16 %v969, %v967
  %v1304 = vpack.c.b16 %v970, %v968
  %v1305 = vpack.c.b16 %v973, %v971
  %v1306 = vpack.c.b16 %v974, %v972
  %v1307 = vpack.c.b16 %v977, %v975
  %v1308 = vpack.c.b16 %v978, %v976
  %v1309 = vpack.c.b16 %v981, %v979
  %v1310 = vpack.c.b16 %v982, %v980
  %v1311 = vpack.c.b16 %v985, %v983
  %v1312 = vpack.c.b16 %v986, %v984
  %v1313 = vpack.c.b16 %v989, %v987
  %v1314 = vpack.c.b16 %v990, %v988
  %v1315 = vpack.c.b16 %v993, %v991
  %v1316 = vpack.c.b16 %v994, %v992
  %v1317 = vpack.c.b16 %v997, %v995
  %v1318 = vpack.c.b16 %v998, %v996
  %v1319 = vpack.c.b16 %v1001, %v999
  %v1320 = vpack.c.b16 %v1002, %v1000
  %v1321 = vpack.c.b16 %v1005, %v1003
  %v1322 = vpack.c.b16 %v1006, %v1004
  %v1323 = vpack.c.b16 %v1009, %v1007
  %v1324 = vpack.c.b16 %v1010, %v1008
  %v1325 = vpack.c.b16 %v1013, %v1011
  %v1326 = vpack.c.b16 %v1014, %v1012
  %v1327 = vpack.c.b16 %v1017, %v1015
  %v1328 = vpack.c.b16 %v1018, %v1016
  %v1329 = vpack.c.b16 %v1021, %v1019
  %v1330 = vpack.c.b16 %v1022, %v1020
  %v1331 = vpack.c.b16 %v1025, %v1023
  %v1332 = vpack.c.b16 %v1026, %v1024
  %v1333 = vpack.c.b16 %v1029, %v1027
  %v1334 = vpack.c.b16 %v1030, %v1028
  %v1335 = vpack.c.b16 %v1033, %v1031
  %v1336 = vpack.c.b16 %v1034, %v1032
  %v1337 = vpack.c.b16 %v1037, %v1035
  %v1338 = vpack.c.b16 %v1038, %v1036
  %v1339 = vpack.c.b16 %v1041, %v1039
  %v1340 = vpack.c.b16 %v1042, %v1040
  %v1341 = vpack.c.b16 %v1045, %v1043
  %v1342 = vpack.c.b16 %v1046, %v1044
  %v1343 = vpack.c.b16 %v1049, %v1047
  %v1344 = vpack.c.b16 %v1050, %v1048
  %v1345 = vpack.c.b16 %v1053, %v1051
  %v1346 = vpack.c.b16 %v1054, %v1052
  %v1347 = vpack.c.b16 %v1057, %v1055
  %v1348 = vpack.c.b16 %v1058, %v1056
  %v1349 = vpack.c.b16 %v1061, %v1059
  %v1350 = vpack.c.b16 %v1062, %v1060
  %v1351 = vpack.c.b16 %v1065, %v1063
  %v1352 = vpack.c.b16 %v1066, %v1064
  %v1353 = vpack.c.b16 %v1069, %v1067
  %v1354 = vpack.c.b16 %v1070, %v1068
  %v1355 = vpack.c.b16 %v1073, %v1071
  %v1356 = vpack.c.b16 %v1074, %v1072
  %v1357 = vpack.c.b16 %v1077, %v1075
  %v1358 = vpack.c.b16 %v1078, %v1076
  %v1359 = vpack.c.b16 %v1081, %v1079
  %v1360 = vpack.c.b16 %v1082, %v1080
  %v1361 = vpack.c.b16 %v1085, %v1083
  %v1362 = vpack.c.b16 %v1086, %v1084
  %v1363 = vpack.c.b16 %v1089, %v1087
  %v1364 = vpack.c.b16 %v1090, %v1088
  %v1365 = vpack.c.b16 %v1093, %v1091
  %v1366 = vpack.c.b16 %v1094, %v1092
  %v1367 = vpack.c.b16 %v1097, %v1095
  %v1368 = vpack.c.b16 %v1098, %v1096
  %v1369 = vpack.c.b16 %v1101, %v1099
  %v1370 = vpack.c.b16 %v1102, %v1100
  %v1371 = vpack.c.b16 %v1105, %v1103
  %v1372 = vpack.c.b16 %v1106, %v1104
  %v1373 = vpack.c.b16 %v1109, %v1107
  %v1374 = vpack.c.b16 %v1110, %v1108
  %v1375 = vpack.c.b16 %v1113, %v1111
  %v1376 = vpack.c.b16 %v1114, %v1112
  %v1377 = vpack.c.b16 %v1117, %v1115
  %v1378 = vpack.c.b16 %v1118, %v1116
  %v1379 = vpack.c.b16 %v1121, %v1119
  %v1380 = vpack.c.b16 %v1122, %v1120
  %v1381 = vpack.c.b16 %v1125, %v1123
  %v1382 = vpack.c.b16 %v1126, %v1124
  %1639 = vmatprep.subr.bf16.mxu0 %v1142
  %1640 = vmatpush1.bf16.msra.mxu0 %v1141
  %1641 = vmatprep.subr.bf16.mxu0 %v1140
  %1642 = vmatpush1.bf16.msra.mxu0 %v1139
  %1643 = vmatprep.subr.bf16.mxu0 %v1138
  %1644 = vmatpush1.bf16.msra.mxu0 %v1137
  %1645 = vmatprep.subr.bf16.mxu0 %v1136
  %1646 = vmatpush1.bf16.msra.mxu0 %v1135
  %1647 = vmatprep.subr.bf16.mxu0 %v1134
  %1648 = vmatpush1.bf16.msra.mxu0 %v1133
  %1649 = vmatprep.subr.bf16.mxu0 %v1132
  %1650 = vmatpush1.bf16.msra.mxu0 %v1131
  %1651 = vmatprep.subr.bf16.mxu0 %v1130
  %1652 = vmatpush1.bf16.msra.mxu0 %v1129
  %1653 = vmatprep.subr.bf16.mxu0 %v1128
  %1654 = vmatpush1.bf16.msra.mxu0 %v1127
  %1655 = vmatprep.subr.bf16.mxu0 %v1158
  %1656 = vmatpush2.bf16.msra.mxu0 %v1157
  %1657 = vmatprep.subr.bf16.mxu0 %v1156
  %1658 = vmatpush2.bf16.msra.mxu0 %v1155
  %1659 = vmatprep.subr.bf16.mxu0 %v1154
  %1660 = vmatpush2.bf16.msra.mxu0 %v1153
  %1661 = vmatprep.subr.bf16.mxu0 %v1152
  %1662 = vmatpush2.bf16.msra.mxu0 %v1151
  %1663 = vmatprep.subr.bf16.mxu0 %v1150
  %1664 = vmatpush2.bf16.msra.mxu0 %v1149
  %1665 = vmatprep.subr.bf16.mxu0 %v1148
  %1666 = vmatpush2.bf16.msra.mxu0 %v1147
  %1667 = vmatprep.subr.bf16.mxu0 %v1146
  %1668 = vmatpush2.bf16.msra.mxu0 %v1145
  %1669 = vmatprep.subr.bf16.mxu0 %v1144
  %1670 = vmatpush2.bf16.msra.mxu0 %v1143
  %1671 = vmatprep.mubr.bf16.mxu0 %v328
  %1672 = vmatmul.mubr.bf16.gmra.mxu0 %v327
  %v1673 = vpop.f32.mrf.mxu0
  %v1674 = vadd.f32 %v296, %v1673
  %v1675 = vpop.f32.mrf.mxu0
  %v1676 = vadd.f32 %v300, %v1675
  %v1677 = vpop.f32.mrf.mxu0
  %v1678 = vpop.f32.mrf.mxu0
  %1679 = vdwg.mxu0
  %1680 = vmatprep.subr.bf16.mxu0 %v1174
  %1681 = vmatpush1.bf16.msra.mxu0 %v1173
  %1682 = vmatprep.subr.bf16.mxu0 %v1172
  %1683 = vmatpush1.bf16.msra.mxu0 %v1171
  %1684 = vmatprep.subr.bf16.mxu0 %v1170
  %1685 = vmatpush1.bf16.msra.mxu0 %v1169
  %1686 = vmatprep.subr.bf16.mxu0 %v1168
  %1687 = vmatpush1.bf16.msra.mxu0 %v1167
  %1688 = vmatprep.subr.bf16.mxu0 %v1166
  %1689 = vmatpush1.bf16.msra.mxu0 %v1165
  %1690 = vmatprep.subr.bf16.mxu0 %v1164
  %1691 = vmatpush1.bf16.msra.mxu0 %v1163
  %1692 = vmatprep.subr.bf16.mxu0 %v1162
  %1693 = vmatpush1.bf16.msra.mxu0 %v1161
  %1694 = vmatprep.subr.bf16.mxu0 %v1160
  %1695 = vmatpush1.bf16.msra.mxu0 %v1159
  %1696 = vmatprep.subr.bf16.mxu0 %v1190
  %1697 = vmatpush2.bf16.msra.mxu0 %v1189
  %1698 = vmatprep.subr.bf16.mxu0 %v1188
  %1699 = vmatpush2.bf16.msra.mxu0 %v1187
  %1700 = vmatprep.subr.bf16.mxu0 %v1186
  %1701 = vmatpush2.bf16.msra.mxu0 %v1185
  %1702 = vmatprep.subr.bf16.mxu0 %v1184
  %1703 = vmatpush2.bf16.msra.mxu0 %v1183
  %1704 = vmatprep.subr.bf16.mxu0 %v1182
  %1705 = vmatpush2.bf16.msra.mxu0 %v1181
  %1706 = vmatprep.subr.bf16.mxu0 %v1180
  %1707 = vmatpush2.bf16.msra.mxu0 %v1179
  %1708 = vmatprep.subr.bf16.mxu0 %v1178
  %1709 = vmatpush2.bf16.msra.mxu0 %v1177
  %1710 = vmatprep.subr.bf16.mxu0 %v1176
  %1711 = vmatpush2.bf16.msra.mxu0 %v1175
  %1712 = vmatprep.mubr.bf16.mxu0 %v330
  %1713 = vmatmul.mubr.bf16.gmra.mxu0 %v329
  %v1714 = vpop.f32.mrf.mxu0
  %v1715 = vadd.f32 %v1674, %v1714
  %v1716 = vpop.f32.mrf.mxu0
  %v1717 = vadd.f32 %v1676, %v1716
  %v1718 = vpop.f32.mrf.mxu0
  %v1719 = vpop.f32.mrf.mxu0
  %1720 = vdwg.mxu0
  %1721 = vmatprep.subr.bf16.mxu0 %v1206
  %1722 = vmatpush1.bf16.msra.mxu0 %v1205
  %1723 = vmatprep.subr.bf16.mxu0 %v1204
  %1724 = vmatpush1.bf16.msra.mxu0 %v1203
  %1725 = vmatprep.subr.bf16.mxu0 %v1202
  %1726 = vmatpush1.bf16.msra.mxu0 %v1201
  %1727 = vmatprep.subr.bf16.mxu0 %v1200
  %1728 = vmatpush1.bf16.msra.mxu0 %v1199
  %1729 = vmatprep.subr.bf16.mxu0 %v1198
  %1730 = vmatpush1.bf16.msra.mxu0 %v1197
  %1731 = vmatprep.subr.bf16.mxu0 %v1196
  %1732 = vmatpush1.bf16.msra.mxu0 %v1195
  %1733 = vmatprep.subr.bf16.mxu0 %v1194
  %1734 = vmatpush1.bf16.msra.mxu0 %v1193
  %1735 = vmatprep.subr.bf16.mxu0 %v1192
  %1736 = vmatpush1.bf16.msra.mxu0 %v1191
  %1737 = vmatprep.subr.bf16.mxu0 %v1222
  %1738 = vmatpush2.bf16.msra.mxu0 %v1221
  %1739 = vmatprep.subr.bf16.mxu0 %v1220
  %1740 = vmatpush2.bf16.msra.mxu0 %v1219
  %1741 = vmatprep.subr.bf16.mxu0 %v1218
  %1742 = vmatpush2.bf16.msra.mxu0 %v1217
  %1743 = vmatprep.subr.bf16.mxu0 %v1216
  %1744 = vmatpush2.bf16.msra.mxu0 %v1215
  %1745 = vmatprep.subr.bf16.mxu0 %v1214
  %1746 = vmatpush2.bf16.msra.mxu0 %v1213
  %1747 = vmatprep.subr.bf16.mxu0 %v1212
  %1748 = vmatpush2.bf16.msra.mxu0 %v1211
  %1749 = vmatprep.subr.bf16.mxu0 %v1210
  %1750 = vmatpush2.bf16.msra.mxu0 %v1209
  %1751 = vmatprep.subr.bf16.mxu0 %v1208
  %1752 = vmatpush2.bf16.msra.mxu0 %v1207
  %1753 = vmatprep.mubr.bf16.mxu0 %v332
  %1754 = vmatmul.mubr.bf16.gmra.mxu0 %v331
  %v1755 = vpop.f32.mrf.mxu0
  %v1756 = vadd.f32 %v1715, %v1755
  %v1757 = vpop.f32.mrf.mxu0
  %v1758 = vadd.f32 %v1717, %v1757
  %v1759 = vpop.f32.mrf.mxu0
  %v1760 = vpop.f32.mrf.mxu0
  %1761 = vdwg.mxu0
  %1762 = vmatprep.subr.bf16.mxu0 %v1238
  %1763 = vmatpush1.bf16.msra.mxu0 %v1237
  %1764 = vmatprep.subr.bf16.mxu0 %v1236
  %1765 = vmatpush1.bf16.msra.mxu0 %v1235
  %1766 = vmatprep.subr.bf16.mxu0 %v1234
  %1767 = vmatpush1.bf16.msra.mxu0 %v1233
  %1768 = vmatprep.subr.bf16.mxu0 %v1232
  %1769 = vmatpush1.bf16.msra.mxu0 %v1231
  %1770 = vmatprep.subr.bf16.mxu0 %v1230
  %1771 = vmatpush1.bf16.msra.mxu0 %v1229
  %1772 = vmatprep.subr.bf16.mxu0 %v1228
  %1773 = vmatpush1.bf16.msra.mxu0 %v1227
  %1774 = vmatprep.subr.bf16.mxu0 %v1226
  %1775 = vmatpush1.bf16.msra.mxu0 %v1225
  %1776 = vmatprep.subr.bf16.mxu0 %v1224
  %1777 = vmatpush1.bf16.msra.mxu0 %v1223
  %1778 = vmatprep.subr.bf16.mxu0 %v1254
  %1779 = vmatpush2.bf16.msra.mxu0 %v1253
  %1780 = vmatprep.subr.bf16.mxu0 %v1252
  %1781 = vmatpush2.bf16.msra.mxu0 %v1251
  %1782 = vmatprep.subr.bf16.mxu0 %v1250
  %1783 = vmatpush2.bf16.msra.mxu0 %v1249
  %1784 = vmatprep.subr.bf16.mxu0 %v1248
  %1785 = vmatpush2.bf16.msra.mxu0 %v1247
  %1786 = vmatprep.subr.bf16.mxu0 %v1246
  %1787 = vmatpush2.bf16.msra.mxu0 %v1245
  %1788 = vmatprep.subr.bf16.mxu0 %v1244
  %1789 = vmatpush2.bf16.msra.mxu0 %v1243
  %1790 = vmatprep.subr.bf16.mxu0 %v1242
  %1791 = vmatpush2.bf16.msra.mxu0 %v1241
  %1792 = vmatprep.subr.bf16.mxu0 %v1240
  %1793 = vmatpush2.bf16.msra.mxu0 %v1239
  %1794 = vmatprep.mubr.bf16.mxu0 %v334
  %1795 = vmatmul.mubr.bf16.gmra.mxu0 %v333
  %v1796 = vpop.f32.mrf.mxu0
  %v1797 = vadd.f32 %v1756, %v1796
  %v1798 = vpop.f32.mrf.mxu0
  %v1799 = vadd.f32 %v1758, %v1798
  %v1800 = vpop.f32.mrf.mxu0
  %v1801 = vpop.f32.mrf.mxu0
  %1802 = vdwg.mxu0
  %1803 = vmatprep.subr.bf16.mxu0 %v1270
  %1804 = vmatpush1.bf16.msra.mxu0 %v1269
  %1805 = vmatprep.subr.bf16.mxu0 %v1268
  %1806 = vmatpush1.bf16.msra.mxu0 %v1267
  %1807 = vmatprep.subr.bf16.mxu0 %v1266
  %1808 = vmatpush1.bf16.msra.mxu0 %v1265
  %1809 = vmatprep.subr.bf16.mxu0 %v1264
  %1810 = vmatpush1.bf16.msra.mxu0 %v1263
  %1811 = vmatprep.subr.bf16.mxu0 %v1262
  %1812 = vmatpush1.bf16.msra.mxu0 %v1261
  %1813 = vmatprep.subr.bf16.mxu0 %v1260
  %1814 = vmatpush1.bf16.msra.mxu0 %v1259
  %1815 = vmatprep.subr.bf16.mxu0 %v1258
  %1816 = vmatpush1.bf16.msra.mxu0 %v1257
  %1817 = vmatprep.subr.bf16.mxu0 %v1256
  %1818 = vmatpush1.bf16.msra.mxu0 %v1255
  %1819 = vmatprep.subr.bf16.mxu0 %v1286
  %1820 = vmatpush2.bf16.msra.mxu0 %v1285
  %1821 = vmatprep.subr.bf16.mxu0 %v1284
  %1822 = vmatpush2.bf16.msra.mxu0 %v1283
  %1823 = vmatprep.subr.bf16.mxu0 %v1282
  %1824 = vmatpush2.bf16.msra.mxu0 %v1281
  %1825 = vmatprep.subr.bf16.mxu0 %v1280
  %1826 = vmatpush2.bf16.msra.mxu0 %v1279
  %1827 = vmatprep.subr.bf16.mxu0 %v1278
  %1828 = vmatpush2.bf16.msra.mxu0 %v1277
  %1829 = vmatprep.subr.bf16.mxu0 %v1276
  %1830 = vmatpush2.bf16.msra.mxu0 %v1275
  %1831 = vmatprep.subr.bf16.mxu0 %v1274
  %1832 = vmatpush2.bf16.msra.mxu0 %v1273
  %1833 = vmatprep.subr.bf16.mxu0 %v1272
  %1834 = vmatpush2.bf16.msra.mxu0 %v1271
  %1835 = vmatprep.mubr.bf16.mxu0 %v336
  %1836 = vmatmul.mubr.bf16.gmra.mxu0 %v335
  %v1837 = vpop.f32.mrf.mxu0
  %v1838 = vadd.f32 %v1797, %v1837
  %v1839 = vpop.f32.mrf.mxu0
  %v1840 = vadd.f32 %v1799, %v1839
  %v1841 = vpop.f32.mrf.mxu0
  %v1842 = vpop.f32.mrf.mxu0
  %1843 = vdwg.mxu0
  %1844 = vmatprep.subr.bf16.mxu0 %v1302
  %1845 = vmatpush1.bf16.msra.mxu0 %v1301
  %1846 = vmatprep.subr.bf16.mxu0 %v1300
  %1847 = vmatpush1.bf16.msra.mxu0 %v1299
  %1848 = vmatprep.subr.bf16.mxu0 %v1298
  %1849 = vmatpush1.bf16.msra.mxu0 %v1297
  %1850 = vmatprep.subr.bf16.mxu0 %v1296
  %1851 = vmatpush1.bf16.msra.mxu0 %v1295
  %1852 = vmatprep.subr.bf16.mxu0 %v1294
  %1853 = vmatpush1.bf16.msra.mxu0 %v1293
  %1854 = vmatprep.subr.bf16.mxu0 %v1292
  %1855 = vmatpush1.bf16.msra.mxu0 %v1291
  %1856 = vmatprep.subr.bf16.mxu0 %v1290
  %1857 = vmatpush1.bf16.msra.mxu0 %v1289
  %1858 = vmatprep.subr.bf16.mxu0 %v1288
  %1859 = vmatpush1.bf16.msra.mxu0 %v1287
  %1860 = vmatprep.subr.bf16.mxu0 %v1318
  %1861 = vmatpush2.bf16.msra.mxu0 %v1317
  %1862 = vmatprep.subr.bf16.mxu0 %v1316
  %1863 = vmatpush2.bf16.msra.mxu0 %v1315
  %1864 = vmatprep.subr.bf16.mxu0 %v1314
  %1865 = vmatpush2.bf16.msra.mxu0 %v1313
  %1866 = vmatprep.subr.bf16.mxu0 %v1312
  %1867 = vmatpush2.bf16.msra.mxu0 %v1311
  %1868 = vmatprep.subr.bf16.mxu0 %v1310
  %1869 = vmatpush2.bf16.msra.mxu0 %v1309
  %1870 = vmatprep.subr.bf16.mxu0 %v1308
  %1871 = vmatpush2.bf16.msra.mxu0 %v1307
  %1872 = vmatprep.subr.bf16.mxu0 %v1306
  %1873 = vmatpush2.bf16.msra.mxu0 %v1305
  %1874 = vmatprep.subr.bf16.mxu0 %v1304
  %1875 = vmatpush2.bf16.msra.mxu0 %v1303
  %1876 = vmatprep.mubr.bf16.mxu0 %v338
  %1877 = vmatmul.mubr.bf16.gmra.mxu0 %v337
  %v1878 = vpop.f32.mrf.mxu0
  %v1879 = vadd.f32 %v1838, %v1878
  %v1880 = vpop.f32.mrf.mxu0
  %v1881 = vadd.f32 %v1840, %v1880
  %v1882 = vpop.f32.mrf.mxu0
  %v1883 = vpop.f32.mrf.mxu0
  %1884 = vdwg.mxu0
  %1885 = vmatprep.subr.bf16.mxu0 %v1334
  %1886 = vmatpush1.bf16.msra.mxu0 %v1333
  %1887 = vmatprep.subr.bf16.mxu0 %v1332
  %1888 = vmatpush1.bf16.msra.mxu0 %v1331
  %1889 = vmatprep.subr.bf16.mxu0 %v1330
  %1890 = vmatpush1.bf16.msra.mxu0 %v1329
  %1891 = vmatprep.subr.bf16.mxu0 %v1328
  %1892 = vmatpush1.bf16.msra.mxu0 %v1327
  %1893 = vmatprep.subr.bf16.mxu0 %v1326
  %1894 = vmatpush1.bf16.msra.mxu0 %v1325
  %1895 = vmatprep.subr.bf16.mxu0 %v1324
  %1896 = vmatpush1.bf16.msra.mxu0 %v1323
  %1897 = vmatprep.subr.bf16.mxu0 %v1322
  %1898 = vmatpush1.bf16.msra.mxu0 %v1321
  %1899 = vmatprep.subr.bf16.mxu0 %v1320
  %1900 = vmatpush1.bf16.msra.mxu0 %v1319
  %1901 = vmatprep.subr.bf16.mxu0 %v1350
  %1902 = vmatpush2.bf16.msra.mxu0 %v1349
  %1903 = vmatprep.subr.bf16.mxu0 %v1348
  %1904 = vmatpush2.bf16.msra.mxu0 %v1347
  %1905 = vmatprep.subr.bf16.mxu0 %v1346
  %1906 = vmatpush2.bf16.msra.mxu0 %v1345
  %1907 = vmatprep.subr.bf16.mxu0 %v1344
  %1908 = vmatpush2.bf16.msra.mxu0 %v1343
  %1909 = vmatprep.subr.bf16.mxu0 %v1342
  %1910 = vmatpush2.bf16.msra.mxu0 %v1341
  %1911 = vmatprep.subr.bf16.mxu0 %v1340
  %1912 = vmatpush2.bf16.msra.mxu0 %v1339
  %1913 = vmatprep.subr.bf16.mxu0 %v1338
  %1914 = vmatpush2.bf16.msra.mxu0 %v1337
  %1915 = vmatprep.subr.bf16.mxu0 %v1336
  %1916 = vmatpush2.bf16.msra.mxu0 %v1335
  %1917 = vmatprep.mubr.bf16.mxu0 %v340
  %1918 = vmatmul.mubr.bf16.gmra.mxu0 %v339
  %v1919 = vpop.f32.mrf.mxu0
  %v1920 = vadd.f32 %v1879, %v1919
  %v1921 = vpop.f32.mrf.mxu0
  %v1922 = vadd.f32 %v1881, %v1921
  %v1923 = vpop.f32.mrf.mxu0
  %v1924 = vpop.f32.mrf.mxu0
  %1925 = vdwg.mxu0
  %1926 = vmatprep.subr.bf16.mxu0 %v1366
  %1927 = vmatpush1.bf16.msra.mxu0 %v1365
  %1928 = vmatprep.subr.bf16.mxu0 %v1364
  %1929 = vmatpush1.bf16.msra.mxu0 %v1363
  %1930 = vmatprep.subr.bf16.mxu0 %v1362
  %1931 = vmatpush1.bf16.msra.mxu0 %v1361
  %1932 = vmatprep.subr.bf16.mxu0 %v1360
  %1933 = vmatpush1.bf16.msra.mxu0 %v1359
  %1934 = vmatprep.subr.bf16.mxu0 %v1358
  %1935 = vmatpush1.bf16.msra.mxu0 %v1357
  %1936 = vmatprep.subr.bf16.mxu0 %v1356
  %1937 = vmatpush1.bf16.msra.mxu0 %v1355
  %1938 = vmatprep.subr.bf16.mxu0 %v1354
  %1939 = vmatpush1.bf16.msra.mxu0 %v1353
  %1940 = vmatprep.subr.bf16.mxu0 %v1352
  %1941 = vmatpush1.bf16.msra.mxu0 %v1351
  %1942 = vmatprep.subr.bf16.mxu0 %v1382
  %1943 = vmatpush2.bf16.msra.mxu0 %v1381
  %1944 = vmatprep.subr.bf16.mxu0 %v1380
  %1945 = vmatpush2.bf16.msra.mxu0 %v1379
  %1946 = vmatprep.subr.bf16.mxu0 %v1378
  %1947 = vmatpush2.bf16.msra.mxu0 %v1377
  %1948 = vmatprep.subr.bf16.mxu0 %v1376
  %1949 = vmatpush2.bf16.msra.mxu0 %v1375
  %1950 = vmatprep.subr.bf16.mxu0 %v1374
  %1951 = vmatpush2.bf16.msra.mxu0 %v1373
  %1952 = vmatprep.subr.bf16.mxu0 %v1372
  %1953 = vmatpush2.bf16.msra.mxu0 %v1371
  %1954 = vmatprep.subr.bf16.mxu0 %v1370
  %1955 = vmatpush2.bf16.msra.mxu0 %v1369
  %1956 = vmatprep.subr.bf16.mxu0 %v1368
  %1957 = vmatpush2.bf16.msra.mxu0 %v1367
  %1958 = vmatprep.mubr.bf16.mxu0 %v342
  %1959 = vmatmul.mubr.bf16.gmra.mxu0 %v341
  %v1960 = vpop.f32.mrf.mxu0
  %v1961 = vadd.f32 %v1920, %v1960
  %v1962 = vpop.f32.mrf.mxu0
  %v1963 = vadd.f32 %v1922, %v1962
  %v1964 = vpop.f32.mrf.mxu0
  %v1965 = vpop.f32.mrf.mxu0
  %1966 = vdwg.mxu0
  %v1967 = vxor.u32 %v1961, 2147483648
  %v1968 = vxor.u32 %v1963, 2147483648
  %v1969 = vmul.f32 %v1967, 1.442695
  %v1970 = vpow.pop %v1969
  %v1971 = vmul.f32 %v1968, 1.442695
  %v1972 = vpow.pop %v1971
  %v1973 = vadd.f32 %v1970, 1.0
  %v1974 = vadd.f32 %v1972, 1.0
  %v1975 = vrcp.pop %v1973
  %v1976 = vmul.f32 1.0, %v1975
  %v1977 = vrcp.pop %v1974
  %v1978 = vmul.f32 1.0, %v1977
  %v1979 = vmul.f32 %v1961, %v1976
  %v1980 = vmul.f32 %v1963, %v1978
  %v1981 = vpack.c.bf16 %v1979, %v1979
  %v1982 = vpack.c.bf16 %v1980, %v1980
  %v1983 = vld [vmem:[%s3] sm:$0xff]
  %v1984 = vld [vmem:[%s3 + $0x8] sm:$0xff]
  %v1985 = vld [vmem:[%s3 + $0x10] sm:$0xff]
  %v1986 = vld [vmem:[%s3 + $0x18] sm:$0xff]
  %v1987 = vld [vmem:[%s3 + $0x20] sm:$0xff]
  %v1988 = vld [vmem:[%s3 + $0x28] sm:$0xff]
  %v1989 = vld [vmem:[%s3 + $0x30] sm:$0xff]
  %v1990 = vld [vmem:[%s3 + $0x38] sm:$0xff]
  %v1991 = vld [vmem:[%s3 + $0x40] sm:$0xff]
  %v1992 = vld [vmem:[%s3 + $0x48] sm:$0xff]
  %v1993 = vld [vmem:[%s3 + $0x50] sm:$0xff]
  %v1994 = vld [vmem:[%s3 + $0x58] sm:$0xff]
  %v1995 = vld [vmem:[%s3 + $0x60] sm:$0xff]
  %v1996 = vld [vmem:[%s3 + $0x68] sm:$0xff]
  %v1997 = vld [vmem:[%s3 + $0x70] sm:$0xff]
  %v1998 = vld [vmem:[%s3 + $0x78] sm:$0xff]
  %v1999 = vld [vmem:[%s3 + $0x80] sm:$0xff]
  %v2000 = vld [vmem:[%s3 + $0x88] sm:$0xff]
  %v2001 = vld [vmem:[%s3 + $0x90] sm:$0xff]
  %v2002 = vld [vmem:[%s3 + $0x98] sm:$0xff]
  %v2003 = vld [vmem:[%s3 + $0xa0] sm:$0xff]
  %v2004 = vld [vmem:[%s3 + $0xa8] sm:$0xff]
  %v2005 = vld [vmem:[%s3 + $0xb0] sm:$0xff]
  %v2006 = vld [vmem:[%s3 + $0xb8] sm:$0xff]
  %v2007 = vld [vmem:[%s3 + $0xc0] sm:$0xff]
  %v2008 = vld [vmem:[%s3 + $0xc8] sm:$0xff]
  %v2009 = vld [vmem:[%s3 + $0xd0] sm:$0xff]
  %v2010 = vld [vmem:[%s3 + $0xd8] sm:$0xff]
  %v2011 = vld [vmem:[%s3 + $0xe0] sm:$0xff]
  %v2012 = vld [vmem:[%s3 + $0xe8] sm:$0xff]
  %v2013 = vld [vmem:[%s3 + $0xf0] sm:$0xff]
  %v2014 = vld [vmem:[%s3 + $0xf8] sm:$0xff]
  %v2015 = vld [vmem:[%s3 + $0x100] sm:$0xff]
  %v2016 = vld [vmem:[%s3 + $0x108] sm:$0xff]
  %v2017 = vld [vmem:[%s3 + $0x110] sm:$0xff]
  %v2018 = vld [vmem:[%s3 + $0x118] sm:$0xff]
  %v2019 = vld [vmem:[%s3 + $0x120] sm:$0xff]
  %v2020 = vld [vmem:[%s3 + $0x128] sm:$0xff]
  %v2021 = vld [vmem:[%s3 + $0x130] sm:$0xff]
  %v2022 = vld [vmem:[%s3 + $0x138] sm:$0xff]
  %v2023 = vld [vmem:[%s3 + $0x140] sm:$0xff]
  %v2024 = vld [vmem:[%s3 + $0x148] sm:$0xff]
  %v2025 = vld [vmem:[%s3 + $0x150] sm:$0xff]
  %v2026 = vld [vmem:[%s3 + $0x158] sm:$0xff]
  %v2027 = vld [vmem:[%s3 + $0x160] sm:$0xff]
  %v2028 = vld [vmem:[%s3 + $0x168] sm:$0xff]
  %v2029 = vld [vmem:[%s3 + $0x170] sm:$0xff]
  %v2030 = vld [vmem:[%s3 + $0x178] sm:$0xff]
  %v2031 = vld [vmem:[%s3 + $0x180] sm:$0xff]
  %v2032 = vld [vmem:[%s3 + $0x188] sm:$0xff]
  %v2033 = vld [vmem:[%s3 + $0x190] sm:$0xff]
  %v2034 = vld [vmem:[%s3 + $0x198] sm:$0xff]
  %v2035 = vld [vmem:[%s3 + $0x1a0] sm:$0xff]
  %v2036 = vld [vmem:[%s3 + $0x1a8] sm:$0xff]
  %v2037 = vld [vmem:[%s3 + $0x1b0] sm:$0xff]
  %v2038 = vld [vmem:[%s3 + $0x1b8] sm:$0xff]
  %v2039 = vld [vmem:[%s3 + $0x1c0] sm:$0xff]
  %v2040 = vld [vmem:[%s3 + $0x1c8] sm:$0xff]
  %v2041 = vld [vmem:[%s3 + $0x1d0] sm:$0xff]
  %v2042 = vld [vmem:[%s3 + $0x1d8] sm:$0xff]
  %v2043 = vld [vmem:[%s3 + $0x1e0] sm:$0xff]
  %v2044 = vld [vmem:[%s3 + $0x1e8] sm:$0xff]
  %v2045 = vld [vmem:[%s3 + $0x1f0] sm:$0xff]
  %v2046 = vld [vmem:[%s3 + $0x1f8] sm:$0xff]
  %v2047 = vld [vmem:[%s4] sm:$0xf]
  %v2049 = vlaneseq
  %v2050 = vshrl.u32 %v2049, 7
  %v2051 = vsub.s32 0, %v2050
  %v2052 = vrot.slane %v2047, %v2051
  %v2053 = vlaneseq
  %v2054 = vshrl.u32 %v2053, 7
  %v2055 = vsub.s32 1, %v2054
  %v2056 = vrot.slane %v2047, %v2055
  %v2057 = vlaneseq
  %v2058 = vshrl.u32 %v2057, 7
  %v2059 = vsub.s32 2, %v2058
  %v2060 = vrot.slane %v2047, %v2059
  %v2061 = vlaneseq
  %v2062 = vshrl.u32 %v2061, 7
  %v2063 = vsub.s32 3, %v2062
  %v2064 = vrot.slane %v2047, %v2063
  %v2133 = vunpack.c.l.b16 %v1983
  %v2134 = vunpack.c.h.b16 %v1983
  %v2135 = vunpack.c.l.b16 %v1984
  %v2136 = vunpack.c.h.b16 %v1984
  %v2137 = vunpack.c.l.b16 %v1985
  %v2138 = vunpack.c.h.b16 %v1985
  %v2139 = vunpack.c.l.b16 %v1986
  %v2140 = vunpack.c.h.b16 %v1986
  %v2141 = vunpack.c.l.b16 %v1987
  %v2142 = vunpack.c.h.b16 %v1987
  %v2143 = vunpack.c.l.b16 %v1988
  %v2144 = vunpack.c.h.b16 %v1988
  %v2145 = vunpack.c.l.b16 %v1989
  %v2146 = vunpack.c.h.b16 %v1989
  %v2147 = vunpack.c.l.b16 %v1990
  %v2148 = vunpack.c.h.b16 %v1990
  %v2149 = vunpack.c.l.b16 %v1991
  %v2150 = vunpack.c.h.b16 %v1991
  %v2151 = vunpack.c.l.b16 %v1992
  %v2152 = vunpack.c.h.b16 %v1992
  %v2153 = vunpack.c.l.b16 %v1993
  %v2154 = vunpack.c.h.b16 %v1993
  %v2155 = vunpack.c.l.b16 %v1994
  %v2156 = vunpack.c.h.b16 %v1994
  %v2157 = vunpack.c.l.b16 %v1995
  %v2158 = vunpack.c.h.b16 %v1995
  %v2159 = vunpack.c.l.b16 %v1996
  %v2160 = vunpack.c.h.b16 %v1996
  %v2161 = vunpack.c.l.b16 %v1997
  %v2162 = vunpack.c.h.b16 %v1997
  %v2163 = vunpack.c.l.b16 %v1998
  %v2164 = vunpack.c.h.b16 %v1998
  %v2165 = vunpack.c.l.b16 %v1999
  %v2166 = vunpack.c.h.b16 %v1999
  %v2167 = vunpack.c.l.b16 %v2000
  %v2168 = vunpack.c.h.b16 %v2000
  %v2169 = vunpack.c.l.b16 %v2001
  %v2170 = vunpack.c.h.b16 %v2001
  %v2171 = vunpack.c.l.b16 %v2002
  %v2172 = vunpack.c.h.b16 %v2002
  %v2173 = vunpack.c.l.b16 %v2003
  %v2174 = vunpack.c.h.b16 %v2003
  %v2175 = vunpack.c.l.b16 %v2004
  %v2176 = vunpack.c.h.b16 %v2004
  %v2177 = vunpack.c.l.b16 %v2005
  %v2178 = vunpack.c.h.b16 %v2005
  %v2179 = vunpack.c.l.b16 %v2006
  %v2180 = vunpack.c.h.b16 %v2006
  %v2181 = vunpack.c.l.b16 %v2007
  %v2182 = vunpack.c.h.b16 %v2007
  %v2183 = vunpack.c.l.b16 %v2008
  %v2184 = vunpack.c.h.b16 %v2008
  %v2185 = vunpack.c.l.b16 %v2009
  %v2186 = vunpack.c.h.b16 %v2009
  %v2187 = vunpack.c.l.b16 %v2010
  %v2188 = vunpack.c.h.b16 %v2010
  %v2189 = vunpack.c.l.b16 %v2011
  %v2190 = vunpack.c.h.b16 %v2011
  %v2191 = vunpack.c.l.b16 %v2012
  %v2192 = vunpack.c.h.b16 %v2012
  %v2193 = vunpack.c.l.b16 %v2013
  %v2194 = vunpack.c.h.b16 %v2013
  %v2195 = vunpack.c.l.b16 %v2014
  %v2196 = vunpack.c.h.b16 %v2014
  %v2197 = vunpack.c.l.b16 %v2015
  %v2198 = vunpack.c.h.b16 %v2015
  %v2199 = vunpack.c.l.b16 %v2016
  %v2200 = vunpack.c.h.b16 %v2016
  %v2201 = vunpack.c.l.b16 %v2017
  %v2202 = vunpack.c.h.b16 %v2017
  %v2203 = vunpack.c.l.b16 %v2018
  %v2204 = vunpack.c.h.b16 %v2018
  %v2205 = vunpack.c.l.b16 %v2019
  %v2206 = vunpack.c.h.b16 %v2019
  %v2207 = vunpack.c.l.b16 %v2020
  %v2208 = vunpack.c.h.b16 %v2020
  %v2209 = vunpack.c.l.b16 %v2021
  %v2210 = vunpack.c.h.b16 %v2021
  %v2211 = vunpack.c.l.b16 %v2022
  %v2212 = vunpack.c.h.b16 %v2022
  %v2213 = vunpack.c.l.b16 %v2023
  %v2214 = vunpack.c.h.b16 %v2023
  %v2215 = vunpack.c.l.b16 %v2024
  %v2216 = vunpack.c.h.b16 %v2024
  %v2217 = vunpack.c.l.b16 %v2025
  %v2218 = vunpack.c.h.b16 %v2025
  %v2219 = vunpack.c.l.b16 %v2026
  %v2220 = vunpack.c.h.b16 %v2026
  %v2221 = vunpack.c.l.b16 %v2027
  %v2222 = vunpack.c.h.b16 %v2027
  %v2223 = vunpack.c.l.b16 %v2028
  %v2224 = vunpack.c.h.b16 %v2028
  %v2225 = vunpack.c.l.b16 %v2029
  %v2226 = vunpack.c.h.b16 %v2029
  %v2227 = vunpack.c.l.b16 %v2030
  %v2228 = vunpack.c.h.b16 %v2030
  %v2229 = vunpack.c.l.b16 %v2031
  %v2230 = vunpack.c.h.b16 %v2031
  %v2231 = vunpack.c.l.b16 %v2032
  %v2232 = vunpack.c.h.b16 %v2032
  %v2233 = vunpack.c.l.b16 %v2033
  %v2234 = vunpack.c.h.b16 %v2033
  %v2235 = vunpack.c.l.b16 %v2034
  %v2236 = vunpack.c.h.b16 %v2034
  %v2237 = vunpack.c.l.b16 %v2035
  %v2238 = vunpack.c.h.b16 %v2035
  %v2239 = vunpack.c.l.b16 %v2036
  %v2240 = vunpack.c.h.b16 %v2036
  %v2241 = vunpack.c.l.b16 %v2037
  %v2242 = vunpack.c.h.b16 %v2037
  %v2243 = vunpack.c.l.b16 %v2038
  %v2244 = vunpack.c.h.b16 %v2038
  %v2245 = vunpack.c.l.b16 %v2039
  %v2246 = vunpack.c.h.b16 %v2039
  %v2247 = vunpack.c.l.b16 %v2040
  %v2248 = vunpack.c.h.b16 %v2040
  %v2249 = vunpack.c.l.b16 %v2041
  %v2250 = vunpack.c.h.b16 %v2041
  %v2251 = vunpack.c.l.b16 %v2042
  %v2252 = vunpack.c.h.b16 %v2042
  %v2253 = vunpack.c.l.b16 %v2043
  %v2254 = vunpack.c.h.b16 %v2043
  %v2255 = vunpack.c.l.b16 %v2044
  %v2256 = vunpack.c.h.b16 %v2044
  %v2257 = vunpack.c.l.b16 %v2045
  %v2258 = vunpack.c.h.b16 %v2045
  %v2259 = vunpack.c.l.b16 %v2046
  %v2260 = vunpack.c.h.b16 %v2046
  %v2261 = vpack.c.b16 %v2137, %v2133
  %v2262 = vpack.c.b16 %v2138, %v2134
  %v2263 = vpack.c.b16 %v2139, %v2135
  %v2264 = vpack.c.b16 %v2140, %v2136
  %v2265 = vpack.c.b16 %v2145, %v2141
  %v2266 = vpack.c.b16 %v2146, %v2142
  %v2267 = vpack.c.b16 %v2147, %v2143
  %v2268 = vpack.c.b16 %v2148, %v2144
  %v2269 = vpack.c.b16 %v2153, %v2149
  %v2270 = vpack.c.b16 %v2154, %v2150
  %v2271 = vpack.c.b16 %v2155, %v2151
  %v2272 = vpack.c.b16 %v2156, %v2152
  %v2273 = vpack.c.b16 %v2161, %v2157
  %v2274 = vpack.c.b16 %v2162, %v2158
  %v2275 = vpack.c.b16 %v2163, %v2159
  %v2276 = vpack.c.b16 %v2164, %v2160
  %v2277 = vpack.c.b16 %v2169, %v2165
  %v2278 = vpack.c.b16 %v2170, %v2166
  %v2279 = vpack.c.b16 %v2171, %v2167
  %v2280 = vpack.c.b16 %v2172, %v2168
  %v2281 = vpack.c.b16 %v2177, %v2173
  %v2282 = vpack.c.b16 %v2178, %v2174
  %v2283 = vpack.c.b16 %v2179, %v2175
  %v2284 = vpack.c.b16 %v2180, %v2176
  %v2285 = vpack.c.b16 %v2185, %v2181
  %v2286 = vpack.c.b16 %v2186, %v2182
  %v2287 = vpack.c.b16 %v2187, %v2183
  %v2288 = vpack.c.b16 %v2188, %v2184
  %v2289 = vpack.c.b16 %v2193, %v2189
  %v2290 = vpack.c.b16 %v2194, %v2190
  %v2291 = vpack.c.b16 %v2195, %v2191
  %v2292 = vpack.c.b16 %v2196, %v2192
  %v2293 = vpack.c.b16 %v2201, %v2197
  %v2294 = vpack.c.b16 %v2202, %v2198
  %v2295 = vpack.c.b16 %v2203, %v2199
  %v2296 = vpack.c.b16 %v2204, %v2200
  %v2297 = vpack.c.b16 %v2209, %v2205
  %v2298 = vpack.c.b16 %v2210, %v2206
  %v2299 = vpack.c.b16 %v2211, %v2207
  %v2300 = vpack.c.b16 %v2212, %v2208
  %v2301 = vpack.c.b16 %v2217, %v2213
  %v2302 = vpack.c.b16 %v2218, %v2214
  %v2303 = vpack.c.b16 %v2219, %v2215
  %v2304 = vpack.c.b16 %v2220, %v2216
  %v2305 = vpack.c.b16 %v2225, %v2221
  %v2306 = vpack.c.b16 %v2226, %v2222
  %v2307 = vpack.c.b16 %v2227, %v2223
  %v2308 = vpack.c.b16 %v2228, %v2224
  %v2309 = vpack.c.b16 %v2233, %v2229
  %v2310 = vpack.c.b16 %v2234, %v2230
  %v2311 = vpack.c.b16 %v2235, %v2231
  %v2312 = vpack.c.b16 %v2236, %v2232
  %v2313 = vpack.c.b16 %v2241, %v2237
  %v2314 = vpack.c.b16 %v2242, %v2238
  %v2315 = vpack.c.b16 %v2243, %v2239
  %v2316 = vpack.c.b16 %v2244, %v2240
  %v2317 = vpack.c.b16 %v2249, %v2245
  %v2318 = vpack.c.b16 %v2250, %v2246
  %v2319 = vpack.c.b16 %v2251, %v2247
  %v2320 = vpack.c.b16 %v2252, %v2248
  %v2321 = vpack.c.b16 %v2257, %v2253
  %v2322 = vpack.c.b16 %v2258, %v2254
  %v2323 = vpack.c.b16 %v2259, %v2255
  %v2324 = vpack.c.b16 %v2260, %v2256
  %2389 = vmatprep.subr.bf16.mxu0 %v2290
  %2390 = vmatpush1.bf16.msra.mxu0 %v2289
  %2391 = vmatprep.subr.bf16.mxu0 %v2286
  %2392 = vmatpush1.bf16.msra.mxu0 %v2285
  %2393 = vmatprep.subr.bf16.mxu0 %v2282
  %2394 = vmatpush1.bf16.msra.mxu0 %v2281
  %2395 = vmatprep.subr.bf16.mxu0 %v2278
  %2396 = vmatpush1.bf16.msra.mxu0 %v2277
  %2397 = vmatprep.subr.bf16.mxu0 %v2274
  %2398 = vmatpush1.bf16.msra.mxu0 %v2273
  %2399 = vmatprep.subr.bf16.mxu0 %v2270
  %2400 = vmatpush1.bf16.msra.mxu0 %v2269
  %2401 = vmatprep.subr.bf16.mxu0 %v2266
  %2402 = vmatpush1.bf16.msra.mxu0 %v2265
  %2403 = vmatprep.subr.bf16.mxu0 %v2262
  %2404 = vmatpush1.bf16.msra.mxu0 %v2261
  %2405 = vmatprep.subr.bf16.mxu0 %v2322
  %2406 = vmatpush2.bf16.msra.mxu0 %v2321
  %2407 = vmatprep.subr.bf16.mxu0 %v2318
  %2408 = vmatpush2.bf16.msra.mxu0 %v2317
  %2409 = vmatprep.subr.bf16.mxu0 %v2314
  %2410 = vmatpush2.bf16.msra.mxu0 %v2313
  %2411 = vmatprep.subr.bf16.mxu0 %v2310
  %2412 = vmatpush2.bf16.msra.mxu0 %v2309
  %2413 = vmatprep.subr.bf16.mxu0 %v2306
  %2414 = vmatpush2.bf16.msra.mxu0 %v2305
  %2415 = vmatprep.subr.bf16.mxu0 %v2302
  %2416 = vmatpush2.bf16.msra.mxu0 %v2301
  %2417 = vmatprep.subr.bf16.mxu0 %v2298
  %2418 = vmatpush2.bf16.msra.mxu0 %v2297
  %2419 = vmatprep.subr.bf16.mxu0 %v2294
  %2420 = vmatpush2.bf16.msra.mxu0 %v2293
  %2421 = vmatprep.mubr.bf16.mxu0 %v1982
  %2422 = vmatmul.mubr.bf16.gmra.mxu0 %v1981
  %v2423 = vpop.f32.mrf.mxu0
  %v2424 = vadd.f32 %v2052, %v2423
  %v2425 = vpop.f32.mrf.mxu0
  %v2426 = vadd.f32 %v2056, %v2425
  %v2427 = vpop.f32.mrf.mxu0
  %v2428 = vpop.f32.mrf.mxu0
  %2429 = vdwg.mxu0
  %2430 = vmatprep.subr.bf16.mxu0 %v2292
  %2431 = vmatpush1.bf16.msra.mxu0 %v2291
  %2432 = vmatprep.subr.bf16.mxu0 %v2288
  %2433 = vmatpush1.bf16.msra.mxu0 %v2287
  %2434 = vmatprep.subr.bf16.mxu0 %v2284
  %2435 = vmatpush1.bf16.msra.mxu0 %v2283
  %2436 = vmatprep.subr.bf16.mxu0 %v2280
  %2437 = vmatpush1.bf16.msra.mxu0 %v2279
  %2438 = vmatprep.subr.bf16.mxu0 %v2276
  %2439 = vmatpush1.bf16.msra.mxu0 %v2275
  %2440 = vmatprep.subr.bf16.mxu0 %v2272
  %2441 = vmatpush1.bf16.msra.mxu0 %v2271
  %2442 = vmatprep.subr.bf16.mxu0 %v2268
  %2443 = vmatpush1.bf16.msra.mxu0 %v2267
  %2444 = vmatprep.subr.bf16.mxu0 %v2264
  %2445 = vmatpush1.bf16.msra.mxu0 %v2263
  %2446 = vmatprep.subr.bf16.mxu0 %v2324
  %2447 = vmatpush2.bf16.msra.mxu0 %v2323
  %2448 = vmatprep.subr.bf16.mxu0 %v2320
  %2449 = vmatpush2.bf16.msra.mxu0 %v2319
  %2450 = vmatprep.subr.bf16.mxu0 %v2316
  %2451 = vmatpush2.bf16.msra.mxu0 %v2315
  %2452 = vmatprep.subr.bf16.mxu0 %v2312
  %2453 = vmatpush2.bf16.msra.mxu0 %v2311
  %2454 = vmatprep.subr.bf16.mxu0 %v2308
  %2455 = vmatpush2.bf16.msra.mxu0 %v2307
  %2456 = vmatprep.subr.bf16.mxu0 %v2304
  %2457 = vmatpush2.bf16.msra.mxu0 %v2303
  %2458 = vmatprep.subr.bf16.mxu0 %v2300
  %2459 = vmatpush2.bf16.msra.mxu0 %v2299
  %2460 = vmatprep.subr.bf16.mxu0 %v2296
  %2461 = vmatpush2.bf16.msra.mxu0 %v2295
  %2462 = vmatprep.mubr.bf16.mxu0 %v1982
  %2463 = vmatmul.mubr.bf16.gmra.mxu0 %v1981
  %v2464 = vpop.f32.mrf.mxu0
  %v2465 = vadd.f32 %v2060, %v2464
  %v2466 = vpop.f32.mrf.mxu0
  %v2467 = vadd.f32 %v2064, %v2466
  %v2468 = vpop.f32.mrf.mxu0
  %v2469 = vpop.f32.mrf.mxu0
  %2470 = vdwg.mxu0
  %v2471 = vxor.u32 %v2424, 2147483648
  %v2472 = vxor.u32 %v2426, 2147483648
  %v2473 = vxor.u32 %v2465, 2147483648
  %v2474 = vxor.u32 %v2467, 2147483648
  %v2475 = vmul.f32 %v2471, 1.442695
  %v2476 = vpow.pop %v2475
  %v2477 = vmul.f32 %v2472, 1.442695
  %v2478 = vpow.pop %v2477
  %v2479 = vmul.f32 %v2473, 1.442695
  %v2480 = vpow.pop %v2479
  %v2481 = vmul.f32 %v2474, 1.442695
  %v2482 = vpow.pop %v2481
  %v2483 = vadd.f32 %v2476, 1.0
  %v2484 = vadd.f32 %v2478, 1.0
  %v2485 = vadd.f32 %v2480, 1.0
  %v2486 = vadd.f32 %v2482, 1.0
  %v2487 = vrcp.pop %v2483
  %v2488 = vmul.f32 1.0, %v2487
  %v2489 = vrcp.pop %v2484
  %v2490 = vmul.f32 1.0, %v2489
  %v2491 = vrcp.pop %v2485
  %v2492 = vmul.f32 1.0, %v2491
  %v2493 = vrcp.pop %v2486
  %v2494 = vmul.f32 1.0, %v2493
  %v2495 = vmul.f32 %v2424, %v2488
  %v2496 = vmul.f32 %v2426, %v2490
  %v2497 = vmul.f32 %v2465, %v2492
  %v2498 = vmul.f32 %v2467, %v2494
  %v2499 = vpack.c.bf16 %v2495, %v2495
  %v2500 = vpack.c.bf16 %v2496, %v2496
  %v2501 = vpack.c.bf16 %v2497, %v2497
  %v2502 = vpack.c.bf16 %v2498, %v2498
  %v2503 = vld [vmem:[%s5] sm:$0xf]
  %v2504 = vld [vmem:[%s5 + $0x4] sm:$0xf]
  %v2505 = vld [vmem:[%s5 + $0x8] sm:$0xf]
  %v2506 = vld [vmem:[%s5 + $0xc] sm:$0xf]
  %v2507 = vld [vmem:[%s5 + $0x10] sm:$0xf]
  %v2508 = vld [vmem:[%s5 + $0x14] sm:$0xf]
  %v2509 = vld [vmem:[%s5 + $0x18] sm:$0xf]
  %v2510 = vld [vmem:[%s5 + $0x1c] sm:$0xf]
  %v2511 = vld [vmem:[%s5 + $0x20] sm:$0xf]
  %v2512 = vld [vmem:[%s5 + $0x24] sm:$0xf]
  %v2513 = vld [vmem:[%s5 + $0x28] sm:$0xf]
  %v2514 = vld [vmem:[%s5 + $0x2c] sm:$0xf]
  %v2515 = vld [vmem:[%s5 + $0x30] sm:$0xf]
  %v2516 = vld [vmem:[%s5 + $0x34] sm:$0xf]
  %v2517 = vld [vmem:[%s5 + $0x38] sm:$0xf]
  %v2518 = vld [vmem:[%s5 + $0x3c] sm:$0xf]
  %v2519 = vld [vmem:[%s5 + $0x40] sm:$0xf]
  %v2520 = vld [vmem:[%s5 + $0x44] sm:$0xf]
  %v2521 = vld [vmem:[%s5 + $0x48] sm:$0xf]
  %v2522 = vld [vmem:[%s5 + $0x4c] sm:$0xf]
  %v2523 = vld [vmem:[%s5 + $0x50] sm:$0xf]
  %v2524 = vld [vmem:[%s5 + $0x54] sm:$0xf]
  %v2525 = vld [vmem:[%s5 + $0x58] sm:$0xf]
  %v2526 = vld [vmem:[%s5 + $0x5c] sm:$0xf]
  %v2527 = vld [vmem:[%s5 + $0x60] sm:$0xf]
  %v2528 = vld [vmem:[%s5 + $0x64] sm:$0xf]
  %v2529 = vld [vmem:[%s5 + $0x68] sm:$0xf]
  %v2530 = vld [vmem:[%s5 + $0x6c] sm:$0xf]
  %v2531 = vld [vmem:[%s5 + $0x70] sm:$0xf]
  %v2532 = vld [vmem:[%s5 + $0x74] sm:$0xf]
  %v2533 = vld [vmem:[%s5 + $0x78] sm:$0xf]
  %v2534 = vld [vmem:[%s5 + $0x7c] sm:$0xf]
  %v2535 = vld [vmem:[%s5 + $0x80] sm:$0xf]
  %v2536 = vld [vmem:[%s5 + $0x84] sm:$0xf]
  %v2537 = vld [vmem:[%s5 + $0x88] sm:$0xf]
  %v2538 = vld [vmem:[%s5 + $0x8c] sm:$0xf]
  %v2539 = vld [vmem:[%s5 + $0x90] sm:$0xf]
  %v2540 = vld [vmem:[%s5 + $0x94] sm:$0xf]
  %v2541 = vld [vmem:[%s5 + $0x98] sm:$0xf]
  %v2542 = vld [vmem:[%s5 + $0x9c] sm:$0xf]
  %v2543 = vld [vmem:[%s5 + $0xa0] sm:$0xf]
  %v2544 = vld [vmem:[%s5 + $0xa4] sm:$0xf]
  %v2545 = vld [vmem:[%s5 + $0xa8] sm:$0xf]
  %v2546 = vld [vmem:[%s5 + $0xac] sm:$0xf]
  %v2547 = vld [vmem:[%s5 + $0xb0] sm:$0xf]
  %v2548 = vld [vmem:[%s5 + $0xb4] sm:$0xf]
  %v2549 = vld [vmem:[%s5 + $0xb8] sm:$0xf]
  %v2550 = vld [vmem:[%s5 + $0xbc] sm:$0xf]
  %v2551 = vld [vmem:[%s5 + $0xc0] sm:$0xf]
  %v2552 = vld [vmem:[%s5 + $0xc4] sm:$0xf]
  %v2553 = vld [vmem:[%s5 + $0xc8] sm:$0xf]
  %v2554 = vld [vmem:[%s5 + $0xcc] sm:$0xf]
  %v2555 = vld [vmem:[%s5 + $0xd0] sm:$0xf]
  %v2556 = vld [vmem:[%s5 + $0xd4] sm:$0xf]
  %v2557 = vld [vmem:[%s5 + $0xd8] sm:$0xf]
  %v2558 = vld [vmem:[%s5 + $0xdc] sm:$0xf]
  %v2559 = vld [vmem:[%s5 + $0xe0] sm:$0xf]
  %v2560 = vld [vmem:[%s5 + $0xe4] sm:$0xf]
  %v2561 = vld [vmem:[%s5 + $0xe8] sm:$0xf]
  %v2562 = vld [vmem:[%s5 + $0xec] sm:$0xf]
  %v2563 = vld [vmem:[%s5 + $0xf0] sm:$0xf]
  %v2564 = vld [vmem:[%s5 + $0xf4] sm:$0xf]
  %v2565 = vld [vmem:[%s5 + $0xf8] sm:$0xf]
  %v2566 = vld [vmem:[%s5 + $0xfc] sm:$0xf]
  %v2567 = vld [vmem:[%s6] sm:$0x1]
  %v2569 = vlaneseq
  %v2570 = vshrl.u32 %v2569, 7
  %v2571 = vsub.s32 0, %v2570
  %v2572 = vrot.slane %v2567, %v2571
  %v2638 = vunpack.c.l.b16 %v2503
  %v2639 = vunpack.c.l.b16 %v2504
  %v2640 = vunpack.c.l.b16 %v2505
  %v2641 = vunpack.c.l.b16 %v2506
  %v2642 = vunpack.c.l.b16 %v2507
  %v2643 = vunpack.c.l.b16 %v2508
  %v2644 = vunpack.c.l.b16 %v2509
  %v2645 = vunpack.c.l.b16 %v2510
  %v2646 = vunpack.c.l.b16 %v2511
  %v2647 = vunpack.c.l.b16 %v2512
  %v2648 = vunpack.c.l.b16 %v2513
  %v2649 = vunpack.c.l.b16 %v2514
  %v2650 = vunpack.c.l.b16 %v2515
  %v2651 = vunpack.c.l.b16 %v2516
  %v2652 = vunpack.c.l.b16 %v2517
  %v2653 = vunpack.c.l.b16 %v2518
  %v2654 = vunpack.c.l.b16 %v2519
  %v2655 = vunpack.c.l.b16 %v2520
  %v2656 = vunpack.c.l.b16 %v2521
  %v2657 = vunpack.c.l.b16 %v2522
  %v2658 = vunpack.c.l.b16 %v2523
  %v2659 = vunpack.c.l.b16 %v2524
  %v2660 = vunpack.c.l.b16 %v2525
  %v2661 = vunpack.c.l.b16 %v2526
  %v2662 = vunpack.c.l.b16 %v2527
  %v2663 = vunpack.c.l.b16 %v2528
  %v2664 = vunpack.c.l.b16 %v2529
  %v2665 = vunpack.c.l.b16 %v2530
  %v2666 = vunpack.c.l.b16 %v2531
  %v2667 = vunpack.c.l.b16 %v2532
  %v2668 = vunpack.c.l.b16 %v2533
  %v2669 = vunpack.c.l.b16 %v2534
  %v2670 = vunpack.c.l.b16 %v2535
  %v2671 = vunpack.c.l.b16 %v2536
  %v2672 = vunpack.c.l.b16 %v2537
  %v2673 = vunpack.c.l.b16 %v2538
  %v2674 = vunpack.c.l.b16 %v2539
  %v2675 = vunpack.c.l.b16 %v2540
  %v2676 = vunpack.c.l.b16 %v2541
  %v2677 = vunpack.c.l.b16 %v2542
  %v2678 = vunpack.c.l.b16 %v2543
  %v2679 = vunpack.c.l.b16 %v2544
  %v2680 = vunpack.c.l.b16 %v2545
  %v2681 = vunpack.c.l.b16 %v2546
  %v2682 = vunpack.c.l.b16 %v2547
  %v2683 = vunpack.c.l.b16 %v2548
  %v2684 = vunpack.c.l.b16 %v2549
  %v2685 = vunpack.c.l.b16 %v2550
  %v2686 = vunpack.c.l.b16 %v2551
  %v2687 = vunpack.c.l.b16 %v2552
  %v2688 = vunpack.c.l.b16 %v2553
  %v2689 = vunpack.c.l.b16 %v2554
  %v2690 = vunpack.c.l.b16 %v2555
  %v2691 = vunpack.c.l.b16 %v2556
  %v2692 = vunpack.c.l.b16 %v2557
  %v2693 = vunpack.c.l.b16 %v2558
  %v2694 = vunpack.c.l.b16 %v2559
  %v2695 = vunpack.c.l.b16 %v2560
  %v2696 = vunpack.c.l.b16 %v2561
  %v2697 = vunpack.c.l.b16 %v2562
  %v2698 = vunpack.c.l.b16 %v2563
  %v2699 = vunpack.c.l.b16 %v2564
  %v2700 = vunpack.c.l.b16 %v2565
  %v2701 = vunpack.c.l.b16 %v2566
  %v2702 = vpack.c.b16 %v2639, %v2638
  %v2703 = vpack.c.b16 %v2641, %v2640
  %v2704 = vpack.c.b16 %v2643, %v2642
  %v2705 = vpack.c.b16 %v2645, %v2644
  %v2706 = vpack.c.b16 %v2647, %v2646
  %v2707 = vpack.c.b16 %v2649, %v2648
  %v2708 = vpack.c.b16 %v2651, %v2650
  %v2709 = vpack.c.b16 %v2653, %v2652
  %v2710 = vpack.c.b16 %v2655, %v2654
  %v2711 = vpack.c.b16 %v2657, %v2656
  %v2712 = vpack.c.b16 %v2659, %v2658
  %v2713 = vpack.c.b16 %v2661, %v2660
  %v2714 = vpack.c.b16 %v2663, %v2662
  %v2715 = vpack.c.b16 %v2665, %v2664
  %v2716 = vpack.c.b16 %v2667, %v2666
  %v2717 = vpack.c.b16 %v2669, %v2668
  %v2718 = vpack.c.b16 %v2671, %v2670
  %v2719 = vpack.c.b16 %v2673, %v2672
  %v2720 = vpack.c.b16 %v2675, %v2674
  %v2721 = vpack.c.b16 %v2677, %v2676
  %v2722 = vpack.c.b16 %v2679, %v2678
  %v2723 = vpack.c.b16 %v2681, %v2680
  %v2724 = vpack.c.b16 %v2683, %v2682
  %v2725 = vpack.c.b16 %v2685, %v2684
  %v2726 = vpack.c.b16 %v2687, %v2686
  %v2727 = vpack.c.b16 %v2689, %v2688
  %v2728 = vpack.c.b16 %v2691, %v2690
  %v2729 = vpack.c.b16 %v2693, %v2692
  %v2730 = vpack.c.b16 %v2695, %v2694
  %v2731 = vpack.c.b16 %v2697, %v2696
  %v2732 = vpack.c.b16 %v2699, %v2698
  %v2733 = vpack.c.b16 %v2701, %v2700
  %2766 = vmatprep.subr.bf16.mxu0 0
  %2767 = vmatpush1.bf16.msra.mxu0 %v2709
  %2768 = vmatprep.subr.bf16.mxu0 0
  %2769 = vmatpush1.bf16.msra.mxu0 %v2708
  %2770 = vmatprep.subr.bf16.mxu0 0
  %2771 = vmatpush1.bf16.msra.mxu0 %v2707
  %2772 = vmatprep.subr.bf16.mxu0 0
  %2773 = vmatpush1.bf16.msra.mxu0 %v2706
  %2774 = vmatprep.subr.bf16.mxu0 0
  %2775 = vmatpush1.bf16.msra.mxu0 %v2705
  %2776 = vmatprep.subr.bf16.mxu0 0
  %2777 = vmatpush1.bf16.msra.mxu0 %v2704
  %2778 = vmatprep.subr.bf16.mxu0 0
  %2779 = vmatpush1.bf16.msra.mxu0 %v2703
  %2780 = vmatprep.subr.bf16.mxu0 0
  %2781 = vmatpush1.bf16.msra.mxu0 %v2702
  %2782 = vmatprep.subr.bf16.mxu0 0
  %2783 = vmatpush2.bf16.msra.mxu0 %v2717
  %2784 = vmatprep.subr.bf16.mxu0 0
  %2785 = vmatpush2.bf16.msra.mxu0 %v2716
  %2786 = vmatprep.subr.bf16.mxu0 0
  %2787 = vmatpush2.bf16.msra.mxu0 %v2715
  %2788 = vmatprep.subr.bf16.mxu0 0
  %2789 = vmatpush2.bf16.msra.mxu0 %v2714
  %2790 = vmatprep.subr.bf16.mxu0 0
  %2791 = vmatpush2.bf16.msra.mxu0 %v2713
  %2792 = vmatprep.subr.bf16.mxu0 0
  %2793 = vmatpush2.bf16.msra.mxu0 %v2712
  %2794 = vmatprep.subr.bf16.mxu0 0
  %2795 = vmatpush2.bf16.msra.mxu0 %v2711
  %2796 = vmatprep.subr.bf16.mxu0 0
  %2797 = vmatpush2.bf16.msra.mxu0 %v2710
  %2798 = vmatprep.mubr.bf16.mxu0 %v2500
  %2799 = vmatmul.mubr.bf16.gmra.mxu0 %v2499
  %v2800 = vpop.f32.mrf.mxu0
  %v2801 = vadd.f32 %v2572, %v2800
  %v2802 = vpop.f32.mrf.mxu0
  %v2803 = vpop.f32.mrf.mxu0
  %v2804 = vpop.f32.mrf.mxu0
  %2805 = vdwg.mxu0
  %2806 = vmatprep.subr.bf16.mxu0 0
  %2807 = vmatpush1.bf16.msra.mxu0 %v2725
  %2808 = vmatprep.subr.bf16.mxu0 0
  %2809 = vmatpush1.bf16.msra.mxu0 %v2724
  %2810 = vmatprep.subr.bf16.mxu0 0
  %2811 = vmatpush1.bf16.msra.mxu0 %v2723
  %2812 = vmatprep.subr.bf16.mxu0 0
  %2813 = vmatpush1.bf16.msra.mxu0 %v2722
  %2814 = vmatprep.subr.bf16.mxu0 0
  %2815 = vmatpush1.bf16.msra.mxu0 %v2721
  %2816 = vmatprep.subr.bf16.mxu0 0
  %2817 = vmatpush1.bf16.msra.mxu0 %v2720
  %2818 = vmatprep.subr.bf16.mxu0 0
  %2819 = vmatpush1.bf16.msra.mxu0 %v2719
  %2820 = vmatprep.subr.bf16.mxu0 0
  %2821 = vmatpush1.bf16.msra.mxu0 %v2718
  %2822 = vmatprep.subr.bf16.mxu0 0
  %2823 = vmatpush2.bf16.msra.mxu0 %v2733
  %2824 = vmatprep.subr.bf16.mxu0 0
  %2825 = vmatpush2.bf16.msra.mxu0 %v2732
  %2826 = vmatprep.subr.bf16.mxu0 0
  %2827 = vmatpush2.bf16.msra.mxu0 %v2731
  %2828 = vmatprep.subr.bf16.mxu0 0
  %2829 = vmatpush2.bf16.msra.mxu0 %v2730
  %2830 = vmatprep.subr.bf16.mxu0 0
  %2831 = vmatpush2.bf16.msra.mxu0 %v2729
  %2832 = vmatprep.subr.bf16.mxu0 0
  %2833 = vmatpush2.bf16.msra.mxu0 %v2728
  %2834 = vmatprep.subr.bf16.mxu0 0
  %2835 = vmatpush2.bf16.msra.mxu0 %v2727
  %2836 = vmatprep.subr.bf16.mxu0 0
  %2837 = vmatpush2.bf16.msra.mxu0 %v2726
  %2838 = vmatprep.mubr.bf16.mxu0 %v2502
  %2839 = vmatmul.mubr.bf16.gmra.mxu0 %v2501
  %v2840 = vpop.f32.mrf.mxu0
  %v2841 = vadd.f32 %v2801, %v2840
  %v2842 = vpop.f32.mrf.mxu0
  %v2843 = vpop.f32.mrf.mxu0
  %v2844 = vpop.f32.mrf.mxu0
  %2845 = vdwg.mxu0
  %2846 = vst [vmem:[%s7] sm:$0xff] %v2841
  // Predicated region
  $region30: #{image_encoder_forward.7} parent=0 // pred_check
    _
  $region31: #{image_encoder_forward.7} parent=0 // pred_check_branch
    %2848 = sbr.rel (0) target = $region33
  $region32: #{image_encoder_forward.7} parent=0 // pred_region
    _
  $region33: #{image_encoder_forward.7} parent=0 // pred_fallthru
    _
  // Predicated region
  $region34: #{image_encoder_forward.7} parent=0 // pred_check
    _
  $region35: #{image_encoder_forward.7} parent=0 // pred_check_branch
    %2850 = sbr.rel (0) target = $region37
  $region36: #{image_encoder_forward.7} parent=0 // pred_region
    _
  $region37: #{image_encoder_forward.7} parent=0 // pred_fallthru
    _

</llo_original>
